<compile_context>
chip_gen: v5e
topology: v5e:2x2
jax: 0.10.0
libtpu: 0.0.40
codegen_flags: <defaults>
</compile_context>

<pallas_src>
import functools

import jax
import jax.numpy as jnp
import numpy as np
from jax.experimental import pallas as pl
from jax.experimental.pallas import tpu as pltpu

_LANE = 128


def _round_up(x, m):
    return ((x + m - 1) // m) * m


def _vmem_caps():
    """(pipeline working-set budget, vmem_limit_bytes) -- generation aware."""
    try:
        cap = int(pltpu.get_tpu_info().vmem_capacity_bytes)
    except Exception:  # interpreter / older jax: assume v7x-sized (64 MiB) VMEM
        cap = 64 * 1024 * 1024
    return int(cap * 0.70), int(cap * 0.85)


# ----------------------------------------------------------------------------
# Kernel 1: fused (M, K) @ (K, Cp) matmul + bias (+ ReLU), bf16 in/out.
# Used for the 1x1 shortcut conv and for 3x3 stride!=1 convs.
# ----------------------------------------------------------------------------
def _make_matmul_kernel(apply_relu):
    def kernel(p_ref, w_ref, b_ref, o_ref):
        acc = jnp.dot(p_ref[...], w_ref[...], preferred_element_type=jnp.float32)
        out = acc + b_ref[...]
        if apply_relu:
            out = jnp.maximum(out, 0.0)
        o_ref[...] = out.astype(o_ref.dtype)
    return kernel


def _matmul_bias_act(patches, w_mat, bias2, *, relu):
    """patches (M,K) bf16, w_mat (K,Cp) bf16, bias2 (1,Cp) f32 -> (M,Cp) bf16.
    Cp is a multiple of 128 so output stores are lane-dense."""
    m, kc = patches.shape
    cp = w_mat.shape[1]
    budget, vmem_limit = _vmem_caps()

    tn = 256 if cp % 256 == 0 else 128
    nj = cp // tn

    def est(tm):
        per = (tm * kc * 2 + kc * tn * 2 + tn * 4      # bf16 LHS/RHS, f32 bias
               + tm * tn * 2 + tm * tn * 4)            # bf16 out + f32 dot temp
        return 2 * per                                  # double-buffered pipeline

    m8 = _round_up(m, 8)
    tm = 8                                              # budget-safe fallback
    for cand in (1024, 512, 256, 128, 64, 32, 16, 8):
        if cand > m8:
            continue                                    # don't pad M past one tile
        if nj == 1 and cand > 8 and cand * 2 > m8:
            continue                                    # keep >=2 grid points (v7x)
        if est(cand) > budget:
            continue
        tm = cand
        break

    m_pad = _round_up(m, tm)
    if m_pad != m:
        patches = jnp.pad(patches, ((0, m_pad - m), (0, 0)))
    grid = (m_pad // tm, nj)

    flops = 2 * m_pad * kc * cp
    bytes_accessed = (m_pad * kc * 2 + grid[0] * kc * cp * 2
                      + cp * 4 + m_pad * cp * 2)

    out = pl.pallas_call(
        _make_matmul_kernel(relu),
        out_shape=jax.ShapeDtypeStruct((m_pad, cp), jnp.bfloat16),
        grid_spec=pltpu.PrefetchScalarGridSpec(
            num_scalar_prefetch=0,
            grid=grid,
            in_specs=[
                pl.BlockSpec((tm, kc), lambda i, j: (i, 0)),   # LHS reused over j
                pl.BlockSpec((kc, tn), lambda i, j: (0, j)),   # BN-folded weights
                pl.BlockSpec((1, tn), lambda i, j: (0, j)),    # bias row
            ],
            out_specs=pl.BlockSpec((tm, tn), lambda i, j: (i, j)),
        ),
        compiler_params=pltpu.CompilerParams(
            dimension_semantics=("parallel", "parallel"),
            vmem_limit_bytes=vmem_limit),
        cost_estimate=pl.CostEstimate(flops=flops, transcendentals=0,
                                      bytes_accessed=bytes_accessed),
    )(patches, w_mat, bias2)
    return out[:m] if m_pad != m else out


# ----------------------------------------------------------------------------
# Kernel 2: direct 3x3 stride-1 conv + folded BN (+ residual) (+ ReLU).
# One zero-padded NHWC image chunk per grid step; nine in-VMEM tap matmuls
# accumulated in f32 -- no im2col buffer ever touches HBM.
# ----------------------------------------------------------------------------
def _make_conv3x3_kernel(relu, has_res, nb, ho, wo, cin):
    mt = nb * ho * wo

    def body(x_ref, w_ref, b_ref, r_ref, o_ref):
        tn = o_ref.shape[-1]
        acc = jnp.zeros((mt, tn), jnp.float32)
        for kh in range(3):
            for kw in range(3):
                # Static sub-window of the padded image held in VMEM; the
                # reshape is layout-free when Wo % 8 == 0 (test shapes are).
                tap = x_ref[:, kh:kh + ho, kw:kw + wo, :].reshape(mt, cin)
                acc = acc + jnp.dot(tap, w_ref[kh, kw],
                                    preferred_element_type=jnp.float32)
        out = (acc + b_ref[...]).reshape(nb, ho, wo, tn)
        if has_res:
            out = out + r_ref[...].astype(jnp.float32)   # f32 residual add
        if relu:
            out = jnp.maximum(out, 0.0)
        o_ref[...] = out.astype(o_ref.dtype)

    if has_res:
        def kernel(x_ref, w_ref, b_ref, r_ref, o_ref):
            body(x_ref, w_ref, b_ref, r_ref, o_ref)
    else:
        def kernel(x_ref, w_ref, b_ref, o_ref):
            body(x_ref, w_ref, b_ref, None, o_ref)
    return kernel


def conv3x3_s1_bn_act(x, w_oihw, scale, bias, *, residual=None, relu=False):
    """3x3, stride 1, padding 1 conv + folded BN (+residual) (+ReLU).
    x: NHWC bf16.  Returns NHWC bf16 with the true Cout channel count."""
    n, h, w, cin = x.shape
    cout = w_oihw.shape[0]
    cp = _round_up(cout, _LANE)                         # lane-dense output channels

    # (Cout,Cin,3,3) -> (3,3,Cin,Cp): fold BN scale, zero-pad Cout, cast bf16.
    wt = jnp.transpose(w_oihw, (2, 3, 1, 0)) * scale.reshape(1, 1, 1, cout)
    wt = jnp.pad(wt, ((0, 0),) * 3 + ((0, cp - cout),)).astype(jnp.bfloat16)
    b2 = jnp.pad(bias.reshape(1, cout), ((0, 0), (0, cp - cout))).astype(jnp.float32)

    xp = jnp.pad(x, ((0, 0), (1, 1), (1, 1), (0, 0)))   # spatial zero pad (bf16)
    hp, wp = h + 2, w + 2
    ho, wo = h, w

    has_res = residual is not None
    args = [xp, wt, b2]
    if has_res:
        res = residual.astype(jnp.bfloat16)
        if res.shape[-1] != cp:
            res = jnp.pad(res, ((0, 0),) * 3 + ((0, cp - res.shape[-1]),))
        args.append(res)

    budget, vmem_limit = _vmem_caps()
    tn = 256 if cp % 256 == 0 else 128
    nj = cp // tn

    def est(nb):
        per = (nb * hp * wp * cin * 2 + 9 * cin * tn * 2 + tn * 4
               + nb * ho * wo * tn * 2)
        if has_res:
            per += nb * ho * wo * tn * 2
        # double-buffered pipeline + f32 accumulator / per-tap temporaries
        return 2 * per + nb * ho * wo * (tn + cin) * 4

    nb = 1
    for cand in (8, 4, 2):
        if n % cand == 0 and (n // cand) * nj >= 2 and est(cand) <= budget:
            nb = cand
            break
    # TODO(synk): if one padded image exceeds the VMEM budget (est(1) > budget),
    # tile output rows and halo-DMA the activation (memory_space=pl.ANY +
    # pltpu.make_async_copy) instead of whole-image blocks.

    grid = (n // nb, nj)
    in_specs = [
        pl.BlockSpec((nb, hp, wp, cin), lambda i, j: (i, 0, 0, 0)),   # activation
        pl.BlockSpec((3, 3, cin, tn), lambda i, j: (0, 0, 0, j)),     # weights
        pl.BlockSpec((1, tn), lambda i, j: (0, j)),                   # bias
    ]
    if has_res:
        in_specs.append(pl.BlockSpec((nb, ho, wo, tn), lambda i, j: (i, 0, 0, j)))

    flops = 2 * n * ho * wo * 9 * cin * cp
    bytes_accessed = (n * hp * wp * cin * 2 + grid[0] * 9 * cin * cp * 2
                      + cp * 4 + n * ho * wo * cp * 2 * (2 if has_res else 1))

    out = pl.pallas_call(
        _make_conv3x3_kernel(relu, has_res, nb, ho, wo, cin),
        out_shape=jax.ShapeDtypeStruct((n, ho, wo, cp), jnp.bfloat16),
        grid_spec=pltpu.PrefetchScalarGridSpec(
            num_scalar_prefetch=0,
            grid=grid,
            in_specs=in_specs,
            out_specs=pl.BlockSpec((nb, ho, wo, tn), lambda i, j: (i, 0, 0, j)),
        ),
        compiler_params=pltpu.CompilerParams(
            dimension_semantics=("parallel", "parallel"),
            vmem_limit_bytes=vmem_limit),
        cost_estimate=pl.CostEstimate(flops=flops, transcendentals=0,
                                      bytes_accessed=bytes_accessed),
    )(*args)
    return out[..., :cout] if cp != cout else out


# ----------------------------------------------------------------------------
# Matmul-path convs (1x1 shortcut, 3x3 stride!=1 fallback)
# ----------------------------------------------------------------------------
def _extract_patches(x, ksize, stride, padding):
    """im2col (bf16): (M, ksize*ksize*Cin) rows, column order (kh, kw, cin)."""
    n, h, w, c = x.shape
    xp = jnp.pad(x, ((0, 0), (padding, padding), (padding, padding), (0, 0)))
    ho = (h + 2 * padding - ksize) // stride + 1
    wo = (w + 2 * padding - ksize) // stride + 1
    cols = []
    for kh in range(ksize):
        for kw in range(ksize):
            cols.append(xp[:, kh:kh + stride * ho:stride,
                           kw:kw + stride * wo:stride, :])
    p = jnp.concatenate(cols, axis=-1) if len(cols) > 1 else cols[0]
    return p.reshape(n * ho * wo, ksize * ksize * c), (n, ho, wo)


def conv_bn_act_matmul(x, w_oihw, scale, bias, *, stride, padding, ksize, relu):
    """Conv as one (M, K) @ (K, Cp) fused matmul.  x: NHWC bf16 -> NHWC bf16."""
    n, h, w, cin = x.shape
    cout = w_oihw.shape[0]
    cp = _round_up(cout, _LANE)

    if ksize == 1:
        xs = x[:, ::stride, ::stride, :]               # no inflation for 1x1
        _, ho, wo, _ = xs.shape
        patches = xs.reshape(n * ho * wo, cin)
    else:
        # TODO(synk): stride!=1 3x3 convs still materialize a 9x im2col buffer
        # (minority of ResNet layers, 4x fewer output rows); replace with a
        # strided halo DMA over NHWC if these layers ever dominate.
        patches, (_, ho, wo) = _extract_patches(x, ksize, stride, padding)
    kc = patches.shape[1]

    w_mat = jnp.transpose(w_oihw, (2, 3, 1, 0)).reshape(kc, cout)
    w_mat = jnp.pad(w_mat * scale.reshape(1, cout),
                    ((0, 0), (0, cp - cout))).astype(jnp.bfloat16)
    b2 = jnp.pad(bias.reshape(1, cout), ((0, 0), (0, cp - cout))).astype(jnp.float32)

    out2d = _matmul_bias_act(patches, w_mat, b2, relu=relu)
    out = out2d.reshape(n, ho, wo, cp)
    return out[..., :cout] if cp != cout else out


# ----------------------------------------------------------------------------
# BasicBlock forward (eval-mode BatchNorm folded into scale/bias)
# ----------------------------------------------------------------------------
def _fold_bn(bn, eps=1e-5):
    gamma, beta, mean, var = bn
    scale = gamma / jnp.sqrt(var + eps)
    return scale, beta - mean * scale


def basic_block_forward(x_nchw, params, *, stride, in_planes, planes):
    x = jnp.transpose(x_nchw, (0, 2, 3, 1)).astype(jnp.bfloat16)   # NHWC bf16

    s1, b1 = _fold_bn(params["bn1"])
    if stride == 1:
        out = conv3x3_s1_bn_act(x, params["w1"], s1, b1, relu=True)
    else:
        out = conv_bn_act_matmul(x, params["w1"], s1, b1,
                                 stride=stride, padding=1, ksize=3, relu=True)

    if stride != 1 or in_planes != planes:
        ss, bs = _fold_bn(params["bn_sc"])
        shortcut = conv_bn_act_matmul(x, params["w_sc"], ss, bs,
                                      stride=stride, padding=0, ksize=1,
                                      relu=False)
    else:
        shortcut = x

    s2, b2 = _fold_bn(params["bn2"])
    out = conv3x3_s1_bn_act(out, params["w2"], s2, b2,
                            residual=shortcut, relu=True)

    return jnp.transpose(out, (0, 3, 1, 2)).astype(jnp.float32)    # NCHW f32


# ----------------------------------------------------------------------------
# Pure-JAX reference (mirrors the kernel's bf16 storage of intermediates,
# f32 accumulation / adds).
# ----------------------------------------------------------------------------
def _ref_conv_bn(x_bf16, w_oihw, scale, bias, stride, padding):
    cout = w_oihw.shape[0]
    w_hwio = (jnp.transpose(w_oihw, (2, 3, 1, 0))
              * scale.reshape(1, 1, 1, cout)).astype(jnp.bfloat16)
    y = jax.lax.conv_general_dilated(
        x_bf16, w_hwio, window_strides=(stride, stride),
        padding=[(padding, padding), (padding, padding)],
        dimension_numbers=("NHWC", "HWIO", "NHWC"),
        preferred_element_type=jnp.float32)
    return y + bias.reshape(1, 1, 1, cout)


def _ref_block(x_nchw, params, *, stride, in_planes, planes):
    x = jnp.transpose(x_nchw, (0, 2, 3, 1)).astype(jnp.bfloat16)
    s1, b1 = _fold_bn(params["bn1"])
    out = jnp.maximum(_ref_conv_bn(x, params["w1"], s1, b1, stride, 1), 0.0)
    out = out.astype(jnp.bfloat16)
    if stride != 1 or in_planes != planes:
        ss, bs = _fold_bn(params["bn_sc"])
        sc = _ref_conv_bn(x, params["w_sc"], ss, bs, stride, 0).astype(jnp.bfloat16)
    else:
        sc = x
    s2, b2 = _fold_bn(params["bn2"])
    out = jnp.maximum(_ref_conv_bn(out, params["w2"], s2, b2, 1, 1)
                      + sc.astype(jnp.float32), 0.0).astype(jnp.bfloat16)
    return jnp.transpose(out, (0, 3, 1, 2)).astype(jnp.float32)


# ----------------------------------------------------------------------------
def _init_params(key, in_planes, planes, stride):
    ks = jax.random.split(key, 6)

    def bn(k, c):
        k1, k2, k3, k4 = jax.random.split(k, 4)
        gamma = 1.0 + 0.1 * jax.random.normal(k1, (c,), jnp.float32)
        beta = 0.1 * jax.random.normal(k2, (c,), jnp.float32)
        mean = 0.1 * jax.random.normal(k3, (c,), jnp.float32)
        var = jnp.abs(1.0 + 0.1 * jax.random.normal(k4, (c,), jnp.float32))
        return (gamma, beta, mean, var)

    params = {
        "w1": 0.1 * jax.random.normal(ks[0], (planes, in_planes, 3, 3), jnp.float32),
        "bn1": bn(ks[1], planes),
        "w2": 0.1 * jax.random.normal(ks[2], (planes, planes, 3, 3), jnp.float32),
        "bn2": bn(ks[3], planes),
    }
    if stride != 1 or in_planes != planes:
        params["w_sc"] = 0.1 * jax.random.normal(
            ks[4], (planes, in_planes, 1, 1), jnp.float32)
        params["bn_sc"] = bn(ks[5], planes)
    return params


if __name__ == "__main__":
    key = jax.random.PRNGKey(0)
    configs = (
        # identity shortcut: both 3x3 convs use the direct (no-im2col) tap
        # kernel; conv2 fuses the residual add + ReLU.
        dict(in_planes=8, planes=8, stride=1, hw=16),
        # downsampling block: stride-2 conv1 (matmul fallback), 1x1 shortcut
        # matmul, stride-1 conv2 tap kernel with the conv-shortcut residual.
        dict(in_planes=4, planes=8, stride=2, hw=16),
    )
    for cfg in configs:
        key, kx, kp = jax.random.split(key, 3)
        x = jax.random.normal(kx, (2, cfg["in_planes"], cfg["hw"], cfg["hw"]),
                              jnp.float32)
        params = _init_params(kp, cfg["in_planes"], cfg["planes"], cfg["stride"])
        fwd = jax.jit(functools.partial(
            basic_block_forward, stride=cfg["stride"],
            in_planes=cfg["in_planes"], planes=cfg["planes"]))
        out = jax.block_until_ready(fwd(x, params))
        ref = _ref_block(x, params, stride=cfg["stride"],
                         in_planes=cfg["in_planes"], planes=cfg["planes"])
        np.testing.assert_allclose(np.asarray(out), np.asarray(ref),
                                   rtol=2e-2, atol=2e-2)
        hw_out = cfg["hw"] // cfg["stride"]
        assert out.shape == (2, cfg["planes"], hw_out, hw_out)
    print("KERNEL_OK")
</pallas_src>

<mosaic_0001>
module attributes {stable_mosaic.version = 11 : i64} {
  func.func @kernel(%arg0: i32, %arg1: i32, %arg2: memref<1x18x18x8xbf16, #tpu.memory_space<vmem>>, %arg3: memref<3x3x8x128xbf16, #tpu.memory_space<vmem>>, %arg4: memref<1x128xf32, #tpu.memory_space<vmem>>, %arg5: memref<1x16x16x128xbf16, #tpu.memory_space<vmem>>) attributes {dimension_semantics = [#tpu.dimension_semantics<parallel>, #tpu.dimension_semantics<parallel>], iteration_bounds = array<i64: 2, 1>, scalar_prefetch = 0 : i64, scratch_operands = 0 : i64, tpu.core_type = #tpu.core_type<tc>, window_params = [{transform_indices = @transform_0, window_bounds = array<i64: 1, 18, 18, 8>}, {transform_indices = @transform_1, window_bounds = array<i64: 3, 3, 8, 128>}, {transform_indices = @transform_2, window_bounds = array<i64: 1, 128>}, {transform_indices = @transform_3, window_bounds = array<i64: 1, 16, 16, 128>}]} {
    %cst = arith.constant 0.000000e+00 : f32
    %0 = vector.broadcast %cst : f32 to vector<256x128xf32>
    %c0 = arith.constant 0 : index
    %c0_0 = arith.constant 0 : index
    %c0_1 = arith.constant 0 : index
    %c0_2 = arith.constant 0 : index
    %1 = vector.load %arg2[%c0, %c0_0, %c0_1, %c0_2] : memref<1x18x18x8xbf16, #tpu.memory_space<vmem>>, vector<1x16x16x8xbf16>
    %2 = vector.shape_cast %1 : vector<1x16x16x8xbf16> to vector<256x8xbf16>
    %c0_3 = arith.constant 0 : index
    %c0_4 = arith.constant 0 : index
    %c0_5 = arith.constant 0 : index
    %c0_6 = arith.constant 0 : index
    %3 = vector.load %arg3[%c0_3, %c0_4, %c0_5, %c0_6] : memref<3x3x8x128xbf16, #tpu.memory_space<vmem>>, vector<1x1x8x128xbf16>
    %4 = vector.shape_cast %3 : vector<1x1x8x128xbf16> to vector<8x128xbf16>
    %cst_7 = arith.constant dense<0.000000e+00> : vector<256x128xf32>
    %5 = tpu.matmul %2, %4, %cst_7 {dimension_numbers = #tpu.dot_dimension_numbers<[1], [0], [0], [1], [0, 0, 1, 1], [], []>} : vector<256x8xbf16>, vector<8x128xbf16>, vector<256x128xf32> -> vector<256x128xf32>
    %6 = arith.addf %0, %5 : vector<256x128xf32>
    %c0_8 = arith.constant 0 : index
    %c0_9 = arith.constant 0 : index
    %c1 = arith.constant 1 : index
    %c0_10 = arith.constant 0 : index
    %7 = vector.load %arg2[%c0_8, %c0_9, %c1, %c0_10] : memref<1x18x18x8xbf16, #tpu.memory_space<vmem>>, vector<1x16x16x8xbf16>
    %8 = vector.shape_cast %7 : vector<1x16x16x8xbf16> to vector<256x8xbf16>
    %c0_11 = arith.constant 0 : index
    %c1_12 = arith.constant 1 : index
    %c0_13 = arith.constant 0 : index
    %c0_14 = arith.constant 0 : index
    %9 = vector.load %arg3[%c0_11, %c1_12, %c0_13, %c0_14] : memref<3x3x8x128xbf16, #tpu.memory_space<vmem>>, vector<1x1x8x128xbf16>
    %10 = vector.shape_cast %9 : vector<1x1x8x128xbf16> to vector<8x128xbf16>
    %cst_15 = arith.constant dense<0.000000e+00> : vector<256x128xf32>
    %11 = tpu.matmul %8, %10, %cst_15 {dimension_numbers = #tpu.dot_dimension_numbers<[1], [0], [0], [1], [0, 0, 1, 1], [], []>} : vector<256x8xbf16>, vector<8x128xbf16>, vector<256x128xf32> -> vector<256x128xf32>
    %12 = arith.addf %6, %11 : vector<256x128xf32>
    %c0_16 = arith.constant 0 : index
    %c0_17 = arith.constant 0 : index
    %c2 = arith.constant 2 : index
    %c0_18 = arith.constant 0 : index
    %13 = vector.load %arg2[%c0_16, %c0_17, %c2, %c0_18] : memref<1x18x18x8xbf16, #tpu.memory_space<vmem>>, vector<1x16x16x8xbf16>
    %14 = vector.shape_cast %13 : vector<1x16x16x8xbf16> to vector<256x8xbf16>
    %c0_19 = arith.constant 0 : index
    %c2_20 = arith.constant 2 : index
    %c0_21 = arith.constant 0 : index
    %c0_22 = arith.constant 0 : index
    %15 = vector.load %arg3[%c0_19, %c2_20, %c0_21, %c0_22] : memref<3x3x8x128xbf16, #tpu.memory_space<vmem>>, vector<1x1x8x128xbf16>
    %16 = vector.shape_cast %15 : vector<1x1x8x128xbf16> to vector<8x128xbf16>
    %cst_23 = arith.constant dense<0.000000e+00> : vector<256x128xf32>
    %17 = tpu.matmul %14, %16, %cst_23 {dimension_numbers = #tpu.dot_dimension_numbers<[1], [0], [0], [1], [0, 0, 1, 1], [], []>} : vector<256x8xbf16>, vector<8x128xbf16>, vector<256x128xf32> -> vector<256x128xf32>
    %18 = arith.addf %12, %17 : vector<256x128xf32>
    %c0_24 = arith.constant 0 : index
    %c1_25 = arith.constant 1 : index
    %c0_26 = arith.constant 0 : index
    %c0_27 = arith.constant 0 : index
    %19 = vector.load %arg2[%c0_24, %c1_25, %c0_26, %c0_27] : memref<1x18x18x8xbf16, #tpu.memory_space<vmem>>, vector<1x16x16x8xbf16>
    %20 = vector.shape_cast %19 : vector<1x16x16x8xbf16> to vector<256x8xbf16>
    %c1_28 = arith.constant 1 : index
    %c0_29 = arith.constant 0 : index
    %c0_30 = arith.constant 0 : index
    %c0_31 = arith.constant 0 : index
    %21 = vector.load %arg3[%c1_28, %c0_29, %c0_30, %c0_31] : memref<3x3x8x128xbf16, #tpu.memory_space<vmem>>, vector<1x1x8x128xbf16>
    %22 = vector.shape_cast %21 : vector<1x1x8x128xbf16> to vector<8x128xbf16>
    %cst_32 = arith.constant dense<0.000000e+00> : vector<256x128xf32>
    %23 = tpu.matmul %20, %22, %cst_32 {dimension_numbers = #tpu.dot_dimension_numbers<[1], [0], [0], [1], [0, 0, 1, 1], [], []>} : vector<256x8xbf16>, vector<8x128xbf16>, vector<256x128xf32> -> vector<256x128xf32>
    %24 = arith.addf %18, %23 : vector<256x128xf32>
    %c0_33 = arith.constant 0 : index
    %c1_34 = arith.constant 1 : index
    %c1_35 = arith.constant 1 : index
    %c0_36 = arith.constant 0 : index
    %25 = vector.load %arg2[%c0_33, %c1_34, %c1_35, %c0_36] : memref<1x18x18x8xbf16, #tpu.memory_space<vmem>>, vector<1x16x16x8xbf16>
    %26 = vector.shape_cast %25 : vector<1x16x16x8xbf16> to vector<256x8xbf16>
    %c1_37 = arith.constant 1 : index
    %c1_38 = arith.constant 1 : index
    %c0_39 = arith.constant 0 : index
    %c0_40 = arith.constant 0 : index
    %27 = vector.load %arg3[%c1_37, %c1_38, %c0_39, %c0_40] : memref<3x3x8x128xbf16, #tpu.memory_space<vmem>>, vector<1x1x8x128xbf16>
    %28 = vector.shape_cast %27 : vector<1x1x8x128xbf16> to vector<8x128xbf16>
    %cst_41 = arith.constant dense<0.000000e+00> : vector<256x128xf32>
    %29 = tpu.matmul %26, %28, %cst_41 {dimension_numbers = #tpu.dot_dimension_numbers<[1], [0], [0], [1], [0, 0, 1, 1], [], []>} : vector<256x8xbf16>, vector<8x128xbf16>, vector<256x128xf32> -> vector<256x128xf32>
    %30 = arith.addf %24, %29 : vector<256x128xf32>
    %c0_42 = arith.constant 0 : index
    %c1_43 = arith.constant 1 : index
    %c2_44 = arith.constant 2 : index
    %c0_45 = arith.constant 0 : index
    %31 = vector.load %arg2[%c0_42, %c1_43, %c2_44, %c0_45] : memref<1x18x18x8xbf16, #tpu.memory_space<vmem>>, vector<1x16x16x8xbf16>
    %32 = vector.shape_cast %31 : vector<1x16x16x8xbf16> to vector<256x8xbf16>
    %c1_46 = arith.constant 1 : index
    %c2_47 = arith.constant 2 : index
    %c0_48 = arith.constant 0 : index
    %c0_49 = arith.constant 0 : index
    %33 = vector.load %arg3[%c1_46, %c2_47, %c0_48, %c0_49] : memref<3x3x8x128xbf16, #tpu.memory_space<vmem>>, vector<1x1x8x128xbf16>
    %34 = vector.shape_cast %33 : vector<1x1x8x128xbf16> to vector<8x128xbf16>
    %cst_50 = arith.constant dense<0.000000e+00> : vector<256x128xf32>
    %35 = tpu.matmul %32, %34, %cst_50 {dimension_numbers = #tpu.dot_dimension_numbers<[1], [0], [0], [1], [0, 0, 1, 1], [], []>} : vector<256x8xbf16>, vector<8x128xbf16>, vector<256x128xf32> -> vector<256x128xf32>
    %36 = arith.addf %30, %35 : vector<256x128xf32>
    %c0_51 = arith.constant 0 : index
    %c2_52 = arith.constant 2 : index
    %c0_53 = arith.constant 0 : index
    %c0_54 = arith.constant 0 : index
    %37 = vector.load %arg2[%c0_51, %c2_52, %c0_53, %c0_54] : memref<1x18x18x8xbf16, #tpu.memory_space<vmem>>, vector<1x16x16x8xbf16>
    %38 = vector.shape_cast %37 : vector<1x16x16x8xbf16> to vector<256x8xbf16>
    %c2_55 = arith.constant 2 : index
    %c0_56 = arith.constant 0 : index
    %c0_57 = arith.constant 0 : index
    %c0_58 = arith.constant 0 : index
    %39 = vector.load %arg3[%c2_55, %c0_56, %c0_57, %c0_58] : memref<3x3x8x128xbf16, #tpu.memory_space<vmem>>, vector<1x1x8x128xbf16>
    %40 = vector.shape_cast %39 : vector<1x1x8x128xbf16> to vector<8x128xbf16>
    %cst_59 = arith.constant dense<0.000000e+00> : vector<256x128xf32>
    %41 = tpu.matmul %38, %40, %cst_59 {dimension_numbers = #tpu.dot_dimension_numbers<[1], [0], [0], [1], [0, 0, 1, 1], [], []>} : vector<256x8xbf16>, vector<8x128xbf16>, vector<256x128xf32> -> vector<256x128xf32>
    %42 = arith.addf %36, %41 : vector<256x128xf32>
    %c0_60 = arith.constant 0 : index
    %c2_61 = arith.constant 2 : index
    %c1_62 = arith.constant 1 : index
    %c0_63 = arith.constant 0 : index
    %43 = vector.load %arg2[%c0_60, %c2_61, %c1_62, %c0_63] : memref<1x18x18x8xbf16, #tpu.memory_space<vmem>>, vector<1x16x16x8xbf16>
    %44 = vector.shape_cast %43 : vector<1x16x16x8xbf16> to vector<256x8xbf16>
    %c2_64 = arith.constant 2 : index
    %c1_65 = arith.constant 1 : index
    %c0_66 = arith.constant 0 : index
    %c0_67 = arith.constant 0 : index
    %45 = vector.load %arg3[%c2_64, %c1_65, %c0_66, %c0_67] : memref<3x3x8x128xbf16, #tpu.memory_space<vmem>>, vector<1x1x8x128xbf16>
    %46 = vector.shape_cast %45 : vector<1x1x8x128xbf16> to vector<8x128xbf16>
    %cst_68 = arith.constant dense<0.000000e+00> : vector<256x128xf32>
    %47 = tpu.matmul %44, %46, %cst_68 {dimension_numbers = #tpu.dot_dimension_numbers<[1], [0], [0], [1], [0, 0, 1, 1], [], []>} : vector<256x8xbf16>, vector<8x128xbf16>, vector<256x128xf32> -> vector<256x128xf32>
    %48 = arith.addf %42, %47 : vector<256x128xf32>
    %c0_69 = arith.constant 0 : index
    %c2_70 = arith.constant 2 : index
    %c2_71 = arith.constant 2 : index
    %c0_72 = arith.constant 0 : index
    %49 = vector.load %arg2[%c0_69, %c2_70, %c2_71, %c0_72] : memref<1x18x18x8xbf16, #tpu.memory_space<vmem>>, vector<1x16x16x8xbf16>
    %50 = vector.shape_cast %49 : vector<1x16x16x8xbf16> to vector<256x8xbf16>
    %c2_73 = arith.constant 2 : index
    %c2_74 = arith.constant 2 : index
    %c0_75 = arith.constant 0 : index
    %c0_76 = arith.constant 0 : index
    %51 = vector.load %arg3[%c2_73, %c2_74, %c0_75, %c0_76] : memref<3x3x8x128xbf16, #tpu.memory_space<vmem>>, vector<1x1x8x128xbf16>
    %52 = vector.shape_cast %51 : vector<1x1x8x128xbf16> to vector<8x128xbf16>
    %cst_77 = arith.constant dense<0.000000e+00> : vector<256x128xf32>
    %53 = tpu.matmul %50, %52, %cst_77 {dimension_numbers = #tpu.dot_dimension_numbers<[1], [0], [0], [1], [0, 0, 1, 1], [], []>} : vector<256x8xbf16>, vector<8x128xbf16>, vector<256x128xf32> -> vector<256x128xf32>
    %54 = arith.addf %48, %53 : vector<256x128xf32>
    %c0_78 = arith.constant 0 : index
    %c0_79 = arith.constant 0 : index
    %55 = vector.load %arg4[%c0_78, %c0_79] : memref<1x128xf32, #tpu.memory_space<vmem>>, vector<1x128xf32>
    %56 = vector.broadcast %55 : vector<1x128xf32> to vector<256x128xf32>
    %57 = arith.addf %54, %56 : vector<256x128xf32>
    %58 = vector.shape_cast %57 : vector<256x128xf32> to vector<1x16x16x128xf32>
    %cst_80 = arith.constant 0.000000e+00 : f32
    %59 = vector.broadcast %cst_80 : f32 to vector<1x16x16x128xf32>
    %60 = arith.maximumf %58, %59 : vector<1x16x16x128xf32>
    %61 = arith.truncf %60 : vector<1x16x16x128xf32> to vector<1x16x16x128xbf16>
    %c0_81 = arith.constant 0 : index
    %c0_82 = arith.constant 0 : index
    %c0_83 = arith.constant 0 : index
    %c0_84 = arith.constant 0 : index
    %62 = vector.load %arg5[%c0_81, %c0_82, %c0_83, %c0_84] : memref<1x16x16x128xbf16, #tpu.memory_space<vmem>>, vector<1x16x16x128xbf16>
    tpu.vector_store %arg5[%c0_81, %c0_82, %c0_83, %c0_84], %61 {strides = array<i32>} : memref<1x16x16x128xbf16, #tpu.memory_space<vmem>>, vector<1x16x16x128xbf16>,
    return
  }
  func.func @transform_0(%arg0: i32, %arg1: i32) -> (i32, i32, i32, i32) {
    %c0_i32 = arith.constant 0 : i32
    %c0_i32_0 = arith.constant 0 : i32
    %c0_i32_1 = arith.constant 0 : i32
    %c0_i32_2 = arith.constant 0 : i32
    return %arg0, %c0_i32, %c0_i32_0, %c0_i32_1 : i32, i32, i32, i32
  }
  func.func @transform_1(%arg0: i32, %arg1: i32) -> (i32, i32, i32, i32) {
    %c0_i32 = arith.constant 0 : i32
    %c0_i32_0 = arith.constant 0 : i32
    %c0_i32_1 = arith.constant 0 : i32
    %c0_i32_2 = arith.constant 0 : i32
    return %c0_i32, %c0_i32_0, %c0_i32_1, %arg1 : i32, i32, i32, i32
  }
  func.func @transform_2(%arg0: i32, %arg1: i32) -> (i32, i32) {
    %c0_i32 = arith.constant 0 : i32
    %c0_i32_0 = arith.constant 0 : i32
    return %c0_i32, %arg1 : i32, i32
  }
  func.func @transform_3(%arg0: i32, %arg1: i32) -> (i32, i32, i32, i32) {
    %c0_i32 = arith.constant 0 : i32
    %c0_i32_0 = arith.constant 0 : i32
    %c0_i32_1 = arith.constant 0 : i32
    return %arg0, %c0_i32, %c0_i32_0, %arg1 : i32, i32, i32, i32
  }
}

module attributes {stable_mosaic.version = 11 : i64} {
  func.func @kernel(%arg0: i32, %arg1: i32, %arg2: memref<1x18x18x8xbf16, #tpu.memory_space<vmem>>, %arg3: memref<3x3x8x128xbf16, #tpu.memory_space<vmem>>, %arg4: memref<1x128xf32, #tpu.memory_space<vmem>>, %arg5: memref<1x16x16x128xbf16, #tpu.memory_space<vmem>>, %arg6: memref<1x16x16x128xbf16, #tpu.memory_space<vmem>>) attributes {dimension_semantics = [#tpu.dimension_semantics<parallel>, #tpu.dimension_semantics<parallel>], iteration_bounds = array<i64: 2, 1>, scalar_prefetch = 0 : i64, scratch_operands = 0 : i64, tpu.core_type = #tpu.core_type<tc>, window_params = [{transform_indices = @transform_0, window_bounds = array<i64: 1, 18, 18, 8>}, {transform_indices = @transform_1, window_bounds = array<i64: 3, 3, 8, 128>}, {transform_indices = @transform_2, window_bounds = array<i64: 1, 128>}, {transform_indices = @transform_3, window_bounds = array<i64: 1, 16, 16, 128>}, {transform_indices = @transform_4, window_bounds = array<i64: 1, 16, 16, 128>}]} {
    %cst = arith.constant 0.000000e+00 : f32
    %0 = vector.broadcast %cst : f32 to vector<256x128xf32>
    %c0 = arith.constant 0 : index
    %c0_0 = arith.constant 0 : index
    %c0_1 = arith.constant 0 : index
    %c0_2 = arith.constant 0 : index
    %1 = vector.load %arg2[%c0, %c0_0, %c0_1, %c0_2] : memref<1x18x18x8xbf16, #tpu.memory_space<vmem>>, vector<1x16x16x8xbf16>
    %2 = vector.shape_cast %1 : vector<1x16x16x8xbf16> to vector<256x8xbf16>
    %c0_3 = arith.constant 0 : index
    %c0_4 = arith.constant 0 : index
    %c0_5 = arith.constant 0 : index
    %c0_6 = arith.constant 0 : index
    %3 = vector.load %arg3[%c0_3, %c0_4, %c0_5, %c0_6] : memref<3x3x8x128xbf16, #tpu.memory_space<vmem>>, vector<1x1x8x128xbf16>
    %4 = vector.shape_cast %3 : vector<1x1x8x128xbf16> to vector<8x128xbf16>
    %cst_7 = arith.constant dense<0.000000e+00> : vector<256x128xf32>
    %5 = tpu.matmul %2, %4, %cst_7 {dimension_numbers = #tpu.dot_dimension_numbers<[1], [0], [0], [1], [0, 0, 1, 1], [], []>} : vector<256x8xbf16>, vector<8x128xbf16>, vector<256x128xf32> -> vector<256x128xf32>
    %6 = arith.addf %0, %5 : vector<256x128xf32>
    %c0_8 = arith.constant 0 : index
    %c0_9 = arith.constant 0 : index
    %c1 = arith.constant 1 : index
    %c0_10 = arith.constant 0 : index
    %7 = vector.load %arg2[%c0_8, %c0_9, %c1, %c0_10] : memref<1x18x18x8xbf16, #tpu.memory_space<vmem>>, vector<1x16x16x8xbf16>
    %8 = vector.shape_cast %7 : vector<1x16x16x8xbf16> to vector<256x8xbf16>
    %c0_11 = arith.constant 0 : index
    %c1_12 = arith.constant 1 : index
    %c0_13 = arith.constant 0 : index
    %c0_14 = arith.constant 0 : index
    %9 = vector.load %arg3[%c0_11, %c1_12, %c0_13, %c0_14] : memref<3x3x8x128xbf16, #tpu.memory_space<vmem>>, vector<1x1x8x128xbf16>
    %10 = vector.shape_cast %9 : vector<1x1x8x128xbf16> to vector<8x128xbf16>
    %cst_15 = arith.constant dense<0.000000e+00> : vector<256x128xf32>
    %11 = tpu.matmul %8, %10, %cst_15 {dimension_numbers = #tpu.dot_dimension_numbers<[1], [0], [0], [1], [0, 0, 1, 1], [], []>} : vector<256x8xbf16>, vector<8x128xbf16>, vector<256x128xf32> -> vector<256x128xf32>
    %12 = arith.addf %6, %11 : vector<256x128xf32>
    %c0_16 = arith.constant 0 : index
    %c0_17 = arith.constant 0 : index
    %c2 = arith.constant 2 : index
    %c0_18 = arith.constant 0 : index
    %13 = vector.load %arg2[%c0_16, %c0_17, %c2, %c0_18] : memref<1x18x18x8xbf16, #tpu.memory_space<vmem>>, vector<1x16x16x8xbf16>
    %14 = vector.shape_cast %13 : vector<1x16x16x8xbf16> to vector<256x8xbf16>
    %c0_19 = arith.constant 0 : index
    %c2_20 = arith.constant 2 : index
    %c0_21 = arith.constant 0 : index
    %c0_22 = arith.constant 0 : index
    %15 = vector.load %arg3[%c0_19, %c2_20, %c0_21, %c0_22] : memref<3x3x8x128xbf16, #tpu.memory_space<vmem>>, vector<1x1x8x128xbf16>
    %16 = vector.shape_cast %15 : vector<1x1x8x128xbf16> to vector<8x128xbf16>
    %cst_23 = arith.constant dense<0.000000e+00> : vector<256x128xf32>
    %17 = tpu.matmul %14, %16, %cst_23 {dimension_numbers = #tpu.dot_dimension_numbers<[1], [0], [0], [1], [0, 0, 1, 1], [], []>} : vector<256x8xbf16>, vector<8x128xbf16>, vector<256x128xf32> -> vector<256x128xf32>
    %18 = arith.addf %12, %17 : vector<256x128xf32>
    %c0_24 = arith.constant 0 : index
    %c1_25 = arith.constant 1 : index
    %c0_26 = arith.constant 0 : index
    %c0_27 = arith.constant 0 : index
    %19 = vector.load %arg2[%c0_24, %c1_25, %c0_26, %c0_27] : memref<1x18x18x8xbf16, #tpu.memory_space<vmem>>, vector<1x16x16x8xbf16>
    %20 = vector.shape_cast %19 : vector<1x16x16x8xbf16> to vector<256x8xbf16>
    %c1_28 = arith.constant 1 : index
    %c0_29 = arith.constant 0 : index
    %c0_30 = arith.constant 0 : index
    %c0_31 = arith.constant 0 : index
    %21 = vector.load %arg3[%c1_28, %c0_29, %c0_30, %c0_31] : memref<3x3x8x128xbf16, #tpu.memory_space<vmem>>, vector<1x1x8x128xbf16>
    %22 = vector.shape_cast %21 : vector<1x1x8x128xbf16> to vector<8x128xbf16>
    %cst_32 = arith.constant dense<0.000000e+00> : vector<256x128xf32>
    %23 = tpu.matmul %20, %22, %cst_32 {dimension_numbers = #tpu.dot_dimension_numbers<[1], [0], [0], [1], [0, 0, 1, 1], [], []>} : vector<256x8xbf16>, vector<8x128xbf16>, vector<256x128xf32> -> vector<256x128xf32>
    %24 = arith.addf %18, %23 : vector<256x128xf32>
    %c0_33 = arith.constant 0 : index
    %c1_34 = arith.constant 1 : index
    %c1_35 = arith.constant 1 : index
    %c0_36 = arith.constant 0 : index
    %25 = vector.load %arg2[%c0_33, %c1_34, %c1_35, %c0_36] : memref<1x18x18x8xbf16, #tpu.memory_space<vmem>>, vector<1x16x16x8xbf16>
    %26 = vector.shape_cast %25 : vector<1x16x16x8xbf16> to vector<256x8xbf16>
    %c1_37 = arith.constant 1 : index
    %c1_38 = arith.constant 1 : index
    %c0_39 = arith.constant 0 : index
    %c0_40 = arith.constant 0 : index
    %27 = vector.load %arg3[%c1_37, %c1_38, %c0_39, %c0_40] : memref<3x3x8x128xbf16, #tpu.memory_space<vmem>>, vector<1x1x8x128xbf16>
    %28 = vector.shape_cast %27 : vector<1x1x8x128xbf16> to vector<8x128xbf16>
    %cst_41 = arith.constant dense<0.000000e+00> : vector<256x128xf32>
    %29 = tpu.matmul %26, %28, %cst_41 {dimension_numbers = #tpu.dot_dimension_numbers<[1], [0], [0], [1], [0, 0, 1, 1], [], []>} : vector<256x8xbf16>, vector<8x128xbf16>, vector<256x128xf32> -> vector<256x128xf32>
    %30 = arith.addf %24, %29 : vector<256x128xf32>
    %c0_42 = arith.constant 0 : index
    %c1_43 = arith.constant 1 : index
    %c2_44 = arith.constant 2 : index
    %c0_45 = arith.constant 0 : index
    %31 = vector.load %arg2[%c0_42, %c1_43, %c2_44, %c0_45] : memref<1x18x18x8xbf16, #tpu.memory_space<vmem>>, vector<1x16x16x8xbf16>
    %32 = vector.shape_cast %31 : vector<1x16x16x8xbf16> to vector<256x8xbf16>
    %c1_46 = arith.constant 1 : index
    %c2_47 = arith.constant 2 : index
    %c0_48 = arith.constant 0 : index
    %c0_49 = arith.constant 0 : index
    %33 = vector.load %arg3[%c1_46, %c2_47, %c0_48, %c0_49] : memref<3x3x8x128xbf16, #tpu.memory_space<vmem>>, vector<1x1x8x128xbf16>
    %34 = vector.shape_cast %33 : vector<1x1x8x128xbf16> to vector<8x128xbf16>
    %cst_50 = arith.constant dense<0.000000e+00> : vector<256x128xf32>
    %35 = tpu.matmul %32, %34, %cst_50 {dimension_numbers = #tpu.dot_dimension_numbers<[1], [0], [0], [1], [0, 0, 1, 1], [], []>} : vector<256x8xbf16>, vector<8x128xbf16>, vector<256x128xf32> -> vector<256x128xf32>
    %36 = arith.addf %30, %35 : vector<256x128xf32>
    %c0_51 = arith.constant 0 : index
    %c2_52 = arith.constant 2 : index
    %c0_53 = arith.constant 0 : index
    %c0_54 = arith.constant 0 : index
    %37 = vector.load %arg2[%c0_51, %c2_52, %c0_53, %c0_54] : memref<1x18x18x8xbf16, #tpu.memory_space<vmem>>, vector<1x16x16x8xbf16>
    %38 = vector.shape_cast %37 : vector<1x16x16x8xbf16> to vector<256x8xbf16>
    %c2_55 = arith.constant 2 : index
    %c0_56 = arith.constant 0 : index
    %c0_57 = arith.constant 0 : index
    %c0_58 = arith.constant 0 : index
    %39 = vector.load %arg3[%c2_55, %c0_56, %c0_57, %c0_58] : memref<3x3x8x128xbf16, #tpu.memory_space<vmem>>, vector<1x1x8x128xbf16>
    %40 = vector.shape_cast %39 : vector<1x1x8x128xbf16> to vector<8x128xbf16>
    %cst_59 = arith.constant dense<0.000000e+00> : vector<256x128xf32>
    %41 = tpu.matmul %38, %40, %cst_59 {dimension_numbers = #tpu.dot_dimension_numbers<[1], [0], [0], [1], [0, 0, 1, 1], [], []>} : vector<256x8xbf16>, vector<8x128xbf16>, vector<256x128xf32> -> vector<256x128xf32>
    %42 = arith.addf %36, %41 : vector<256x128xf32>
    %c0_60 = arith.constant 0 : index
    %c2_61 = arith.constant 2 : index
    %c1_62 = arith.constant 1 : index
    %c0_63 = arith.constant 0 : index
    %43 = vector.load %arg2[%c0_60, %c2_61, %c1_62, %c0_63] : memref<1x18x18x8xbf16, #tpu.memory_space<vmem>>, vector<1x16x16x8xbf16>
    %44 = vector.shape_cast %43 : vector<1x16x16x8xbf16> to vector<256x8xbf16>
    %c2_64 = arith.constant 2 : index
    %c1_65 = arith.constant 1 : index
    %c0_66 = arith.constant 0 : index
    %c0_67 = arith.constant 0 : index
    %45 = vector.load %arg3[%c2_64, %c1_65, %c0_66, %c0_67] : memref<3x3x8x128xbf16, #tpu.memory_space<vmem>>, vector<1x1x8x128xbf16>
    %46 = vector.shape_cast %45 : vector<1x1x8x128xbf16> to vector<8x128xbf16>
    %cst_68 = arith.constant dense<0.000000e+00> : vector<256x128xf32>
    %47 = tpu.matmul %44, %46, %cst_68 {dimension_numbers = #tpu.dot_dimension_numbers<[1], [0], [0], [1], [0, 0, 1, 1], [], []>} : vector<256x8xbf16>, vector<8x128xbf16>, vector<256x128xf32> -> vector<256x128xf32>
    %48 = arith.addf %42, %47 : vector<256x128xf32>
    %c0_69 = arith.constant 0 : index
    %c2_70 = arith.constant 2 : index
    %c2_71 = arith.constant 2 : index
    %c0_72 = arith.constant 0 : index
    %49 = vector.load %arg2[%c0_69, %c2_70, %c2_71, %c0_72] : memref<1x18x18x8xbf16, #tpu.memory_space<vmem>>, vector<1x16x16x8xbf16>
    %50 = vector.shape_cast %49 : vector<1x16x16x8xbf16> to vector<256x8xbf16>
    %c2_73 = arith.constant 2 : index
    %c2_74 = arith.constant 2 : index
    %c0_75 = arith.constant 0 : index
    %c0_76 = arith.constant 0 : index
    %51 = vector.load %arg3[%c2_73, %c2_74, %c0_75, %c0_76] : memref<3x3x8x128xbf16, #tpu.memory_space<vmem>>, vector<1x1x8x128xbf16>
    %52 = vector.shape_cast %51 : vector<1x1x8x128xbf16> to vector<8x128xbf16>
    %cst_77 = arith.constant dense<0.000000e+00> : vector<256x128xf32>
    %53 = tpu.matmul %50, %52, %cst_77 {dimension_numbers = #tpu.dot_dimension_numbers<[1], [0], [0], [1], [0, 0, 1, 1], [], []>} : vector<256x8xbf16>, vector<8x128xbf16>, vector<256x128xf32> -> vector<256x128xf32>
    %54 = arith.addf %48, %53 : vector<256x128xf32>
    %c0_78 = arith.constant 0 : index
    %c0_79 = arith.constant 0 : index
    %55 = vector.load %arg4[%c0_78, %c0_79] : memref<1x128xf32, #tpu.memory_space<vmem>>, vector<1x128xf32>
    %56 = vector.broadcast %55 : vector<1x128xf32> to vector<256x128xf32>
    %57 = arith.addf %54, %56 : vector<256x128xf32>
    %58 = vector.shape_cast %57 : vector<256x128xf32> to vector<1x16x16x128xf32>
    %c0_80 = arith.constant 0 : index
    %c0_81 = arith.constant 0 : index
    %c0_82 = arith.constant 0 : index
    %c0_83 = arith.constant 0 : index
    %59 = vector.load %arg5[%c0_80, %c0_81, %c0_82, %c0_83] : memref<1x16x16x128xbf16, #tpu.memory_space<vmem>>, vector<1x16x16x128xbf16>
    %60 = arith.extf %59 : vector<1x16x16x128xbf16> to vector<1x16x16x128xf32>
    %61 = arith.addf %58, %60 : vector<1x16x16x128xf32>
    %cst_84 = arith.constant 0.000000e+00 : f32
    %62 = vector.broadcast %cst_84 : f32 to vector<1x16x16x128xf32>
    %63 = arith.maximumf %61, %62 : vector<1x16x16x128xf32>
    %64 = arith.truncf %63 : vector<1x16x16x128xf32> to vector<1x16x16x128xbf16>
    %c0_85 = arith.constant 0 : index
    %c0_86 = arith.constant 0 : index
    %c0_87 = arith.constant 0 : index
    %c0_88 = arith.constant 0 : index
    %65 = vector.load %arg6[%c0_85, %c0_86, %c0_87, %c0_88] : memref<1x16x16x128xbf16, #tpu.memory_space<vmem>>, vector<1x16x16x128xbf16>
    tpu.vector_store %arg6[%c0_85, %c0_86, %c0_87, %c0_88], %64 {strides = array<i32>} : memref<1x16x16x128xbf16, #tpu.memory_space<vmem>>, vector<1x16x16x128xbf16>,
    return
  }
  func.func @transform_0(%arg0: i32, %arg1: i32) -> (i32, i32, i32, i32) {
    %c0_i32 = arith.constant 0 : i32
    %c0_i32_0 = arith.constant 0 : i32
    %c0_i32_1 = arith.constant 0 : i32
    %c0_i32_2 = arith.constant 0 : i32
    return %arg0, %c0_i32, %c0_i32_0, %c0_i32_1 : i32, i32, i32, i32
  }
  func.func @transform_1(%arg0: i32, %arg1: i32) -> (i32, i32, i32, i32) {
    %c0_i32 = arith.constant 0 : i32
    %c0_i32_0 = arith.constant 0 : i32
    %c0_i32_1 = arith.constant 0 : i32
    %c0_i32_2 = arith.constant 0 : i32
    return %c0_i32, %c0_i32_0, %c0_i32_1, %arg1 : i32, i32, i32, i32
  }
  func.func @transform_2(%arg0: i32, %arg1: i32) -> (i32, i32) {
    %c0_i32 = arith.constant 0 : i32
    %c0_i32_0 = arith.constant 0 : i32
    return %c0_i32, %arg1 : i32, i32
  }
  func.func @transform_3(%arg0: i32, %arg1: i32) -> (i32, i32, i32, i32) {
    %c0_i32 = arith.constant 0 : i32
    %c0_i32_0 = arith.constant 0 : i32
    %c0_i32_1 = arith.constant 0 : i32
    return %arg0, %c0_i32, %c0_i32_0, %arg1 : i32, i32, i32, i32
  }
  func.func @transform_4(%arg0: i32, %arg1: i32) -> (i32, i32, i32, i32) {
    %c0_i32 = arith.constant 0 : i32
    %c0_i32_0 = arith.constant 0 : i32
    %c0_i32_1 = arith.constant 0 : i32
    return %arg0, %c0_i32, %c0_i32_0, %arg1 : i32, i32, i32, i32
  }
}

</mosaic_0001>

<llo_original>
// kernel: basic_block_forward.2
$region0: #{basic_block_forward.2}
  #allocation0 [shape = 'u32[]', space=smem, size = 0x4, offset = 0x4, fixed_abs, tag = 'smem constant byte address 0x4 - core index']
  #allocation1 [shape = 'u32[72,128]{1,0:T(1,128)}', space=vmem, size = 0x9000, scoped, tag = 'internal scratch']
  %s0 = inlined_call_operand.vmem [shape: bf16[2,18,18,8], index: 0, kind: input, shape index: {}]
  %s1 = inlined_call_operand.vmem [shape: bf16[3,3,8,128], index: 1, kind: input, shape index: {}]
  %s2 = inlined_call_operand.vmem [shape: f32[1,128], index: 2, kind: input, shape index: {}]
  %s3 = inlined_call_operand.vmem [shape: bf16[2,16,16,128], index: 3, kind: output, shape index: {}]
  %s4 = sld [smem:[#allocation0]]
  $region45: #{basic_block_forward.2} parent=0
    _
  %s6 = ssub.s32 1, %s4
  %s7 = scalar_select 0, %s6, %s4
  loop: start=0, step=1, limit=4
  $region2: #{basic_block_forward.2} parent=0 // loop_pre_header
    _
  $region3: #{basic_block_forward.2} parent=0 // loop_header
    %s9 = sphi 0, %s13
    %p10 = scmp.ge.s32.totalorder %s9, 4
    %s16 = sphi 0, %s28
    %s17 = sphi 0, %s24
    %s18 = sphi 0, %s16
    %s19 = sphi 0, %s17
    %s20 = sphi 0, %s18
    %s21 = sphi 0, %s19
    %s31 = sphi 0, %s33
    %s34 = sphi 0, %s31
    %s35 = sphi 0, %s34
    %s51 = sphi 0, %s35
    %s57 = sphi 0, %s59
    %s60 = sphi 0, %s57
    %s61 = sphi 0, %s60
    %s77 = sphi 0, %s61
    %s83 = sphi 0, %s85
    %s86 = sphi 0, %s83
    %s87 = sphi 0, %s86
    %s103 = sphi 0, %s87
    %s111 = sphi 0, %s113
    %s114 = sphi 0, %s111
    %s115 = sphi 0, %s114
    %s131 = sphi 0, %s115
  $region4: #{basic_block_forward.2} parent=0 // loop_header_branch
    %12 = sbr.rel (%p10) target = $region8
  $region5: #{basic_block_forward.2} parent=0 // loop_body
    %s14 = ssub.s32 %s9, 1
    %s15 = ssub.s32 %s9, 2
    %s22 = sadd.s32 1, %s17
    %p23 = scmp.ge.s32.totalorder %s22, 1
    %s24 = scalar_select %p23, 0, %s22
    %s25 = sadd.s32 1, %s16
    %s26 = scalar_select %p23, %s25, %s16
    %p27 = scmp.ge.s32.totalorder %s26, 2
    %s28 = scalar_select %p27, 0, %s26
    %s29 = ssub.s32 %s16, %s28
    %p30 = scmp.eq.s32.totalorder %s29, 0
    %s32 = sadd.s32 %s31, 1
    %s33 = scalar_select %p30, %s31, %s32
    %p36 = pneg %p30
    %p37 = scmp.eq.s32.totalorder %s9, 1
    %p38 = por %p36, %p37
    %p39 = scmp.ne.s32.totalorder %s31, %s34
    %p40 = scmp.eq.s32.totalorder %s9, 0
    %p41 = por %p39, %p40
    %p42 = scmp.ne.s32.totalorder %s31, %s34
    %p43 = scmp.eq.s32.totalorder %s14, 1
    %p44 = por %p42, %p43
    %p45 = scmp.ne.s32.totalorder %s34, %s35
    %p46 = scmp.eq.s32.totalorder %s14, 0
    %p47 = por %p45, %p46
    %p48 = scmp.ne.s32.totalorder %s34, %s35
    %p49 = scmp.eq.s32.totalorder %s15, 1
    %p50 = por %p48, %p49
    %p52 = scmp.ne.s32.totalorder %s35, %s51
    %p53 = scmp.eq.s32.totalorder %s15, 0
    %p54 = por %p52, %p53
    %s55 = ssub.s32 %s17, %s24
    %p56 = scmp.eq.s32.totalorder %s55, 0
    %s58 = sadd.s32 %s57, 1
    %s59 = scalar_select %p56, %s57, %s58
    %p62 = pneg %p56
    %p63 = scmp.eq.s32.totalorder %s9, 1
    %p64 = por %p62, %p63
    %p65 = scmp.ne.s32.totalorder %s57, %s60
    %p66 = scmp.eq.s32.totalorder %s9, 0
    %p67 = por %p65, %p66
    %p68 = scmp.ne.s32.totalorder %s57, %s60
    %p69 = scmp.eq.s32.totalorder %s14, 1
    %p70 = por %p68, %p69
    %p71 = scmp.ne.s32.totalorder %s60, %s61
    %p72 = scmp.eq.s32.totalorder %s14, 0
    %p73 = por %p71, %p72
    %p74 = scmp.ne.s32.totalorder %s60, %s61
    %p75 = scmp.eq.s32.totalorder %s15, 1
    %p76 = por %p74, %p75
    %p78 = scmp.ne.s32.totalorder %s61, %s77
    %p79 = scmp.eq.s32.totalorder %s15, 0
    %p80 = por %p78, %p79
    %s81 = ssub.s32 %s17, %s24
    %p82 = scmp.eq.s32.totalorder %s81, 0
    %s84 = sadd.s32 %s83, 1
    %s85 = scalar_select %p82, %s83, %s84
    %p88 = pneg %p82
    %p89 = scmp.eq.s32.totalorder %s9, 1
    %p90 = por %p88, %p89
    %p91 = scmp.ne.s32.totalorder %s83, %s86
    %p92 = scmp.eq.s32.totalorder %s9, 0
    %p93 = por %p91, %p92
    %p94 = scmp.ne.s32.totalorder %s83, %s86
    %p95 = scmp.eq.s32.totalorder %s14, 1
    %p96 = por %p94, %p95
    %p97 = scmp.ne.s32.totalorder %s86, %s87
    %p98 = scmp.eq.s32.totalorder %s14, 0
    %p99 = por %p97, %p98
    %p100 = scmp.ne.s32.totalorder %s86, %s87
    %p101 = scmp.eq.s32.totalorder %s15, 1
    %p102 = por %p100, %p101
    %p104 = scmp.ne.s32.totalorder %s87, %s103
    %p105 = scmp.eq.s32.totalorder %s15, 0
    %p106 = por %p104, %p105
    %s107 = ssub.s32 %s16, %s28
    %s108 = ssub.s32 %s17, %s24
    %s109 = sor.u32 %s107, %s108
    %p110 = scmp.eq.s32.totalorder %s109, 0
    %s112 = sadd.s32 %s111, 1
    %s113 = scalar_select %p110, %s111, %s112
    %p116 = pneg %p110
    %p117 = scmp.eq.s32.totalorder %s9, 1
    %p118 = por %p116, %p117
    %p119 = scmp.ne.s32.totalorder %s111, %s114
    %p120 = scmp.eq.s32.totalorder %s9, 0
    %p121 = por %p119, %p120
    %p122 = scmp.ne.s32.totalorder %s111, %s114
    %p123 = scmp.eq.s32.totalorder %s14, 1
    %p124 = por %p122, %p123
    %p125 = scmp.ne.s32.totalorder %s114, %s115
    %p126 = scmp.eq.s32.totalorder %s14, 0
    %p127 = por %p125, %p126
    %p128 = scmp.ne.s32.totalorder %s114, %s115
    %p129 = scmp.eq.s32.totalorder %s15, 1
    %p130 = por %p128, %p129
    %p132 = scmp.ne.s32.totalorder %s115, %s131
    %p133 = scmp.eq.s32.totalorder %s15, 0
    %p134 = por %p132, %p133
    %p135 = scmp.le.s32.totalorder 1, %s9
    %p136 = scmp.lt.s32.totalorder %s9, 3
    %p137 = pnand %p135, %p136
    %p138 = pneg %p137
    // Predicated region
    $region9: #{basic_block_forward.2} parent=5 // pred_check
      _
    $region10: #{basic_block_forward.2} parent=5 // pred_check_branch
      %140 = sbr.rel (%p137) target = $region12
    $region11: #{basic_block_forward.2} parent=5 // pred_region
      %s141 = ssub.s32 %s9, 1
      // Predicated region
      $region13: #{basic_block_forward.2} parent=11 // pred_check
        %p142 = pneg %p73
      $region14: #{basic_block_forward.2} parent=11 // pred_check_branch
        %144 = sbr.rel (%p142) target = $region16
      $region15: #{basic_block_forward.2} parent=11 // pred_region
        %p145 = scmp.lt.s32.totalorder %s19, 0
        %s146 = scalar_select %p145, %s19, 0
        %s147 = smul.addr %s146, 4
        %s148 = scalar_lea.vmem %s1, %s147
      $region16: #{basic_block_forward.2} parent=11 // pred_fallthru
        _
      // Predicated region
      $region17: #{basic_block_forward.2} parent=11 // pred_check
        %p149 = pneg %p99
      $region18: #{basic_block_forward.2} parent=11 // pred_check_branch
        %151 = sbr.rel (%p149) target = $region20
      $region19: #{basic_block_forward.2} parent=11 // pred_region
        %p152 = scmp.lt.s32.totalorder %s19, 0
        %s153 = scalar_select %p152, %s19, 0
        %s154 = scalar_lea.vmem %s2, %s153
      $region20: #{basic_block_forward.2} parent=11 // pred_fallthru
        _
    $region12: #{basic_block_forward.2} parent=5 // pred_fallthru
      _
    %p155 = scmp.lt.s32.totalorder %s9, 2
    // Predicated region
    $region21: #{basic_block_forward.2} parent=5 // pred_check
      %p156 = pneg %p155
    $region22: #{basic_block_forward.2} parent=5 // pred_check_branch
      %158 = sbr.rel (%p156) target = $region24
    $region23: #{basic_block_forward.2} parent=5 // pred_region
      // Predicated region
      $region25: #{basic_block_forward.2} parent=23 // pred_check
        %p159 = pneg %p41
      $region26: #{basic_block_forward.2} parent=23 // pred_check_branch
        %161 = sbr.rel (%p159) target = $region28
      $region27: #{basic_block_forward.2} parent=23 // pred_region
        %p162 = scmp.lt.s32.totalorder %s16, 1
        %s163 = scalar_select %p162, %s16, 1
        %s164 = smul.addr %s163, 54
        %s165 = smul.addr %s164, 4
        %s166 = scalar_lea.vmem %s0, %s165
      $region28: #{basic_block_forward.2} parent=23 // pred_fallthru
        _
    $region24: #{basic_block_forward.2} parent=5 // pred_fallthru
      _
    %p167 = scmp.le.s32.totalorder 1, %s9
    %p168 = scmp.lt.s32.totalorder %s9, 3
    %p169 = pnand %p167, %p168
    %p170 = pneg %p169
    // Predicated region
    $region29: #{basic_block_forward.2} parent=5 // pred_check
      _
    $region30: #{basic_block_forward.2} parent=5 // pred_check_branch
      %172 = sbr.rel (%p169) target = $region32
    $region31: #{basic_block_forward.2} parent=5 // pred_region
      %s173 = ssub.s32 %s9, 1
      %p174 = scmp.lt.s32.totalorder %s18, 1
      %s175 = scalar_select %p174, %s18, 1
      %s176 = smul.addr %s175, 54
      %s177 = smul.addr %s176, 4
      %s178 = scalar_lea.vmem %s0, %s177
      %p179 = pneg %p47
      %p180 = pneg %p44
      %p181 = scmp.lt.s32.totalorder %s19, 0
      %s182 = scalar_select %p181, %s19, 0
      %s183 = smul.addr %s182, 4
      %s184 = scalar_lea.vmem %s1, %s183
      %p185 = pneg %p73
      %p186 = pneg %p70
      %p187 = scmp.lt.s32.totalorder %s19, 0
      %s188 = scalar_select %p187, %s19, 0
      %s189 = scalar_lea.vmem %s2, %s188
      %p190 = pneg %p99
      %p191 = pneg %p96
      %p192 = pneg %p127
      %p193 = pneg %p124
      %p194 = scmp.lt.s32.totalorder %s18, 1
      %s195 = scalar_select %p194, %s18, 1
      %p196 = scmp.lt.s32.totalorder %s19, 0
      %s197 = scalar_select %p196, %s19, 0
      %s198 = smul.addr %s195, 32
      %s199 = sadd.s32 %s197, %s198
      %s200 = smul.addr %s199, 4
      %s201 = scalar_lea.vmem %s3, %s200
      %p202 = scmp.lt.s32.totalorder %s18, 1
      %s203 = scalar_select %p202, %s18, 1
      %s204 = smul.addr %s203, 54
      %s205 = smul.addr %s204, 4
      %s206 = scalar_lea.vmem %s0, %s205
      %p207 = scmp.lt.s32.totalorder %s19, 0
      %s208 = scalar_select %p207, %s19, 0
      %s209 = smul.addr %s208, 4
      %s210 = scalar_lea.vmem %s1, %s209
      %p211 = scmp.lt.s32.totalorder %s19, 0
      %s212 = scalar_select %p211, %s19, 0
      %s213 = scalar_lea.vmem %s2, %s212
      %p214 = scmp.lt.s32.totalorder %s18, 1
      %s215 = scalar_select %p214, %s18, 1
      %p216 = scmp.lt.s32.totalorder %s19, 0
      %s217 = scalar_select %p216, %s19, 0
      %s218 = smul.addr %s215, 32
      %s219 = sadd.s32 %s217, %s218
      %s220 = smul.addr %s219, 4
      %s221 = scalar_lea.vmem %s3, %s220
      %v223 = vld [vmem:[%s206] sm:$0xf]
      %v224 = vld [vmem:[%s206 + $0x4] sm:$0xf]
      %v225 = vld [vmem:[%s206 + $0xc] sm:$0xf]
      %v226 = vld [vmem:[%s206 + $0x10] sm:$0xf]
      %v227 = vld [vmem:[%s206 + $0x18] sm:$0xf]
      %v228 = vld [vmem:[%s206 + $0x1c] sm:$0xf]
      %v229 = vld [vmem:[%s206 + $0x24] sm:$0xf]
      %v230 = vld [vmem:[%s206 + $0x28] sm:$0xf]
      %v231 = vld [vmem:[%s206 + $0x30] sm:$0xf]
      %v232 = vld [vmem:[%s206 + $0x34] sm:$0xf]
      %v233 = vld [vmem:[%s206 + $0x3c] sm:$0xf]
      %v234 = vld [vmem:[%s206 + $0x40] sm:$0xf]
      %v235 = vld [vmem:[%s206 + $0x48] sm:$0xf]
      %v236 = vld [vmem:[%s206 + $0x4c] sm:$0xf]
      %v237 = vld [vmem:[%s206 + $0x54] sm:$0xf]
      %v238 = vld [vmem:[%s206 + $0x58] sm:$0xf]
      %v239 = vld [vmem:[%s206 + $0x60] sm:$0xf]
      %v240 = vld [vmem:[%s206 + $0x64] sm:$0xf]
      %v241 = vld [vmem:[%s206 + $0x6c] sm:$0xf]
      %v242 = vld [vmem:[%s206 + $0x70] sm:$0xf]
      %v243 = vld [vmem:[%s206 + $0x78] sm:$0xf]
      %v244 = vld [vmem:[%s206 + $0x7c] sm:$0xf]
      %v245 = vld [vmem:[%s206 + $0x84] sm:$0xf]
      %v246 = vld [vmem:[%s206 + $0x88] sm:$0xf]
      %v247 = vld [vmem:[%s206 + $0x90] sm:$0xf]
      %v248 = vld [vmem:[%s206 + $0x94] sm:$0xf]
      %v249 = vld [vmem:[%s206 + $0x9c] sm:$0xf]
      %v250 = vld [vmem:[%s206 + $0xa0] sm:$0xf]
      %v251 = vld [vmem:[%s206 + $0xa8] sm:$0xf]
      %v252 = vld [vmem:[%s206 + $0xac] sm:$0xf]
      %v253 = vld [vmem:[%s206 + $0xb4] sm:$0xf]
      %v254 = vld [vmem:[%s206 + $0xb8] sm:$0xf]
      %v255 = vld [vmem:[%s210] sm:$0xf]
      %v256 = vld [vmem:[%s206 + $0x8] sm:$0x1]
      %v257 = vld [vmem:[%s206 + $0x14] sm:$0x1]
      %v258 = vld [vmem:[%s206 + $0x20] sm:$0x1]
      %v259 = vld [vmem:[%s206 + $0x2c] sm:$0x1]
      %v260 = vld [vmem:[%s206 + $0x38] sm:$0x1]
      %v261 = vld [vmem:[%s206 + $0x44] sm:$0x1]
      %v262 = vld [vmem:[%s206 + $0x50] sm:$0x1]
      %v263 = vld [vmem:[%s206 + $0x5c] sm:$0x1]
      %v264 = vld [vmem:[%s206 + $0x68] sm:$0x1]
      %v265 = vld [vmem:[%s206 + $0x74] sm:$0x1]
      %v266 = vld [vmem:[%s206 + $0x80] sm:$0x1]
      %v267 = vld [vmem:[%s206 + $0x8c] sm:$0x1]
      %v268 = vld [vmem:[%s206 + $0x98] sm:$0x1]
      %v269 = vld [vmem:[%s206 + $0xa4] sm:$0x1]
      %v270 = vld [vmem:[%s206 + $0xb0] sm:$0x1]
      %v271 = vld [vmem:[%s206 + $0xbc] sm:$0x1]
      %vm272 = vsmask.f32 3328
      %vm273 = vsmask.f32 7440
      %vm274 = vmor %vm272, %vm273
      %v276 = vshrl.u32 %v223, 16
      %v278 = vrot.slane %v276, 4
      %v279 = vshll.u32 %v223, 16
      %v281 = vrot.slane %v279, 5
      %v282 = vor.u32 %v278, %v281
      %v283 = vrot.slane %v282, 4
      %v285 = vshll.u32 %v224, 16
      %v287 = vrot.slane %v285, 5
      %v288 = vsel %vm274, %v283, %v287
      %v289 = vshrl.u32 %v224, 16
      %v291 = vrot.slane %v289, 4
      %v292 = vor.u32 %v291, %v287
      %v293 = vrot.slane %v292, 4
      %v295 = vshll.u32 %v256, 16
      %v297 = vrot.slane %v295, 5
      %v298 = vsel %vm274, %v293, %v297
      %v300 = vshrl.u32 %v225, 16
      %v302 = vrot.slane %v300, 4
      %v303 = vshll.u32 %v225, 16
      %v305 = vrot.slane %v303, 5
      %v306 = vor.u32 %v302, %v305
      %v307 = vrot.slane %v306, 4
      %v309 = vshll.u32 %v226, 16
      %v311 = vrot.slane %v309, 5
      %v312 = vsel %vm274, %v307, %v311
      %v313 = vshrl.u32 %v226, 16
      %v315 = vrot.slane %v313, 4
      %v316 = vor.u32 %v315, %v311
      %v317 = vrot.slane %v316, 4
      %v319 = vshll.u32 %v257, 16
      %v321 = vrot.slane %v319, 5
      %v322 = vsel %vm274, %v317, %v321
      %v324 = vshrl.u32 %v227, 16
      %v326 = vrot.slane %v324, 4
      %v327 = vshll.u32 %v227, 16
      %v329 = vrot.slane %v327, 5
      %v330 = vor.u32 %v326, %v329
      %v331 = vrot.slane %v330, 4
      %v333 = vshll.u32 %v228, 16
      %v335 = vrot.slane %v333, 5
      %v336 = vsel %vm274, %v331, %v335
      %v337 = vshrl.u32 %v228, 16
      %v339 = vrot.slane %v337, 4
      %v340 = vor.u32 %v339, %v335
      %v341 = vrot.slane %v340, 4
      %v343 = vshll.u32 %v258, 16
      %v345 = vrot.slane %v343, 5
      %v346 = vsel %vm274, %v341, %v345
      %v348 = vshrl.u32 %v229, 16
      %v350 = vrot.slane %v348, 4
      %v351 = vshll.u32 %v229, 16
      %v353 = vrot.slane %v351, 5
      %v354 = vor.u32 %v350, %v353
      %v355 = vrot.slane %v354, 4
      %v357 = vshll.u32 %v230, 16
      %v359 = vrot.slane %v357, 5
      %v360 = vsel %vm274, %v355, %v359
      %v361 = vshrl.u32 %v230, 16
      %v363 = vrot.slane %v361, 4
      %v364 = vor.u32 %v363, %v359
      %v365 = vrot.slane %v364, 4
      %v367 = vshll.u32 %v259, 16
      %v369 = vrot.slane %v367, 5
      %v370 = vsel %vm274, %v365, %v369
      %v372 = vshrl.u32 %v231, 16
      %v374 = vrot.slane %v372, 4
      %v375 = vshll.u32 %v231, 16
      %v377 = vrot.slane %v375, 5
      %v378 = vor.u32 %v374, %v377
      %v379 = vrot.slane %v378, 4
      %v381 = vshll.u32 %v232, 16
      %v383 = vrot.slane %v381, 5
      %v384 = vsel %vm274, %v379, %v383
      %v385 = vshrl.u32 %v232, 16
      %v387 = vrot.slane %v385, 4
      %v388 = vor.u32 %v387, %v383
      %v389 = vrot.slane %v388, 4
      %v391 = vshll.u32 %v260, 16
      %v393 = vrot.slane %v391, 5
      %v394 = vsel %vm274, %v389, %v393
      %v396 = vshrl.u32 %v233, 16
      %v398 = vrot.slane %v396, 4
      %v399 = vshll.u32 %v233, 16
      %v401 = vrot.slane %v399, 5
      %v402 = vor.u32 %v398, %v401
      %v403 = vrot.slane %v402, 4
      %v405 = vshll.u32 %v234, 16
      %v407 = vrot.slane %v405, 5
      %v408 = vsel %vm274, %v403, %v407
      %v409 = vshrl.u32 %v234, 16
      %v411 = vrot.slane %v409, 4
      %v412 = vor.u32 %v411, %v407
      %v413 = vrot.slane %v412, 4
      %v415 = vshll.u32 %v261, 16
      %v417 = vrot.slane %v415, 5
      %v418 = vsel %vm274, %v413, %v417
      %v420 = vshrl.u32 %v235, 16
      %v422 = vrot.slane %v420, 4
      %v423 = vshll.u32 %v235, 16
      %v425 = vrot.slane %v423, 5
      %v426 = vor.u32 %v422, %v425
      %v427 = vrot.slane %v426, 4
      %v429 = vshll.u32 %v236, 16
      %v431 = vrot.slane %v429, 5
      %v432 = vsel %vm274, %v427, %v431
      %v433 = vshrl.u32 %v236, 16
      %v435 = vrot.slane %v433, 4
      %v436 = vor.u32 %v435, %v431
      %v437 = vrot.slane %v436, 4
      %v439 = vshll.u32 %v262, 16
      %v441 = vrot.slane %v439, 5
      %v442 = vsel %vm274, %v437, %v441
      %v444 = vshrl.u32 %v237, 16
      %v446 = vrot.slane %v444, 4
      %v447 = vshll.u32 %v237, 16
      %v449 = vrot.slane %v447, 5
      %v450 = vor.u32 %v446, %v449
      %v451 = vrot.slane %v450, 4
      %v453 = vshll.u32 %v238, 16
      %v455 = vrot.slane %v453, 5
      %v456 = vsel %vm274, %v451, %v455
      %v457 = vshrl.u32 %v238, 16
      %v459 = vrot.slane %v457, 4
      %v460 = vor.u32 %v459, %v455
      %v461 = vrot.slane %v460, 4
      %v463 = vshll.u32 %v263, 16
      %v465 = vrot.slane %v463, 5
      %v466 = vsel %vm274, %v461, %v465
      %v468 = vshrl.u32 %v239, 16
      %v470 = vrot.slane %v468, 4
      %v471 = vshll.u32 %v239, 16
      %v473 = vrot.slane %v471, 5
      %v474 = vor.u32 %v470, %v473
      %v475 = vrot.slane %v474, 4
      %v477 = vshll.u32 %v240, 16
      %v479 = vrot.slane %v477, 5
      %v480 = vsel %vm274, %v475, %v479
      %v481 = vshrl.u32 %v240, 16
      %v483 = vrot.slane %v481, 4
      %v484 = vor.u32 %v483, %v479
      %v485 = vrot.slane %v484, 4
      %v487 = vshll.u32 %v264, 16
      %v489 = vrot.slane %v487, 5
      %v490 = vsel %vm274, %v485, %v489
      %v492 = vshrl.u32 %v241, 16
      %v494 = vrot.slane %v492, 4
      %v495 = vshll.u32 %v241, 16
      %v497 = vrot.slane %v495, 5
      %v498 = vor.u32 %v494, %v497
      %v499 = vrot.slane %v498, 4
      %v501 = vshll.u32 %v242, 16
      %v503 = vrot.slane %v501, 5
      %v504 = vsel %vm274, %v499, %v503
      %v505 = vshrl.u32 %v242, 16
      %v507 = vrot.slane %v505, 4
      %v508 = vor.u32 %v507, %v503
      %v509 = vrot.slane %v508, 4
      %v511 = vshll.u32 %v265, 16
      %v513 = vrot.slane %v511, 5
      %v514 = vsel %vm274, %v509, %v513
      %v516 = vshrl.u32 %v243, 16
      %v518 = vrot.slane %v516, 4
      %v519 = vshll.u32 %v243, 16
      %v521 = vrot.slane %v519, 5
      %v522 = vor.u32 %v518, %v521
      %v523 = vrot.slane %v522, 4
      %v525 = vshll.u32 %v244, 16
      %v527 = vrot.slane %v525, 5
      %v528 = vsel %vm274, %v523, %v527
      %v529 = vshrl.u32 %v244, 16
      %v531 = vrot.slane %v529, 4
      %v532 = vor.u32 %v531, %v527
      %v533 = vrot.slane %v532, 4
      %v535 = vshll.u32 %v266, 16
      %v537 = vrot.slane %v535, 5
      %v538 = vsel %vm274, %v533, %v537
      %v540 = vshrl.u32 %v245, 16
      %v542 = vrot.slane %v540, 4
      %v543 = vshll.u32 %v245, 16
      %v545 = vrot.slane %v543, 5
      %v546 = vor.u32 %v542, %v545
      %v547 = vrot.slane %v546, 4
      %v549 = vshll.u32 %v246, 16
      %v551 = vrot.slane %v549, 5
      %v552 = vsel %vm274, %v547, %v551
      %v553 = vshrl.u32 %v246, 16
      %v555 = vrot.slane %v553, 4
      %v556 = vor.u32 %v555, %v551
      %v557 = vrot.slane %v556, 4
      %v559 = vshll.u32 %v267, 16
      %v561 = vrot.slane %v559, 5
      %v562 = vsel %vm274, %v557, %v561
      %v564 = vshrl.u32 %v247, 16
      %v566 = vrot.slane %v564, 4
      %v567 = vshll.u32 %v247, 16
      %v569 = vrot.slane %v567, 5
      %v570 = vor.u32 %v566, %v569
      %v571 = vrot.slane %v570, 4
      %v573 = vshll.u32 %v248, 16
      %v575 = vrot.slane %v573, 5
      %v576 = vsel %vm274, %v571, %v575
      %v577 = vshrl.u32 %v248, 16
      %v579 = vrot.slane %v577, 4
      %v580 = vor.u32 %v579, %v575
      %v581 = vrot.slane %v580, 4
      %v583 = vshll.u32 %v268, 16
      %v585 = vrot.slane %v583, 5
      %v586 = vsel %vm274, %v581, %v585
      %v588 = vshrl.u32 %v249, 16
      %v590 = vrot.slane %v588, 4
      %v591 = vshll.u32 %v249, 16
      %v593 = vrot.slane %v591, 5
      %v594 = vor.u32 %v590, %v593
      %v595 = vrot.slane %v594, 4
      %v597 = vshll.u32 %v250, 16
      %v599 = vrot.slane %v597, 5
      %v600 = vsel %vm274, %v595, %v599
      %v601 = vshrl.u32 %v250, 16
      %v603 = vrot.slane %v601, 4
      %v604 = vor.u32 %v603, %v599
      %v605 = vrot.slane %v604, 4
      %v607 = vshll.u32 %v269, 16
      %v609 = vrot.slane %v607, 5
      %v610 = vsel %vm274, %v605, %v609
      %v612 = vshrl.u32 %v251, 16
      %v614 = vrot.slane %v612, 4
      %v615 = vshll.u32 %v251, 16
      %v617 = vrot.slane %v615, 5
      %v618 = vor.u32 %v614, %v617
      %v619 = vrot.slane %v618, 4
      %v621 = vshll.u32 %v252, 16
      %v623 = vrot.slane %v621, 5
      %v624 = vsel %vm274, %v619, %v623
      %v625 = vshrl.u32 %v252, 16
      %v627 = vrot.slane %v625, 4
      %v628 = vor.u32 %v627, %v623
      %v629 = vrot.slane %v628, 4
      %v631 = vshll.u32 %v270, 16
      %v633 = vrot.slane %v631, 5
      %v634 = vsel %vm274, %v629, %v633
      %v636 = vshrl.u32 %v253, 16
      %v638 = vrot.slane %v636, 4
      %v639 = vshll.u32 %v253, 16
      %v641 = vrot.slane %v639, 5
      %v642 = vor.u32 %v638, %v641
      %v643 = vrot.slane %v642, 4
      %v645 = vshll.u32 %v254, 16
      %v647 = vrot.slane %v645, 5
      %v648 = vsel %vm274, %v643, %v647
      %v649 = vshrl.u32 %v254, 16
      %v651 = vrot.slane %v649, 4
      %v652 = vor.u32 %v651, %v647
      %v653 = vrot.slane %v652, 4
      %v655 = vshll.u32 %v271, 16
      %v657 = vrot.slane %v655, 5
      %v658 = vsel %vm274, %v653, %v657
      %s659 = scalar_lea.vmem %s210, 4
      %v660 = vld [vmem:[%s659] sm:$0xf]
      %v661 = vunpack.c.l.b16 %v288
      %v662 = vunpack.c.l.b16 %v298
      %v663 = vunpack.c.l.b16 %v312
      %v664 = vunpack.c.l.b16 %v322
      %v665 = vunpack.c.l.b16 %v336
      %v666 = vunpack.c.l.b16 %v346
      %v667 = vunpack.c.l.b16 %v360
      %v668 = vunpack.c.l.b16 %v370
      %v669 = vunpack.c.l.b16 %v384
      %v670 = vunpack.c.l.b16 %v394
      %v671 = vunpack.c.l.b16 %v408
      %v672 = vunpack.c.l.b16 %v418
      %v673 = vunpack.c.l.b16 %v432
      %v674 = vunpack.c.l.b16 %v442
      %v675 = vunpack.c.l.b16 %v456
      %v676 = vunpack.c.l.b16 %v466
      %v677 = vunpack.c.l.b16 %v480
      %v678 = vunpack.c.l.b16 %v490
      %v679 = vunpack.c.l.b16 %v504
      %v680 = vunpack.c.l.b16 %v514
      %v681 = vunpack.c.l.b16 %v528
      %v682 = vunpack.c.l.b16 %v538
      %v683 = vunpack.c.l.b16 %v552
      %v684 = vunpack.c.l.b16 %v562
      %v685 = vunpack.c.l.b16 %v576
      %v686 = vunpack.c.l.b16 %v586
      %v687 = vunpack.c.l.b16 %v600
      %v688 = vunpack.c.l.b16 %v610
      %v689 = vunpack.c.l.b16 %v624
      %v690 = vunpack.c.l.b16 %v634
      %v691 = vunpack.c.l.b16 %v648
      %v692 = vunpack.c.l.b16 %v658
      %v693 = vpack.c.b16 %v662, %v661
      %v694 = vpack.c.b16 %v664, %v663
      %v695 = vpack.c.b16 %v666, %v665
      %v696 = vpack.c.b16 %v668, %v667
      %v697 = vpack.c.b16 %v670, %v669
      %v698 = vpack.c.b16 %v672, %v671
      %v699 = vpack.c.b16 %v674, %v673
      %v700 = vpack.c.b16 %v676, %v675
      %v701 = vpack.c.b16 %v678, %v677
      %v702 = vpack.c.b16 %v680, %v679
      %v703 = vpack.c.b16 %v682, %v681
      %v704 = vpack.c.b16 %v684, %v683
      %v705 = vpack.c.b16 %v686, %v685
      %v706 = vpack.c.b16 %v688, %v687
      %v707 = vpack.c.b16 %v690, %v689
      %v708 = vpack.c.b16 %v692, %v691
      %vm709 = vcmask 64512
      %v711 = vsel %vm709, %v693, 0
      %v714 = vsel %vm709, %v694, 0
      %v717 = vsel %vm709, %v695, 0
      %v720 = vsel %vm709, %v696, 0
      %v723 = vsel %vm709, %v697, 0
      %v726 = vsel %vm709, %v698, 0
      %v729 = vsel %vm709, %v699, 0
      %v732 = vsel %vm709, %v700, 0
      %v735 = vsel %vm709, %v701, 0
      %v738 = vsel %vm709, %v702, 0
      %v741 = vsel %vm709, %v703, 0
      %v744 = vsel %vm709, %v704, 0
      %v747 = vsel %vm709, %v705, 0
      %v750 = vsel %vm709, %v706, 0
      %v753 = vsel %vm709, %v707, 0
      %v756 = vsel %vm709, %v708, 0
      %vm758 = vcmask 1043456
      %v760 = vsel %vm758, %v660, 0
      %762 = vmatpush.bf16.msra.mxu0 0
      %763 = vmatpush.bf16.msra.mxu0 0
      %764 = vmatpush.bf16.msra.mxu0 0
      %765 = vmatpush.bf16.msra.mxu0 0
      %766 = vmatpush.bf16.msra.mxu0 0
      %767 = vmatpush.bf16.msra.mxu0 0
      %768 = vmatpush.bf16.msra.mxu0 0
      %769 = vmatpush.bf16.msra.mxu0 %v760
      %770 = vmatmul.bf16.gmra.mxu0 %v711
      %v771 = vpop.f32.mrf.mxu0
      %v772 = vadd.f32 0.0, %v771
      %v773 = vpop.f32.mrf.mxu0
      %v774 = vadd.f32 0.0, %v773
      %775 = vmatmul.bf16.gmra.mxu0 %v714
      %v776 = vpop.f32.mrf.mxu0
      %v777 = vadd.f32 0.0, %v776
      %v778 = vpop.f32.mrf.mxu0
      %v779 = vadd.f32 0.0, %v778
      %780 = vmatmul.bf16.gmra.mxu0 %v717
      %v781 = vpop.f32.mrf.mxu0
      %v782 = vadd.f32 0.0, %v781
      %v783 = vpop.f32.mrf.mxu0
      %v784 = vadd.f32 0.0, %v783
      %785 = vmatmul.bf16.gmra.mxu0 %v720
      %v786 = vpop.f32.mrf.mxu0
      %v787 = vadd.f32 0.0, %v786
      %v788 = vpop.f32.mrf.mxu0
      %v789 = vadd.f32 0.0, %v788
      %790 = vmatmul.bf16.gmra.mxu0 %v723
      %v791 = vpop.f32.mrf.mxu0
      %v792 = vadd.f32 0.0, %v791
      %v793 = vpop.f32.mrf.mxu0
      %v794 = vadd.f32 0.0, %v793
      %795 = vmatmul.bf16.gmra.mxu0 %v726
      %v796 = vpop.f32.mrf.mxu0
      %v797 = vadd.f32 0.0, %v796
      %v798 = vpop.f32.mrf.mxu0
      %v799 = vadd.f32 0.0, %v798
      %800 = vmatmul.bf16.gmra.mxu0 %v729
      %v801 = vpop.f32.mrf.mxu0
      %v802 = vadd.f32 0.0, %v801
      %v803 = vpop.f32.mrf.mxu0
      %v804 = vadd.f32 0.0, %v803
      %805 = vmatmul.bf16.gmra.mxu0 %v732
      %v806 = vpop.f32.mrf.mxu0
      %v807 = vadd.f32 0.0, %v806
      %v808 = vpop.f32.mrf.mxu0
      %v809 = vadd.f32 0.0, %v808
      %810 = vmatmul.bf16.gmra.mxu0 %v735
      %v811 = vpop.f32.mrf.mxu0
      %v812 = vadd.f32 0.0, %v811
      %v813 = vpop.f32.mrf.mxu0
      %v814 = vadd.f32 0.0, %v813
      %815 = vmatmul.bf16.gmra.mxu0 %v738
      %v816 = vpop.f32.mrf.mxu0
      %v817 = vadd.f32 0.0, %v816
      %v818 = vpop.f32.mrf.mxu0
      %v819 = vadd.f32 0.0, %v818
      %820 = vmatmul.bf16.gmra.mxu0 %v741
      %v821 = vpop.f32.mrf.mxu0
      %v822 = vadd.f32 0.0, %v821
      %v823 = vpop.f32.mrf.mxu0
      %v824 = vadd.f32 0.0, %v823
      %825 = vmatmul.bf16.gmra.mxu0 %v744
      %v826 = vpop.f32.mrf.mxu0
      %v827 = vadd.f32 0.0, %v826
      %v828 = vpop.f32.mrf.mxu0
      %v829 = vadd.f32 0.0, %v828
      %830 = vmatmul.bf16.gmra.mxu0 %v747
      %v831 = vpop.f32.mrf.mxu0
      %v832 = vadd.f32 0.0, %v831
      %v833 = vpop.f32.mrf.mxu0
      %v834 = vadd.f32 0.0, %v833
      %835 = vmatmul.bf16.gmra.mxu0 %v750
      %v836 = vpop.f32.mrf.mxu0
      %v837 = vadd.f32 0.0, %v836
      %v838 = vpop.f32.mrf.mxu0
      %v839 = vadd.f32 0.0, %v838
      %840 = vmatmul.bf16.gmra.mxu0 %v753
      %v841 = vpop.f32.mrf.mxu0
      %v842 = vadd.f32 0.0, %v841
      %v843 = vpop.f32.mrf.mxu0
      %v844 = vadd.f32 0.0, %v843
      %845 = vmatmul.bf16.gmra.mxu0 %v756
      %v846 = vpop.f32.mrf.mxu0
      %v847 = vadd.f32 0.0, %v846
      %v848 = vpop.f32.mrf.mxu0
      %v849 = vadd.f32 0.0, %v848
      %850 = vdwg.mxu0
      %v883 = vunpack.c.l.b16 %v223
      %v884 = vunpack.c.l.b16 %v224
      %v885 = vunpack.c.l.b16 %v225
      %v886 = vunpack.c.l.b16 %v226
      %v887 = vunpack.c.l.b16 %v227
      %v888 = vunpack.c.l.b16 %v228
      %v889 = vunpack.c.l.b16 %v229
      %v890 = vunpack.c.l.b16 %v230
      %v891 = vunpack.c.l.b16 %v231
      %v892 = vunpack.c.l.b16 %v232
      %v893 = vunpack.c.l.b16 %v233
      %v894 = vunpack.c.l.b16 %v234
      %v895 = vunpack.c.l.b16 %v235
      %v896 = vunpack.c.l.b16 %v236
      %v897 = vunpack.c.l.b16 %v237
      %v898 = vunpack.c.l.b16 %v238
      %v899 = vunpack.c.l.b16 %v239
      %v900 = vunpack.c.l.b16 %v240
      %v901 = vunpack.c.l.b16 %v241
      %v902 = vunpack.c.l.b16 %v242
      %v903 = vunpack.c.l.b16 %v243
      %v904 = vunpack.c.l.b16 %v244
      %v905 = vunpack.c.l.b16 %v245
      %v906 = vunpack.c.l.b16 %v246
      %v907 = vunpack.c.l.b16 %v247
      %v908 = vunpack.c.l.b16 %v248
      %v909 = vunpack.c.l.b16 %v249
      %v910 = vunpack.c.l.b16 %v250
      %v911 = vunpack.c.l.b16 %v251
      %v912 = vunpack.c.l.b16 %v252
      %v913 = vunpack.c.l.b16 %v253
      %v914 = vunpack.c.l.b16 %v254
      %v915 = vpack.c.b16 %v884, %v883
      %v916 = vpack.c.b16 %v886, %v885
      %v917 = vpack.c.b16 %v888, %v887
      %v918 = vpack.c.b16 %v890, %v889
      %v919 = vpack.c.b16 %v892, %v891
      %v920 = vpack.c.b16 %v894, %v893
      %v921 = vpack.c.b16 %v896, %v895
      %v922 = vpack.c.b16 %v898, %v897
      %v923 = vpack.c.b16 %v900, %v899
      %v924 = vpack.c.b16 %v902, %v901
      %v925 = vpack.c.b16 %v904, %v903
      %v926 = vpack.c.b16 %v906, %v905
      %v927 = vpack.c.b16 %v908, %v907
      %v928 = vpack.c.b16 %v910, %v909
      %v929 = vpack.c.b16 %v912, %v911
      %v930 = vpack.c.b16 %v914, %v913
      %v932 = vsel %vm709, %v915, 0
      %v935 = vsel %vm709, %v916, 0
      %v938 = vsel %vm709, %v917, 0
      %v941 = vsel %vm709, %v918, 0
      %v944 = vsel %vm709, %v919, 0
      %v947 = vsel %vm709, %v920, 0
      %v950 = vsel %vm709, %v921, 0
      %v953 = vsel %vm709, %v922, 0
      %v956 = vsel %vm709, %v923, 0
      %v959 = vsel %vm709, %v924, 0
      %v962 = vsel %vm709, %v925, 0
      %v965 = vsel %vm709, %v926, 0
      %v968 = vsel %vm709, %v927, 0
      %v971 = vsel %vm709, %v928, 0
      %v974 = vsel %vm709, %v929, 0
      %v977 = vsel %vm709, %v930, 0
      %v980 = vsel %vm758, %v255, 0
      %982 = vmatpush.bf16.msra.mxu0 0
      %983 = vmatpush.bf16.msra.mxu0 0
      %984 = vmatpush.bf16.msra.mxu0 0
      %985 = vmatpush.bf16.msra.mxu0 0
      %986 = vmatpush.bf16.msra.mxu0 0
      %987 = vmatpush.bf16.msra.mxu0 0
      %988 = vmatpush.bf16.msra.mxu0 0
      %989 = vmatpush.bf16.msra.mxu0 %v980
      %990 = vmatmul.bf16.gmra.mxu0 %v932
      %v991 = vpop.f32.mrf.mxu0
      %v992 = vadd.f32 %v772, %v991
      %v993 = vpop.f32.mrf.mxu0
      %v994 = vadd.f32 %v774, %v993
      %995 = vmatmul.bf16.gmra.mxu0 %v935
      %v996 = vpop.f32.mrf.mxu0
      %v997 = vadd.f32 %v777, %v996
      %v998 = vpop.f32.mrf.mxu0
      %v999 = vadd.f32 %v779, %v998
      %1000 = vmatmul.bf16.gmra.mxu0 %v938
      %v1001 = vpop.f32.mrf.mxu0
      %v1002 = vadd.f32 %v782, %v1001
      %v1003 = vpop.f32.mrf.mxu0
      %v1004 = vadd.f32 %v784, %v1003
      %1005 = vmatmul.bf16.gmra.mxu0 %v941
      %v1006 = vpop.f32.mrf.mxu0
      %v1007 = vadd.f32 %v787, %v1006
      %v1008 = vpop.f32.mrf.mxu0
      %v1009 = vadd.f32 %v789, %v1008
      %1010 = vmatmul.bf16.gmra.mxu0 %v944
      %v1011 = vpop.f32.mrf.mxu0
      %v1012 = vadd.f32 %v792, %v1011
      %v1013 = vpop.f32.mrf.mxu0
      %v1014 = vadd.f32 %v794, %v1013
      %1015 = vmatmul.bf16.gmra.mxu0 %v947
      %v1016 = vpop.f32.mrf.mxu0
      %v1017 = vadd.f32 %v797, %v1016
      %v1018 = vpop.f32.mrf.mxu0
      %v1019 = vadd.f32 %v799, %v1018
      %1020 = vmatmul.bf16.gmra.mxu0 %v950
      %v1021 = vpop.f32.mrf.mxu0
      %v1022 = vadd.f32 %v802, %v1021
      %v1023 = vpop.f32.mrf.mxu0
      %v1024 = vadd.f32 %v804, %v1023
      %1025 = vmatmul.bf16.gmra.mxu0 %v953
      %v1026 = vpop.f32.mrf.mxu0
      %v1027 = vadd.f32 %v807, %v1026
      %v1028 = vpop.f32.mrf.mxu0
      %v1029 = vadd.f32 %v809, %v1028
      %1030 = vmatmul.bf16.gmra.mxu0 %v956
      %v1031 = vpop.f32.mrf.mxu0
      %v1032 = vadd.f32 %v812, %v1031
      %v1033 = vpop.f32.mrf.mxu0
      %v1034 = vadd.f32 %v814, %v1033
      %1035 = vmatmul.bf16.gmra.mxu0 %v959
      %v1036 = vpop.f32.mrf.mxu0
      %v1037 = vadd.f32 %v817, %v1036
      %v1038 = vpop.f32.mrf.mxu0
      %v1039 = vadd.f32 %v819, %v1038
      %1040 = vmatmul.bf16.gmra.mxu0 %v962
      %v1041 = vpop.f32.mrf.mxu0
      %v1042 = vadd.f32 %v822, %v1041
      %v1043 = vpop.f32.mrf.mxu0
      %v1044 = vadd.f32 %v824, %v1043
      %1045 = vmatmul.bf16.gmra.mxu0 %v965
      %v1046 = vpop.f32.mrf.mxu0
      %v1047 = vadd.f32 %v827, %v1046
      %v1048 = vpop.f32.mrf.mxu0
      %v1049 = vadd.f32 %v829, %v1048
      %1050 = vmatmul.bf16.gmra.mxu0 %v968
      %v1051 = vpop.f32.mrf.mxu0
      %v1052 = vadd.f32 %v832, %v1051
      %v1053 = vpop.f32.mrf.mxu0
      %v1054 = vadd.f32 %v834, %v1053
      %1055 = vmatmul.bf16.gmra.mxu0 %v971
      %v1056 = vpop.f32.mrf.mxu0
      %v1057 = vadd.f32 %v837, %v1056
      %v1058 = vpop.f32.mrf.mxu0
      %v1059 = vadd.f32 %v839, %v1058
      %1060 = vmatmul.bf16.gmra.mxu0 %v974
      %v1061 = vpop.f32.mrf.mxu0
      %v1062 = vadd.f32 %v842, %v1061
      %v1063 = vpop.f32.mrf.mxu0
      %v1064 = vadd.f32 %v844, %v1063
      %1065 = vmatmul.bf16.gmra.mxu0 %v977
      %v1066 = vpop.f32.mrf.mxu0
      %v1067 = vadd.f32 %v847, %v1066
      %v1068 = vpop.f32.mrf.mxu0
      %v1069 = vadd.f32 %v849, %v1068
      %1070 = vdwg.mxu0
      %v1071 = vld [vmem:[%s206] sm:$0xe]
      %v1072 = vld [vmem:[%s206 + $0xc] sm:$0xe]
      %v1073 = vld [vmem:[%s206 + $0x18] sm:$0xe]
      %v1074 = vld [vmem:[%s206 + $0x24] sm:$0xe]
      %v1075 = vld [vmem:[%s206 + $0x30] sm:$0xe]
      %v1076 = vld [vmem:[%s206 + $0x3c] sm:$0xe]
      %v1077 = vld [vmem:[%s206 + $0x48] sm:$0xe]
      %v1078 = vld [vmem:[%s206 + $0x54] sm:$0xe]
      %v1079 = vld [vmem:[%s206 + $0x60] sm:$0xe]
      %v1080 = vld [vmem:[%s206 + $0x6c] sm:$0xe]
      %v1081 = vld [vmem:[%s206 + $0x78] sm:$0xe]
      %v1082 = vld [vmem:[%s206 + $0x84] sm:$0xe]
      %v1083 = vld [vmem:[%s206 + $0x90] sm:$0xe]
      %v1084 = vld [vmem:[%s206 + $0x9c] sm:$0xe]
      %v1085 = vld [vmem:[%s206 + $0xa8] sm:$0xe]
      %v1086 = vld [vmem:[%s206 + $0xb4] sm:$0xe]
      %vm1119 = vcmask 1042432
      %vm1120 = vcmask 1046532
      %vm1121 = vmor %vm1119, %vm1120
      %v1122 = vrot.slane %v1071, 5
      %v1123 = vrot.slane %v1122, 4
      %v1124 = vrot.slane %v224, 5
      %v1125 = vsel %vm1121, %v1123, %v1124
      %v1126 = vrot.slane %v1124, 4
      %v1127 = vrot.slane %v256, 5
      %v1128 = vsel %vm1121, %v1126, %v1127
      %v1129 = vrot.slane %v1072, 5
      %v1130 = vrot.slane %v1129, 4
      %v1131 = vrot.slane %v226, 5
      %v1132 = vsel %vm1121, %v1130, %v1131
      %v1133 = vrot.slane %v1131, 4
      %v1134 = vrot.slane %v257, 5
      %v1135 = vsel %vm1121, %v1133, %v1134
      %v1136 = vrot.slane %v1073, 5
      %v1137 = vrot.slane %v1136, 4
      %v1138 = vrot.slane %v228, 5
      %v1139 = vsel %vm1121, %v1137, %v1138
      %v1140 = vrot.slane %v1138, 4
      %v1141 = vrot.slane %v258, 5
      %v1142 = vsel %vm1121, %v1140, %v1141
      %v1143 = vrot.slane %v1074, 5
      %v1144 = vrot.slane %v1143, 4
      %v1145 = vrot.slane %v230, 5
      %v1146 = vsel %vm1121, %v1144, %v1145
      %v1147 = vrot.slane %v1145, 4
      %v1148 = vrot.slane %v259, 5
      %v1149 = vsel %vm1121, %v1147, %v1148
      %v1150 = vrot.slane %v1075, 5
      %v1151 = vrot.slane %v1150, 4
      %v1152 = vrot.slane %v232, 5
      %v1153 = vsel %vm1121, %v1151, %v1152
      %v1154 = vrot.slane %v1152, 4
      %v1155 = vrot.slane %v260, 5
      %v1156 = vsel %vm1121, %v1154, %v1155
      %v1157 = vrot.slane %v1076, 5
      %v1158 = vrot.slane %v1157, 4
      %v1159 = vrot.slane %v234, 5
      %v1160 = vsel %vm1121, %v1158, %v1159
      %v1161 = vrot.slane %v1159, 4
      %v1162 = vrot.slane %v261, 5
      %v1163 = vsel %vm1121, %v1161, %v1162
      %v1164 = vrot.slane %v1077, 5
      %v1165 = vrot.slane %v1164, 4
      %v1166 = vrot.slane %v236, 5
      %v1167 = vsel %vm1121, %v1165, %v1166
      %v1168 = vrot.slane %v1166, 4
      %v1169 = vrot.slane %v262, 5
      %v1170 = vsel %vm1121, %v1168, %v1169
      %v1171 = vrot.slane %v1078, 5
      %v1172 = vrot.slane %v1171, 4
      %v1173 = vrot.slane %v238, 5
      %v1174 = vsel %vm1121, %v1172, %v1173
      %v1175 = vrot.slane %v1173, 4
      %v1176 = vrot.slane %v263, 5
      %v1177 = vsel %vm1121, %v1175, %v1176
      %v1178 = vrot.slane %v1079, 5
      %v1179 = vrot.slane %v1178, 4
      %v1180 = vrot.slane %v240, 5
      %v1181 = vsel %vm1121, %v1179, %v1180
      %v1182 = vrot.slane %v1180, 4
      %v1183 = vrot.slane %v264, 5
      %v1184 = vsel %vm1121, %v1182, %v1183
      %v1185 = vrot.slane %v1080, 5
      %v1186 = vrot.slane %v1185, 4
      %v1187 = vrot.slane %v242, 5
      %v1188 = vsel %vm1121, %v1186, %v1187
      %v1189 = vrot.slane %v1187, 4
      %v1190 = vrot.slane %v265, 5
      %v1191 = vsel %vm1121, %v1189, %v1190
      %v1192 = vrot.slane %v1081, 5
      %v1193 = vrot.slane %v1192, 4
      %v1194 = vrot.slane %v244, 5
      %v1195 = vsel %vm1121, %v1193, %v1194
      %v1196 = vrot.slane %v1194, 4
      %v1197 = vrot.slane %v266, 5
      %v1198 = vsel %vm1121, %v1196, %v1197
      %v1199 = vrot.slane %v1082, 5
      %v1200 = vrot.slane %v1199, 4
      %v1201 = vrot.slane %v246, 5
      %v1202 = vsel %vm1121, %v1200, %v1201
      %v1203 = vrot.slane %v1201, 4
      %v1204 = vrot.slane %v267, 5
      %v1205 = vsel %vm1121, %v1203, %v1204
      %v1206 = vrot.slane %v1083, 5
      %v1207 = vrot.slane %v1206, 4
      %v1208 = vrot.slane %v248, 5
      %v1209 = vsel %vm1121, %v1207, %v1208
      %v1210 = vrot.slane %v1208, 4
      %v1211 = vrot.slane %v268, 5
      %v1212 = vsel %vm1121, %v1210, %v1211
      %v1213 = vrot.slane %v1084, 5
      %v1214 = vrot.slane %v1213, 4
      %v1215 = vrot.slane %v250, 5
      %v1216 = vsel %vm1121, %v1214, %v1215
      %v1217 = vrot.slane %v1215, 4
      %v1218 = vrot.slane %v269, 5
      %v1219 = vsel %vm1121, %v1217, %v1218
      %v1220 = vrot.slane %v1085, 5
      %v1221 = vrot.slane %v1220, 4
      %v1222 = vrot.slane %v252, 5
      %v1223 = vsel %vm1121, %v1221, %v1222
      %v1224 = vrot.slane %v1222, 4
      %v1225 = vrot.slane %v270, 5
      %v1226 = vsel %vm1121, %v1224, %v1225
      %v1227 = vrot.slane %v1086, 5
      %v1228 = vrot.slane %v1227, 4
      %v1229 = vrot.slane %v254, 5
      %v1230 = vsel %vm1121, %v1228, %v1229
      %v1231 = vrot.slane %v1229, 4
      %v1232 = vrot.slane %v271, 5
      %v1233 = vsel %vm1121, %v1231, %v1232
      %s1234 = scalar_lea.vmem %s210, 8
      %v1235 = vld [vmem:[%s1234] sm:$0xf]
      %v1236 = vunpack.c.l.b16 %v1125
      %v1237 = vunpack.c.l.b16 %v1128
      %v1238 = vunpack.c.l.b16 %v1132
      %v1239 = vunpack.c.l.b16 %v1135
      %v1240 = vunpack.c.l.b16 %v1139
      %v1241 = vunpack.c.l.b16 %v1142
      %v1242 = vunpack.c.l.b16 %v1146
      %v1243 = vunpack.c.l.b16 %v1149
      %v1244 = vunpack.c.l.b16 %v1153
      %v1245 = vunpack.c.l.b16 %v1156
      %v1246 = vunpack.c.l.b16 %v1160
      %v1247 = vunpack.c.l.b16 %v1163
      %v1248 = vunpack.c.l.b16 %v1167
      %v1249 = vunpack.c.l.b16 %v1170
      %v1250 = vunpack.c.l.b16 %v1174
      %v1251 = vunpack.c.l.b16 %v1177
      %v1252 = vunpack.c.l.b16 %v1181
      %v1253 = vunpack.c.l.b16 %v1184
      %v1254 = vunpack.c.l.b16 %v1188
      %v1255 = vunpack.c.l.b16 %v1191
      %v1256 = vunpack.c.l.b16 %v1195
      %v1257 = vunpack.c.l.b16 %v1198
      %v1258 = vunpack.c.l.b16 %v1202
      %v1259 = vunpack.c.l.b16 %v1205
      %v1260 = vunpack.c.l.b16 %v1209
      %v1261 = vunpack.c.l.b16 %v1212
      %v1262 = vunpack.c.l.b16 %v1216
      %v1263 = vunpack.c.l.b16 %v1219
      %v1264 = vunpack.c.l.b16 %v1223
      %v1265 = vunpack.c.l.b16 %v1226
      %v1266 = vunpack.c.l.b16 %v1230
      %v1267 = vunpack.c.l.b16 %v1233
      %v1268 = vpack.c.b16 %v1237, %v1236
      %v1269 = vpack.c.b16 %v1239, %v1238
      %v1270 = vpack.c.b16 %v1241, %v1240
      %v1271 = vpack.c.b16 %v1243, %v1242
      %v1272 = vpack.c.b16 %v1245, %v1244
      %v1273 = vpack.c.b16 %v1247, %v1246
      %v1274 = vpack.c.b16 %v1249, %v1248
      %v1275 = vpack.c.b16 %v1251, %v1250
      %v1276 = vpack.c.b16 %v1253, %v1252
      %v1277 = vpack.c.b16 %v1255, %v1254
      %v1278 = vpack.c.b16 %v1257, %v1256
      %v1279 = vpack.c.b16 %v1259, %v1258
      %v1280 = vpack.c.b16 %v1261, %v1260
      %v1281 = vpack.c.b16 %v1263, %v1262
      %v1282 = vpack.c.b16 %v1265, %v1264
      %v1283 = vpack.c.b16 %v1267, %v1266
      %v1285 = vsel %vm709, %v1268, 0
      %v1288 = vsel %vm709, %v1269, 0
      %v1291 = vsel %vm709, %v1270, 0
      %v1294 = vsel %vm709, %v1271, 0
      %v1297 = vsel %vm709, %v1272, 0
      %v1300 = vsel %vm709, %v1273, 0
      %v1303 = vsel %vm709, %v1274, 0
      %v1306 = vsel %vm709, %v1275, 0
      %v1309 = vsel %vm709, %v1276, 0
      %v1312 = vsel %vm709, %v1277, 0
      %v1315 = vsel %vm709, %v1278, 0
      %v1318 = vsel %vm709, %v1279, 0
      %v1321 = vsel %vm709, %v1280, 0
      %v1324 = vsel %vm709, %v1281, 0
      %v1327 = vsel %vm709, %v1282, 0
      %v1330 = vsel %vm709, %v1283, 0
      %v1333 = vsel %vm758, %v1235, 0
      %1335 = vmatpush.bf16.msra.mxu0 0
      %1336 = vmatpush.bf16.msra.mxu0 0
      %1337 = vmatpush.bf16.msra.mxu0 0
      %1338 = vmatpush.bf16.msra.mxu0 0
      %1339 = vmatpush.bf16.msra.mxu0 0
      %1340 = vmatpush.bf16.msra.mxu0 0
      %1341 = vmatpush.bf16.msra.mxu0 0
      %1342 = vmatpush.bf16.msra.mxu0 %v1333
      %1343 = vmatmul.bf16.gmra.mxu0 %v1285
      %v1344 = vpop.f32.mrf.mxu0
      %v1345 = vadd.f32 0.0, %v1344
      %v1346 = vpop.f32.mrf.mxu0
      %v1347 = vadd.f32 0.0, %v1346
      %1348 = vmatmul.bf16.gmra.mxu0 %v1288
      %v1349 = vpop.f32.mrf.mxu0
      %v1350 = vadd.f32 0.0, %v1349
      %v1351 = vpop.f32.mrf.mxu0
      %v1352 = vadd.f32 0.0, %v1351
      %1353 = vmatmul.bf16.gmra.mxu0 %v1291
      %v1354 = vpop.f32.mrf.mxu0
      %v1355 = vadd.f32 0.0, %v1354
      %v1356 = vpop.f32.mrf.mxu0
      %v1357 = vadd.f32 0.0, %v1356
      %1358 = vmatmul.bf16.gmra.mxu0 %v1294
      %v1359 = vpop.f32.mrf.mxu0
      %v1360 = vadd.f32 0.0, %v1359
      %v1361 = vpop.f32.mrf.mxu0
      %v1362 = vadd.f32 0.0, %v1361
      %1363 = vmatmul.bf16.gmra.mxu0 %v1297
      %v1364 = vpop.f32.mrf.mxu0
      %v1365 = vadd.f32 0.0, %v1364
      %v1366 = vpop.f32.mrf.mxu0
      %v1367 = vadd.f32 0.0, %v1366
      %1368 = vmatmul.bf16.gmra.mxu0 %v1300
      %v1369 = vpop.f32.mrf.mxu0
      %v1370 = vadd.f32 0.0, %v1369
      %v1371 = vpop.f32.mrf.mxu0
      %v1372 = vadd.f32 0.0, %v1371
      %1373 = vmatmul.bf16.gmra.mxu0 %v1303
      %v1374 = vpop.f32.mrf.mxu0
      %v1375 = vadd.f32 0.0, %v1374
      %v1376 = vpop.f32.mrf.mxu0
      %v1377 = vadd.f32 0.0, %v1376
      %1378 = vmatmul.bf16.gmra.mxu0 %v1306
      %v1379 = vpop.f32.mrf.mxu0
      %v1380 = vadd.f32 0.0, %v1379
      %v1381 = vpop.f32.mrf.mxu0
      %v1382 = vadd.f32 0.0, %v1381
      %1383 = vmatmul.bf16.gmra.mxu0 %v1309
      %v1384 = vpop.f32.mrf.mxu0
      %v1385 = vadd.f32 0.0, %v1384
      %v1386 = vpop.f32.mrf.mxu0
      %v1387 = vadd.f32 0.0, %v1386
      %1388 = vmatmul.bf16.gmra.mxu0 %v1312
      %v1389 = vpop.f32.mrf.mxu0
      %v1390 = vadd.f32 0.0, %v1389
      %v1391 = vpop.f32.mrf.mxu0
      %v1392 = vadd.f32 0.0, %v1391
      %1393 = vmatmul.bf16.gmra.mxu0 %v1315
      %v1394 = vpop.f32.mrf.mxu0
      %v1395 = vadd.f32 0.0, %v1394
      %v1396 = vpop.f32.mrf.mxu0
      %v1397 = vadd.f32 0.0, %v1396
      %1398 = vmatmul.bf16.gmra.mxu0 %v1318
      %v1399 = vpop.f32.mrf.mxu0
      %v1400 = vadd.f32 0.0, %v1399
      %v1401 = vpop.f32.mrf.mxu0
      %v1402 = vadd.f32 0.0, %v1401
      %1403 = vmatmul.bf16.gmra.mxu0 %v1321
      %v1404 = vpop.f32.mrf.mxu0
      %v1405 = vadd.f32 0.0, %v1404
      %v1406 = vpop.f32.mrf.mxu0
      %v1407 = vadd.f32 0.0, %v1406
      %1408 = vmatmul.bf16.gmra.mxu0 %v1324
      %v1409 = vpop.f32.mrf.mxu0
      %v1410 = vadd.f32 0.0, %v1409
      %v1411 = vpop.f32.mrf.mxu0
      %v1412 = vadd.f32 0.0, %v1411
      %1413 = vmatmul.bf16.gmra.mxu0 %v1327
      %v1414 = vpop.f32.mrf.mxu0
      %v1415 = vadd.f32 0.0, %v1414
      %v1416 = vpop.f32.mrf.mxu0
      %v1417 = vadd.f32 0.0, %v1416
      %1418 = vmatmul.bf16.gmra.mxu0 %v1330
      %v1419 = vpop.f32.mrf.mxu0
      %v1420 = vadd.f32 0.0, %v1419
      %v1421 = vpop.f32.mrf.mxu0
      %v1422 = vadd.f32 0.0, %v1421
      %1423 = vdwg.mxu0
      %v1424 = vadd.f32 %v992, %v1345
      %v1425 = vadd.f32 %v994, %v1347
      %v1426 = vadd.f32 %v997, %v1350
      %v1427 = vadd.f32 %v999, %v1352
      %v1428 = vadd.f32 %v1002, %v1355
      %v1429 = vadd.f32 %v1004, %v1357
      %v1430 = vadd.f32 %v1007, %v1360
      %v1431 = vadd.f32 %v1009, %v1362
      %v1432 = vadd.f32 %v1012, %v1365
      %v1433 = vadd.f32 %v1014, %v1367
      %v1434 = vadd.f32 %v1017, %v1370
      %v1435 = vadd.f32 %v1019, %v1372
      %v1436 = vadd.f32 %v1022, %v1375
      %v1437 = vadd.f32 %v1024, %v1377
      %v1438 = vadd.f32 %v1027, %v1380
      %v1439 = vadd.f32 %v1029, %v1382
      %v1440 = vadd.f32 %v1032, %v1385
      %v1441 = vadd.f32 %v1034, %v1387
      %v1442 = vadd.f32 %v1037, %v1390
      %v1443 = vadd.f32 %v1039, %v1392
      %v1444 = vadd.f32 %v1042, %v1395
      %v1445 = vadd.f32 %v1044, %v1397
      %v1446 = vadd.f32 %v1047, %v1400
      %v1447 = vadd.f32 %v1049, %v1402
      %v1448 = vadd.f32 %v1052, %v1405
      %v1449 = vadd.f32 %v1054, %v1407
      %v1450 = vadd.f32 %v1057, %v1410
      %v1451 = vadd.f32 %v1059, %v1412
      %v1452 = vadd.f32 %v1062, %v1415
      %v1453 = vadd.f32 %v1064, %v1417
      %v1454 = vadd.f32 %v1067, %v1420
      %v1455 = vadd.f32 %v1069, %v1422
      %s1456 = scalar_lea.vmem %s206, 12
      %v1457 = vld [vmem:[%s1456] sm:$0xf]
      %v1458 = vld [vmem:[%s1456 + $0x4] sm:$0xf]
      %v1459 = vld [vmem:[%s1456 + $0xc] sm:$0xf]
      %v1460 = vld [vmem:[%s1456 + $0x10] sm:$0xf]
      %v1461 = vld [vmem:[%s1456 + $0x18] sm:$0xf]
      %v1462 = vld [vmem:[%s1456 + $0x1c] sm:$0xf]
      %v1463 = vld [vmem:[%s1456 + $0x24] sm:$0xf]
      %v1464 = vld [vmem:[%s1456 + $0x28] sm:$0xf]
      %v1465 = vld [vmem:[%s1456 + $0x30] sm:$0xf]
      %v1466 = vld [vmem:[%s1456 + $0x34] sm:$0xf]
      %v1467 = vld [vmem:[%s1456 + $0x3c] sm:$0xf]
      %v1468 = vld [vmem:[%s1456 + $0x40] sm:$0xf]
      %v1469 = vld [vmem:[%s1456 + $0x48] sm:$0xf]
      %v1470 = vld [vmem:[%s1456 + $0x4c] sm:$0xf]
      %v1471 = vld [vmem:[%s1456 + $0x54] sm:$0xf]
      %v1472 = vld [vmem:[%s1456 + $0x58] sm:$0xf]
      %v1473 = vld [vmem:[%s1456 + $0x60] sm:$0xf]
      %v1474 = vld [vmem:[%s1456 + $0x64] sm:$0xf]
      %v1475 = vld [vmem:[%s1456 + $0x6c] sm:$0xf]
      %v1476 = vld [vmem:[%s1456 + $0x70] sm:$0xf]
      %v1477 = vld [vmem:[%s1456 + $0x78] sm:$0xf]
      %v1478 = vld [vmem:[%s1456 + $0x7c] sm:$0xf]
      %v1479 = vld [vmem:[%s1456 + $0x84] sm:$0xf]
      %v1480 = vld [vmem:[%s1456 + $0x88] sm:$0xf]
      %v1481 = vld [vmem:[%s1456 + $0x90] sm:$0xf]
      %v1482 = vld [vmem:[%s1456 + $0x94] sm:$0xf]
      %v1483 = vld [vmem:[%s1456 + $0x9c] sm:$0xf]
      %v1484 = vld [vmem:[%s1456 + $0xa0] sm:$0xf]
      %v1485 = vld [vmem:[%s1456 + $0xa8] sm:$0xf]
      %v1486 = vld [vmem:[%s1456 + $0xac] sm:$0xf]
      %v1487 = vld [vmem:[%s1456 + $0xb4] sm:$0xf]
      %v1488 = vld [vmem:[%s1456 + $0xb8] sm:$0xf]
      %s1489 = scalar_lea.vmem %s210, 12
      %v1490 = vld [vmem:[%s1489] sm:$0xf]
      %v1523 = vunpack.c.l.b16 %v1457
      %v1524 = vunpack.c.l.b16 %v1458
      %v1525 = vunpack.c.l.b16 %v1459
      %v1526 = vunpack.c.l.b16 %v1460
      %v1527 = vunpack.c.l.b16 %v1461
      %v1528 = vunpack.c.l.b16 %v1462
      %v1529 = vunpack.c.l.b16 %v1463
      %v1530 = vunpack.c.l.b16 %v1464
      %v1531 = vunpack.c.l.b16 %v1465
      %v1532 = vunpack.c.l.b16 %v1466
      %v1533 = vunpack.c.l.b16 %v1467
      %v1534 = vunpack.c.l.b16 %v1468
      %v1535 = vunpack.c.l.b16 %v1469
      %v1536 = vunpack.c.l.b16 %v1470
      %v1537 = vunpack.c.l.b16 %v1471
      %v1538 = vunpack.c.l.b16 %v1472
      %v1539 = vunpack.c.l.b16 %v1473
      %v1540 = vunpack.c.l.b16 %v1474
      %v1541 = vunpack.c.l.b16 %v1475
      %v1542 = vunpack.c.l.b16 %v1476
      %v1543 = vunpack.c.l.b16 %v1477
      %v1544 = vunpack.c.l.b16 %v1478
      %v1545 = vunpack.c.l.b16 %v1479
      %v1546 = vunpack.c.l.b16 %v1480
      %v1547 = vunpack.c.l.b16 %v1481
      %v1548 = vunpack.c.l.b16 %v1482
      %v1549 = vunpack.c.l.b16 %v1483
      %v1550 = vunpack.c.l.b16 %v1484
      %v1551 = vunpack.c.l.b16 %v1485
      %v1552 = vunpack.c.l.b16 %v1486
      %v1553 = vunpack.c.l.b16 %v1487
      %v1554 = vunpack.c.l.b16 %v1488
      %v1555 = vpack.c.b16 %v1524, %v1523
      %v1556 = vpack.c.b16 %v1526, %v1525
      %v1557 = vpack.c.b16 %v1528, %v1527
      %v1558 = vpack.c.b16 %v1530, %v1529
      %v1559 = vpack.c.b16 %v1532, %v1531
      %v1560 = vpack.c.b16 %v1534, %v1533
      %v1561 = vpack.c.b16 %v1536, %v1535
      %v1562 = vpack.c.b16 %v1538, %v1537
      %v1563 = vpack.c.b16 %v1540, %v1539
      %v1564 = vpack.c.b16 %v1542, %v1541
      %v1565 = vpack.c.b16 %v1544, %v1543
      %v1566 = vpack.c.b16 %v1546, %v1545
      %v1567 = vpack.c.b16 %v1548, %v1547
      %v1568 = vpack.c.b16 %v1550, %v1549
      %v1569 = vpack.c.b16 %v1552, %v1551
      %v1570 = vpack.c.b16 %v1554, %v1553
      %v1572 = vsel %vm709, %v1555, 0
      %v1575 = vsel %vm709, %v1556, 0
      %v1578 = vsel %vm709, %v1557, 0
      %v1581 = vsel %vm709, %v1558, 0
      %v1584 = vsel %vm709, %v1559, 0
      %v1587 = vsel %vm709, %v1560, 0
      %v1590 = vsel %vm709, %v1561, 0
      %v1593 = vsel %vm709, %v1562, 0
      %v1596 = vsel %vm709, %v1563, 0
      %v1599 = vsel %vm709, %v1564, 0
      %v1602 = vsel %vm709, %v1565, 0
      %v1605 = vsel %vm709, %v1566, 0
      %v1608 = vsel %vm709, %v1567, 0
      %v1611 = vsel %vm709, %v1568, 0
      %v1614 = vsel %vm709, %v1569, 0
      %v1617 = vsel %vm709, %v1570, 0
      %v1620 = vsel %vm758, %v1490, 0
      %1622 = vmatpush.bf16.msra.mxu0 0
      %1623 = vmatpush.bf16.msra.mxu0 0
      %1624 = vmatpush.bf16.msra.mxu0 0
      %1625 = vmatpush.bf16.msra.mxu0 0
      %1626 = vmatpush.bf16.msra.mxu0 0
      %1627 = vmatpush.bf16.msra.mxu0 0
      %1628 = vmatpush.bf16.msra.mxu0 0
      %1629 = vmatpush.bf16.msra.mxu0 %v1620
      %1630 = vmatmul.bf16.gmra.mxu0 %v1572
      %v1631 = vpop.f32.mrf.mxu0
      %v1632 = vadd.f32 0.0, %v1631
      %v1633 = vpop.f32.mrf.mxu0
      %v1634 = vadd.f32 0.0, %v1633
      %1635 = vmatmul.bf16.gmra.mxu0 %v1575
      %v1636 = vpop.f32.mrf.mxu0
      %v1637 = vadd.f32 0.0, %v1636
      %v1638 = vpop.f32.mrf.mxu0
      %v1639 = vadd.f32 0.0, %v1638
      %1640 = vmatmul.bf16.gmra.mxu0 %v1578
      %v1641 = vpop.f32.mrf.mxu0
      %v1642 = vadd.f32 0.0, %v1641
      %v1643 = vpop.f32.mrf.mxu0
      %v1644 = vadd.f32 0.0, %v1643
      %1645 = vmatmul.bf16.gmra.mxu0 %v1581
      %v1646 = vpop.f32.mrf.mxu0
      %v1647 = vadd.f32 0.0, %v1646
      %v1648 = vpop.f32.mrf.mxu0
      %v1649 = vadd.f32 0.0, %v1648
      %1650 = vmatmul.bf16.gmra.mxu0 %v1584
      %v1651 = vpop.f32.mrf.mxu0
      %v1652 = vadd.f32 0.0, %v1651
      %v1653 = vpop.f32.mrf.mxu0
      %v1654 = vadd.f32 0.0, %v1653
      %1655 = vmatmul.bf16.gmra.mxu0 %v1587
      %v1656 = vpop.f32.mrf.mxu0
      %v1657 = vadd.f32 0.0, %v1656
      %v1658 = vpop.f32.mrf.mxu0
      %v1659 = vadd.f32 0.0, %v1658
      %1660 = vmatmul.bf16.gmra.mxu0 %v1590
      %v1661 = vpop.f32.mrf.mxu0
      %v1662 = vadd.f32 0.0, %v1661
      %v1663 = vpop.f32.mrf.mxu0
      %v1664 = vadd.f32 0.0, %v1663
      %1665 = vmatmul.bf16.gmra.mxu0 %v1593
      %v1666 = vpop.f32.mrf.mxu0
      %v1667 = vadd.f32 0.0, %v1666
      %v1668 = vpop.f32.mrf.mxu0
      %v1669 = vadd.f32 0.0, %v1668
      %1670 = vmatmul.bf16.gmra.mxu0 %v1596
      %v1671 = vpop.f32.mrf.mxu0
      %v1672 = vadd.f32 0.0, %v1671
      %v1673 = vpop.f32.mrf.mxu0
      %v1674 = vadd.f32 0.0, %v1673
      %1675 = vmatmul.bf16.gmra.mxu0 %v1599
      %v1676 = vpop.f32.mrf.mxu0
      %v1677 = vadd.f32 0.0, %v1676
      %v1678 = vpop.f32.mrf.mxu0
      %v1679 = vadd.f32 0.0, %v1678
      %1680 = vmatmul.bf16.gmra.mxu0 %v1602
      %v1681 = vpop.f32.mrf.mxu0
      %v1682 = vadd.f32 0.0, %v1681
      %v1683 = vpop.f32.mrf.mxu0
      %v1684 = vadd.f32 0.0, %v1683
      %1685 = vmatmul.bf16.gmra.mxu0 %v1605
      %v1686 = vpop.f32.mrf.mxu0
      %v1687 = vadd.f32 0.0, %v1686
      %v1688 = vpop.f32.mrf.mxu0
      %v1689 = vadd.f32 0.0, %v1688
      %1690 = vmatmul.bf16.gmra.mxu0 %v1608
      %v1691 = vpop.f32.mrf.mxu0
      %v1692 = vadd.f32 0.0, %v1691
      %v1693 = vpop.f32.mrf.mxu0
      %v1694 = vadd.f32 0.0, %v1693
      %1695 = vmatmul.bf16.gmra.mxu0 %v1611
      %v1696 = vpop.f32.mrf.mxu0
      %v1697 = vadd.f32 0.0, %v1696
      %v1698 = vpop.f32.mrf.mxu0
      %v1699 = vadd.f32 0.0, %v1698
      %1700 = vmatmul.bf16.gmra.mxu0 %v1614
      %v1701 = vpop.f32.mrf.mxu0
      %v1702 = vadd.f32 0.0, %v1701
      %v1703 = vpop.f32.mrf.mxu0
      %v1704 = vadd.f32 0.0, %v1703
      %1705 = vmatmul.bf16.gmra.mxu0 %v1617
      %v1706 = vpop.f32.mrf.mxu0
      %v1707 = vadd.f32 0.0, %v1706
      %v1708 = vpop.f32.mrf.mxu0
      %v1709 = vadd.f32 0.0, %v1708
      %1710 = vdwg.mxu0
      %v1711 = vadd.f32 %v1424, %v1632
      %v1712 = vadd.f32 %v1425, %v1634
      %v1713 = vadd.f32 %v1426, %v1637
      %v1714 = vadd.f32 %v1427, %v1639
      %v1715 = vadd.f32 %v1428, %v1642
      %v1716 = vadd.f32 %v1429, %v1644
      %v1717 = vadd.f32 %v1430, %v1647
      %v1718 = vadd.f32 %v1431, %v1649
      %v1719 = vadd.f32 %v1432, %v1652
      %v1720 = vadd.f32 %v1433, %v1654
      %v1721 = vadd.f32 %v1434, %v1657
      %v1722 = vadd.f32 %v1435, %v1659
      %v1723 = vadd.f32 %v1436, %v1662
      %v1724 = vadd.f32 %v1437, %v1664
      %v1725 = vadd.f32 %v1438, %v1667
      %v1726 = vadd.f32 %v1439, %v1669
      %v1727 = vadd.f32 %v1440, %v1672
      %v1728 = vadd.f32 %v1441, %v1674
      %v1729 = vadd.f32 %v1442, %v1677
      %v1730 = vadd.f32 %v1443, %v1679
      %v1731 = vadd.f32 %v1444, %v1682
      %v1732 = vadd.f32 %v1445, %v1684
      %v1733 = vadd.f32 %v1446, %v1687
      %v1734 = vadd.f32 %v1447, %v1689
      %v1735 = vadd.f32 %v1448, %v1692
      %v1736 = vadd.f32 %v1449, %v1694
      %v1737 = vadd.f32 %v1450, %v1697
      %v1738 = vadd.f32 %v1451, %v1699
      %v1739 = vadd.f32 %v1452, %v1702
      %v1740 = vadd.f32 %v1453, %v1704
      %v1741 = vadd.f32 %v1454, %v1707
      %v1742 = vadd.f32 %v1455, %v1709
      %v1743 = vld [vmem:[%s1456] sm:$0xf]
      %v1744 = vld [vmem:[%s1456 + $0x4] sm:$0xf]
      %v1745 = vld [vmem:[%s1456 + $0x8] sm:$0x1]
      %v1746 = vld [vmem:[%s1456 + $0xc] sm:$0xf]
      %v1747 = vld [vmem:[%s1456 + $0x10] sm:$0xf]
      %v1748 = vld [vmem:[%s1456 + $0x14] sm:$0x1]
      %v1749 = vld [vmem:[%s1456 + $0x18] sm:$0xf]
      %v1750 = vld [vmem:[%s1456 + $0x1c] sm:$0xf]
      %v1751 = vld [vmem:[%s1456 + $0x20] sm:$0x1]
      %v1752 = vld [vmem:[%s1456 + $0x24] sm:$0xf]
      %v1753 = vld [vmem:[%s1456 + $0x28] sm:$0xf]
      %v1754 = vld [vmem:[%s1456 + $0x2c] sm:$0x1]
      %v1755 = vld [vmem:[%s1456 + $0x30] sm:$0xf]
      %v1756 = vld [vmem:[%s1456 + $0x34] sm:$0xf]
      %v1757 = vld [vmem:[%s1456 + $0x38] sm:$0x1]
      %v1758 = vld [vmem:[%s1456 + $0x3c] sm:$0xf]
      %v1759 = vld [vmem:[%s1456 + $0x40] sm:$0xf]
      %v1760 = vld [vmem:[%s1456 + $0x44] sm:$0x1]
      %v1761 = vld [vmem:[%s1456 + $0x48] sm:$0xf]
      %v1762 = vld [vmem:[%s1456 + $0x4c] sm:$0xf]
      %v1763 = vld [vmem:[%s1456 + $0x50] sm:$0x1]
      %v1764 = vld [vmem:[%s1456 + $0x54] sm:$0xf]
      %v1765 = vld [vmem:[%s1456 + $0x58] sm:$0xf]
      %v1766 = vld [vmem:[%s1456 + $0x5c] sm:$0x1]
      %v1767 = vld [vmem:[%s1456 + $0x60] sm:$0xf]
      %v1768 = vld [vmem:[%s1456 + $0x64] sm:$0xf]
      %v1769 = vld [vmem:[%s1456 + $0x68] sm:$0x1]
      %v1770 = vld [vmem:[%s1456 + $0x6c] sm:$0xf]
      %v1771 = vld [vmem:[%s1456 + $0x70] sm:$0xf]
      %v1772 = vld [vmem:[%s1456 + $0x74] sm:$0x1]
      %v1773 = vld [vmem:[%s1456 + $0x78] sm:$0xf]
      %v1774 = vld [vmem:[%s1456 + $0x7c] sm:$0xf]
      %v1775 = vld [vmem:[%s1456 + $0x80] sm:$0x1]
      %v1776 = vld [vmem:[%s1456 + $0x84] sm:$0xf]
      %v1777 = vld [vmem:[%s1456 + $0x88] sm:$0xf]
      %v1778 = vld [vmem:[%s1456 + $0x8c] sm:$0x1]
      %v1779 = vld [vmem:[%s1456 + $0x90] sm:$0xf]
      %v1780 = vld [vmem:[%s1456 + $0x94] sm:$0xf]
      %v1781 = vld [vmem:[%s1456 + $0x98] sm:$0x1]
      %v1782 = vld [vmem:[%s1456 + $0x9c] sm:$0xf]
      %v1783 = vld [vmem:[%s1456 + $0xa0] sm:$0xf]
      %v1784 = vld [vmem:[%s1456 + $0xa4] sm:$0x1]
      %v1785 = vld [vmem:[%s1456 + $0xa8] sm:$0xf]
      %v1786 = vld [vmem:[%s1456 + $0xac] sm:$0xf]
      %v1787 = vld [vmem:[%s1456 + $0xb0] sm:$0x1]
      %v1788 = vld [vmem:[%s1456 + $0xb4] sm:$0xf]
      %v1789 = vld [vmem:[%s1456 + $0xb8] sm:$0xf]
      %v1790 = vld [vmem:[%s1456 + $0xbc] sm:$0x1]
      %v1792 = vshrl.u32 %v1743, 16
      %v1794 = vrot.slane %v1792, 4
      %v1795 = vshll.u32 %v1743, 16
      %v1797 = vrot.slane %v1795, 5
      %v1798 = vor.u32 %v1794, %v1797
      %v1799 = vrot.slane %v1798, 4
      %v1801 = vshll.u32 %v1744, 16
      %v1803 = vrot.slane %v1801, 5
      %v1804 = vsel %vm274, %v1799, %v1803
      %v1805 = vshrl.u32 %v1744, 16
      %v1807 = vrot.slane %v1805, 4
      %v1808 = vor.u32 %v1807, %v1803
      %v1809 = vrot.slane %v1808, 4
      %v1811 = vshll.u32 %v1745, 16
      %v1813 = vrot.slane %v1811, 5
      %v1814 = vsel %vm274, %v1809, %v1813
      %v1816 = vshrl.u32 %v1746, 16
      %v1818 = vrot.slane %v1816, 4
      %v1819 = vshll.u32 %v1746, 16
      %v1821 = vrot.slane %v1819, 5
      %v1822 = vor.u32 %v1818, %v1821
      %v1823 = vrot.slane %v1822, 4
      %v1825 = vshll.u32 %v1747, 16
      %v1827 = vrot.slane %v1825, 5
      %v1828 = vsel %vm274, %v1823, %v1827
      %v1829 = vshrl.u32 %v1747, 16
      %v1831 = vrot.slane %v1829, 4
      %v1832 = vor.u32 %v1831, %v1827
      %v1833 = vrot.slane %v1832, 4
      %v1835 = vshll.u32 %v1748, 16
      %v1837 = vrot.slane %v1835, 5
      %v1838 = vsel %vm274, %v1833, %v1837
      %v1840 = vshrl.u32 %v1749, 16
      %v1842 = vrot.slane %v1840, 4
      %v1843 = vshll.u32 %v1749, 16
      %v1845 = vrot.slane %v1843, 5
      %v1846 = vor.u32 %v1842, %v1845
      %v1847 = vrot.slane %v1846, 4
      %v1849 = vshll.u32 %v1750, 16
      %v1851 = vrot.slane %v1849, 5
      %v1852 = vsel %vm274, %v1847, %v1851
      %v1853 = vshrl.u32 %v1750, 16
      %v1855 = vrot.slane %v1853, 4
      %v1856 = vor.u32 %v1855, %v1851
      %v1857 = vrot.slane %v1856, 4
      %v1859 = vshll.u32 %v1751, 16
      %v1861 = vrot.slane %v1859, 5
      %v1862 = vsel %vm274, %v1857, %v1861
      %v1864 = vshrl.u32 %v1752, 16
      %v1866 = vrot.slane %v1864, 4
      %v1867 = vshll.u32 %v1752, 16
      %v1869 = vrot.slane %v1867, 5
      %v1870 = vor.u32 %v1866, %v1869
      %v1871 = vrot.slane %v1870, 4
      %v1873 = vshll.u32 %v1753, 16
      %v1875 = vrot.slane %v1873, 5
      %v1876 = vsel %vm274, %v1871, %v1875
      %v1877 = vshrl.u32 %v1753, 16
      %v1879 = vrot.slane %v1877, 4
      %v1880 = vor.u32 %v1879, %v1875
      %v1881 = vrot.slane %v1880, 4
      %v1883 = vshll.u32 %v1754, 16
      %v1885 = vrot.slane %v1883, 5
      %v1886 = vsel %vm274, %v1881, %v1885
      %v1888 = vshrl.u32 %v1755, 16
      %v1890 = vrot.slane %v1888, 4
      %v1891 = vshll.u32 %v1755, 16
      %v1893 = vrot.slane %v1891, 5
      %v1894 = vor.u32 %v1890, %v1893
      %v1895 = vrot.slane %v1894, 4
      %v1897 = vshll.u32 %v1756, 16
      %v1899 = vrot.slane %v1897, 5
      %v1900 = vsel %vm274, %v1895, %v1899
      %v1901 = vshrl.u32 %v1756, 16
      %v1903 = vrot.slane %v1901, 4
      %v1904 = vor.u32 %v1903, %v1899
      %v1905 = vrot.slane %v1904, 4
      %v1907 = vshll.u32 %v1757, 16
      %v1909 = vrot.slane %v1907, 5
      %v1910 = vsel %vm274, %v1905, %v1909
      %v1912 = vshrl.u32 %v1758, 16
      %v1914 = vrot.slane %v1912, 4
      %v1915 = vshll.u32 %v1758, 16
      %v1917 = vrot.slane %v1915, 5
      %v1918 = vor.u32 %v1914, %v1917
      %v1919 = vrot.slane %v1918, 4
      %v1921 = vshll.u32 %v1759, 16
      %v1923 = vrot.slane %v1921, 5
      %v1924 = vsel %vm274, %v1919, %v1923
      %v1925 = vshrl.u32 %v1759, 16
      %v1927 = vrot.slane %v1925, 4
      %v1928 = vor.u32 %v1927, %v1923
      %v1929 = vrot.slane %v1928, 4
      %v1931 = vshll.u32 %v1760, 16
      %v1933 = vrot.slane %v1931, 5
      %v1934 = vsel %vm274, %v1929, %v1933
      %v1936 = vshrl.u32 %v1761, 16
      %v1938 = vrot.slane %v1936, 4
      %v1939 = vshll.u32 %v1761, 16
      %v1941 = vrot.slane %v1939, 5
      %v1942 = vor.u32 %v1938, %v1941
      %v1943 = vrot.slane %v1942, 4
      %v1945 = vshll.u32 %v1762, 16
      %v1947 = vrot.slane %v1945, 5
      %v1948 = vsel %vm274, %v1943, %v1947
      %v1949 = vshrl.u32 %v1762, 16
      %v1951 = vrot.slane %v1949, 4
      %v1952 = vor.u32 %v1951, %v1947
      %v1953 = vrot.slane %v1952, 4
      %v1955 = vshll.u32 %v1763, 16
      %v1957 = vrot.slane %v1955, 5
      %v1958 = vsel %vm274, %v1953, %v1957
      %v1960 = vshrl.u32 %v1764, 16
      %v1962 = vrot.slane %v1960, 4
      %v1963 = vshll.u32 %v1764, 16
      %v1965 = vrot.slane %v1963, 5
      %v1966 = vor.u32 %v1962, %v1965
      %v1967 = vrot.slane %v1966, 4
      %v1969 = vshll.u32 %v1765, 16
      %v1971 = vrot.slane %v1969, 5
      %v1972 = vsel %vm274, %v1967, %v1971
      %v1973 = vshrl.u32 %v1765, 16
      %v1975 = vrot.slane %v1973, 4
      %v1976 = vor.u32 %v1975, %v1971
      %v1977 = vrot.slane %v1976, 4
      %v1979 = vshll.u32 %v1766, 16
      %v1981 = vrot.slane %v1979, 5
      %v1982 = vsel %vm274, %v1977, %v1981
      %v1984 = vshrl.u32 %v1767, 16
      %v1986 = vrot.slane %v1984, 4
      %v1987 = vshll.u32 %v1767, 16
      %v1989 = vrot.slane %v1987, 5
      %v1990 = vor.u32 %v1986, %v1989
      %v1991 = vrot.slane %v1990, 4
      %v1993 = vshll.u32 %v1768, 16
      %v1995 = vrot.slane %v1993, 5
      %v1996 = vsel %vm274, %v1991, %v1995
      %v1997 = vshrl.u32 %v1768, 16
      %v1999 = vrot.slane %v1997, 4
      %v2000 = vor.u32 %v1999, %v1995
      %v2001 = vrot.slane %v2000, 4
      %v2003 = vshll.u32 %v1769, 16
      %v2005 = vrot.slane %v2003, 5
      %v2006 = vsel %vm274, %v2001, %v2005
      %v2008 = vshrl.u32 %v1770, 16
      %v2010 = vrot.slane %v2008, 4
      %v2011 = vshll.u32 %v1770, 16
      %v2013 = vrot.slane %v2011, 5
      %v2014 = vor.u32 %v2010, %v2013
      %v2015 = vrot.slane %v2014, 4
      %v2017 = vshll.u32 %v1771, 16
      %v2019 = vrot.slane %v2017, 5
      %v2020 = vsel %vm274, %v2015, %v2019
      %v2021 = vshrl.u32 %v1771, 16
      %v2023 = vrot.slane %v2021, 4
      %v2024 = vor.u32 %v2023, %v2019
      %v2025 = vrot.slane %v2024, 4
      %v2027 = vshll.u32 %v1772, 16
      %v2029 = vrot.slane %v2027, 5
      %v2030 = vsel %vm274, %v2025, %v2029
      %v2032 = vshrl.u32 %v1773, 16
      %v2034 = vrot.slane %v2032, 4
      %v2035 = vshll.u32 %v1773, 16
      %v2037 = vrot.slane %v2035, 5
      %v2038 = vor.u32 %v2034, %v2037
      %v2039 = vrot.slane %v2038, 4
      %v2041 = vshll.u32 %v1774, 16
      %v2043 = vrot.slane %v2041, 5
      %v2044 = vsel %vm274, %v2039, %v2043
      %v2045 = vshrl.u32 %v1774, 16
      %v2047 = vrot.slane %v2045, 4
      %v2048 = vor.u32 %v2047, %v2043
      %v2049 = vrot.slane %v2048, 4
      %v2051 = vshll.u32 %v1775, 16
      %v2053 = vrot.slane %v2051, 5
      %v2054 = vsel %vm274, %v2049, %v2053
      %v2056 = vshrl.u32 %v1776, 16
      %v2058 = vrot.slane %v2056, 4
      %v2059 = vshll.u32 %v1776, 16
      %v2061 = vrot.slane %v2059, 5
      %v2062 = vor.u32 %v2058, %v2061
      %v2063 = vrot.slane %v2062, 4
      %v2065 = vshll.u32 %v1777, 16
      %v2067 = vrot.slane %v2065, 5
      %v2068 = vsel %vm274, %v2063, %v2067
      %v2069 = vshrl.u32 %v1777, 16
      %v2071 = vrot.slane %v2069, 4
      %v2072 = vor.u32 %v2071, %v2067
      %v2073 = vrot.slane %v2072, 4
      %v2075 = vshll.u32 %v1778, 16
      %v2077 = vrot.slane %v2075, 5
      %v2078 = vsel %vm274, %v2073, %v2077
      %v2080 = vshrl.u32 %v1779, 16
      %v2082 = vrot.slane %v2080, 4
      %v2083 = vshll.u32 %v1779, 16
      %v2085 = vrot.slane %v2083, 5
      %v2086 = vor.u32 %v2082, %v2085
      %v2087 = vrot.slane %v2086, 4
      %v2089 = vshll.u32 %v1780, 16
      %v2091 = vrot.slane %v2089, 5
      %v2092 = vsel %vm274, %v2087, %v2091
      %v2093 = vshrl.u32 %v1780, 16
      %v2095 = vrot.slane %v2093, 4
      %v2096 = vor.u32 %v2095, %v2091
      %v2097 = vrot.slane %v2096, 4
      %v2099 = vshll.u32 %v1781, 16
      %v2101 = vrot.slane %v2099, 5
      %v2102 = vsel %vm274, %v2097, %v2101
      %v2104 = vshrl.u32 %v1782, 16
      %v2106 = vrot.slane %v2104, 4
      %v2107 = vshll.u32 %v1782, 16
      %v2109 = vrot.slane %v2107, 5
      %v2110 = vor.u32 %v2106, %v2109
      %v2111 = vrot.slane %v2110, 4
      %v2113 = vshll.u32 %v1783, 16
      %v2115 = vrot.slane %v2113, 5
      %v2116 = vsel %vm274, %v2111, %v2115
      %v2117 = vshrl.u32 %v1783, 16
      %v2119 = vrot.slane %v2117, 4
      %v2120 = vor.u32 %v2119, %v2115
      %v2121 = vrot.slane %v2120, 4
      %v2123 = vshll.u32 %v1784, 16
      %v2125 = vrot.slane %v2123, 5
      %v2126 = vsel %vm274, %v2121, %v2125
      %v2128 = vshrl.u32 %v1785, 16
      %v2130 = vrot.slane %v2128, 4
      %v2131 = vshll.u32 %v1785, 16
      %v2133 = vrot.slane %v2131, 5
      %v2134 = vor.u32 %v2130, %v2133
      %v2135 = vrot.slane %v2134, 4
      %v2137 = vshll.u32 %v1786, 16
      %v2139 = vrot.slane %v2137, 5
      %v2140 = vsel %vm274, %v2135, %v2139
      %v2141 = vshrl.u32 %v1786, 16
      %v2143 = vrot.slane %v2141, 4
      %v2144 = vor.u32 %v2143, %v2139
      %v2145 = vrot.slane %v2144, 4
      %v2147 = vshll.u32 %v1787, 16
      %v2149 = vrot.slane %v2147, 5
      %v2150 = vsel %vm274, %v2145, %v2149
      %v2152 = vshrl.u32 %v1788, 16
      %v2154 = vrot.slane %v2152, 4
      %v2155 = vshll.u32 %v1788, 16
      %v2157 = vrot.slane %v2155, 5
      %v2158 = vor.u32 %v2154, %v2157
      %v2159 = vrot.slane %v2158, 4
      %v2161 = vshll.u32 %v1789, 16
      %v2163 = vrot.slane %v2161, 5
      %v2164 = vsel %vm274, %v2159, %v2163
      %v2165 = vshrl.u32 %v1789, 16
      %v2167 = vrot.slane %v2165, 4
      %v2168 = vor.u32 %v2167, %v2163
      %v2169 = vrot.slane %v2168, 4
      %v2171 = vshll.u32 %v1790, 16
      %v2173 = vrot.slane %v2171, 5
      %v2174 = vsel %vm274, %v2169, %v2173
      %s2175 = scalar_lea.vmem %s210, 16
      %v2176 = vld [vmem:[%s2175] sm:$0xf]
      %v2177 = vunpack.c.l.b16 %v1804
      %v2178 = vunpack.c.l.b16 %v1814
      %v2179 = vunpack.c.l.b16 %v1828
      %v2180 = vunpack.c.l.b16 %v1838
      %v2181 = vunpack.c.l.b16 %v1852
      %v2182 = vunpack.c.l.b16 %v1862
      %v2183 = vunpack.c.l.b16 %v1876
      %v2184 = vunpack.c.l.b16 %v1886
      %v2185 = vunpack.c.l.b16 %v1900
      %v2186 = vunpack.c.l.b16 %v1910
      %v2187 = vunpack.c.l.b16 %v1924
      %v2188 = vunpack.c.l.b16 %v1934
      %v2189 = vunpack.c.l.b16 %v1948
      %v2190 = vunpack.c.l.b16 %v1958
      %v2191 = vunpack.c.l.b16 %v1972
      %v2192 = vunpack.c.l.b16 %v1982
      %v2193 = vunpack.c.l.b16 %v1996
      %v2194 = vunpack.c.l.b16 %v2006
      %v2195 = vunpack.c.l.b16 %v2020
      %v2196 = vunpack.c.l.b16 %v2030
      %v2197 = vunpack.c.l.b16 %v2044
      %v2198 = vunpack.c.l.b16 %v2054
      %v2199 = vunpack.c.l.b16 %v2068
      %v2200 = vunpack.c.l.b16 %v2078
      %v2201 = vunpack.c.l.b16 %v2092
      %v2202 = vunpack.c.l.b16 %v2102
      %v2203 = vunpack.c.l.b16 %v2116
      %v2204 = vunpack.c.l.b16 %v2126
      %v2205 = vunpack.c.l.b16 %v2140
      %v2206 = vunpack.c.l.b16 %v2150
      %v2207 = vunpack.c.l.b16 %v2164
      %v2208 = vunpack.c.l.b16 %v2174
      %v2209 = vpack.c.b16 %v2178, %v2177
      %v2210 = vpack.c.b16 %v2180, %v2179
      %v2211 = vpack.c.b16 %v2182, %v2181
      %v2212 = vpack.c.b16 %v2184, %v2183
      %v2213 = vpack.c.b16 %v2186, %v2185
      %v2214 = vpack.c.b16 %v2188, %v2187
      %v2215 = vpack.c.b16 %v2190, %v2189
      %v2216 = vpack.c.b16 %v2192, %v2191
      %v2217 = vpack.c.b16 %v2194, %v2193
      %v2218 = vpack.c.b16 %v2196, %v2195
      %v2219 = vpack.c.b16 %v2198, %v2197
      %v2220 = vpack.c.b16 %v2200, %v2199
      %v2221 = vpack.c.b16 %v2202, %v2201
      %v2222 = vpack.c.b16 %v2204, %v2203
      %v2223 = vpack.c.b16 %v2206, %v2205
      %v2224 = vpack.c.b16 %v2208, %v2207
      %v2226 = vsel %vm709, %v2209, 0
      %v2229 = vsel %vm709, %v2210, 0
      %v2232 = vsel %vm709, %v2211, 0
      %v2235 = vsel %vm709, %v2212, 0
      %v2238 = vsel %vm709, %v2213, 0
      %v2241 = vsel %vm709, %v2214, 0
      %v2244 = vsel %vm709, %v2215, 0
      %v2247 = vsel %vm709, %v2216, 0
      %v2250 = vsel %vm709, %v2217, 0
      %v2253 = vsel %vm709, %v2218, 0
      %v2256 = vsel %vm709, %v2219, 0
      %v2259 = vsel %vm709, %v2220, 0
      %v2262 = vsel %vm709, %v2221, 0
      %v2265 = vsel %vm709, %v2222, 0
      %v2268 = vsel %vm709, %v2223, 0
      %v2271 = vsel %vm709, %v2224, 0
      %v2274 = vsel %vm758, %v2176, 0
      %2276 = vmatpush.bf16.msra.mxu0 0
      %2277 = vmatpush.bf16.msra.mxu0 0
      %2278 = vmatpush.bf16.msra.mxu0 0
      %2279 = vmatpush.bf16.msra.mxu0 0
      %2280 = vmatpush.bf16.msra.mxu0 0
      %2281 = vmatpush.bf16.msra.mxu0 0
      %2282 = vmatpush.bf16.msra.mxu0 0
      %2283 = vmatpush.bf16.msra.mxu0 %v2274
      %2284 = vmatmul.bf16.gmra.mxu0 %v2226
      %v2285 = vpop.f32.mrf.mxu0
      %v2286 = vadd.f32 0.0, %v2285
      %v2287 = vpop.f32.mrf.mxu0
      %v2288 = vadd.f32 0.0, %v2287
      %2289 = vmatmul.bf16.gmra.mxu0 %v2229
      %v2290 = vpop.f32.mrf.mxu0
      %v2291 = vadd.f32 0.0, %v2290
      %v2292 = vpop.f32.mrf.mxu0
      %v2293 = vadd.f32 0.0, %v2292
      %2294 = vmatmul.bf16.gmra.mxu0 %v2232
      %v2295 = vpop.f32.mrf.mxu0
      %v2296 = vadd.f32 0.0, %v2295
      %v2297 = vpop.f32.mrf.mxu0
      %v2298 = vadd.f32 0.0, %v2297
      %2299 = vmatmul.bf16.gmra.mxu0 %v2235
      %v2300 = vpop.f32.mrf.mxu0
      %v2301 = vadd.f32 0.0, %v2300
      %v2302 = vpop.f32.mrf.mxu0
      %v2303 = vadd.f32 0.0, %v2302
      %2304 = vmatmul.bf16.gmra.mxu0 %v2238
      %v2305 = vpop.f32.mrf.mxu0
      %v2306 = vadd.f32 0.0, %v2305
      %v2307 = vpop.f32.mrf.mxu0
      %v2308 = vadd.f32 0.0, %v2307
      %2309 = vmatmul.bf16.gmra.mxu0 %v2241
      %v2310 = vpop.f32.mrf.mxu0
      %v2311 = vadd.f32 0.0, %v2310
      %v2312 = vpop.f32.mrf.mxu0
      %v2313 = vadd.f32 0.0, %v2312
      %2314 = vmatmul.bf16.gmra.mxu0 %v2244
      %v2315 = vpop.f32.mrf.mxu0
      %v2316 = vadd.f32 0.0, %v2315
      %v2317 = vpop.f32.mrf.mxu0
      %v2318 = vadd.f32 0.0, %v2317
      %2319 = vmatmul.bf16.gmra.mxu0 %v2247
      %v2320 = vpop.f32.mrf.mxu0
      %v2321 = vadd.f32 0.0, %v2320
      %v2322 = vpop.f32.mrf.mxu0
      %v2323 = vadd.f32 0.0, %v2322
      %2324 = vmatmul.bf16.gmra.mxu0 %v2250
      %v2325 = vpop.f32.mrf.mxu0
      %v2326 = vadd.f32 0.0, %v2325
      %v2327 = vpop.f32.mrf.mxu0
      %v2328 = vadd.f32 0.0, %v2327
      %2329 = vmatmul.bf16.gmra.mxu0 %v2253
      %v2330 = vpop.f32.mrf.mxu0
      %v2331 = vadd.f32 0.0, %v2330
      %v2332 = vpop.f32.mrf.mxu0
      %v2333 = vadd.f32 0.0, %v2332
      %2334 = vmatmul.bf16.gmra.mxu0 %v2256
      %v2335 = vpop.f32.mrf.mxu0
      %v2336 = vadd.f32 0.0, %v2335
      %v2337 = vpop.f32.mrf.mxu0
      %v2338 = vadd.f32 0.0, %v2337
      %2339 = vmatmul.bf16.gmra.mxu0 %v2259
      %v2340 = vpop.f32.mrf.mxu0
      %v2341 = vadd.f32 0.0, %v2340
      %v2342 = vpop.f32.mrf.mxu0
      %v2343 = vadd.f32 0.0, %v2342
      %2344 = vmatmul.bf16.gmra.mxu0 %v2262
      %v2345 = vpop.f32.mrf.mxu0
      %v2346 = vadd.f32 0.0, %v2345
      %v2347 = vpop.f32.mrf.mxu0
      %v2348 = vadd.f32 0.0, %v2347
      %2349 = vmatmul.bf16.gmra.mxu0 %v2265
      %v2350 = vpop.f32.mrf.mxu0
      %v2351 = vadd.f32 0.0, %v2350
      %v2352 = vpop.f32.mrf.mxu0
      %v2353 = vadd.f32 0.0, %v2352
      %2354 = vmatmul.bf16.gmra.mxu0 %v2268
      %v2355 = vpop.f32.mrf.mxu0
      %v2356 = vadd.f32 0.0, %v2355
      %v2357 = vpop.f32.mrf.mxu0
      %v2358 = vadd.f32 0.0, %v2357
      %2359 = vmatmul.bf16.gmra.mxu0 %v2271
      %v2360 = vpop.f32.mrf.mxu0
      %v2361 = vadd.f32 0.0, %v2360
      %v2362 = vpop.f32.mrf.mxu0
      %v2363 = vadd.f32 0.0, %v2362
      %2364 = vdwg.mxu0
      %v2365 = vadd.f32 %v1711, %v2286
      %v2366 = vadd.f32 %v1712, %v2288
      %v2367 = vadd.f32 %v1713, %v2291
      %v2368 = vadd.f32 %v1714, %v2293
      %v2369 = vadd.f32 %v1715, %v2296
      %v2370 = vadd.f32 %v1716, %v2298
      %v2371 = vadd.f32 %v1717, %v2301
      %v2372 = vadd.f32 %v1718, %v2303
      %v2373 = vadd.f32 %v1719, %v2306
      %v2374 = vadd.f32 %v1720, %v2308
      %v2375 = vadd.f32 %v1721, %v2311
      %v2376 = vadd.f32 %v1722, %v2313
      %v2377 = vadd.f32 %v1723, %v2316
      %v2378 = vadd.f32 %v1724, %v2318
      %v2379 = vadd.f32 %v1725, %v2321
      %v2380 = vadd.f32 %v1726, %v2323
      %v2381 = vadd.f32 %v1727, %v2326
      %v2382 = vadd.f32 %v1728, %v2328
      %v2383 = vadd.f32 %v1729, %v2331
      %v2384 = vadd.f32 %v1730, %v2333
      %v2385 = vadd.f32 %v1731, %v2336
      %v2386 = vadd.f32 %v1732, %v2338
      %v2387 = vadd.f32 %v1733, %v2341
      %v2388 = vadd.f32 %v1734, %v2343
      %v2389 = vadd.f32 %v1735, %v2346
      %v2390 = vadd.f32 %v1736, %v2348
      %v2391 = vadd.f32 %v1737, %v2351
      %v2392 = vadd.f32 %v1738, %v2353
      %v2393 = vadd.f32 %v1739, %v2356
      %v2394 = vadd.f32 %v1740, %v2358
      %v2395 = vadd.f32 %v1741, %v2361
      %v2396 = vadd.f32 %v1742, %v2363
      %v2397 = vld [vmem:[%s1456] sm:$0xe]
      %v2398 = vld [vmem:[%s1456 + $0xc] sm:$0xe]
      %v2399 = vld [vmem:[%s1456 + $0x18] sm:$0xe]
      %v2400 = vld [vmem:[%s1456 + $0x24] sm:$0xe]
      %v2401 = vld [vmem:[%s1456 + $0x30] sm:$0xe]
      %v2402 = vld [vmem:[%s1456 + $0x3c] sm:$0xe]
      %v2403 = vld [vmem:[%s1456 + $0x48] sm:$0xe]
      %v2404 = vld [vmem:[%s1456 + $0x54] sm:$0xe]
      %v2405 = vld [vmem:[%s1456 + $0x60] sm:$0xe]
      %v2406 = vld [vmem:[%s1456 + $0x6c] sm:$0xe]
      %v2407 = vld [vmem:[%s1456 + $0x78] sm:$0xe]
      %v2408 = vld [vmem:[%s1456 + $0x84] sm:$0xe]
      %v2409 = vld [vmem:[%s1456 + $0x90] sm:$0xe]
      %v2410 = vld [vmem:[%s1456 + $0x9c] sm:$0xe]
      %v2411 = vld [vmem:[%s1456 + $0xa8] sm:$0xe]
      %v2412 = vld [vmem:[%s1456 + $0xb4] sm:$0xe]
      %v2461 = vrot.slane %v2397, 5
      %v2462 = vrot.slane %v2461, 4
      %v2463 = vrot.slane %v1744, 5
      %v2464 = vsel %vm1121, %v2462, %v2463
      %v2465 = vrot.slane %v2463, 4
      %v2466 = vrot.slane %v1745, 5
      %v2467 = vsel %vm1121, %v2465, %v2466
      %v2468 = vrot.slane %v2398, 5
      %v2469 = vrot.slane %v2468, 4
      %v2470 = vrot.slane %v1747, 5
      %v2471 = vsel %vm1121, %v2469, %v2470
      %v2472 = vrot.slane %v2470, 4
      %v2473 = vrot.slane %v1748, 5
      %v2474 = vsel %vm1121, %v2472, %v2473
      %v2475 = vrot.slane %v2399, 5
      %v2476 = vrot.slane %v2475, 4
      %v2477 = vrot.slane %v1750, 5
      %v2478 = vsel %vm1121, %v2476, %v2477
      %v2479 = vrot.slane %v2477, 4
      %v2480 = vrot.slane %v1751, 5
      %v2481 = vsel %vm1121, %v2479, %v2480
      %v2482 = vrot.slane %v2400, 5
      %v2483 = vrot.slane %v2482, 4
      %v2484 = vrot.slane %v1753, 5
      %v2485 = vsel %vm1121, %v2483, %v2484
      %v2486 = vrot.slane %v2484, 4
      %v2487 = vrot.slane %v1754, 5
      %v2488 = vsel %vm1121, %v2486, %v2487
      %v2489 = vrot.slane %v2401, 5
      %v2490 = vrot.slane %v2489, 4
      %v2491 = vrot.slane %v1756, 5
      %v2492 = vsel %vm1121, %v2490, %v2491
      %v2493 = vrot.slane %v2491, 4
      %v2494 = vrot.slane %v1757, 5
      %v2495 = vsel %vm1121, %v2493, %v2494
      %v2496 = vrot.slane %v2402, 5
      %v2497 = vrot.slane %v2496, 4
      %v2498 = vrot.slane %v1759, 5
      %v2499 = vsel %vm1121, %v2497, %v2498
      %v2500 = vrot.slane %v2498, 4
      %v2501 = vrot.slane %v1760, 5
      %v2502 = vsel %vm1121, %v2500, %v2501
      %v2503 = vrot.slane %v2403, 5
      %v2504 = vrot.slane %v2503, 4
      %v2505 = vrot.slane %v1762, 5
      %v2506 = vsel %vm1121, %v2504, %v2505
      %v2507 = vrot.slane %v2505, 4
      %v2508 = vrot.slane %v1763, 5
      %v2509 = vsel %vm1121, %v2507, %v2508
      %v2510 = vrot.slane %v2404, 5
      %v2511 = vrot.slane %v2510, 4
      %v2512 = vrot.slane %v1765, 5
      %v2513 = vsel %vm1121, %v2511, %v2512
      %v2514 = vrot.slane %v2512, 4
      %v2515 = vrot.slane %v1766, 5
      %v2516 = vsel %vm1121, %v2514, %v2515
      %v2517 = vrot.slane %v2405, 5
      %v2518 = vrot.slane %v2517, 4
      %v2519 = vrot.slane %v1768, 5
      %v2520 = vsel %vm1121, %v2518, %v2519
      %v2521 = vrot.slane %v2519, 4
      %v2522 = vrot.slane %v1769, 5
      %v2523 = vsel %vm1121, %v2521, %v2522
      %v2524 = vrot.slane %v2406, 5
      %v2525 = vrot.slane %v2524, 4
      %v2526 = vrot.slane %v1771, 5
      %v2527 = vsel %vm1121, %v2525, %v2526
      %v2528 = vrot.slane %v2526, 4
      %v2529 = vrot.slane %v1772, 5
      %v2530 = vsel %vm1121, %v2528, %v2529
      %v2531 = vrot.slane %v2407, 5
      %v2532 = vrot.slane %v2531, 4
      %v2533 = vrot.slane %v1774, 5
      %v2534 = vsel %vm1121, %v2532, %v2533
      %v2535 = vrot.slane %v2533, 4
      %v2536 = vrot.slane %v1775, 5
      %v2537 = vsel %vm1121, %v2535, %v2536
      %v2538 = vrot.slane %v2408, 5
      %v2539 = vrot.slane %v2538, 4
      %v2540 = vrot.slane %v1777, 5
      %v2541 = vsel %vm1121, %v2539, %v2540
      %v2542 = vrot.slane %v2540, 4
      %v2543 = vrot.slane %v1778, 5
      %v2544 = vsel %vm1121, %v2542, %v2543
      %v2545 = vrot.slane %v2409, 5
      %v2546 = vrot.slane %v2545, 4
      %v2547 = vrot.slane %v1780, 5
      %v2548 = vsel %vm1121, %v2546, %v2547
      %v2549 = vrot.slane %v2547, 4
      %v2550 = vrot.slane %v1781, 5
      %v2551 = vsel %vm1121, %v2549, %v2550
      %v2552 = vrot.slane %v2410, 5
      %v2553 = vrot.slane %v2552, 4
      %v2554 = vrot.slane %v1783, 5
      %v2555 = vsel %vm1121, %v2553, %v2554
      %v2556 = vrot.slane %v2554, 4
      %v2557 = vrot.slane %v1784, 5
      %v2558 = vsel %vm1121, %v2556, %v2557
      %v2559 = vrot.slane %v2411, 5
      %v2560 = vrot.slane %v2559, 4
      %v2561 = vrot.slane %v1786, 5
      %v2562 = vsel %vm1121, %v2560, %v2561
      %v2563 = vrot.slane %v2561, 4
      %v2564 = vrot.slane %v1787, 5
      %v2565 = vsel %vm1121, %v2563, %v2564
      %v2566 = vrot.slane %v2412, 5
      %v2567 = vrot.slane %v2566, 4
      %v2568 = vrot.slane %v1789, 5
      %v2569 = vsel %vm1121, %v2567, %v2568
      %v2570 = vrot.slane %v2568, 4
      %v2571 = vrot.slane %v1790, 5
      %v2572 = vsel %vm1121, %v2570, %v2571
      %s2573 = scalar_lea.vmem %s210, 20
      %v2574 = vld [vmem:[%s2573] sm:$0xf]
      %v2575 = vunpack.c.l.b16 %v2464
      %v2576 = vunpack.c.l.b16 %v2467
      %v2577 = vunpack.c.l.b16 %v2471
      %v2578 = vunpack.c.l.b16 %v2474
      %v2579 = vunpack.c.l.b16 %v2478
      %v2580 = vunpack.c.l.b16 %v2481
      %v2581 = vunpack.c.l.b16 %v2485
      %v2582 = vunpack.c.l.b16 %v2488
      %v2583 = vunpack.c.l.b16 %v2492
      %v2584 = vunpack.c.l.b16 %v2495
      %v2585 = vunpack.c.l.b16 %v2499
      %v2586 = vunpack.c.l.b16 %v2502
      %v2587 = vunpack.c.l.b16 %v2506
      %v2588 = vunpack.c.l.b16 %v2509
      %v2589 = vunpack.c.l.b16 %v2513
      %v2590 = vunpack.c.l.b16 %v2516
      %v2591 = vunpack.c.l.b16 %v2520
      %v2592 = vunpack.c.l.b16 %v2523
      %v2593 = vunpack.c.l.b16 %v2527
      %v2594 = vunpack.c.l.b16 %v2530
      %v2595 = vunpack.c.l.b16 %v2534
      %v2596 = vunpack.c.l.b16 %v2537
      %v2597 = vunpack.c.l.b16 %v2541
      %v2598 = vunpack.c.l.b16 %v2544
      %v2599 = vunpack.c.l.b16 %v2548
      %v2600 = vunpack.c.l.b16 %v2551
      %v2601 = vunpack.c.l.b16 %v2555
      %v2602 = vunpack.c.l.b16 %v2558
      %v2603 = vunpack.c.l.b16 %v2562
      %v2604 = vunpack.c.l.b16 %v2565
      %v2605 = vunpack.c.l.b16 %v2569
      %v2606 = vunpack.c.l.b16 %v2572
      %v2607 = vpack.c.b16 %v2576, %v2575
      %v2608 = vpack.c.b16 %v2578, %v2577
      %v2609 = vpack.c.b16 %v2580, %v2579
      %v2610 = vpack.c.b16 %v2582, %v2581
      %v2611 = vpack.c.b16 %v2584, %v2583
      %v2612 = vpack.c.b16 %v2586, %v2585
      %v2613 = vpack.c.b16 %v2588, %v2587
      %v2614 = vpack.c.b16 %v2590, %v2589
      %v2615 = vpack.c.b16 %v2592, %v2591
      %v2616 = vpack.c.b16 %v2594, %v2593
      %v2617 = vpack.c.b16 %v2596, %v2595
      %v2618 = vpack.c.b16 %v2598, %v2597
      %v2619 = vpack.c.b16 %v2600, %v2599
      %v2620 = vpack.c.b16 %v2602, %v2601
      %v2621 = vpack.c.b16 %v2604, %v2603
      %v2622 = vpack.c.b16 %v2606, %v2605
      %v2624 = vsel %vm709, %v2607, 0
      %v2627 = vsel %vm709, %v2608, 0
      %v2630 = vsel %vm709, %v2609, 0
      %v2633 = vsel %vm709, %v2610, 0
      %v2636 = vsel %vm709, %v2611, 0
      %v2639 = vsel %vm709, %v2612, 0
      %v2642 = vsel %vm709, %v2613, 0
      %v2645 = vsel %vm709, %v2614, 0
      %v2648 = vsel %vm709, %v2615, 0
      %v2651 = vsel %vm709, %v2616, 0
      %v2654 = vsel %vm709, %v2617, 0
      %v2657 = vsel %vm709, %v2618, 0
      %v2660 = vsel %vm709, %v2619, 0
      %v2663 = vsel %vm709, %v2620, 0
      %v2666 = vsel %vm709, %v2621, 0
      %v2669 = vsel %vm709, %v2622, 0
      %v2672 = vsel %vm758, %v2574, 0
      %2674 = vmatpush.bf16.msra.mxu0 0
      %2675 = vmatpush.bf16.msra.mxu0 0
      %2676 = vmatpush.bf16.msra.mxu0 0
      %2677 = vmatpush.bf16.msra.mxu0 0
      %2678 = vmatpush.bf16.msra.mxu0 0
      %2679 = vmatpush.bf16.msra.mxu0 0
      %2680 = vmatpush.bf16.msra.mxu0 0
      %2681 = vmatpush.bf16.msra.mxu0 %v2672
      %2682 = vmatmul.bf16.gmra.mxu0 %v2624
      %v2683 = vpop.f32.mrf.mxu0
      %v2684 = vadd.f32 0.0, %v2683
      %v2685 = vpop.f32.mrf.mxu0
      %v2686 = vadd.f32 0.0, %v2685
      %2687 = vmatmul.bf16.gmra.mxu0 %v2627
      %v2688 = vpop.f32.mrf.mxu0
      %v2689 = vadd.f32 0.0, %v2688
      %v2690 = vpop.f32.mrf.mxu0
      %v2691 = vadd.f32 0.0, %v2690
      %2692 = vmatmul.bf16.gmra.mxu0 %v2630
      %v2693 = vpop.f32.mrf.mxu0
      %v2694 = vadd.f32 0.0, %v2693
      %v2695 = vpop.f32.mrf.mxu0
      %v2696 = vadd.f32 0.0, %v2695
      %2697 = vmatmul.bf16.gmra.mxu0 %v2633
      %v2698 = vpop.f32.mrf.mxu0
      %v2699 = vadd.f32 0.0, %v2698
      %v2700 = vpop.f32.mrf.mxu0
      %v2701 = vadd.f32 0.0, %v2700
      %2702 = vmatmul.bf16.gmra.mxu0 %v2636
      %v2703 = vpop.f32.mrf.mxu0
      %v2704 = vadd.f32 0.0, %v2703
      %v2705 = vpop.f32.mrf.mxu0
      %v2706 = vadd.f32 0.0, %v2705
      %2707 = vmatmul.bf16.gmra.mxu0 %v2639
      %v2708 = vpop.f32.mrf.mxu0
      %v2709 = vadd.f32 0.0, %v2708
      %v2710 = vpop.f32.mrf.mxu0
      %v2711 = vadd.f32 0.0, %v2710
      %2712 = vmatmul.bf16.gmra.mxu0 %v2642
      %v2713 = vpop.f32.mrf.mxu0
      %v2714 = vadd.f32 0.0, %v2713
      %v2715 = vpop.f32.mrf.mxu0
      %v2716 = vadd.f32 0.0, %v2715
      %2717 = vmatmul.bf16.gmra.mxu0 %v2645
      %v2718 = vpop.f32.mrf.mxu0
      %v2719 = vadd.f32 0.0, %v2718
      %v2720 = vpop.f32.mrf.mxu0
      %v2721 = vadd.f32 0.0, %v2720
      %2722 = vmatmul.bf16.gmra.mxu0 %v2648
      %v2723 = vpop.f32.mrf.mxu0
      %v2724 = vadd.f32 0.0, %v2723
      %v2725 = vpop.f32.mrf.mxu0
      %v2726 = vadd.f32 0.0, %v2725
      %2727 = vmatmul.bf16.gmra.mxu0 %v2651
      %v2728 = vpop.f32.mrf.mxu0
      %v2729 = vadd.f32 0.0, %v2728
      %v2730 = vpop.f32.mrf.mxu0
      %v2731 = vadd.f32 0.0, %v2730
      %2732 = vmatmul.bf16.gmra.mxu0 %v2654
      %v2733 = vpop.f32.mrf.mxu0
      %v2734 = vadd.f32 0.0, %v2733
      %v2735 = vpop.f32.mrf.mxu0
      %v2736 = vadd.f32 0.0, %v2735
      %2737 = vmatmul.bf16.gmra.mxu0 %v2657
      %v2738 = vpop.f32.mrf.mxu0
      %v2739 = vadd.f32 0.0, %v2738
      %v2740 = vpop.f32.mrf.mxu0
      %v2741 = vadd.f32 0.0, %v2740
      %2742 = vmatmul.bf16.gmra.mxu0 %v2660
      %v2743 = vpop.f32.mrf.mxu0
      %v2744 = vadd.f32 0.0, %v2743
      %v2745 = vpop.f32.mrf.mxu0
      %v2746 = vadd.f32 0.0, %v2745
      %2747 = vmatmul.bf16.gmra.mxu0 %v2663
      %v2748 = vpop.f32.mrf.mxu0
      %v2749 = vadd.f32 0.0, %v2748
      %v2750 = vpop.f32.mrf.mxu0
      %v2751 = vadd.f32 0.0, %v2750
      %2752 = vmatmul.bf16.gmra.mxu0 %v2666
      %v2753 = vpop.f32.mrf.mxu0
      %v2754 = vadd.f32 0.0, %v2753
      %v2755 = vpop.f32.mrf.mxu0
      %v2756 = vadd.f32 0.0, %v2755
      %2757 = vmatmul.bf16.gmra.mxu0 %v2669
      %v2758 = vpop.f32.mrf.mxu0
      %v2759 = vadd.f32 0.0, %v2758
      %v2760 = vpop.f32.mrf.mxu0
      %v2761 = vadd.f32 0.0, %v2760
      %2762 = vdwg.mxu0
      %v2763 = vadd.f32 %v2365, %v2684
      %v2764 = vadd.f32 %v2366, %v2686
      %v2765 = vadd.f32 %v2367, %v2689
      %v2766 = vadd.f32 %v2368, %v2691
      %v2767 = vadd.f32 %v2369, %v2694
      %v2768 = vadd.f32 %v2370, %v2696
      %v2769 = vadd.f32 %v2371, %v2699
      %v2770 = vadd.f32 %v2372, %v2701
      %v2771 = vadd.f32 %v2373, %v2704
      %v2772 = vadd.f32 %v2374, %v2706
      %v2773 = vadd.f32 %v2375, %v2709
      %v2774 = vadd.f32 %v2376, %v2711
      %v2775 = vadd.f32 %v2377, %v2714
      %v2776 = vadd.f32 %v2378, %v2716
      %v2777 = vadd.f32 %v2379, %v2719
      %v2778 = vadd.f32 %v2380, %v2721
      %v2779 = vadd.f32 %v2381, %v2724
      %v2780 = vadd.f32 %v2382, %v2726
      %v2781 = vadd.f32 %v2383, %v2729
      %v2782 = vadd.f32 %v2384, %v2731
      %v2783 = vadd.f32 %v2385, %v2734
      %v2784 = vadd.f32 %v2386, %v2736
      %v2785 = vadd.f32 %v2387, %v2739
      %v2786 = vadd.f32 %v2388, %v2741
      %v2787 = vadd.f32 %v2389, %v2744
      %v2788 = vadd.f32 %v2390, %v2746
      %v2789 = vadd.f32 %v2391, %v2749
      %v2790 = vadd.f32 %v2392, %v2751
      %v2791 = vadd.f32 %v2393, %v2754
      %v2792 = vadd.f32 %v2394, %v2756
      %v2793 = vadd.f32 %v2395, %v2759
      %v2794 = vadd.f32 %v2396, %v2761
      %s2795 = scalar_lea.vmem %s206, 24
      %v2796 = vld [vmem:[%s2795] sm:$0xf]
      %v2797 = vld [vmem:[%s2795 + $0x4] sm:$0xf]
      %v2798 = vld [vmem:[%s2795 + $0xc] sm:$0xf]
      %v2799 = vld [vmem:[%s2795 + $0x10] sm:$0xf]
      %v2800 = vld [vmem:[%s2795 + $0x18] sm:$0xf]
      %v2801 = vld [vmem:[%s2795 + $0x1c] sm:$0xf]
      %v2802 = vld [vmem:[%s2795 + $0x24] sm:$0xf]
      %v2803 = vld [vmem:[%s2795 + $0x28] sm:$0xf]
      %v2804 = vld [vmem:[%s2795 + $0x30] sm:$0xf]
      %v2805 = vld [vmem:[%s2795 + $0x34] sm:$0xf]
      %v2806 = vld [vmem:[%s2795 + $0x3c] sm:$0xf]
      %v2807 = vld [vmem:[%s2795 + $0x40] sm:$0xf]
      %v2808 = vld [vmem:[%s2795 + $0x48] sm:$0xf]
      %v2809 = vld [vmem:[%s2795 + $0x4c] sm:$0xf]
      %v2810 = vld [vmem:[%s2795 + $0x54] sm:$0xf]
      %v2811 = vld [vmem:[%s2795 + $0x58] sm:$0xf]
      %v2812 = vld [vmem:[%s2795 + $0x60] sm:$0xf]
      %v2813 = vld [vmem:[%s2795 + $0x64] sm:$0xf]
      %v2814 = vld [vmem:[%s2795 + $0x6c] sm:$0xf]
      %v2815 = vld [vmem:[%s2795 + $0x70] sm:$0xf]
      %v2816 = vld [vmem:[%s2795 + $0x78] sm:$0xf]
      %v2817 = vld [vmem:[%s2795 + $0x7c] sm:$0xf]
      %v2818 = vld [vmem:[%s2795 + $0x84] sm:$0xf]
      %v2819 = vld [vmem:[%s2795 + $0x88] sm:$0xf]
      %v2820 = vld [vmem:[%s2795 + $0x90] sm:$0xf]
      %v2821 = vld [vmem:[%s2795 + $0x94] sm:$0xf]
      %v2822 = vld [vmem:[%s2795 + $0x9c] sm:$0xf]
      %v2823 = vld [vmem:[%s2795 + $0xa0] sm:$0xf]
      %v2824 = vld [vmem:[%s2795 + $0xa8] sm:$0xf]
      %v2825 = vld [vmem:[%s2795 + $0xac] sm:$0xf]
      %v2826 = vld [vmem:[%s2795 + $0xb4] sm:$0xf]
      %v2827 = vld [vmem:[%s2795 + $0xb8] sm:$0xf]
      %s2828 = scalar_lea.vmem %s210, 24
      %v2829 = vld [vmem:[%s2828] sm:$0xf]
      %v2862 = vunpack.c.l.b16 %v2796
      %v2863 = vunpack.c.l.b16 %v2797
      %v2864 = vunpack.c.l.b16 %v2798
      %v2865 = vunpack.c.l.b16 %v2799
      %v2866 = vunpack.c.l.b16 %v2800
      %v2867 = vunpack.c.l.b16 %v2801
      %v2868 = vunpack.c.l.b16 %v2802
      %v2869 = vunpack.c.l.b16 %v2803
      %v2870 = vunpack.c.l.b16 %v2804
      %v2871 = vunpack.c.l.b16 %v2805
      %v2872 = vunpack.c.l.b16 %v2806
      %v2873 = vunpack.c.l.b16 %v2807
      %v2874 = vunpack.c.l.b16 %v2808
      %v2875 = vunpack.c.l.b16 %v2809
      %v2876 = vunpack.c.l.b16 %v2810
      %v2877 = vunpack.c.l.b16 %v2811
      %v2878 = vunpack.c.l.b16 %v2812
      %v2879 = vunpack.c.l.b16 %v2813
      %v2880 = vunpack.c.l.b16 %v2814
      %v2881 = vunpack.c.l.b16 %v2815
      %v2882 = vunpack.c.l.b16 %v2816
      %v2883 = vunpack.c.l.b16 %v2817
      %v2884 = vunpack.c.l.b16 %v2818
      %v2885 = vunpack.c.l.b16 %v2819
      %v2886 = vunpack.c.l.b16 %v2820
      %v2887 = vunpack.c.l.b16 %v2821
      %v2888 = vunpack.c.l.b16 %v2822
      %v2889 = vunpack.c.l.b16 %v2823
      %v2890 = vunpack.c.l.b16 %v2824
      %v2891 = vunpack.c.l.b16 %v2825
      %v2892 = vunpack.c.l.b16 %v2826
      %v2893 = vunpack.c.l.b16 %v2827
      %v2894 = vpack.c.b16 %v2863, %v2862
      %v2895 = vpack.c.b16 %v2865, %v2864
      %v2896 = vpack.c.b16 %v2867, %v2866
      %v2897 = vpack.c.b16 %v2869, %v2868
      %v2898 = vpack.c.b16 %v2871, %v2870
      %v2899 = vpack.c.b16 %v2873, %v2872
      %v2900 = vpack.c.b16 %v2875, %v2874
      %v2901 = vpack.c.b16 %v2877, %v2876
      %v2902 = vpack.c.b16 %v2879, %v2878
      %v2903 = vpack.c.b16 %v2881, %v2880
      %v2904 = vpack.c.b16 %v2883, %v2882
      %v2905 = vpack.c.b16 %v2885, %v2884
      %v2906 = vpack.c.b16 %v2887, %v2886
      %v2907 = vpack.c.b16 %v2889, %v2888
      %v2908 = vpack.c.b16 %v2891, %v2890
      %v2909 = vpack.c.b16 %v2893, %v2892
      %v2911 = vsel %vm709, %v2894, 0
      %v2914 = vsel %vm709, %v2895, 0
      %v2917 = vsel %vm709, %v2896, 0
      %v2920 = vsel %vm709, %v2897, 0
      %v2923 = vsel %vm709, %v2898, 0
      %v2926 = vsel %vm709, %v2899, 0
      %v2929 = vsel %vm709, %v2900, 0
      %v2932 = vsel %vm709, %v2901, 0
      %v2935 = vsel %vm709, %v2902, 0
      %v2938 = vsel %vm709, %v2903, 0
      %v2941 = vsel %vm709, %v2904, 0
      %v2944 = vsel %vm709, %v2905, 0
      %v2947 = vsel %vm709, %v2906, 0
      %v2950 = vsel %vm709, %v2907, 0
      %v2953 = vsel %vm709, %v2908, 0
      %v2956 = vsel %vm709, %v2909, 0
      %v2959 = vsel %vm758, %v2829, 0
      %2961 = vmatpush.bf16.msra.mxu0 0
      %2962 = vmatpush.bf16.msra.mxu0 0
      %2963 = vmatpush.bf16.msra.mxu0 0
      %2964 = vmatpush.bf16.msra.mxu0 0
      %2965 = vmatpush.bf16.msra.mxu0 0
      %2966 = vmatpush.bf16.msra.mxu0 0
      %2967 = vmatpush.bf16.msra.mxu0 0
      %2968 = vmatpush.bf16.msra.mxu0 %v2959
      %2969 = vmatmul.bf16.gmra.mxu0 %v2911
      %v2970 = vpop.f32.mrf.mxu0
      %v2971 = vadd.f32 0.0, %v2970
      %v2972 = vpop.f32.mrf.mxu0
      %v2973 = vadd.f32 0.0, %v2972
      %2974 = vmatmul.bf16.gmra.mxu0 %v2914
      %v2975 = vpop.f32.mrf.mxu0
      %v2976 = vadd.f32 0.0, %v2975
      %v2977 = vpop.f32.mrf.mxu0
      %v2978 = vadd.f32 0.0, %v2977
      %2979 = vmatmul.bf16.gmra.mxu0 %v2917
      %v2980 = vpop.f32.mrf.mxu0
      %v2981 = vadd.f32 0.0, %v2980
      %v2982 = vpop.f32.mrf.mxu0
      %v2983 = vadd.f32 0.0, %v2982
      %2984 = vmatmul.bf16.gmra.mxu0 %v2920
      %v2985 = vpop.f32.mrf.mxu0
      %v2986 = vadd.f32 0.0, %v2985
      %v2987 = vpop.f32.mrf.mxu0
      %v2988 = vadd.f32 0.0, %v2987
      %2989 = vmatmul.bf16.gmra.mxu0 %v2923
      %v2990 = vpop.f32.mrf.mxu0
      %v2991 = vadd.f32 0.0, %v2990
      %v2992 = vpop.f32.mrf.mxu0
      %v2993 = vadd.f32 0.0, %v2992
      %2994 = vmatmul.bf16.gmra.mxu0 %v2926
      %v2995 = vpop.f32.mrf.mxu0
      %v2996 = vadd.f32 0.0, %v2995
      %v2997 = vpop.f32.mrf.mxu0
      %v2998 = vadd.f32 0.0, %v2997
      %2999 = vmatmul.bf16.gmra.mxu0 %v2929
      %v3000 = vpop.f32.mrf.mxu0
      %v3001 = vadd.f32 0.0, %v3000
      %v3002 = vpop.f32.mrf.mxu0
      %v3003 = vadd.f32 0.0, %v3002
      %3004 = vmatmul.bf16.gmra.mxu0 %v2932
      %v3005 = vpop.f32.mrf.mxu0
      %v3006 = vadd.f32 0.0, %v3005
      %v3007 = vpop.f32.mrf.mxu0
      %v3008 = vadd.f32 0.0, %v3007
      %3009 = vmatmul.bf16.gmra.mxu0 %v2935
      %v3010 = vpop.f32.mrf.mxu0
      %v3011 = vadd.f32 0.0, %v3010
      %v3012 = vpop.f32.mrf.mxu0
      %v3013 = vadd.f32 0.0, %v3012
      %3014 = vmatmul.bf16.gmra.mxu0 %v2938
      %v3015 = vpop.f32.mrf.mxu0
      %v3016 = vadd.f32 0.0, %v3015
      %v3017 = vpop.f32.mrf.mxu0
      %v3018 = vadd.f32 0.0, %v3017
      %3019 = vmatmul.bf16.gmra.mxu0 %v2941
      %v3020 = vpop.f32.mrf.mxu0
      %v3021 = vadd.f32 0.0, %v3020
      %v3022 = vpop.f32.mrf.mxu0
      %v3023 = vadd.f32 0.0, %v3022
      %3024 = vmatmul.bf16.gmra.mxu0 %v2944
      %v3025 = vpop.f32.mrf.mxu0
      %v3026 = vadd.f32 0.0, %v3025
      %v3027 = vpop.f32.mrf.mxu0
      %v3028 = vadd.f32 0.0, %v3027
      %3029 = vmatmul.bf16.gmra.mxu0 %v2947
      %v3030 = vpop.f32.mrf.mxu0
      %v3031 = vadd.f32 0.0, %v3030
      %v3032 = vpop.f32.mrf.mxu0
      %v3033 = vadd.f32 0.0, %v3032
      %3034 = vmatmul.bf16.gmra.mxu0 %v2950
      %v3035 = vpop.f32.mrf.mxu0
      %v3036 = vadd.f32 0.0, %v3035
      %v3037 = vpop.f32.mrf.mxu0
      %v3038 = vadd.f32 0.0, %v3037
      %3039 = vmatmul.bf16.gmra.mxu0 %v2953
      %v3040 = vpop.f32.mrf.mxu0
      %v3041 = vadd.f32 0.0, %v3040
      %v3042 = vpop.f32.mrf.mxu0
      %v3043 = vadd.f32 0.0, %v3042
      %3044 = vmatmul.bf16.gmra.mxu0 %v2956
      %v3045 = vpop.f32.mrf.mxu0
      %v3046 = vadd.f32 0.0, %v3045
      %v3047 = vpop.f32.mrf.mxu0
      %v3048 = vadd.f32 0.0, %v3047
      %3049 = vdwg.mxu0
      %v3050 = vadd.f32 %v2763, %v2971
      %v3051 = vadd.f32 %v2764, %v2973
      %v3052 = vadd.f32 %v2765, %v2976
      %v3053 = vadd.f32 %v2766, %v2978
      %v3054 = vadd.f32 %v2767, %v2981
      %v3055 = vadd.f32 %v2768, %v2983
      %v3056 = vadd.f32 %v2769, %v2986
      %v3057 = vadd.f32 %v2770, %v2988
      %v3058 = vadd.f32 %v2771, %v2991
      %v3059 = vadd.f32 %v2772, %v2993
      %v3060 = vadd.f32 %v2773, %v2996
      %v3061 = vadd.f32 %v2774, %v2998
      %v3062 = vadd.f32 %v2775, %v3001
      %v3063 = vadd.f32 %v2776, %v3003
      %v3064 = vadd.f32 %v2777, %v3006
      %v3065 = vadd.f32 %v2778, %v3008
      %v3066 = vadd.f32 %v2779, %v3011
      %v3067 = vadd.f32 %v2780, %v3013
      %v3068 = vadd.f32 %v2781, %v3016
      %v3069 = vadd.f32 %v2782, %v3018
      %v3070 = vadd.f32 %v2783, %v3021
      %v3071 = vadd.f32 %v2784, %v3023
      %v3072 = vadd.f32 %v2785, %v3026
      %v3073 = vadd.f32 %v2786, %v3028
      %v3074 = vadd.f32 %v2787, %v3031
      %v3075 = vadd.f32 %v2788, %v3033
      %v3076 = vadd.f32 %v2789, %v3036
      %v3077 = vadd.f32 %v2790, %v3038
      %v3078 = vadd.f32 %v2791, %v3041
      %v3079 = vadd.f32 %v2792, %v3043
      %v3080 = vadd.f32 %v2793, %v3046
      %v3081 = vadd.f32 %v2794, %v3048
      %v3082 = vld [vmem:[%s2795] sm:$0xf]
      %v3083 = vld [vmem:[%s2795 + $0x4] sm:$0xf]
      %v3084 = vld [vmem:[%s2795 + $0x8] sm:$0x1]
      %v3085 = vld [vmem:[%s2795 + $0xc] sm:$0xf]
      %v3086 = vld [vmem:[%s2795 + $0x10] sm:$0xf]
      %v3087 = vld [vmem:[%s2795 + $0x14] sm:$0x1]
      %v3088 = vld [vmem:[%s2795 + $0x18] sm:$0xf]
      %v3089 = vld [vmem:[%s2795 + $0x1c] sm:$0xf]
      %v3090 = vld [vmem:[%s2795 + $0x20] sm:$0x1]
      %v3091 = vld [vmem:[%s2795 + $0x24] sm:$0xf]
      %v3092 = vld [vmem:[%s2795 + $0x28] sm:$0xf]
      %v3093 = vld [vmem:[%s2795 + $0x2c] sm:$0x1]
      %v3094 = vld [vmem:[%s2795 + $0x30] sm:$0xf]
      %v3095 = vld [vmem:[%s2795 + $0x34] sm:$0xf]
      %v3096 = vld [vmem:[%s2795 + $0x38] sm:$0x1]
      %v3097 = vld [vmem:[%s2795 + $0x3c] sm:$0xf]
      %v3098 = vld [vmem:[%s2795 + $0x40] sm:$0xf]
      %v3099 = vld [vmem:[%s2795 + $0x44] sm:$0x1]
      %v3100 = vld [vmem:[%s2795 + $0x48] sm:$0xf]
      %v3101 = vld [vmem:[%s2795 + $0x4c] sm:$0xf]
      %v3102 = vld [vmem:[%s2795 + $0x50] sm:$0x1]
      %v3103 = vld [vmem:[%s2795 + $0x54] sm:$0xf]
      %v3104 = vld [vmem:[%s2795 + $0x58] sm:$0xf]
      %v3105 = vld [vmem:[%s2795 + $0x5c] sm:$0x1]
      %v3106 = vld [vmem:[%s2795 + $0x60] sm:$0xf]
      %v3107 = vld [vmem:[%s2795 + $0x64] sm:$0xf]
      %v3108 = vld [vmem:[%s2795 + $0x68] sm:$0x1]
      %v3109 = vld [vmem:[%s2795 + $0x6c] sm:$0xf]
      %v3110 = vld [vmem:[%s2795 + $0x70] sm:$0xf]
      %v3111 = vld [vmem:[%s2795 + $0x74] sm:$0x1]
      %v3112 = vld [vmem:[%s2795 + $0x78] sm:$0xf]
      %v3113 = vld [vmem:[%s2795 + $0x7c] sm:$0xf]
      %v3114 = vld [vmem:[%s2795 + $0x80] sm:$0x1]
      %v3115 = vld [vmem:[%s2795 + $0x84] sm:$0xf]
      %v3116 = vld [vmem:[%s2795 + $0x88] sm:$0xf]
      %v3117 = vld [vmem:[%s2795 + $0x8c] sm:$0x1]
      %v3118 = vld [vmem:[%s2795 + $0x90] sm:$0xf]
      %v3119 = vld [vmem:[%s2795 + $0x94] sm:$0xf]
      %v3120 = vld [vmem:[%s2795 + $0x98] sm:$0x1]
      %v3121 = vld [vmem:[%s2795 + $0x9c] sm:$0xf]
      %v3122 = vld [vmem:[%s2795 + $0xa0] sm:$0xf]
      %v3123 = vld [vmem:[%s2795 + $0xa4] sm:$0x1]
      %v3124 = vld [vmem:[%s2795 + $0xa8] sm:$0xf]
      %v3125 = vld [vmem:[%s2795 + $0xac] sm:$0xf]
      %v3126 = vld [vmem:[%s2795 + $0xb0] sm:$0x1]
      %v3127 = vld [vmem:[%s2795 + $0xb4] sm:$0xf]
      %v3128 = vld [vmem:[%s2795 + $0xb8] sm:$0xf]
      %v3129 = vld [vmem:[%s2795 + $0xbc] sm:$0x1]
      %v3131 = vshrl.u32 %v3082, 16
      %v3133 = vrot.slane %v3131, 4
      %v3134 = vshll.u32 %v3082, 16
      %v3136 = vrot.slane %v3134, 5
      %v3137 = vor.u32 %v3133, %v3136
      %v3138 = vrot.slane %v3137, 4
      %v3140 = vshll.u32 %v3083, 16
      %v3142 = vrot.slane %v3140, 5
      %v3143 = vsel %vm274, %v3138, %v3142
      %v3144 = vshrl.u32 %v3083, 16
      %v3146 = vrot.slane %v3144, 4
      %v3147 = vor.u32 %v3146, %v3142
      %v3148 = vrot.slane %v3147, 4
      %v3150 = vshll.u32 %v3084, 16
      %v3152 = vrot.slane %v3150, 5
      %v3153 = vsel %vm274, %v3148, %v3152
      %v3155 = vshrl.u32 %v3085, 16
      %v3157 = vrot.slane %v3155, 4
      %v3158 = vshll.u32 %v3085, 16
      %v3160 = vrot.slane %v3158, 5
      %v3161 = vor.u32 %v3157, %v3160
      %v3162 = vrot.slane %v3161, 4
      %v3164 = vshll.u32 %v3086, 16
      %v3166 = vrot.slane %v3164, 5
      %v3167 = vsel %vm274, %v3162, %v3166
      %v3168 = vshrl.u32 %v3086, 16
      %v3170 = vrot.slane %v3168, 4
      %v3171 = vor.u32 %v3170, %v3166
      %v3172 = vrot.slane %v3171, 4
      %v3174 = vshll.u32 %v3087, 16
      %v3176 = vrot.slane %v3174, 5
      %v3177 = vsel %vm274, %v3172, %v3176
      %v3179 = vshrl.u32 %v3088, 16
      %v3181 = vrot.slane %v3179, 4
      %v3182 = vshll.u32 %v3088, 16
      %v3184 = vrot.slane %v3182, 5
      %v3185 = vor.u32 %v3181, %v3184
      %v3186 = vrot.slane %v3185, 4
      %v3188 = vshll.u32 %v3089, 16
      %v3190 = vrot.slane %v3188, 5
      %v3191 = vsel %vm274, %v3186, %v3190
      %v3192 = vshrl.u32 %v3089, 16
      %v3194 = vrot.slane %v3192, 4
      %v3195 = vor.u32 %v3194, %v3190
      %v3196 = vrot.slane %v3195, 4
      %v3198 = vshll.u32 %v3090, 16
      %v3200 = vrot.slane %v3198, 5
      %v3201 = vsel %vm274, %v3196, %v3200
      %v3203 = vshrl.u32 %v3091, 16
      %v3205 = vrot.slane %v3203, 4
      %v3206 = vshll.u32 %v3091, 16
      %v3208 = vrot.slane %v3206, 5
      %v3209 = vor.u32 %v3205, %v3208
      %v3210 = vrot.slane %v3209, 4
      %v3212 = vshll.u32 %v3092, 16
      %v3214 = vrot.slane %v3212, 5
      %v3215 = vsel %vm274, %v3210, %v3214
      %v3216 = vshrl.u32 %v3092, 16
      %v3218 = vrot.slane %v3216, 4
      %v3219 = vor.u32 %v3218, %v3214
      %v3220 = vrot.slane %v3219, 4
      %v3222 = vshll.u32 %v3093, 16
      %v3224 = vrot.slane %v3222, 5
      %v3225 = vsel %vm274, %v3220, %v3224
      %v3227 = vshrl.u32 %v3094, 16
      %v3229 = vrot.slane %v3227, 4
      %v3230 = vshll.u32 %v3094, 16
      %v3232 = vrot.slane %v3230, 5
      %v3233 = vor.u32 %v3229, %v3232
      %v3234 = vrot.slane %v3233, 4
      %v3236 = vshll.u32 %v3095, 16
      %v3238 = vrot.slane %v3236, 5
      %v3239 = vsel %vm274, %v3234, %v3238
      %v3240 = vshrl.u32 %v3095, 16
      %v3242 = vrot.slane %v3240, 4
      %v3243 = vor.u32 %v3242, %v3238
      %v3244 = vrot.slane %v3243, 4
      %v3246 = vshll.u32 %v3096, 16
      %v3248 = vrot.slane %v3246, 5
      %v3249 = vsel %vm274, %v3244, %v3248
      %v3251 = vshrl.u32 %v3097, 16
      %v3253 = vrot.slane %v3251, 4
      %v3254 = vshll.u32 %v3097, 16
      %v3256 = vrot.slane %v3254, 5
      %v3257 = vor.u32 %v3253, %v3256
      %v3258 = vrot.slane %v3257, 4
      %v3260 = vshll.u32 %v3098, 16
      %v3262 = vrot.slane %v3260, 5
      %v3263 = vsel %vm274, %v3258, %v3262
      %v3264 = vshrl.u32 %v3098, 16
      %v3266 = vrot.slane %v3264, 4
      %v3267 = vor.u32 %v3266, %v3262
      %v3268 = vrot.slane %v3267, 4
      %v3270 = vshll.u32 %v3099, 16
      %v3272 = vrot.slane %v3270, 5
      %v3273 = vsel %vm274, %v3268, %v3272
      %v3275 = vshrl.u32 %v3100, 16
      %v3277 = vrot.slane %v3275, 4
      %v3278 = vshll.u32 %v3100, 16
      %v3280 = vrot.slane %v3278, 5
      %v3281 = vor.u32 %v3277, %v3280
      %v3282 = vrot.slane %v3281, 4
      %v3284 = vshll.u32 %v3101, 16
      %v3286 = vrot.slane %v3284, 5
      %v3287 = vsel %vm274, %v3282, %v3286
      %v3288 = vshrl.u32 %v3101, 16
      %v3290 = vrot.slane %v3288, 4
      %v3291 = vor.u32 %v3290, %v3286
      %v3292 = vrot.slane %v3291, 4
      %v3294 = vshll.u32 %v3102, 16
      %v3296 = vrot.slane %v3294, 5
      %v3297 = vsel %vm274, %v3292, %v3296
      %v3299 = vshrl.u32 %v3103, 16
      %v3301 = vrot.slane %v3299, 4
      %v3302 = vshll.u32 %v3103, 16
      %v3304 = vrot.slane %v3302, 5
      %v3305 = vor.u32 %v3301, %v3304
      %v3306 = vrot.slane %v3305, 4
      %v3308 = vshll.u32 %v3104, 16
      %v3310 = vrot.slane %v3308, 5
      %v3311 = vsel %vm274, %v3306, %v3310
      %v3312 = vshrl.u32 %v3104, 16
      %v3314 = vrot.slane %v3312, 4
      %v3315 = vor.u32 %v3314, %v3310
      %v3316 = vrot.slane %v3315, 4
      %v3318 = vshll.u32 %v3105, 16
      %v3320 = vrot.slane %v3318, 5
      %v3321 = vsel %vm274, %v3316, %v3320
      %v3323 = vshrl.u32 %v3106, 16
      %v3325 = vrot.slane %v3323, 4
      %v3326 = vshll.u32 %v3106, 16
      %v3328 = vrot.slane %v3326, 5
      %v3329 = vor.u32 %v3325, %v3328
      %v3330 = vrot.slane %v3329, 4
      %v3332 = vshll.u32 %v3107, 16
      %v3334 = vrot.slane %v3332, 5
      %v3335 = vsel %vm274, %v3330, %v3334
      %v3336 = vshrl.u32 %v3107, 16
      %v3338 = vrot.slane %v3336, 4
      %v3339 = vor.u32 %v3338, %v3334
      %v3340 = vrot.slane %v3339, 4
      %v3342 = vshll.u32 %v3108, 16
      %v3344 = vrot.slane %v3342, 5
      %v3345 = vsel %vm274, %v3340, %v3344
      %v3347 = vshrl.u32 %v3109, 16
      %v3349 = vrot.slane %v3347, 4
      %v3350 = vshll.u32 %v3109, 16
      %v3352 = vrot.slane %v3350, 5
      %v3353 = vor.u32 %v3349, %v3352
      %v3354 = vrot.slane %v3353, 4
      %v3356 = vshll.u32 %v3110, 16
      %v3358 = vrot.slane %v3356, 5
      %v3359 = vsel %vm274, %v3354, %v3358
      %v3360 = vshrl.u32 %v3110, 16
      %v3362 = vrot.slane %v3360, 4
      %v3363 = vor.u32 %v3362, %v3358
      %v3364 = vrot.slane %v3363, 4
      %v3366 = vshll.u32 %v3111, 16
      %v3368 = vrot.slane %v3366, 5
      %v3369 = vsel %vm274, %v3364, %v3368
      %v3371 = vshrl.u32 %v3112, 16
      %v3373 = vrot.slane %v3371, 4
      %v3374 = vshll.u32 %v3112, 16
      %v3376 = vrot.slane %v3374, 5
      %v3377 = vor.u32 %v3373, %v3376
      %v3378 = vrot.slane %v3377, 4
      %v3380 = vshll.u32 %v3113, 16
      %v3382 = vrot.slane %v3380, 5
      %v3383 = vsel %vm274, %v3378, %v3382
      %v3384 = vshrl.u32 %v3113, 16
      %v3386 = vrot.slane %v3384, 4
      %v3387 = vor.u32 %v3386, %v3382
      %v3388 = vrot.slane %v3387, 4
      %v3390 = vshll.u32 %v3114, 16
      %v3392 = vrot.slane %v3390, 5
      %v3393 = vsel %vm274, %v3388, %v3392
      %v3395 = vshrl.u32 %v3115, 16
      %v3397 = vrot.slane %v3395, 4
      %v3398 = vshll.u32 %v3115, 16
      %v3400 = vrot.slane %v3398, 5
      %v3401 = vor.u32 %v3397, %v3400
      %v3402 = vrot.slane %v3401, 4
      %v3404 = vshll.u32 %v3116, 16
      %v3406 = vrot.slane %v3404, 5
      %v3407 = vsel %vm274, %v3402, %v3406
      %v3408 = vshrl.u32 %v3116, 16
      %v3410 = vrot.slane %v3408, 4
      %v3411 = vor.u32 %v3410, %v3406
      %v3412 = vrot.slane %v3411, 4
      %v3414 = vshll.u32 %v3117, 16
      %v3416 = vrot.slane %v3414, 5
      %v3417 = vsel %vm274, %v3412, %v3416
      %v3419 = vshrl.u32 %v3118, 16
      %v3421 = vrot.slane %v3419, 4
      %v3422 = vshll.u32 %v3118, 16
      %v3424 = vrot.slane %v3422, 5
      %v3425 = vor.u32 %v3421, %v3424
      %v3426 = vrot.slane %v3425, 4
      %v3428 = vshll.u32 %v3119, 16
      %v3430 = vrot.slane %v3428, 5
      %v3431 = vsel %vm274, %v3426, %v3430
      %v3432 = vshrl.u32 %v3119, 16
      %v3434 = vrot.slane %v3432, 4
      %v3435 = vor.u32 %v3434, %v3430
      %v3436 = vrot.slane %v3435, 4
      %v3438 = vshll.u32 %v3120, 16
      %v3440 = vrot.slane %v3438, 5
      %v3441 = vsel %vm274, %v3436, %v3440
      %v3443 = vshrl.u32 %v3121, 16
      %v3445 = vrot.slane %v3443, 4
      %v3446 = vshll.u32 %v3121, 16
      %v3448 = vrot.slane %v3446, 5
      %v3449 = vor.u32 %v3445, %v3448
      %v3450 = vrot.slane %v3449, 4
      %v3452 = vshll.u32 %v3122, 16
      %v3454 = vrot.slane %v3452, 5
      %v3455 = vsel %vm274, %v3450, %v3454
      %v3456 = vshrl.u32 %v3122, 16
      %v3458 = vrot.slane %v3456, 4
      %v3459 = vor.u32 %v3458, %v3454
      %v3460 = vrot.slane %v3459, 4
      %v3462 = vshll.u32 %v3123, 16
      %v3464 = vrot.slane %v3462, 5
      %v3465 = vsel %vm274, %v3460, %v3464
      %v3467 = vshrl.u32 %v3124, 16
      %v3469 = vrot.slane %v3467, 4
      %v3470 = vshll.u32 %v3124, 16
      %v3472 = vrot.slane %v3470, 5
      %v3473 = vor.u32 %v3469, %v3472
      %v3474 = vrot.slane %v3473, 4
      %v3476 = vshll.u32 %v3125, 16
      %v3478 = vrot.slane %v3476, 5
      %v3479 = vsel %vm274, %v3474, %v3478
      %v3480 = vshrl.u32 %v3125, 16
      %v3482 = vrot.slane %v3480, 4
      %v3483 = vor.u32 %v3482, %v3478
      %v3484 = vrot.slane %v3483, 4
      %v3486 = vshll.u32 %v3126, 16
      %v3488 = vrot.slane %v3486, 5
      %v3489 = vsel %vm274, %v3484, %v3488
      %v3491 = vshrl.u32 %v3127, 16
      %v3493 = vrot.slane %v3491, 4
      %v3494 = vshll.u32 %v3127, 16
      %v3496 = vrot.slane %v3494, 5
      %v3497 = vor.u32 %v3493, %v3496
      %v3498 = vrot.slane %v3497, 4
      %v3500 = vshll.u32 %v3128, 16
      %v3502 = vrot.slane %v3500, 5
      %v3503 = vsel %vm274, %v3498, %v3502
      %v3504 = vshrl.u32 %v3128, 16
      %v3506 = vrot.slane %v3504, 4
      %v3507 = vor.u32 %v3506, %v3502
      %v3508 = vrot.slane %v3507, 4
      %v3510 = vshll.u32 %v3129, 16
      %v3512 = vrot.slane %v3510, 5
      %v3513 = vsel %vm274, %v3508, %v3512
      %s3514 = scalar_lea.vmem %s210, 28
      %v3515 = vld [vmem:[%s3514] sm:$0xf]
      %v3516 = vunpack.c.l.b16 %v3143
      %v3517 = vunpack.c.l.b16 %v3153
      %v3518 = vunpack.c.l.b16 %v3167
      %v3519 = vunpack.c.l.b16 %v3177
      %v3520 = vunpack.c.l.b16 %v3191
      %v3521 = vunpack.c.l.b16 %v3201
      %v3522 = vunpack.c.l.b16 %v3215
      %v3523 = vunpack.c.l.b16 %v3225
      %v3524 = vunpack.c.l.b16 %v3239
      %v3525 = vunpack.c.l.b16 %v3249
      %v3526 = vunpack.c.l.b16 %v3263
      %v3527 = vunpack.c.l.b16 %v3273
      %v3528 = vunpack.c.l.b16 %v3287
      %v3529 = vunpack.c.l.b16 %v3297
      %v3530 = vunpack.c.l.b16 %v3311
      %v3531 = vunpack.c.l.b16 %v3321
      %v3532 = vunpack.c.l.b16 %v3335
      %v3533 = vunpack.c.l.b16 %v3345
      %v3534 = vunpack.c.l.b16 %v3359
      %v3535 = vunpack.c.l.b16 %v3369
      %v3536 = vunpack.c.l.b16 %v3383
      %v3537 = vunpack.c.l.b16 %v3393
      %v3538 = vunpack.c.l.b16 %v3407
      %v3539 = vunpack.c.l.b16 %v3417
      %v3540 = vunpack.c.l.b16 %v3431
      %v3541 = vunpack.c.l.b16 %v3441
      %v3542 = vunpack.c.l.b16 %v3455
      %v3543 = vunpack.c.l.b16 %v3465
      %v3544 = vunpack.c.l.b16 %v3479
      %v3545 = vunpack.c.l.b16 %v3489
      %v3546 = vunpack.c.l.b16 %v3503
      %v3547 = vunpack.c.l.b16 %v3513
      %v3548 = vpack.c.b16 %v3517, %v3516
      %v3549 = vpack.c.b16 %v3519, %v3518
      %v3550 = vpack.c.b16 %v3521, %v3520
      %v3551 = vpack.c.b16 %v3523, %v3522
      %v3552 = vpack.c.b16 %v3525, %v3524
      %v3553 = vpack.c.b16 %v3527, %v3526
      %v3554 = vpack.c.b16 %v3529, %v3528
      %v3555 = vpack.c.b16 %v3531, %v3530
      %v3556 = vpack.c.b16 %v3533, %v3532
      %v3557 = vpack.c.b16 %v3535, %v3534
      %v3558 = vpack.c.b16 %v3537, %v3536
      %v3559 = vpack.c.b16 %v3539, %v3538
      %v3560 = vpack.c.b16 %v3541, %v3540
      %v3561 = vpack.c.b16 %v3543, %v3542
      %v3562 = vpack.c.b16 %v3545, %v3544
      %v3563 = vpack.c.b16 %v3547, %v3546
      %v3565 = vsel %vm709, %v3548, 0
      %v3568 = vsel %vm709, %v3549, 0
      %v3571 = vsel %vm709, %v3550, 0
      %v3574 = vsel %vm709, %v3551, 0
      %v3577 = vsel %vm709, %v3552, 0
      %v3580 = vsel %vm709, %v3553, 0
      %v3583 = vsel %vm709, %v3554, 0
      %v3586 = vsel %vm709, %v3555, 0
      %v3589 = vsel %vm709, %v3556, 0
      %v3592 = vsel %vm709, %v3557, 0
      %v3595 = vsel %vm709, %v3558, 0
      %v3598 = vsel %vm709, %v3559, 0
      %v3601 = vsel %vm709, %v3560, 0
      %v3604 = vsel %vm709, %v3561, 0
      %v3607 = vsel %vm709, %v3562, 0
      %v3610 = vsel %vm709, %v3563, 0
      %v3613 = vsel %vm758, %v3515, 0
      %3615 = vmatpush.bf16.msra.mxu0 0
      %3616 = vmatpush.bf16.msra.mxu0 0
      %3617 = vmatpush.bf16.msra.mxu0 0
      %3618 = vmatpush.bf16.msra.mxu0 0
      %3619 = vmatpush.bf16.msra.mxu0 0
      %3620 = vmatpush.bf16.msra.mxu0 0
      %3621 = vmatpush.bf16.msra.mxu0 0
      %3622 = vmatpush.bf16.msra.mxu0 %v3613
      %3623 = vmatmul.bf16.gmra.mxu0 %v3565
      %v3624 = vpop.f32.mrf.mxu0
      %v3625 = vadd.f32 0.0, %v3624
      %v3626 = vpop.f32.mrf.mxu0
      %v3627 = vadd.f32 0.0, %v3626
      %3628 = vmatmul.bf16.gmra.mxu0 %v3568
      %v3629 = vpop.f32.mrf.mxu0
      %v3630 = vadd.f32 0.0, %v3629
      %v3631 = vpop.f32.mrf.mxu0
      %v3632 = vadd.f32 0.0, %v3631
      %3633 = vmatmul.bf16.gmra.mxu0 %v3571
      %v3634 = vpop.f32.mrf.mxu0
      %v3635 = vadd.f32 0.0, %v3634
      %v3636 = vpop.f32.mrf.mxu0
      %v3637 = vadd.f32 0.0, %v3636
      %3638 = vmatmul.bf16.gmra.mxu0 %v3574
      %v3639 = vpop.f32.mrf.mxu0
      %v3640 = vadd.f32 0.0, %v3639
      %v3641 = vpop.f32.mrf.mxu0
      %v3642 = vadd.f32 0.0, %v3641
      %3643 = vmatmul.bf16.gmra.mxu0 %v3577
      %v3644 = vpop.f32.mrf.mxu0
      %v3645 = vadd.f32 0.0, %v3644
      %v3646 = vpop.f32.mrf.mxu0
      %v3647 = vadd.f32 0.0, %v3646
      %3648 = vmatmul.bf16.gmra.mxu0 %v3580
      %v3649 = vpop.f32.mrf.mxu0
      %v3650 = vadd.f32 0.0, %v3649
      %v3651 = vpop.f32.mrf.mxu0
      %v3652 = vadd.f32 0.0, %v3651
      %3653 = vmatmul.bf16.gmra.mxu0 %v3583
      %v3654 = vpop.f32.mrf.mxu0
      %v3655 = vadd.f32 0.0, %v3654
      %v3656 = vpop.f32.mrf.mxu0
      %v3657 = vadd.f32 0.0, %v3656
      %3658 = vmatmul.bf16.gmra.mxu0 %v3586
      %v3659 = vpop.f32.mrf.mxu0
      %v3660 = vadd.f32 0.0, %v3659
      %v3661 = vpop.f32.mrf.mxu0
      %v3662 = vadd.f32 0.0, %v3661
      %3663 = vmatmul.bf16.gmra.mxu0 %v3589
      %v3664 = vpop.f32.mrf.mxu0
      %v3665 = vadd.f32 0.0, %v3664
      %v3666 = vpop.f32.mrf.mxu0
      %v3667 = vadd.f32 0.0, %v3666
      %3668 = vmatmul.bf16.gmra.mxu0 %v3592
      %v3669 = vpop.f32.mrf.mxu0
      %v3670 = vadd.f32 0.0, %v3669
      %v3671 = vpop.f32.mrf.mxu0
      %v3672 = vadd.f32 0.0, %v3671
      %3673 = vmatmul.bf16.gmra.mxu0 %v3595
      %v3674 = vpop.f32.mrf.mxu0
      %v3675 = vadd.f32 0.0, %v3674
      %v3676 = vpop.f32.mrf.mxu0
      %v3677 = vadd.f32 0.0, %v3676
      %3678 = vmatmul.bf16.gmra.mxu0 %v3598
      %v3679 = vpop.f32.mrf.mxu0
      %v3680 = vadd.f32 0.0, %v3679
      %v3681 = vpop.f32.mrf.mxu0
      %v3682 = vadd.f32 0.0, %v3681
      %3683 = vmatmul.bf16.gmra.mxu0 %v3601
      %v3684 = vpop.f32.mrf.mxu0
      %v3685 = vadd.f32 0.0, %v3684
      %v3686 = vpop.f32.mrf.mxu0
      %v3687 = vadd.f32 0.0, %v3686
      %3688 = vmatmul.bf16.gmra.mxu0 %v3604
      %v3689 = vpop.f32.mrf.mxu0
      %v3690 = vadd.f32 0.0, %v3689
      %v3691 = vpop.f32.mrf.mxu0
      %v3692 = vadd.f32 0.0, %v3691
      %3693 = vmatmul.bf16.gmra.mxu0 %v3607
      %v3694 = vpop.f32.mrf.mxu0
      %v3695 = vadd.f32 0.0, %v3694
      %v3696 = vpop.f32.mrf.mxu0
      %v3697 = vadd.f32 0.0, %v3696
      %3698 = vmatmul.bf16.gmra.mxu0 %v3610
      %v3699 = vpop.f32.mrf.mxu0
      %v3700 = vadd.f32 0.0, %v3699
      %v3701 = vpop.f32.mrf.mxu0
      %v3702 = vadd.f32 0.0, %v3701
      %3703 = vdwg.mxu0
      %v3704 = vadd.f32 %v3050, %v3625
      %v3705 = vadd.f32 %v3051, %v3627
      %v3706 = vadd.f32 %v3052, %v3630
      %v3707 = vadd.f32 %v3053, %v3632
      %v3708 = vadd.f32 %v3054, %v3635
      %v3709 = vadd.f32 %v3055, %v3637
      %v3710 = vadd.f32 %v3056, %v3640
      %v3711 = vadd.f32 %v3057, %v3642
      %v3712 = vadd.f32 %v3058, %v3645
      %v3713 = vadd.f32 %v3059, %v3647
      %v3714 = vadd.f32 %v3060, %v3650
      %v3715 = vadd.f32 %v3061, %v3652
      %v3716 = vadd.f32 %v3062, %v3655
      %v3717 = vadd.f32 %v3063, %v3657
      %v3718 = vadd.f32 %v3064, %v3660
      %v3719 = vadd.f32 %v3065, %v3662
      %v3720 = vadd.f32 %v3066, %v3665
      %v3721 = vadd.f32 %v3067, %v3667
      %v3722 = vadd.f32 %v3068, %v3670
      %v3723 = vadd.f32 %v3069, %v3672
      %v3724 = vadd.f32 %v3070, %v3675
      %v3725 = vadd.f32 %v3071, %v3677
      %v3726 = vadd.f32 %v3072, %v3680
      %v3727 = vadd.f32 %v3073, %v3682
      %v3728 = vadd.f32 %v3074, %v3685
      %v3729 = vadd.f32 %v3075, %v3687
      %v3730 = vadd.f32 %v3076, %v3690
      %v3731 = vadd.f32 %v3077, %v3692
      %v3732 = vadd.f32 %v3078, %v3695
      %v3733 = vadd.f32 %v3079, %v3697
      %v3734 = vadd.f32 %v3080, %v3700
      %v3735 = vadd.f32 %v3081, %v3702
      %v3736 = vld [vmem:[%s2795] sm:$0xe]
      %v3737 = vld [vmem:[%s2795 + $0xc] sm:$0xe]
      %v3738 = vld [vmem:[%s2795 + $0x18] sm:$0xe]
      %v3739 = vld [vmem:[%s2795 + $0x24] sm:$0xe]
      %v3740 = vld [vmem:[%s2795 + $0x30] sm:$0xe]
      %v3741 = vld [vmem:[%s2795 + $0x3c] sm:$0xe]
      %v3742 = vld [vmem:[%s2795 + $0x48] sm:$0xe]
      %v3743 = vld [vmem:[%s2795 + $0x54] sm:$0xe]
      %v3744 = vld [vmem:[%s2795 + $0x60] sm:$0xe]
      %v3745 = vld [vmem:[%s2795 + $0x6c] sm:$0xe]
      %v3746 = vld [vmem:[%s2795 + $0x78] sm:$0xe]
      %v3747 = vld [vmem:[%s2795 + $0x84] sm:$0xe]
      %v3748 = vld [vmem:[%s2795 + $0x90] sm:$0xe]
      %v3749 = vld [vmem:[%s2795 + $0x9c] sm:$0xe]
      %v3750 = vld [vmem:[%s2795 + $0xa8] sm:$0xe]
      %v3751 = vld [vmem:[%s2795 + $0xb4] sm:$0xe]
      %v3800 = vrot.slane %v3736, 5
      %v3801 = vrot.slane %v3800, 4
      %v3802 = vrot.slane %v3083, 5
      %v3803 = vsel %vm1121, %v3801, %v3802
      %v3804 = vrot.slane %v3802, 4
      %v3805 = vrot.slane %v3084, 5
      %v3806 = vsel %vm1121, %v3804, %v3805
      %v3807 = vrot.slane %v3737, 5
      %v3808 = vrot.slane %v3807, 4
      %v3809 = vrot.slane %v3086, 5
      %v3810 = vsel %vm1121, %v3808, %v3809
      %v3811 = vrot.slane %v3809, 4
      %v3812 = vrot.slane %v3087, 5
      %v3813 = vsel %vm1121, %v3811, %v3812
      %v3814 = vrot.slane %v3738, 5
      %v3815 = vrot.slane %v3814, 4
      %v3816 = vrot.slane %v3089, 5
      %v3817 = vsel %vm1121, %v3815, %v3816
      %v3818 = vrot.slane %v3816, 4
      %v3819 = vrot.slane %v3090, 5
      %v3820 = vsel %vm1121, %v3818, %v3819
      %v3821 = vrot.slane %v3739, 5
      %v3822 = vrot.slane %v3821, 4
      %v3823 = vrot.slane %v3092, 5
      %v3824 = vsel %vm1121, %v3822, %v3823
      %v3825 = vrot.slane %v3823, 4
      %v3826 = vrot.slane %v3093, 5
      %v3827 = vsel %vm1121, %v3825, %v3826
      %v3828 = vrot.slane %v3740, 5
      %v3829 = vrot.slane %v3828, 4
      %v3830 = vrot.slane %v3095, 5
      %v3831 = vsel %vm1121, %v3829, %v3830
      %v3832 = vrot.slane %v3830, 4
      %v3833 = vrot.slane %v3096, 5
      %v3834 = vsel %vm1121, %v3832, %v3833
      %v3835 = vrot.slane %v3741, 5
      %v3836 = vrot.slane %v3835, 4
      %v3837 = vrot.slane %v3098, 5
      %v3838 = vsel %vm1121, %v3836, %v3837
      %v3839 = vrot.slane %v3837, 4
      %v3840 = vrot.slane %v3099, 5
      %v3841 = vsel %vm1121, %v3839, %v3840
      %v3842 = vrot.slane %v3742, 5
      %v3843 = vrot.slane %v3842, 4
      %v3844 = vrot.slane %v3101, 5
      %v3845 = vsel %vm1121, %v3843, %v3844
      %v3846 = vrot.slane %v3844, 4
      %v3847 = vrot.slane %v3102, 5
      %v3848 = vsel %vm1121, %v3846, %v3847
      %v3849 = vrot.slane %v3743, 5
      %v3850 = vrot.slane %v3849, 4
      %v3851 = vrot.slane %v3104, 5
      %v3852 = vsel %vm1121, %v3850, %v3851
      %v3853 = vrot.slane %v3851, 4
      %v3854 = vrot.slane %v3105, 5
      %v3855 = vsel %vm1121, %v3853, %v3854
      %v3856 = vrot.slane %v3744, 5
      %v3857 = vrot.slane %v3856, 4
      %v3858 = vrot.slane %v3107, 5
      %v3859 = vsel %vm1121, %v3857, %v3858
      %v3860 = vrot.slane %v3858, 4
      %v3861 = vrot.slane %v3108, 5
      %v3862 = vsel %vm1121, %v3860, %v3861
      %v3863 = vrot.slane %v3745, 5
      %v3864 = vrot.slane %v3863, 4
      %v3865 = vrot.slane %v3110, 5
      %v3866 = vsel %vm1121, %v3864, %v3865
      %v3867 = vrot.slane %v3865, 4
      %v3868 = vrot.slane %v3111, 5
      %v3869 = vsel %vm1121, %v3867, %v3868
      %v3870 = vrot.slane %v3746, 5
      %v3871 = vrot.slane %v3870, 4
      %v3872 = vrot.slane %v3113, 5
      %v3873 = vsel %vm1121, %v3871, %v3872
      %v3874 = vrot.slane %v3872, 4
      %v3875 = vrot.slane %v3114, 5
      %v3876 = vsel %vm1121, %v3874, %v3875
      %v3877 = vrot.slane %v3747, 5
      %v3878 = vrot.slane %v3877, 4
      %v3879 = vrot.slane %v3116, 5
      %v3880 = vsel %vm1121, %v3878, %v3879
      %v3881 = vrot.slane %v3879, 4
      %v3882 = vrot.slane %v3117, 5
      %v3883 = vsel %vm1121, %v3881, %v3882
      %v3884 = vrot.slane %v3748, 5
      %v3885 = vrot.slane %v3884, 4
      %v3886 = vrot.slane %v3119, 5
      %v3887 = vsel %vm1121, %v3885, %v3886
      %v3888 = vrot.slane %v3886, 4
      %v3889 = vrot.slane %v3120, 5
      %v3890 = vsel %vm1121, %v3888, %v3889
      %v3891 = vrot.slane %v3749, 5
      %v3892 = vrot.slane %v3891, 4
      %v3893 = vrot.slane %v3122, 5
      %v3894 = vsel %vm1121, %v3892, %v3893
      %v3895 = vrot.slane %v3893, 4
      %v3896 = vrot.slane %v3123, 5
      %v3897 = vsel %vm1121, %v3895, %v3896
      %v3898 = vrot.slane %v3750, 5
      %v3899 = vrot.slane %v3898, 4
      %v3900 = vrot.slane %v3125, 5
      %v3901 = vsel %vm1121, %v3899, %v3900
      %v3902 = vrot.slane %v3900, 4
      %v3903 = vrot.slane %v3126, 5
      %v3904 = vsel %vm1121, %v3902, %v3903
      %v3905 = vrot.slane %v3751, 5
      %v3906 = vrot.slane %v3905, 4
      %v3907 = vrot.slane %v3128, 5
      %v3908 = vsel %vm1121, %v3906, %v3907
      %v3909 = vrot.slane %v3907, 4
      %v3910 = vrot.slane %v3129, 5
      %v3911 = vsel %vm1121, %v3909, %v3910
      %s3912 = scalar_lea.vmem %s210, 32
      %v3913 = vld [vmem:[%s3912] sm:$0xf]
      %v3914 = vunpack.c.l.b16 %v3803
      %v3915 = vunpack.c.l.b16 %v3806
      %v3916 = vunpack.c.l.b16 %v3810
      %v3917 = vunpack.c.l.b16 %v3813
      %v3918 = vunpack.c.l.b16 %v3817
      %v3919 = vunpack.c.l.b16 %v3820
      %v3920 = vunpack.c.l.b16 %v3824
      %v3921 = vunpack.c.l.b16 %v3827
      %v3922 = vunpack.c.l.b16 %v3831
      %v3923 = vunpack.c.l.b16 %v3834
      %v3924 = vunpack.c.l.b16 %v3838
      %v3925 = vunpack.c.l.b16 %v3841
      %v3926 = vunpack.c.l.b16 %v3845
      %v3927 = vunpack.c.l.b16 %v3848
      %v3928 = vunpack.c.l.b16 %v3852
      %v3929 = vunpack.c.l.b16 %v3855
      %v3930 = vunpack.c.l.b16 %v3859
      %v3931 = vunpack.c.l.b16 %v3862
      %v3932 = vunpack.c.l.b16 %v3866
      %v3933 = vunpack.c.l.b16 %v3869
      %v3934 = vunpack.c.l.b16 %v3873
      %v3935 = vunpack.c.l.b16 %v3876
      %v3936 = vunpack.c.l.b16 %v3880
      %v3937 = vunpack.c.l.b16 %v3883
      %v3938 = vunpack.c.l.b16 %v3887
      %v3939 = vunpack.c.l.b16 %v3890
      %v3940 = vunpack.c.l.b16 %v3894
      %v3941 = vunpack.c.l.b16 %v3897
      %v3942 = vunpack.c.l.b16 %v3901
      %v3943 = vunpack.c.l.b16 %v3904
      %v3944 = vunpack.c.l.b16 %v3908
      %v3945 = vunpack.c.l.b16 %v3911
      %v3946 = vpack.c.b16 %v3915, %v3914
      %v3947 = vpack.c.b16 %v3917, %v3916
      %v3948 = vpack.c.b16 %v3919, %v3918
      %v3949 = vpack.c.b16 %v3921, %v3920
      %v3950 = vpack.c.b16 %v3923, %v3922
      %v3951 = vpack.c.b16 %v3925, %v3924
      %v3952 = vpack.c.b16 %v3927, %v3926
      %v3953 = vpack.c.b16 %v3929, %v3928
      %v3954 = vpack.c.b16 %v3931, %v3930
      %v3955 = vpack.c.b16 %v3933, %v3932
      %v3956 = vpack.c.b16 %v3935, %v3934
      %v3957 = vpack.c.b16 %v3937, %v3936
      %v3958 = vpack.c.b16 %v3939, %v3938
      %v3959 = vpack.c.b16 %v3941, %v3940
      %v3960 = vpack.c.b16 %v3943, %v3942
      %v3961 = vpack.c.b16 %v3945, %v3944
      %v3963 = vsel %vm709, %v3946, 0
      %v3966 = vsel %vm709, %v3947, 0
      %v3969 = vsel %vm709, %v3948, 0
      %v3972 = vsel %vm709, %v3949, 0
      %v3975 = vsel %vm709, %v3950, 0
      %v3978 = vsel %vm709, %v3951, 0
      %v3981 = vsel %vm709, %v3952, 0
      %v3984 = vsel %vm709, %v3953, 0
      %v3987 = vsel %vm709, %v3954, 0
      %v3990 = vsel %vm709, %v3955, 0
      %v3993 = vsel %vm709, %v3956, 0
      %v3996 = vsel %vm709, %v3957, 0
      %v3999 = vsel %vm709, %v3958, 0
      %v4002 = vsel %vm709, %v3959, 0
      %v4005 = vsel %vm709, %v3960, 0
      %v4008 = vsel %vm709, %v3961, 0
      %v4011 = vsel %vm758, %v3913, 0
      %4013 = vmatpush.bf16.msra.mxu0 0
      %4014 = vmatpush.bf16.msra.mxu0 0
      %4015 = vmatpush.bf16.msra.mxu0 0
      %4016 = vmatpush.bf16.msra.mxu0 0
      %4017 = vmatpush.bf16.msra.mxu0 0
      %4018 = vmatpush.bf16.msra.mxu0 0
      %4019 = vmatpush.bf16.msra.mxu0 0
      %4020 = vmatpush.bf16.msra.mxu0 %v4011
      %4021 = vmatmul.bf16.gmra.mxu0 %v3963
      %v4022 = vpop.f32.mrf.mxu0
      %v4023 = vadd.f32 0.0, %v4022
      %v4024 = vpop.f32.mrf.mxu0
      %v4025 = vadd.f32 0.0, %v4024
      %4026 = vmatmul.bf16.gmra.mxu0 %v3966
      %v4027 = vpop.f32.mrf.mxu0
      %v4028 = vadd.f32 0.0, %v4027
      %v4029 = vpop.f32.mrf.mxu0
      %v4030 = vadd.f32 0.0, %v4029
      %4031 = vmatmul.bf16.gmra.mxu0 %v3969
      %v4032 = vpop.f32.mrf.mxu0
      %v4033 = vadd.f32 0.0, %v4032
      %v4034 = vpop.f32.mrf.mxu0
      %v4035 = vadd.f32 0.0, %v4034
      %4036 = vmatmul.bf16.gmra.mxu0 %v3972
      %v4037 = vpop.f32.mrf.mxu0
      %v4038 = vadd.f32 0.0, %v4037
      %v4039 = vpop.f32.mrf.mxu0
      %v4040 = vadd.f32 0.0, %v4039
      %4041 = vmatmul.bf16.gmra.mxu0 %v3975
      %v4042 = vpop.f32.mrf.mxu0
      %v4043 = vadd.f32 0.0, %v4042
      %v4044 = vpop.f32.mrf.mxu0
      %v4045 = vadd.f32 0.0, %v4044
      %4046 = vmatmul.bf16.gmra.mxu0 %v3978
      %v4047 = vpop.f32.mrf.mxu0
      %v4048 = vadd.f32 0.0, %v4047
      %v4049 = vpop.f32.mrf.mxu0
      %v4050 = vadd.f32 0.0, %v4049
      %4051 = vmatmul.bf16.gmra.mxu0 %v3981
      %v4052 = vpop.f32.mrf.mxu0
      %v4053 = vadd.f32 0.0, %v4052
      %v4054 = vpop.f32.mrf.mxu0
      %v4055 = vadd.f32 0.0, %v4054
      %4056 = vmatmul.bf16.gmra.mxu0 %v3984
      %v4057 = vpop.f32.mrf.mxu0
      %v4058 = vadd.f32 0.0, %v4057
      %v4059 = vpop.f32.mrf.mxu0
      %v4060 = vadd.f32 0.0, %v4059
      %4061 = vmatmul.bf16.gmra.mxu0 %v3987
      %v4062 = vpop.f32.mrf.mxu0
      %v4063 = vadd.f32 0.0, %v4062
      %v4064 = vpop.f32.mrf.mxu0
      %v4065 = vadd.f32 0.0, %v4064
      %4066 = vmatmul.bf16.gmra.mxu0 %v3990
      %v4067 = vpop.f32.mrf.mxu0
      %v4068 = vadd.f32 0.0, %v4067
      %v4069 = vpop.f32.mrf.mxu0
      %v4070 = vadd.f32 0.0, %v4069
      %4071 = vmatmul.bf16.gmra.mxu0 %v3993
      %v4072 = vpop.f32.mrf.mxu0
      %v4073 = vadd.f32 0.0, %v4072
      %v4074 = vpop.f32.mrf.mxu0
      %v4075 = vadd.f32 0.0, %v4074
      %4076 = vmatmul.bf16.gmra.mxu0 %v3996
      %v4077 = vpop.f32.mrf.mxu0
      %v4078 = vadd.f32 0.0, %v4077
      %v4079 = vpop.f32.mrf.mxu0
      %v4080 = vadd.f32 0.0, %v4079
      %4081 = vmatmul.bf16.gmra.mxu0 %v3999
      %v4082 = vpop.f32.mrf.mxu0
      %v4083 = vadd.f32 0.0, %v4082
      %v4084 = vpop.f32.mrf.mxu0
      %v4085 = vadd.f32 0.0, %v4084
      %4086 = vmatmul.bf16.gmra.mxu0 %v4002
      %v4087 = vpop.f32.mrf.mxu0
      %v4088 = vadd.f32 0.0, %v4087
      %v4089 = vpop.f32.mrf.mxu0
      %v4090 = vadd.f32 0.0, %v4089
      %4091 = vmatmul.bf16.gmra.mxu0 %v4005
      %v4092 = vpop.f32.mrf.mxu0
      %v4093 = vadd.f32 0.0, %v4092
      %v4094 = vpop.f32.mrf.mxu0
      %v4095 = vadd.f32 0.0, %v4094
      %4096 = vmatmul.bf16.gmra.mxu0 %v4008
      %v4097 = vpop.f32.mrf.mxu0
      %v4098 = vadd.f32 0.0, %v4097
      %v4099 = vpop.f32.mrf.mxu0
      %v4100 = vadd.f32 0.0, %v4099
      %4101 = vdwg.mxu0
      %v4102 = vadd.f32 %v3704, %v4023
      %v4103 = vadd.f32 %v3705, %v4025
      %v4104 = vadd.f32 %v3706, %v4028
      %v4105 = vadd.f32 %v3707, %v4030
      %v4106 = vadd.f32 %v3708, %v4033
      %v4107 = vadd.f32 %v3709, %v4035
      %v4108 = vadd.f32 %v3710, %v4038
      %v4109 = vadd.f32 %v3711, %v4040
      %v4110 = vadd.f32 %v3712, %v4043
      %v4111 = vadd.f32 %v3713, %v4045
      %v4112 = vadd.f32 %v3714, %v4048
      %v4113 = vadd.f32 %v3715, %v4050
      %v4114 = vadd.f32 %v3716, %v4053
      %v4115 = vadd.f32 %v3717, %v4055
      %v4116 = vadd.f32 %v3718, %v4058
      %v4117 = vadd.f32 %v3719, %v4060
      %v4118 = vadd.f32 %v3720, %v4063
      %v4119 = vadd.f32 %v3721, %v4065
      %v4120 = vadd.f32 %v3722, %v4068
      %v4121 = vadd.f32 %v3723, %v4070
      %v4122 = vadd.f32 %v3724, %v4073
      %v4123 = vadd.f32 %v3725, %v4075
      %v4124 = vadd.f32 %v3726, %v4078
      %v4125 = vadd.f32 %v3727, %v4080
      %v4126 = vadd.f32 %v3728, %v4083
      %v4127 = vadd.f32 %v3729, %v4085
      %v4128 = vadd.f32 %v3730, %v4088
      %v4129 = vadd.f32 %v3731, %v4090
      %v4130 = vadd.f32 %v3732, %v4093
      %v4131 = vadd.f32 %v3733, %v4095
      %v4132 = vadd.f32 %v3734, %v4098
      %v4133 = vadd.f32 %v3735, %v4100
      %v4134 = vld [vmem:[%s213] sm:$0x1]
      %v4136 = vperm.slane %v4134, 0
      %v4138 = vadd.f32 %v4102, %v4136
      %v4139 = vadd.f32 %v4103, %v4136
      %v4140 = vadd.f32 %v4104, %v4136
      %v4141 = vadd.f32 %v4105, %v4136
      %v4142 = vadd.f32 %v4106, %v4136
      %v4143 = vadd.f32 %v4107, %v4136
      %v4144 = vadd.f32 %v4108, %v4136
      %v4145 = vadd.f32 %v4109, %v4136
      %v4146 = vadd.f32 %v4110, %v4136
      %v4147 = vadd.f32 %v4111, %v4136
      %v4148 = vadd.f32 %v4112, %v4136
      %v4149 = vadd.f32 %v4113, %v4136
      %v4150 = vadd.f32 %v4114, %v4136
      %v4151 = vadd.f32 %v4115, %v4136
      %v4152 = vadd.f32 %v4116, %v4136
      %v4153 = vadd.f32 %v4117, %v4136
      %v4154 = vadd.f32 %v4118, %v4136
      %v4155 = vadd.f32 %v4119, %v4136
      %v4156 = vadd.f32 %v4120, %v4136
      %v4157 = vadd.f32 %v4121, %v4136
      %v4158 = vadd.f32 %v4122, %v4136
      %v4159 = vadd.f32 %v4123, %v4136
      %v4160 = vadd.f32 %v4124, %v4136
      %v4161 = vadd.f32 %v4125, %v4136
      %v4162 = vadd.f32 %v4126, %v4136
      %v4163 = vadd.f32 %v4127, %v4136
      %v4164 = vadd.f32 %v4128, %v4136
      %v4165 = vadd.f32 %v4129, %v4136
      %v4166 = vadd.f32 %v4130, %v4136
      %v4167 = vadd.f32 %v4131, %v4136
      %v4168 = vadd.f32 %v4132, %v4136
      %v4169 = vadd.f32 %v4133, %v4136
      %v4170 = vmax.f32 %v4138, 0.0
      %v4171 = vmax.f32 %v4139, 0.0
      %v4172 = vmax.f32 %v4140, 0.0
      %v4173 = vmax.f32 %v4141, 0.0
      %v4174 = vmax.f32 %v4142, 0.0
      %v4175 = vmax.f32 %v4143, 0.0
      %v4176 = vmax.f32 %v4144, 0.0
      %v4177 = vmax.f32 %v4145, 0.0
      %v4178 = vmax.f32 %v4146, 0.0
      %v4179 = vmax.f32 %v4147, 0.0
      %v4180 = vmax.f32 %v4148, 0.0
      %v4181 = vmax.f32 %v4149, 0.0
      %v4182 = vmax.f32 %v4150, 0.0
      %v4183 = vmax.f32 %v4151, 0.0
      %v4184 = vmax.f32 %v4152, 0.0
      %v4185 = vmax.f32 %v4153, 0.0
      %v4186 = vmax.f32 %v4154, 0.0
      %v4187 = vmax.f32 %v4155, 0.0
      %v4188 = vmax.f32 %v4156, 0.0
      %v4189 = vmax.f32 %v4157, 0.0
      %v4190 = vmax.f32 %v4158, 0.0
      %v4191 = vmax.f32 %v4159, 0.0
      %v4192 = vmax.f32 %v4160, 0.0
      %v4193 = vmax.f32 %v4161, 0.0
      %v4194 = vmax.f32 %v4162, 0.0
      %v4195 = vmax.f32 %v4163, 0.0
      %v4196 = vmax.f32 %v4164, 0.0
      %v4197 = vmax.f32 %v4165, 0.0
      %v4198 = vmax.f32 %v4166, 0.0
      %v4199 = vmax.f32 %v4167, 0.0
      %v4200 = vmax.f32 %v4168, 0.0
      %v4201 = vmax.f32 %v4169, 0.0
      %v4202 = vpack.c.bf16 %v4170, %v4170
      %v4203 = vpack.c.bf16 %v4171, %v4171
      %v4204 = vpack.c.bf16 %v4172, %v4172
      %v4205 = vpack.c.bf16 %v4173, %v4173
      %v4206 = vpack.c.bf16 %v4174, %v4174
      %v4207 = vpack.c.bf16 %v4175, %v4175
      %v4208 = vpack.c.bf16 %v4176, %v4176
      %v4209 = vpack.c.bf16 %v4177, %v4177
      %v4210 = vpack.c.bf16 %v4178, %v4178
      %v4211 = vpack.c.bf16 %v4179, %v4179
      %v4212 = vpack.c.bf16 %v4180, %v4180
      %v4213 = vpack.c.bf16 %v4181, %v4181
      %v4214 = vpack.c.bf16 %v4182, %v4182
      %v4215 = vpack.c.bf16 %v4183, %v4183
      %v4216 = vpack.c.bf16 %v4184, %v4184
      %v4217 = vpack.c.bf16 %v4185, %v4185
      %v4218 = vpack.c.bf16 %v4186, %v4186
      %v4219 = vpack.c.bf16 %v4187, %v4187
      %v4220 = vpack.c.bf16 %v4188, %v4188
      %v4221 = vpack.c.bf16 %v4189, %v4189
      %v4222 = vpack.c.bf16 %v4190, %v4190
      %v4223 = vpack.c.bf16 %v4191, %v4191
      %v4224 = vpack.c.bf16 %v4192, %v4192
      %v4225 = vpack.c.bf16 %v4193, %v4193
      %v4226 = vpack.c.bf16 %v4194, %v4194
      %v4227 = vpack.c.bf16 %v4195, %v4195
      %v4228 = vpack.c.bf16 %v4196, %v4196
      %v4229 = vpack.c.bf16 %v4197, %v4197
      %v4230 = vpack.c.bf16 %v4198, %v4198
      %v4231 = vpack.c.bf16 %v4199, %v4199
      %v4232 = vpack.c.bf16 %v4200, %v4200
      %v4233 = vpack.c.bf16 %v4201, %v4201
      %4234 = vst [vmem:[%s221] sm:$0xf] %v4202
      %4235 = vst [vmem:[%s221 + $0x4] sm:$0xf] %v4203
      %4236 = vst [vmem:[%s221 + $0x8] sm:$0xf] %v4204
      %4237 = vst [vmem:[%s221 + $0xc] sm:$0xf] %v4205
      %4238 = vst [vmem:[%s221 + $0x10] sm:$0xf] %v4206
      %4239 = vst [vmem:[%s221 + $0x14] sm:$0xf] %v4207
      %4240 = vst [vmem:[%s221 + $0x18] sm:$0xf] %v4208
      %4241 = vst [vmem:[%s221 + $0x1c] sm:$0xf] %v4209
      %4242 = vst [vmem:[%s221 + $0x20] sm:$0xf] %v4210
      %4243 = vst [vmem:[%s221 + $0x24] sm:$0xf] %v4211
      %4244 = vst [vmem:[%s221 + $0x28] sm:$0xf] %v4212
      %4245 = vst [vmem:[%s221 + $0x2c] sm:$0xf] %v4213
      %4246 = vst [vmem:[%s221 + $0x30] sm:$0xf] %v4214
      %4247 = vst [vmem:[%s221 + $0x34] sm:$0xf] %v4215
      %4248 = vst [vmem:[%s221 + $0x38] sm:$0xf] %v4216
      %4249 = vst [vmem:[%s221 + $0x3c] sm:$0xf] %v4217
      %4250 = vst [vmem:[%s221 + $0x40] sm:$0xf] %v4218
      %4251 = vst [vmem:[%s221 + $0x44] sm:$0xf] %v4219
      %4252 = vst [vmem:[%s221 + $0x48] sm:$0xf] %v4220
      %4253 = vst [vmem:[%s221 + $0x4c] sm:$0xf] %v4221
      %4254 = vst [vmem:[%s221 + $0x50] sm:$0xf] %v4222
      %4255 = vst [vmem:[%s221 + $0x54] sm:$0xf] %v4223
      %4256 = vst [vmem:[%s221 + $0x58] sm:$0xf] %v4224
      %4257 = vst [vmem:[%s221 + $0x5c] sm:$0xf] %v4225
      %4258 = vst [vmem:[%s221 + $0x60] sm:$0xf] %v4226
      %4259 = vst [vmem:[%s221 + $0x64] sm:$0xf] %v4227
      %4260 = vst [vmem:[%s221 + $0x68] sm:$0xf] %v4228
      %4261 = vst [vmem:[%s221 + $0x6c] sm:$0xf] %v4229
      %4262 = vst [vmem:[%s221 + $0x70] sm:$0xf] %v4230
      %4263 = vst [vmem:[%s221 + $0x74] sm:$0xf] %v4231
      %4264 = vst [vmem:[%s221 + $0x78] sm:$0xf] %v4232
      %4265 = vst [vmem:[%s221 + $0x7c] sm:$0xf] %v4233
      %p4266 = scmp.lt.s32.totalorder %s18, 1
      %s4267 = scalar_select %p4266, %s18, 1
      %p4268 = scmp.lt.s32.totalorder %s19, 0
      %s4269 = scalar_select %p4268, %s19, 0
      %s4270 = smul.addr %s4267, 32
      %s4271 = sadd.s32 %s4269, %s4270
      %s4272 = smul.addr %s4271, 4
      %s4273 = scalar_lea.vmem %s3, %s4272
      // Predicated region
      $region33: #{basic_block_forward.2} parent=31 // pred_check
        %p4274 = pneg %p124
      $region34: #{basic_block_forward.2} parent=31 // pred_check_branch
        %4276 = sbr.rel (%p4274) target = $region36
      $region35: #{basic_block_forward.2} parent=31 // pred_region
        _
      $region36: #{basic_block_forward.2} parent=31 // pred_fallthru
        _
    $region32: #{basic_block_forward.2} parent=5 // pred_fallthru
      _
    %p4277 = scmp.le.s32.totalorder 2, %s9
    // Predicated region
    $region37: #{basic_block_forward.2} parent=5 // pred_check
      %p4278 = pneg %p4277
    $region38: #{basic_block_forward.2} parent=5 // pred_check_branch
      %4280 = sbr.rel (%p4278) target = $region40
    $region39: #{basic_block_forward.2} parent=5 // pred_region
      %s4281 = ssub.s32 %s9, 2
      // Predicated region
      $region41: #{basic_block_forward.2} parent=39 // pred_check
        %p4282 = pneg %p130
      $region42: #{basic_block_forward.2} parent=39 // pred_check_branch
        %4284 = sbr.rel (%p4282) target = $region44
      $region43: #{basic_block_forward.2} parent=39 // pred_region
        %p4285 = scmp.lt.s32.totalorder %s20, 1
        %s4286 = scalar_select %p4285, %s20, 1
        %p4287 = scmp.lt.s32.totalorder %s21, 0
        %s4288 = scalar_select %p4287, %s21, 0
        %s4289 = smul.addr %s4286, 32
        %s4290 = sadd.s32 %s4288, %s4289
        %s4291 = smul.addr %s4290, 4
        %s4292 = scalar_lea.vmem %s3, %s4291
      $region44: #{basic_block_forward.2} parent=39 // pred_fallthru
        _
    $region40: #{basic_block_forward.2} parent=5 // pred_fallthru
      _
  $region6: #{basic_block_forward.2} parent=0 // loop_footer
    %s13 = sadd.s32 1, %s9
  $region7: #{basic_block_forward.2} parent=0 // loop_footer_branch
    %8 = sbr.rel target = $region3
  $region8: #{basic_block_forward.2} parent=0 // loop_exit
    _

// kernel: basic_block_forward.3
$region0: #{basic_block_forward.3}
  #allocation0 [shape = 'u32[]', space=smem, size = 0x4, offset = 0x4, fixed_abs, tag = 'smem constant byte address 0x4 - core index']
  #allocation1 [shape = 'u32[72,128]{1,0:T(1,128)}', space=vmem, size = 0x9000, scoped, tag = 'internal scratch']
  %s0 = inlined_call_operand.vmem [shape: bf16[2,18,18,8], index: 0, kind: input, shape index: {}]
  %s1 = inlined_call_operand.vmem [shape: bf16[3,3,8,128], index: 1, kind: input, shape index: {}]
  %s2 = inlined_call_operand.vmem [shape: f32[1,128], index: 2, kind: input, shape index: {}]
  %s3 = inlined_call_operand.vmem [shape: bf16[2,16,16,128], index: 3, kind: input, shape index: {}]
  %s4 = inlined_call_operand.vmem [shape: bf16[2,16,16,128], index: 4, kind: output, shape index: {}]
  %s5 = sld [smem:[#allocation0]]
  $region49: #{basic_block_forward.3} parent=0
    _
  %s7 = ssub.s32 1, %s5
  %s8 = scalar_select 0, %s7, %s5
  loop: start=0, step=1, limit=4
  $region2: #{basic_block_forward.3} parent=0 // loop_pre_header
    _
  $region3: #{basic_block_forward.3} parent=0 // loop_header
    %s10 = sphi 0, %s14
    %p11 = scmp.ge.s32.totalorder %s10, 4
    %s17 = sphi 0, %s29
    %s18 = sphi 0, %s25
    %s19 = sphi 0, %s17
    %s20 = sphi 0, %s18
    %s21 = sphi 0, %s19
    %s22 = sphi 0, %s20
    %s32 = sphi 0, %s34
    %s35 = sphi 0, %s32
    %s36 = sphi 0, %s35
    %s52 = sphi 0, %s36
    %s58 = sphi 0, %s60
    %s61 = sphi 0, %s58
    %s62 = sphi 0, %s61
    %s78 = sphi 0, %s62
    %s84 = sphi 0, %s86
    %s87 = sphi 0, %s84
    %s88 = sphi 0, %s87
    %s104 = sphi 0, %s88
    %s112 = sphi 0, %s114
    %s115 = sphi 0, %s112
    %s116 = sphi 0, %s115
    %s132 = sphi 0, %s116
    %s140 = sphi 0, %s142
    %s143 = sphi 0, %s140
    %s144 = sphi 0, %s143
    %s160 = sphi 0, %s144
  $region4: #{basic_block_forward.3} parent=0 // loop_header_branch
    %13 = sbr.rel (%p11) target = $region8
  $region5: #{basic_block_forward.3} parent=0 // loop_body
    %s15 = ssub.s32 %s10, 1
    %s16 = ssub.s32 %s10, 2
    %s23 = sadd.s32 1, %s18
    %p24 = scmp.ge.s32.totalorder %s23, 1
    %s25 = scalar_select %p24, 0, %s23
    %s26 = sadd.s32 1, %s17
    %s27 = scalar_select %p24, %s26, %s17
    %p28 = scmp.ge.s32.totalorder %s27, 2
    %s29 = scalar_select %p28, 0, %s27
    %s30 = ssub.s32 %s17, %s29
    %p31 = scmp.eq.s32.totalorder %s30, 0
    %s33 = sadd.s32 %s32, 1
    %s34 = scalar_select %p31, %s32, %s33
    %p37 = pneg %p31
    %p38 = scmp.eq.s32.totalorder %s10, 1
    %p39 = por %p37, %p38
    %p40 = scmp.ne.s32.totalorder %s32, %s35
    %p41 = scmp.eq.s32.totalorder %s10, 0
    %p42 = por %p40, %p41
    %p43 = scmp.ne.s32.totalorder %s32, %s35
    %p44 = scmp.eq.s32.totalorder %s15, 1
    %p45 = por %p43, %p44
    %p46 = scmp.ne.s32.totalorder %s35, %s36
    %p47 = scmp.eq.s32.totalorder %s15, 0
    %p48 = por %p46, %p47
    %p49 = scmp.ne.s32.totalorder %s35, %s36
    %p50 = scmp.eq.s32.totalorder %s16, 1
    %p51 = por %p49, %p50
    %p53 = scmp.ne.s32.totalorder %s36, %s52
    %p54 = scmp.eq.s32.totalorder %s16, 0
    %p55 = por %p53, %p54
    %s56 = ssub.s32 %s18, %s25
    %p57 = scmp.eq.s32.totalorder %s56, 0
    %s59 = sadd.s32 %s58, 1
    %s60 = scalar_select %p57, %s58, %s59
    %p63 = pneg %p57
    %p64 = scmp.eq.s32.totalorder %s10, 1
    %p65 = por %p63, %p64
    %p66 = scmp.ne.s32.totalorder %s58, %s61
    %p67 = scmp.eq.s32.totalorder %s10, 0
    %p68 = por %p66, %p67
    %p69 = scmp.ne.s32.totalorder %s58, %s61
    %p70 = scmp.eq.s32.totalorder %s15, 1
    %p71 = por %p69, %p70
    %p72 = scmp.ne.s32.totalorder %s61, %s62
    %p73 = scmp.eq.s32.totalorder %s15, 0
    %p74 = por %p72, %p73
    %p75 = scmp.ne.s32.totalorder %s61, %s62
    %p76 = scmp.eq.s32.totalorder %s16, 1
    %p77 = por %p75, %p76
    %p79 = scmp.ne.s32.totalorder %s62, %s78
    %p80 = scmp.eq.s32.totalorder %s16, 0
    %p81 = por %p79, %p80
    %s82 = ssub.s32 %s18, %s25
    %p83 = scmp.eq.s32.totalorder %s82, 0
    %s85 = sadd.s32 %s84, 1
    %s86 = scalar_select %p83, %s84, %s85
    %p89 = pneg %p83
    %p90 = scmp.eq.s32.totalorder %s10, 1
    %p91 = por %p89, %p90
    %p92 = scmp.ne.s32.totalorder %s84, %s87
    %p93 = scmp.eq.s32.totalorder %s10, 0
    %p94 = por %p92, %p93
    %p95 = scmp.ne.s32.totalorder %s84, %s87
    %p96 = scmp.eq.s32.totalorder %s15, 1
    %p97 = por %p95, %p96
    %p98 = scmp.ne.s32.totalorder %s87, %s88
    %p99 = scmp.eq.s32.totalorder %s15, 0
    %p100 = por %p98, %p99
    %p101 = scmp.ne.s32.totalorder %s87, %s88
    %p102 = scmp.eq.s32.totalorder %s16, 1
    %p103 = por %p101, %p102
    %p105 = scmp.ne.s32.totalorder %s88, %s104
    %p106 = scmp.eq.s32.totalorder %s16, 0
    %p107 = por %p105, %p106
    %s108 = ssub.s32 %s17, %s29
    %s109 = ssub.s32 %s18, %s25
    %s110 = sor.u32 %s108, %s109
    %p111 = scmp.eq.s32.totalorder %s110, 0
    %s113 = sadd.s32 %s112, 1
    %s114 = scalar_select %p111, %s112, %s113
    %p117 = pneg %p111
    %p118 = scmp.eq.s32.totalorder %s10, 1
    %p119 = por %p117, %p118
    %p120 = scmp.ne.s32.totalorder %s112, %s115
    %p121 = scmp.eq.s32.totalorder %s10, 0
    %p122 = por %p120, %p121
    %p123 = scmp.ne.s32.totalorder %s112, %s115
    %p124 = scmp.eq.s32.totalorder %s15, 1
    %p125 = por %p123, %p124
    %p126 = scmp.ne.s32.totalorder %s115, %s116
    %p127 = scmp.eq.s32.totalorder %s15, 0
    %p128 = por %p126, %p127
    %p129 = scmp.ne.s32.totalorder %s115, %s116
    %p130 = scmp.eq.s32.totalorder %s16, 1
    %p131 = por %p129, %p130
    %p133 = scmp.ne.s32.totalorder %s116, %s132
    %p134 = scmp.eq.s32.totalorder %s16, 0
    %p135 = por %p133, %p134
    %s136 = ssub.s32 %s17, %s29
    %s137 = ssub.s32 %s18, %s25
    %s138 = sor.u32 %s136, %s137
    %p139 = scmp.eq.s32.totalorder %s138, 0
    %s141 = sadd.s32 %s140, 1
    %s142 = scalar_select %p139, %s140, %s141
    %p145 = pneg %p139
    %p146 = scmp.eq.s32.totalorder %s10, 1
    %p147 = por %p145, %p146
    %p148 = scmp.ne.s32.totalorder %s140, %s143
    %p149 = scmp.eq.s32.totalorder %s10, 0
    %p150 = por %p148, %p149
    %p151 = scmp.ne.s32.totalorder %s140, %s143
    %p152 = scmp.eq.s32.totalorder %s15, 1
    %p153 = por %p151, %p152
    %p154 = scmp.ne.s32.totalorder %s143, %s144
    %p155 = scmp.eq.s32.totalorder %s15, 0
    %p156 = por %p154, %p155
    %p157 = scmp.ne.s32.totalorder %s143, %s144
    %p158 = scmp.eq.s32.totalorder %s16, 1
    %p159 = por %p157, %p158
    %p161 = scmp.ne.s32.totalorder %s144, %s160
    %p162 = scmp.eq.s32.totalorder %s16, 0
    %p163 = por %p161, %p162
    %p164 = scmp.le.s32.totalorder 1, %s10
    %p165 = scmp.lt.s32.totalorder %s10, 3
    %p166 = pnand %p164, %p165
    %p167 = pneg %p166
    // Predicated region
    $region9: #{basic_block_forward.3} parent=5 // pred_check
      _
    $region10: #{basic_block_forward.3} parent=5 // pred_check_branch
      %169 = sbr.rel (%p166) target = $region12
    $region11: #{basic_block_forward.3} parent=5 // pred_region
      %s170 = ssub.s32 %s10, 1
      // Predicated region
      $region13: #{basic_block_forward.3} parent=11 // pred_check
        %p171 = pneg %p74
      $region14: #{basic_block_forward.3} parent=11 // pred_check_branch
        %173 = sbr.rel (%p171) target = $region16
      $region15: #{basic_block_forward.3} parent=11 // pred_region
        %p174 = scmp.lt.s32.totalorder %s20, 0
        %s175 = scalar_select %p174, %s20, 0
        %s176 = smul.addr %s175, 4
        %s177 = scalar_lea.vmem %s1, %s176
      $region16: #{basic_block_forward.3} parent=11 // pred_fallthru
        _
      // Predicated region
      $region17: #{basic_block_forward.3} parent=11 // pred_check
        %p178 = pneg %p100
      $region18: #{basic_block_forward.3} parent=11 // pred_check_branch
        %180 = sbr.rel (%p178) target = $region20
      $region19: #{basic_block_forward.3} parent=11 // pred_region
        %p181 = scmp.lt.s32.totalorder %s20, 0
        %s182 = scalar_select %p181, %s20, 0
        %s183 = scalar_lea.vmem %s2, %s182
      $region20: #{basic_block_forward.3} parent=11 // pred_fallthru
        _
    $region12: #{basic_block_forward.3} parent=5 // pred_fallthru
      _
    %p184 = scmp.lt.s32.totalorder %s10, 2
    // Predicated region
    $region21: #{basic_block_forward.3} parent=5 // pred_check
      %p185 = pneg %p184
    $region22: #{basic_block_forward.3} parent=5 // pred_check_branch
      %187 = sbr.rel (%p185) target = $region24
    $region23: #{basic_block_forward.3} parent=5 // pred_region
      // Predicated region
      $region25: #{basic_block_forward.3} parent=23 // pred_check
        %p188 = pneg %p42
      $region26: #{basic_block_forward.3} parent=23 // pred_check_branch
        %190 = sbr.rel (%p188) target = $region28
      $region27: #{basic_block_forward.3} parent=23 // pred_region
        %p191 = scmp.lt.s32.totalorder %s17, 1
        %s192 = scalar_select %p191, %s17, 1
        %s193 = smul.addr %s192, 54
        %s194 = smul.addr %s193, 4
        %s195 = scalar_lea.vmem %s0, %s194
      $region28: #{basic_block_forward.3} parent=23 // pred_fallthru
        _
      // Predicated region
      $region29: #{basic_block_forward.3} parent=23 // pred_check
        %p196 = pneg %p122
      $region30: #{basic_block_forward.3} parent=23 // pred_check_branch
        %198 = sbr.rel (%p196) target = $region32
      $region31: #{basic_block_forward.3} parent=23 // pred_region
        %p199 = scmp.lt.s32.totalorder %s17, 1
        %s200 = scalar_select %p199, %s17, 1
        %p201 = scmp.lt.s32.totalorder %s18, 0
        %s202 = scalar_select %p201, %s18, 0
        %s203 = smul.addr %s200, 32
        %s204 = sadd.s32 %s202, %s203
        %s205 = smul.addr %s204, 4
        %s206 = scalar_lea.vmem %s3, %s205
      $region32: #{basic_block_forward.3} parent=23 // pred_fallthru
        _
    $region24: #{basic_block_forward.3} parent=5 // pred_fallthru
      _
    %p207 = scmp.le.s32.totalorder 1, %s10
    %p208 = scmp.lt.s32.totalorder %s10, 3
    %p209 = pnand %p207, %p208
    %p210 = pneg %p209
    // Predicated region
    $region33: #{basic_block_forward.3} parent=5 // pred_check
      _
    $region34: #{basic_block_forward.3} parent=5 // pred_check_branch
      %212 = sbr.rel (%p209) target = $region36
    $region35: #{basic_block_forward.3} parent=5 // pred_region
      %s213 = ssub.s32 %s10, 1
      %p214 = scmp.lt.s32.totalorder %s19, 1
      %s215 = scalar_select %p214, %s19, 1
      %s216 = smul.addr %s215, 54
      %s217 = smul.addr %s216, 4
      %s218 = scalar_lea.vmem %s0, %s217
      %p219 = pneg %p48
      %p220 = pneg %p45
      %p221 = scmp.lt.s32.totalorder %s20, 0
      %s222 = scalar_select %p221, %s20, 0
      %s223 = smul.addr %s222, 4
      %s224 = scalar_lea.vmem %s1, %s223
      %p225 = pneg %p74
      %p226 = pneg %p71
      %p227 = scmp.lt.s32.totalorder %s20, 0
      %s228 = scalar_select %p227, %s20, 0
      %s229 = scalar_lea.vmem %s2, %s228
      %p230 = pneg %p100
      %p231 = pneg %p97
      %p232 = scmp.lt.s32.totalorder %s19, 1
      %s233 = scalar_select %p232, %s19, 1
      %p234 = scmp.lt.s32.totalorder %s20, 0
      %s235 = scalar_select %p234, %s20, 0
      %s236 = smul.addr %s233, 32
      %s237 = sadd.s32 %s235, %s236
      %s238 = smul.addr %s237, 4
      %s239 = scalar_lea.vmem %s3, %s238
      %p240 = pneg %p128
      %p241 = pneg %p125
      %p242 = pneg %p156
      %p243 = pneg %p153
      %p244 = scmp.lt.s32.totalorder %s19, 1
      %s245 = scalar_select %p244, %s19, 1
      %p246 = scmp.lt.s32.totalorder %s20, 0
      %s247 = scalar_select %p246, %s20, 0
      %s248 = smul.addr %s245, 32
      %s249 = sadd.s32 %s247, %s248
      %s250 = smul.addr %s249, 4
      %s251 = scalar_lea.vmem %s4, %s250
      %p252 = scmp.lt.s32.totalorder %s19, 1
      %s253 = scalar_select %p252, %s19, 1
      %s254 = smul.addr %s253, 54
      %s255 = smul.addr %s254, 4
      %s256 = scalar_lea.vmem %s0, %s255
      %p257 = scmp.lt.s32.totalorder %s20, 0
      %s258 = scalar_select %p257, %s20, 0
      %s259 = smul.addr %s258, 4
      %s260 = scalar_lea.vmem %s1, %s259
      %p261 = scmp.lt.s32.totalorder %s20, 0
      %s262 = scalar_select %p261, %s20, 0
      %s263 = scalar_lea.vmem %s2, %s262
      %p264 = scmp.lt.s32.totalorder %s19, 1
      %s265 = scalar_select %p264, %s19, 1
      %p266 = scmp.lt.s32.totalorder %s20, 0
      %s267 = scalar_select %p266, %s20, 0
      %s268 = smul.addr %s265, 32
      %s269 = sadd.s32 %s267, %s268
      %s270 = smul.addr %s269, 4
      %s271 = scalar_lea.vmem %s3, %s270
      %p272 = scmp.lt.s32.totalorder %s19, 1
      %s273 = scalar_select %p272, %s19, 1
      %p274 = scmp.lt.s32.totalorder %s20, 0
      %s275 = scalar_select %p274, %s20, 0
      %s276 = smul.addr %s273, 32
      %s277 = sadd.s32 %s275, %s276
      %s278 = smul.addr %s277, 4
      %s279 = scalar_lea.vmem %s4, %s278
      %v281 = vld [vmem:[%s256] sm:$0xf]
      %v282 = vld [vmem:[%s256 + $0x4] sm:$0xf]
      %v283 = vld [vmem:[%s256 + $0xc] sm:$0xf]
      %v284 = vld [vmem:[%s256 + $0x10] sm:$0xf]
      %v285 = vld [vmem:[%s256 + $0x18] sm:$0xf]
      %v286 = vld [vmem:[%s256 + $0x1c] sm:$0xf]
      %v287 = vld [vmem:[%s256 + $0x24] sm:$0xf]
      %v288 = vld [vmem:[%s256 + $0x28] sm:$0xf]
      %v289 = vld [vmem:[%s256 + $0x30] sm:$0xf]
      %v290 = vld [vmem:[%s256 + $0x34] sm:$0xf]
      %v291 = vld [vmem:[%s256 + $0x3c] sm:$0xf]
      %v292 = vld [vmem:[%s256 + $0x40] sm:$0xf]
      %v293 = vld [vmem:[%s256 + $0x48] sm:$0xf]
      %v294 = vld [vmem:[%s256 + $0x4c] sm:$0xf]
      %v295 = vld [vmem:[%s256 + $0x54] sm:$0xf]
      %v296 = vld [vmem:[%s256 + $0x58] sm:$0xf]
      %v297 = vld [vmem:[%s256 + $0x60] sm:$0xf]
      %v298 = vld [vmem:[%s256 + $0x64] sm:$0xf]
      %v299 = vld [vmem:[%s256 + $0x6c] sm:$0xf]
      %v300 = vld [vmem:[%s256 + $0x70] sm:$0xf]
      %v301 = vld [vmem:[%s256 + $0x78] sm:$0xf]
      %v302 = vld [vmem:[%s256 + $0x7c] sm:$0xf]
      %v303 = vld [vmem:[%s256 + $0x84] sm:$0xf]
      %v304 = vld [vmem:[%s256 + $0x88] sm:$0xf]
      %v305 = vld [vmem:[%s256 + $0x90] sm:$0xf]
      %v306 = vld [vmem:[%s256 + $0x94] sm:$0xf]
      %v307 = vld [vmem:[%s256 + $0x9c] sm:$0xf]
      %v308 = vld [vmem:[%s256 + $0xa0] sm:$0xf]
      %v309 = vld [vmem:[%s256 + $0xa8] sm:$0xf]
      %v310 = vld [vmem:[%s256 + $0xac] sm:$0xf]
      %v311 = vld [vmem:[%s256 + $0xb4] sm:$0xf]
      %v312 = vld [vmem:[%s256 + $0xb8] sm:$0xf]
      %v313 = vld [vmem:[%s260] sm:$0xf]
      %v314 = vld [vmem:[%s256 + $0x8] sm:$0x1]
      %v315 = vld [vmem:[%s256 + $0x14] sm:$0x1]
      %v316 = vld [vmem:[%s256 + $0x20] sm:$0x1]
      %v317 = vld [vmem:[%s256 + $0x2c] sm:$0x1]
      %v318 = vld [vmem:[%s256 + $0x38] sm:$0x1]
      %v319 = vld [vmem:[%s256 + $0x44] sm:$0x1]
      %v320 = vld [vmem:[%s256 + $0x50] sm:$0x1]
      %v321 = vld [vmem:[%s256 + $0x5c] sm:$0x1]
      %v322 = vld [vmem:[%s256 + $0x68] sm:$0x1]
      %v323 = vld [vmem:[%s256 + $0x74] sm:$0x1]
      %v324 = vld [vmem:[%s256 + $0x80] sm:$0x1]
      %v325 = vld [vmem:[%s256 + $0x8c] sm:$0x1]
      %v326 = vld [vmem:[%s256 + $0x98] sm:$0x1]
      %v327 = vld [vmem:[%s256 + $0xa4] sm:$0x1]
      %v328 = vld [vmem:[%s256 + $0xb0] sm:$0x1]
      %v329 = vld [vmem:[%s256 + $0xbc] sm:$0x1]
      %vm330 = vsmask.f32 3328
      %vm331 = vsmask.f32 7440
      %vm332 = vmor %vm330, %vm331
      %v334 = vshrl.u32 %v281, 16
      %v336 = vrot.slane %v334, 4
      %v337 = vshll.u32 %v281, 16
      %v339 = vrot.slane %v337, 5
      %v340 = vor.u32 %v336, %v339
      %v341 = vrot.slane %v340, 4
      %v343 = vshll.u32 %v282, 16
      %v345 = vrot.slane %v343, 5
      %v346 = vsel %vm332, %v341, %v345
      %v347 = vshrl.u32 %v282, 16
      %v349 = vrot.slane %v347, 4
      %v350 = vor.u32 %v349, %v345
      %v351 = vrot.slane %v350, 4
      %v353 = vshll.u32 %v314, 16
      %v355 = vrot.slane %v353, 5
      %v356 = vsel %vm332, %v351, %v355
      %v358 = vshrl.u32 %v283, 16
      %v360 = vrot.slane %v358, 4
      %v361 = vshll.u32 %v283, 16
      %v363 = vrot.slane %v361, 5
      %v364 = vor.u32 %v360, %v363
      %v365 = vrot.slane %v364, 4
      %v367 = vshll.u32 %v284, 16
      %v369 = vrot.slane %v367, 5
      %v370 = vsel %vm332, %v365, %v369
      %v371 = vshrl.u32 %v284, 16
      %v373 = vrot.slane %v371, 4
      %v374 = vor.u32 %v373, %v369
      %v375 = vrot.slane %v374, 4
      %v377 = vshll.u32 %v315, 16
      %v379 = vrot.slane %v377, 5
      %v380 = vsel %vm332, %v375, %v379
      %v382 = vshrl.u32 %v285, 16
      %v384 = vrot.slane %v382, 4
      %v385 = vshll.u32 %v285, 16
      %v387 = vrot.slane %v385, 5
      %v388 = vor.u32 %v384, %v387
      %v389 = vrot.slane %v388, 4
      %v391 = vshll.u32 %v286, 16
      %v393 = vrot.slane %v391, 5
      %v394 = vsel %vm332, %v389, %v393
      %v395 = vshrl.u32 %v286, 16
      %v397 = vrot.slane %v395, 4
      %v398 = vor.u32 %v397, %v393
      %v399 = vrot.slane %v398, 4
      %v401 = vshll.u32 %v316, 16
      %v403 = vrot.slane %v401, 5
      %v404 = vsel %vm332, %v399, %v403
      %v406 = vshrl.u32 %v287, 16
      %v408 = vrot.slane %v406, 4
      %v409 = vshll.u32 %v287, 16
      %v411 = vrot.slane %v409, 5
      %v412 = vor.u32 %v408, %v411
      %v413 = vrot.slane %v412, 4
      %v415 = vshll.u32 %v288, 16
      %v417 = vrot.slane %v415, 5
      %v418 = vsel %vm332, %v413, %v417
      %v419 = vshrl.u32 %v288, 16
      %v421 = vrot.slane %v419, 4
      %v422 = vor.u32 %v421, %v417
      %v423 = vrot.slane %v422, 4
      %v425 = vshll.u32 %v317, 16
      %v427 = vrot.slane %v425, 5
      %v428 = vsel %vm332, %v423, %v427
      %v430 = vshrl.u32 %v289, 16
      %v432 = vrot.slane %v430, 4
      %v433 = vshll.u32 %v289, 16
      %v435 = vrot.slane %v433, 5
      %v436 = vor.u32 %v432, %v435
      %v437 = vrot.slane %v436, 4
      %v439 = vshll.u32 %v290, 16
      %v441 = vrot.slane %v439, 5
      %v442 = vsel %vm332, %v437, %v441
      %v443 = vshrl.u32 %v290, 16
      %v445 = vrot.slane %v443, 4
      %v446 = vor.u32 %v445, %v441
      %v447 = vrot.slane %v446, 4
      %v449 = vshll.u32 %v318, 16
      %v451 = vrot.slane %v449, 5
      %v452 = vsel %vm332, %v447, %v451
      %v454 = vshrl.u32 %v291, 16
      %v456 = vrot.slane %v454, 4
      %v457 = vshll.u32 %v291, 16
      %v459 = vrot.slane %v457, 5
      %v460 = vor.u32 %v456, %v459
      %v461 = vrot.slane %v460, 4
      %v463 = vshll.u32 %v292, 16
      %v465 = vrot.slane %v463, 5
      %v466 = vsel %vm332, %v461, %v465
      %v467 = vshrl.u32 %v292, 16
      %v469 = vrot.slane %v467, 4
      %v470 = vor.u32 %v469, %v465
      %v471 = vrot.slane %v470, 4
      %v473 = vshll.u32 %v319, 16
      %v475 = vrot.slane %v473, 5
      %v476 = vsel %vm332, %v471, %v475
      %v478 = vshrl.u32 %v293, 16
      %v480 = vrot.slane %v478, 4
      %v481 = vshll.u32 %v293, 16
      %v483 = vrot.slane %v481, 5
      %v484 = vor.u32 %v480, %v483
      %v485 = vrot.slane %v484, 4
      %v487 = vshll.u32 %v294, 16
      %v489 = vrot.slane %v487, 5
      %v490 = vsel %vm332, %v485, %v489
      %v491 = vshrl.u32 %v294, 16
      %v493 = vrot.slane %v491, 4
      %v494 = vor.u32 %v493, %v489
      %v495 = vrot.slane %v494, 4
      %v497 = vshll.u32 %v320, 16
      %v499 = vrot.slane %v497, 5
      %v500 = vsel %vm332, %v495, %v499
      %v502 = vshrl.u32 %v295, 16
      %v504 = vrot.slane %v502, 4
      %v505 = vshll.u32 %v295, 16
      %v507 = vrot.slane %v505, 5
      %v508 = vor.u32 %v504, %v507
      %v509 = vrot.slane %v508, 4
      %v511 = vshll.u32 %v296, 16
      %v513 = vrot.slane %v511, 5
      %v514 = vsel %vm332, %v509, %v513
      %v515 = vshrl.u32 %v296, 16
      %v517 = vrot.slane %v515, 4
      %v518 = vor.u32 %v517, %v513
      %v519 = vrot.slane %v518, 4
      %v521 = vshll.u32 %v321, 16
      %v523 = vrot.slane %v521, 5
      %v524 = vsel %vm332, %v519, %v523
      %v526 = vshrl.u32 %v297, 16
      %v528 = vrot.slane %v526, 4
      %v529 = vshll.u32 %v297, 16
      %v531 = vrot.slane %v529, 5
      %v532 = vor.u32 %v528, %v531
      %v533 = vrot.slane %v532, 4
      %v535 = vshll.u32 %v298, 16
      %v537 = vrot.slane %v535, 5
      %v538 = vsel %vm332, %v533, %v537
      %v539 = vshrl.u32 %v298, 16
      %v541 = vrot.slane %v539, 4
      %v542 = vor.u32 %v541, %v537
      %v543 = vrot.slane %v542, 4
      %v545 = vshll.u32 %v322, 16
      %v547 = vrot.slane %v545, 5
      %v548 = vsel %vm332, %v543, %v547
      %v550 = vshrl.u32 %v299, 16
      %v552 = vrot.slane %v550, 4
      %v553 = vshll.u32 %v299, 16
      %v555 = vrot.slane %v553, 5
      %v556 = vor.u32 %v552, %v555
      %v557 = vrot.slane %v556, 4
      %v559 = vshll.u32 %v300, 16
      %v561 = vrot.slane %v559, 5
      %v562 = vsel %vm332, %v557, %v561
      %v563 = vshrl.u32 %v300, 16
      %v565 = vrot.slane %v563, 4
      %v566 = vor.u32 %v565, %v561
      %v567 = vrot.slane %v566, 4
      %v569 = vshll.u32 %v323, 16
      %v571 = vrot.slane %v569, 5
      %v572 = vsel %vm332, %v567, %v571
      %v574 = vshrl.u32 %v301, 16
      %v576 = vrot.slane %v574, 4
      %v577 = vshll.u32 %v301, 16
      %v579 = vrot.slane %v577, 5
      %v580 = vor.u32 %v576, %v579
      %v581 = vrot.slane %v580, 4
      %v583 = vshll.u32 %v302, 16
      %v585 = vrot.slane %v583, 5
      %v586 = vsel %vm332, %v581, %v585
      %v587 = vshrl.u32 %v302, 16
      %v589 = vrot.slane %v587, 4
      %v590 = vor.u32 %v589, %v585
      %v591 = vrot.slane %v590, 4
      %v593 = vshll.u32 %v324, 16
      %v595 = vrot.slane %v593, 5
      %v596 = vsel %vm332, %v591, %v595
      %v598 = vshrl.u32 %v303, 16
      %v600 = vrot.slane %v598, 4
      %v601 = vshll.u32 %v303, 16
      %v603 = vrot.slane %v601, 5
      %v604 = vor.u32 %v600, %v603
      %v605 = vrot.slane %v604, 4
      %v607 = vshll.u32 %v304, 16
      %v609 = vrot.slane %v607, 5
      %v610 = vsel %vm332, %v605, %v609
      %v611 = vshrl.u32 %v304, 16
      %v613 = vrot.slane %v611, 4
      %v614 = vor.u32 %v613, %v609
      %v615 = vrot.slane %v614, 4
      %v617 = vshll.u32 %v325, 16
      %v619 = vrot.slane %v617, 5
      %v620 = vsel %vm332, %v615, %v619
      %v622 = vshrl.u32 %v305, 16
      %v624 = vrot.slane %v622, 4
      %v625 = vshll.u32 %v305, 16
      %v627 = vrot.slane %v625, 5
      %v628 = vor.u32 %v624, %v627
      %v629 = vrot.slane %v628, 4
      %v631 = vshll.u32 %v306, 16
      %v633 = vrot.slane %v631, 5
      %v634 = vsel %vm332, %v629, %v633
      %v635 = vshrl.u32 %v306, 16
      %v637 = vrot.slane %v635, 4
      %v638 = vor.u32 %v637, %v633
      %v639 = vrot.slane %v638, 4
      %v641 = vshll.u32 %v326, 16
      %v643 = vrot.slane %v641, 5
      %v644 = vsel %vm332, %v639, %v643
      %v646 = vshrl.u32 %v307, 16
      %v648 = vrot.slane %v646, 4
      %v649 = vshll.u32 %v307, 16
      %v651 = vrot.slane %v649, 5
      %v652 = vor.u32 %v648, %v651
      %v653 = vrot.slane %v652, 4
      %v655 = vshll.u32 %v308, 16
      %v657 = vrot.slane %v655, 5
      %v658 = vsel %vm332, %v653, %v657
      %v659 = vshrl.u32 %v308, 16
      %v661 = vrot.slane %v659, 4
      %v662 = vor.u32 %v661, %v657
      %v663 = vrot.slane %v662, 4
      %v665 = vshll.u32 %v327, 16
      %v667 = vrot.slane %v665, 5
      %v668 = vsel %vm332, %v663, %v667
      %v670 = vshrl.u32 %v309, 16
      %v672 = vrot.slane %v670, 4
      %v673 = vshll.u32 %v309, 16
      %v675 = vrot.slane %v673, 5
      %v676 = vor.u32 %v672, %v675
      %v677 = vrot.slane %v676, 4
      %v679 = vshll.u32 %v310, 16
      %v681 = vrot.slane %v679, 5
      %v682 = vsel %vm332, %v677, %v681
      %v683 = vshrl.u32 %v310, 16
      %v685 = vrot.slane %v683, 4
      %v686 = vor.u32 %v685, %v681
      %v687 = vrot.slane %v686, 4
      %v689 = vshll.u32 %v328, 16
      %v691 = vrot.slane %v689, 5
      %v692 = vsel %vm332, %v687, %v691
      %v694 = vshrl.u32 %v311, 16
      %v696 = vrot.slane %v694, 4
      %v697 = vshll.u32 %v311, 16
      %v699 = vrot.slane %v697, 5
      %v700 = vor.u32 %v696, %v699
      %v701 = vrot.slane %v700, 4
      %v703 = vshll.u32 %v312, 16
      %v705 = vrot.slane %v703, 5
      %v706 = vsel %vm332, %v701, %v705
      %v707 = vshrl.u32 %v312, 16
      %v709 = vrot.slane %v707, 4
      %v710 = vor.u32 %v709, %v705
      %v711 = vrot.slane %v710, 4
      %v713 = vshll.u32 %v329, 16
      %v715 = vrot.slane %v713, 5
      %v716 = vsel %vm332, %v711, %v715
      %s717 = scalar_lea.vmem %s260, 4
      %v718 = vld [vmem:[%s717] sm:$0xf]
      %v719 = vunpack.c.l.b16 %v346
      %v720 = vunpack.c.l.b16 %v356
      %v721 = vunpack.c.l.b16 %v370
      %v722 = vunpack.c.l.b16 %v380
      %v723 = vunpack.c.l.b16 %v394
      %v724 = vunpack.c.l.b16 %v404
      %v725 = vunpack.c.l.b16 %v418
      %v726 = vunpack.c.l.b16 %v428
      %v727 = vunpack.c.l.b16 %v442
      %v728 = vunpack.c.l.b16 %v452
      %v729 = vunpack.c.l.b16 %v466
      %v730 = vunpack.c.l.b16 %v476
      %v731 = vunpack.c.l.b16 %v490
      %v732 = vunpack.c.l.b16 %v500
      %v733 = vunpack.c.l.b16 %v514
      %v734 = vunpack.c.l.b16 %v524
      %v735 = vunpack.c.l.b16 %v538
      %v736 = vunpack.c.l.b16 %v548
      %v737 = vunpack.c.l.b16 %v562
      %v738 = vunpack.c.l.b16 %v572
      %v739 = vunpack.c.l.b16 %v586
      %v740 = vunpack.c.l.b16 %v596
      %v741 = vunpack.c.l.b16 %v610
      %v742 = vunpack.c.l.b16 %v620
      %v743 = vunpack.c.l.b16 %v634
      %v744 = vunpack.c.l.b16 %v644
      %v745 = vunpack.c.l.b16 %v658
      %v746 = vunpack.c.l.b16 %v668
      %v747 = vunpack.c.l.b16 %v682
      %v748 = vunpack.c.l.b16 %v692
      %v749 = vunpack.c.l.b16 %v706
      %v750 = vunpack.c.l.b16 %v716
      %v751 = vpack.c.b16 %v720, %v719
      %v752 = vpack.c.b16 %v722, %v721
      %v753 = vpack.c.b16 %v724, %v723
      %v754 = vpack.c.b16 %v726, %v725
      %v755 = vpack.c.b16 %v728, %v727
      %v756 = vpack.c.b16 %v730, %v729
      %v757 = vpack.c.b16 %v732, %v731
      %v758 = vpack.c.b16 %v734, %v733
      %v759 = vpack.c.b16 %v736, %v735
      %v760 = vpack.c.b16 %v738, %v737
      %v761 = vpack.c.b16 %v740, %v739
      %v762 = vpack.c.b16 %v742, %v741
      %v763 = vpack.c.b16 %v744, %v743
      %v764 = vpack.c.b16 %v746, %v745
      %v765 = vpack.c.b16 %v748, %v747
      %v766 = vpack.c.b16 %v750, %v749
      %vm767 = vcmask 64512
      %v769 = vsel %vm767, %v751, 0
      %v772 = vsel %vm767, %v752, 0
      %v775 = vsel %vm767, %v753, 0
      %v778 = vsel %vm767, %v754, 0
      %v781 = vsel %vm767, %v755, 0
      %v784 = vsel %vm767, %v756, 0
      %v787 = vsel %vm767, %v757, 0
      %v790 = vsel %vm767, %v758, 0
      %v793 = vsel %vm767, %v759, 0
      %v796 = vsel %vm767, %v760, 0
      %v799 = vsel %vm767, %v761, 0
      %v802 = vsel %vm767, %v762, 0
      %v805 = vsel %vm767, %v763, 0
      %v808 = vsel %vm767, %v764, 0
      %v811 = vsel %vm767, %v765, 0
      %v814 = vsel %vm767, %v766, 0
      %vm816 = vcmask 1043456
      %v818 = vsel %vm816, %v718, 0
      %820 = vmatpush.bf16.msra.mxu0 0
      %821 = vmatpush.bf16.msra.mxu0 0
      %822 = vmatpush.bf16.msra.mxu0 0
      %823 = vmatpush.bf16.msra.mxu0 0
      %824 = vmatpush.bf16.msra.mxu0 0
      %825 = vmatpush.bf16.msra.mxu0 0
      %826 = vmatpush.bf16.msra.mxu0 0
      %827 = vmatpush.bf16.msra.mxu0 %v818
      %828 = vmatmul.bf16.gmra.mxu0 %v769
      %v829 = vpop.f32.mrf.mxu0
      %v830 = vadd.f32 0.0, %v829
      %v831 = vpop.f32.mrf.mxu0
      %v832 = vadd.f32 0.0, %v831
      %833 = vmatmul.bf16.gmra.mxu0 %v772
      %v834 = vpop.f32.mrf.mxu0
      %v835 = vadd.f32 0.0, %v834
      %v836 = vpop.f32.mrf.mxu0
      %v837 = vadd.f32 0.0, %v836
      %838 = vmatmul.bf16.gmra.mxu0 %v775
      %v839 = vpop.f32.mrf.mxu0
      %v840 = vadd.f32 0.0, %v839
      %v841 = vpop.f32.mrf.mxu0
      %v842 = vadd.f32 0.0, %v841
      %843 = vmatmul.bf16.gmra.mxu0 %v778
      %v844 = vpop.f32.mrf.mxu0
      %v845 = vadd.f32 0.0, %v844
      %v846 = vpop.f32.mrf.mxu0
      %v847 = vadd.f32 0.0, %v846
      %848 = vmatmul.bf16.gmra.mxu0 %v781
      %v849 = vpop.f32.mrf.mxu0
      %v850 = vadd.f32 0.0, %v849
      %v851 = vpop.f32.mrf.mxu0
      %v852 = vadd.f32 0.0, %v851
      %853 = vmatmul.bf16.gmra.mxu0 %v784
      %v854 = vpop.f32.mrf.mxu0
      %v855 = vadd.f32 0.0, %v854
      %v856 = vpop.f32.mrf.mxu0
      %v857 = vadd.f32 0.0, %v856
      %858 = vmatmul.bf16.gmra.mxu0 %v787
      %v859 = vpop.f32.mrf.mxu0
      %v860 = vadd.f32 0.0, %v859
      %v861 = vpop.f32.mrf.mxu0
      %v862 = vadd.f32 0.0, %v861
      %863 = vmatmul.bf16.gmra.mxu0 %v790
      %v864 = vpop.f32.mrf.mxu0
      %v865 = vadd.f32 0.0, %v864
      %v866 = vpop.f32.mrf.mxu0
      %v867 = vadd.f32 0.0, %v866
      %868 = vmatmul.bf16.gmra.mxu0 %v793
      %v869 = vpop.f32.mrf.mxu0
      %v870 = vadd.f32 0.0, %v869
      %v871 = vpop.f32.mrf.mxu0
      %v872 = vadd.f32 0.0, %v871
      %873 = vmatmul.bf16.gmra.mxu0 %v796
      %v874 = vpop.f32.mrf.mxu0
      %v875 = vadd.f32 0.0, %v874
      %v876 = vpop.f32.mrf.mxu0
      %v877 = vadd.f32 0.0, %v876
      %878 = vmatmul.bf16.gmra.mxu0 %v799
      %v879 = vpop.f32.mrf.mxu0
      %v880 = vadd.f32 0.0, %v879
      %v881 = vpop.f32.mrf.mxu0
      %v882 = vadd.f32 0.0, %v881
      %883 = vmatmul.bf16.gmra.mxu0 %v802
      %v884 = vpop.f32.mrf.mxu0
      %v885 = vadd.f32 0.0, %v884
      %v886 = vpop.f32.mrf.mxu0
      %v887 = vadd.f32 0.0, %v886
      %888 = vmatmul.bf16.gmra.mxu0 %v805
      %v889 = vpop.f32.mrf.mxu0
      %v890 = vadd.f32 0.0, %v889
      %v891 = vpop.f32.mrf.mxu0
      %v892 = vadd.f32 0.0, %v891
      %893 = vmatmul.bf16.gmra.mxu0 %v808
      %v894 = vpop.f32.mrf.mxu0
      %v895 = vadd.f32 0.0, %v894
      %v896 = vpop.f32.mrf.mxu0
      %v897 = vadd.f32 0.0, %v896
      %898 = vmatmul.bf16.gmra.mxu0 %v811
      %v899 = vpop.f32.mrf.mxu0
      %v900 = vadd.f32 0.0, %v899
      %v901 = vpop.f32.mrf.mxu0
      %v902 = vadd.f32 0.0, %v901
      %903 = vmatmul.bf16.gmra.mxu0 %v814
      %v904 = vpop.f32.mrf.mxu0
      %v905 = vadd.f32 0.0, %v904
      %v906 = vpop.f32.mrf.mxu0
      %v907 = vadd.f32 0.0, %v906
      %908 = vdwg.mxu0
      %v941 = vunpack.c.l.b16 %v281
      %v942 = vunpack.c.l.b16 %v282
      %v943 = vunpack.c.l.b16 %v283
      %v944 = vunpack.c.l.b16 %v284
      %v945 = vunpack.c.l.b16 %v285
      %v946 = vunpack.c.l.b16 %v286
      %v947 = vunpack.c.l.b16 %v287
      %v948 = vunpack.c.l.b16 %v288
      %v949 = vunpack.c.l.b16 %v289
      %v950 = vunpack.c.l.b16 %v290
      %v951 = vunpack.c.l.b16 %v291
      %v952 = vunpack.c.l.b16 %v292
      %v953 = vunpack.c.l.b16 %v293
      %v954 = vunpack.c.l.b16 %v294
      %v955 = vunpack.c.l.b16 %v295
      %v956 = vunpack.c.l.b16 %v296
      %v957 = vunpack.c.l.b16 %v297
      %v958 = vunpack.c.l.b16 %v298
      %v959 = vunpack.c.l.b16 %v299
      %v960 = vunpack.c.l.b16 %v300
      %v961 = vunpack.c.l.b16 %v301
      %v962 = vunpack.c.l.b16 %v302
      %v963 = vunpack.c.l.b16 %v303
      %v964 = vunpack.c.l.b16 %v304
      %v965 = vunpack.c.l.b16 %v305
      %v966 = vunpack.c.l.b16 %v306
      %v967 = vunpack.c.l.b16 %v307
      %v968 = vunpack.c.l.b16 %v308
      %v969 = vunpack.c.l.b16 %v309
      %v970 = vunpack.c.l.b16 %v310
      %v971 = vunpack.c.l.b16 %v311
      %v972 = vunpack.c.l.b16 %v312
      %v973 = vpack.c.b16 %v942, %v941
      %v974 = vpack.c.b16 %v944, %v943
      %v975 = vpack.c.b16 %v946, %v945
      %v976 = vpack.c.b16 %v948, %v947
      %v977 = vpack.c.b16 %v950, %v949
      %v978 = vpack.c.b16 %v952, %v951
      %v979 = vpack.c.b16 %v954, %v953
      %v980 = vpack.c.b16 %v956, %v955
      %v981 = vpack.c.b16 %v958, %v957
      %v982 = vpack.c.b16 %v960, %v959
      %v983 = vpack.c.b16 %v962, %v961
      %v984 = vpack.c.b16 %v964, %v963
      %v985 = vpack.c.b16 %v966, %v965
      %v986 = vpack.c.b16 %v968, %v967
      %v987 = vpack.c.b16 %v970, %v969
      %v988 = vpack.c.b16 %v972, %v971
      %v990 = vsel %vm767, %v973, 0
      %v993 = vsel %vm767, %v974, 0
      %v996 = vsel %vm767, %v975, 0
      %v999 = vsel %vm767, %v976, 0
      %v1002 = vsel %vm767, %v977, 0
      %v1005 = vsel %vm767, %v978, 0
      %v1008 = vsel %vm767, %v979, 0
      %v1011 = vsel %vm767, %v980, 0
      %v1014 = vsel %vm767, %v981, 0
      %v1017 = vsel %vm767, %v982, 0
      %v1020 = vsel %vm767, %v983, 0
      %v1023 = vsel %vm767, %v984, 0
      %v1026 = vsel %vm767, %v985, 0
      %v1029 = vsel %vm767, %v986, 0
      %v1032 = vsel %vm767, %v987, 0
      %v1035 = vsel %vm767, %v988, 0
      %v1038 = vsel %vm816, %v313, 0
      %1040 = vmatpush.bf16.msra.mxu0 0
      %1041 = vmatpush.bf16.msra.mxu0 0
      %1042 = vmatpush.bf16.msra.mxu0 0
      %1043 = vmatpush.bf16.msra.mxu0 0
      %1044 = vmatpush.bf16.msra.mxu0 0
      %1045 = vmatpush.bf16.msra.mxu0 0
      %1046 = vmatpush.bf16.msra.mxu0 0
      %1047 = vmatpush.bf16.msra.mxu0 %v1038
      %1048 = vmatmul.bf16.gmra.mxu0 %v990
      %v1049 = vpop.f32.mrf.mxu0
      %v1050 = vadd.f32 %v830, %v1049
      %v1051 = vpop.f32.mrf.mxu0
      %v1052 = vadd.f32 %v832, %v1051
      %1053 = vmatmul.bf16.gmra.mxu0 %v993
      %v1054 = vpop.f32.mrf.mxu0
      %v1055 = vadd.f32 %v835, %v1054
      %v1056 = vpop.f32.mrf.mxu0
      %v1057 = vadd.f32 %v837, %v1056
      %1058 = vmatmul.bf16.gmra.mxu0 %v996
      %v1059 = vpop.f32.mrf.mxu0
      %v1060 = vadd.f32 %v840, %v1059
      %v1061 = vpop.f32.mrf.mxu0
      %v1062 = vadd.f32 %v842, %v1061
      %1063 = vmatmul.bf16.gmra.mxu0 %v999
      %v1064 = vpop.f32.mrf.mxu0
      %v1065 = vadd.f32 %v845, %v1064
      %v1066 = vpop.f32.mrf.mxu0
      %v1067 = vadd.f32 %v847, %v1066
      %1068 = vmatmul.bf16.gmra.mxu0 %v1002
      %v1069 = vpop.f32.mrf.mxu0
      %v1070 = vadd.f32 %v850, %v1069
      %v1071 = vpop.f32.mrf.mxu0
      %v1072 = vadd.f32 %v852, %v1071
      %1073 = vmatmul.bf16.gmra.mxu0 %v1005
      %v1074 = vpop.f32.mrf.mxu0
      %v1075 = vadd.f32 %v855, %v1074
      %v1076 = vpop.f32.mrf.mxu0
      %v1077 = vadd.f32 %v857, %v1076
      %1078 = vmatmul.bf16.gmra.mxu0 %v1008
      %v1079 = vpop.f32.mrf.mxu0
      %v1080 = vadd.f32 %v860, %v1079
      %v1081 = vpop.f32.mrf.mxu0
      %v1082 = vadd.f32 %v862, %v1081
      %1083 = vmatmul.bf16.gmra.mxu0 %v1011
      %v1084 = vpop.f32.mrf.mxu0
      %v1085 = vadd.f32 %v865, %v1084
      %v1086 = vpop.f32.mrf.mxu0
      %v1087 = vadd.f32 %v867, %v1086
      %1088 = vmatmul.bf16.gmra.mxu0 %v1014
      %v1089 = vpop.f32.mrf.mxu0
      %v1090 = vadd.f32 %v870, %v1089
      %v1091 = vpop.f32.mrf.mxu0
      %v1092 = vadd.f32 %v872, %v1091
      %1093 = vmatmul.bf16.gmra.mxu0 %v1017
      %v1094 = vpop.f32.mrf.mxu0
      %v1095 = vadd.f32 %v875, %v1094
      %v1096 = vpop.f32.mrf.mxu0
      %v1097 = vadd.f32 %v877, %v1096
      %1098 = vmatmul.bf16.gmra.mxu0 %v1020
      %v1099 = vpop.f32.mrf.mxu0
      %v1100 = vadd.f32 %v880, %v1099
      %v1101 = vpop.f32.mrf.mxu0
      %v1102 = vadd.f32 %v882, %v1101
      %1103 = vmatmul.bf16.gmra.mxu0 %v1023
      %v1104 = vpop.f32.mrf.mxu0
      %v1105 = vadd.f32 %v885, %v1104
      %v1106 = vpop.f32.mrf.mxu0
      %v1107 = vadd.f32 %v887, %v1106
      %1108 = vmatmul.bf16.gmra.mxu0 %v1026
      %v1109 = vpop.f32.mrf.mxu0
      %v1110 = vadd.f32 %v890, %v1109
      %v1111 = vpop.f32.mrf.mxu0
      %v1112 = vadd.f32 %v892, %v1111
      %1113 = vmatmul.bf16.gmra.mxu0 %v1029
      %v1114 = vpop.f32.mrf.mxu0
      %v1115 = vadd.f32 %v895, %v1114
      %v1116 = vpop.f32.mrf.mxu0
      %v1117 = vadd.f32 %v897, %v1116
      %1118 = vmatmul.bf16.gmra.mxu0 %v1032
      %v1119 = vpop.f32.mrf.mxu0
      %v1120 = vadd.f32 %v900, %v1119
      %v1121 = vpop.f32.mrf.mxu0
      %v1122 = vadd.f32 %v902, %v1121
      %1123 = vmatmul.bf16.gmra.mxu0 %v1035
      %v1124 = vpop.f32.mrf.mxu0
      %v1125 = vadd.f32 %v905, %v1124
      %v1126 = vpop.f32.mrf.mxu0
      %v1127 = vadd.f32 %v907, %v1126
      %1128 = vdwg.mxu0
      %v1129 = vld [vmem:[%s256] sm:$0xe]
      %v1130 = vld [vmem:[%s256 + $0xc] sm:$0xe]
      %v1131 = vld [vmem:[%s256 + $0x18] sm:$0xe]
      %v1132 = vld [vmem:[%s256 + $0x24] sm:$0xe]
      %v1133 = vld [vmem:[%s256 + $0x30] sm:$0xe]
      %v1134 = vld [vmem:[%s256 + $0x3c] sm:$0xe]
      %v1135 = vld [vmem:[%s256 + $0x48] sm:$0xe]
      %v1136 = vld [vmem:[%s256 + $0x54] sm:$0xe]
      %v1137 = vld [vmem:[%s256 + $0x60] sm:$0xe]
      %v1138 = vld [vmem:[%s256 + $0x6c] sm:$0xe]
      %v1139 = vld [vmem:[%s256 + $0x78] sm:$0xe]
      %v1140 = vld [vmem:[%s256 + $0x84] sm:$0xe]
      %v1141 = vld [vmem:[%s256 + $0x90] sm:$0xe]
      %v1142 = vld [vmem:[%s256 + $0x9c] sm:$0xe]
      %v1143 = vld [vmem:[%s256 + $0xa8] sm:$0xe]
      %v1144 = vld [vmem:[%s256 + $0xb4] sm:$0xe]
      %vm1177 = vcmask 1042432
      %vm1178 = vcmask 1046532
      %vm1179 = vmor %vm1177, %vm1178
      %v1180 = vrot.slane %v1129, 5
      %v1181 = vrot.slane %v1180, 4
      %v1182 = vrot.slane %v282, 5
      %v1183 = vsel %vm1179, %v1181, %v1182
      %v1184 = vrot.slane %v1182, 4
      %v1185 = vrot.slane %v314, 5
      %v1186 = vsel %vm1179, %v1184, %v1185
      %v1187 = vrot.slane %v1130, 5
      %v1188 = vrot.slane %v1187, 4
      %v1189 = vrot.slane %v284, 5
      %v1190 = vsel %vm1179, %v1188, %v1189
      %v1191 = vrot.slane %v1189, 4
      %v1192 = vrot.slane %v315, 5
      %v1193 = vsel %vm1179, %v1191, %v1192
      %v1194 = vrot.slane %v1131, 5
      %v1195 = vrot.slane %v1194, 4
      %v1196 = vrot.slane %v286, 5
      %v1197 = vsel %vm1179, %v1195, %v1196
      %v1198 = vrot.slane %v1196, 4
      %v1199 = vrot.slane %v316, 5
      %v1200 = vsel %vm1179, %v1198, %v1199
      %v1201 = vrot.slane %v1132, 5
      %v1202 = vrot.slane %v1201, 4
      %v1203 = vrot.slane %v288, 5
      %v1204 = vsel %vm1179, %v1202, %v1203
      %v1205 = vrot.slane %v1203, 4
      %v1206 = vrot.slane %v317, 5
      %v1207 = vsel %vm1179, %v1205, %v1206
      %v1208 = vrot.slane %v1133, 5
      %v1209 = vrot.slane %v1208, 4
      %v1210 = vrot.slane %v290, 5
      %v1211 = vsel %vm1179, %v1209, %v1210
      %v1212 = vrot.slane %v1210, 4
      %v1213 = vrot.slane %v318, 5
      %v1214 = vsel %vm1179, %v1212, %v1213
      %v1215 = vrot.slane %v1134, 5
      %v1216 = vrot.slane %v1215, 4
      %v1217 = vrot.slane %v292, 5
      %v1218 = vsel %vm1179, %v1216, %v1217
      %v1219 = vrot.slane %v1217, 4
      %v1220 = vrot.slane %v319, 5
      %v1221 = vsel %vm1179, %v1219, %v1220
      %v1222 = vrot.slane %v1135, 5
      %v1223 = vrot.slane %v1222, 4
      %v1224 = vrot.slane %v294, 5
      %v1225 = vsel %vm1179, %v1223, %v1224
      %v1226 = vrot.slane %v1224, 4
      %v1227 = vrot.slane %v320, 5
      %v1228 = vsel %vm1179, %v1226, %v1227
      %v1229 = vrot.slane %v1136, 5
      %v1230 = vrot.slane %v1229, 4
      %v1231 = vrot.slane %v296, 5
      %v1232 = vsel %vm1179, %v1230, %v1231
      %v1233 = vrot.slane %v1231, 4
      %v1234 = vrot.slane %v321, 5
      %v1235 = vsel %vm1179, %v1233, %v1234
      %v1236 = vrot.slane %v1137, 5
      %v1237 = vrot.slane %v1236, 4
      %v1238 = vrot.slane %v298, 5
      %v1239 = vsel %vm1179, %v1237, %v1238
      %v1240 = vrot.slane %v1238, 4
      %v1241 = vrot.slane %v322, 5
      %v1242 = vsel %vm1179, %v1240, %v1241
      %v1243 = vrot.slane %v1138, 5
      %v1244 = vrot.slane %v1243, 4
      %v1245 = vrot.slane %v300, 5
      %v1246 = vsel %vm1179, %v1244, %v1245
      %v1247 = vrot.slane %v1245, 4
      %v1248 = vrot.slane %v323, 5
      %v1249 = vsel %vm1179, %v1247, %v1248
      %v1250 = vrot.slane %v1139, 5
      %v1251 = vrot.slane %v1250, 4
      %v1252 = vrot.slane %v302, 5
      %v1253 = vsel %vm1179, %v1251, %v1252
      %v1254 = vrot.slane %v1252, 4
      %v1255 = vrot.slane %v324, 5
      %v1256 = vsel %vm1179, %v1254, %v1255
      %v1257 = vrot.slane %v1140, 5
      %v1258 = vrot.slane %v1257, 4
      %v1259 = vrot.slane %v304, 5
      %v1260 = vsel %vm1179, %v1258, %v1259
      %v1261 = vrot.slane %v1259, 4
      %v1262 = vrot.slane %v325, 5
      %v1263 = vsel %vm1179, %v1261, %v1262
      %v1264 = vrot.slane %v1141, 5
      %v1265 = vrot.slane %v1264, 4
      %v1266 = vrot.slane %v306, 5
      %v1267 = vsel %vm1179, %v1265, %v1266
      %v1268 = vrot.slane %v1266, 4
      %v1269 = vrot.slane %v326, 5
      %v1270 = vsel %vm1179, %v1268, %v1269
      %v1271 = vrot.slane %v1142, 5
      %v1272 = vrot.slane %v1271, 4
      %v1273 = vrot.slane %v308, 5
      %v1274 = vsel %vm1179, %v1272, %v1273
      %v1275 = vrot.slane %v1273, 4
      %v1276 = vrot.slane %v327, 5
      %v1277 = vsel %vm1179, %v1275, %v1276
      %v1278 = vrot.slane %v1143, 5
      %v1279 = vrot.slane %v1278, 4
      %v1280 = vrot.slane %v310, 5
      %v1281 = vsel %vm1179, %v1279, %v1280
      %v1282 = vrot.slane %v1280, 4
      %v1283 = vrot.slane %v328, 5
      %v1284 = vsel %vm1179, %v1282, %v1283
      %v1285 = vrot.slane %v1144, 5
      %v1286 = vrot.slane %v1285, 4
      %v1287 = vrot.slane %v312, 5
      %v1288 = vsel %vm1179, %v1286, %v1287
      %v1289 = vrot.slane %v1287, 4
      %v1290 = vrot.slane %v329, 5
      %v1291 = vsel %vm1179, %v1289, %v1290
      %s1292 = scalar_lea.vmem %s260, 8
      %v1293 = vld [vmem:[%s1292] sm:$0xf]
      %v1294 = vunpack.c.l.b16 %v1183
      %v1295 = vunpack.c.l.b16 %v1186
      %v1296 = vunpack.c.l.b16 %v1190
      %v1297 = vunpack.c.l.b16 %v1193
      %v1298 = vunpack.c.l.b16 %v1197
      %v1299 = vunpack.c.l.b16 %v1200
      %v1300 = vunpack.c.l.b16 %v1204
      %v1301 = vunpack.c.l.b16 %v1207
      %v1302 = vunpack.c.l.b16 %v1211
      %v1303 = vunpack.c.l.b16 %v1214
      %v1304 = vunpack.c.l.b16 %v1218
      %v1305 = vunpack.c.l.b16 %v1221
      %v1306 = vunpack.c.l.b16 %v1225
      %v1307 = vunpack.c.l.b16 %v1228
      %v1308 = vunpack.c.l.b16 %v1232
      %v1309 = vunpack.c.l.b16 %v1235
      %v1310 = vunpack.c.l.b16 %v1239
      %v1311 = vunpack.c.l.b16 %v1242
      %v1312 = vunpack.c.l.b16 %v1246
      %v1313 = vunpack.c.l.b16 %v1249
      %v1314 = vunpack.c.l.b16 %v1253
      %v1315 = vunpack.c.l.b16 %v1256
      %v1316 = vunpack.c.l.b16 %v1260
      %v1317 = vunpack.c.l.b16 %v1263
      %v1318 = vunpack.c.l.b16 %v1267
      %v1319 = vunpack.c.l.b16 %v1270
      %v1320 = vunpack.c.l.b16 %v1274
      %v1321 = vunpack.c.l.b16 %v1277
      %v1322 = vunpack.c.l.b16 %v1281
      %v1323 = vunpack.c.l.b16 %v1284
      %v1324 = vunpack.c.l.b16 %v1288
      %v1325 = vunpack.c.l.b16 %v1291
      %v1326 = vpack.c.b16 %v1295, %v1294
      %v1327 = vpack.c.b16 %v1297, %v1296
      %v1328 = vpack.c.b16 %v1299, %v1298
      %v1329 = vpack.c.b16 %v1301, %v1300
      %v1330 = vpack.c.b16 %v1303, %v1302
      %v1331 = vpack.c.b16 %v1305, %v1304
      %v1332 = vpack.c.b16 %v1307, %v1306
      %v1333 = vpack.c.b16 %v1309, %v1308
      %v1334 = vpack.c.b16 %v1311, %v1310
      %v1335 = vpack.c.b16 %v1313, %v1312
      %v1336 = vpack.c.b16 %v1315, %v1314
      %v1337 = vpack.c.b16 %v1317, %v1316
      %v1338 = vpack.c.b16 %v1319, %v1318
      %v1339 = vpack.c.b16 %v1321, %v1320
      %v1340 = vpack.c.b16 %v1323, %v1322
      %v1341 = vpack.c.b16 %v1325, %v1324
      %v1343 = vsel %vm767, %v1326, 0
      %v1346 = vsel %vm767, %v1327, 0
      %v1349 = vsel %vm767, %v1328, 0
      %v1352 = vsel %vm767, %v1329, 0
      %v1355 = vsel %vm767, %v1330, 0
      %v1358 = vsel %vm767, %v1331, 0
      %v1361 = vsel %vm767, %v1332, 0
      %v1364 = vsel %vm767, %v1333, 0
      %v1367 = vsel %vm767, %v1334, 0
      %v1370 = vsel %vm767, %v1335, 0
      %v1373 = vsel %vm767, %v1336, 0
      %v1376 = vsel %vm767, %v1337, 0
      %v1379 = vsel %vm767, %v1338, 0
      %v1382 = vsel %vm767, %v1339, 0
      %v1385 = vsel %vm767, %v1340, 0
      %v1388 = vsel %vm767, %v1341, 0
      %v1391 = vsel %vm816, %v1293, 0
      %1393 = vmatpush.bf16.msra.mxu0 0
      %1394 = vmatpush.bf16.msra.mxu0 0
      %1395 = vmatpush.bf16.msra.mxu0 0
      %1396 = vmatpush.bf16.msra.mxu0 0
      %1397 = vmatpush.bf16.msra.mxu0 0
      %1398 = vmatpush.bf16.msra.mxu0 0
      %1399 = vmatpush.bf16.msra.mxu0 0
      %1400 = vmatpush.bf16.msra.mxu0 %v1391
      %1401 = vmatmul.bf16.gmra.mxu0 %v1343
      %v1402 = vpop.f32.mrf.mxu0
      %v1403 = vadd.f32 0.0, %v1402
      %v1404 = vpop.f32.mrf.mxu0
      %v1405 = vadd.f32 0.0, %v1404
      %1406 = vmatmul.bf16.gmra.mxu0 %v1346
      %v1407 = vpop.f32.mrf.mxu0
      %v1408 = vadd.f32 0.0, %v1407
      %v1409 = vpop.f32.mrf.mxu0
      %v1410 = vadd.f32 0.0, %v1409
      %1411 = vmatmul.bf16.gmra.mxu0 %v1349
      %v1412 = vpop.f32.mrf.mxu0
      %v1413 = vadd.f32 0.0, %v1412
      %v1414 = vpop.f32.mrf.mxu0
      %v1415 = vadd.f32 0.0, %v1414
      %1416 = vmatmul.bf16.gmra.mxu0 %v1352
      %v1417 = vpop.f32.mrf.mxu0
      %v1418 = vadd.f32 0.0, %v1417
      %v1419 = vpop.f32.mrf.mxu0
      %v1420 = vadd.f32 0.0, %v1419
      %1421 = vmatmul.bf16.gmra.mxu0 %v1355
      %v1422 = vpop.f32.mrf.mxu0
      %v1423 = vadd.f32 0.0, %v1422
      %v1424 = vpop.f32.mrf.mxu0
      %v1425 = vadd.f32 0.0, %v1424
      %1426 = vmatmul.bf16.gmra.mxu0 %v1358
      %v1427 = vpop.f32.mrf.mxu0
      %v1428 = vadd.f32 0.0, %v1427
      %v1429 = vpop.f32.mrf.mxu0
      %v1430 = vadd.f32 0.0, %v1429
      %1431 = vmatmul.bf16.gmra.mxu0 %v1361
      %v1432 = vpop.f32.mrf.mxu0
      %v1433 = vadd.f32 0.0, %v1432
      %v1434 = vpop.f32.mrf.mxu0
      %v1435 = vadd.f32 0.0, %v1434
      %1436 = vmatmul.bf16.gmra.mxu0 %v1364
      %v1437 = vpop.f32.mrf.mxu0
      %v1438 = vadd.f32 0.0, %v1437
      %v1439 = vpop.f32.mrf.mxu0
      %v1440 = vadd.f32 0.0, %v1439
      %1441 = vmatmul.bf16.gmra.mxu0 %v1367
      %v1442 = vpop.f32.mrf.mxu0
      %v1443 = vadd.f32 0.0, %v1442
      %v1444 = vpop.f32.mrf.mxu0
      %v1445 = vadd.f32 0.0, %v1444
      %1446 = vmatmul.bf16.gmra.mxu0 %v1370
      %v1447 = vpop.f32.mrf.mxu0
      %v1448 = vadd.f32 0.0, %v1447
      %v1449 = vpop.f32.mrf.mxu0
      %v1450 = vadd.f32 0.0, %v1449
      %1451 = vmatmul.bf16.gmra.mxu0 %v1373
      %v1452 = vpop.f32.mrf.mxu0
      %v1453 = vadd.f32 0.0, %v1452
      %v1454 = vpop.f32.mrf.mxu0
      %v1455 = vadd.f32 0.0, %v1454
      %1456 = vmatmul.bf16.gmra.mxu0 %v1376
      %v1457 = vpop.f32.mrf.mxu0
      %v1458 = vadd.f32 0.0, %v1457
      %v1459 = vpop.f32.mrf.mxu0
      %v1460 = vadd.f32 0.0, %v1459
      %1461 = vmatmul.bf16.gmra.mxu0 %v1379
      %v1462 = vpop.f32.mrf.mxu0
      %v1463 = vadd.f32 0.0, %v1462
      %v1464 = vpop.f32.mrf.mxu0
      %v1465 = vadd.f32 0.0, %v1464
      %1466 = vmatmul.bf16.gmra.mxu0 %v1382
      %v1467 = vpop.f32.mrf.mxu0
      %v1468 = vadd.f32 0.0, %v1467
      %v1469 = vpop.f32.mrf.mxu0
      %v1470 = vadd.f32 0.0, %v1469
      %1471 = vmatmul.bf16.gmra.mxu0 %v1385
      %v1472 = vpop.f32.mrf.mxu0
      %v1473 = vadd.f32 0.0, %v1472
      %v1474 = vpop.f32.mrf.mxu0
      %v1475 = vadd.f32 0.0, %v1474
      %1476 = vmatmul.bf16.gmra.mxu0 %v1388
      %v1477 = vpop.f32.mrf.mxu0
      %v1478 = vadd.f32 0.0, %v1477
      %v1479 = vpop.f32.mrf.mxu0
      %v1480 = vadd.f32 0.0, %v1479
      %1481 = vdwg.mxu0
      %v1482 = vadd.f32 %v1050, %v1403
      %v1483 = vadd.f32 %v1052, %v1405
      %v1484 = vadd.f32 %v1055, %v1408
      %v1485 = vadd.f32 %v1057, %v1410
      %v1486 = vadd.f32 %v1060, %v1413
      %v1487 = vadd.f32 %v1062, %v1415
      %v1488 = vadd.f32 %v1065, %v1418
      %v1489 = vadd.f32 %v1067, %v1420
      %v1490 = vadd.f32 %v1070, %v1423
      %v1491 = vadd.f32 %v1072, %v1425
      %v1492 = vadd.f32 %v1075, %v1428
      %v1493 = vadd.f32 %v1077, %v1430
      %v1494 = vadd.f32 %v1080, %v1433
      %v1495 = vadd.f32 %v1082, %v1435
      %v1496 = vadd.f32 %v1085, %v1438
      %v1497 = vadd.f32 %v1087, %v1440
      %v1498 = vadd.f32 %v1090, %v1443
      %v1499 = vadd.f32 %v1092, %v1445
      %v1500 = vadd.f32 %v1095, %v1448
      %v1501 = vadd.f32 %v1097, %v1450
      %v1502 = vadd.f32 %v1100, %v1453
      %v1503 = vadd.f32 %v1102, %v1455
      %v1504 = vadd.f32 %v1105, %v1458
      %v1505 = vadd.f32 %v1107, %v1460
      %v1506 = vadd.f32 %v1110, %v1463
      %v1507 = vadd.f32 %v1112, %v1465
      %v1508 = vadd.f32 %v1115, %v1468
      %v1509 = vadd.f32 %v1117, %v1470
      %v1510 = vadd.f32 %v1120, %v1473
      %v1511 = vadd.f32 %v1122, %v1475
      %v1512 = vadd.f32 %v1125, %v1478
      %v1513 = vadd.f32 %v1127, %v1480
      %s1514 = scalar_lea.vmem %s256, 12
      %v1515 = vld [vmem:[%s1514] sm:$0xf]
      %v1516 = vld [vmem:[%s1514 + $0x4] sm:$0xf]
      %v1517 = vld [vmem:[%s1514 + $0xc] sm:$0xf]
      %v1518 = vld [vmem:[%s1514 + $0x10] sm:$0xf]
      %v1519 = vld [vmem:[%s1514 + $0x18] sm:$0xf]
      %v1520 = vld [vmem:[%s1514 + $0x1c] sm:$0xf]
      %v1521 = vld [vmem:[%s1514 + $0x24] sm:$0xf]
      %v1522 = vld [vmem:[%s1514 + $0x28] sm:$0xf]
      %v1523 = vld [vmem:[%s1514 + $0x30] sm:$0xf]
      %v1524 = vld [vmem:[%s1514 + $0x34] sm:$0xf]
      %v1525 = vld [vmem:[%s1514 + $0x3c] sm:$0xf]
      %v1526 = vld [vmem:[%s1514 + $0x40] sm:$0xf]
      %v1527 = vld [vmem:[%s1514 + $0x48] sm:$0xf]
      %v1528 = vld [vmem:[%s1514 + $0x4c] sm:$0xf]
      %v1529 = vld [vmem:[%s1514 + $0x54] sm:$0xf]
      %v1530 = vld [vmem:[%s1514 + $0x58] sm:$0xf]
      %v1531 = vld [vmem:[%s1514 + $0x60] sm:$0xf]
      %v1532 = vld [vmem:[%s1514 + $0x64] sm:$0xf]
      %v1533 = vld [vmem:[%s1514 + $0x6c] sm:$0xf]
      %v1534 = vld [vmem:[%s1514 + $0x70] sm:$0xf]
      %v1535 = vld [vmem:[%s1514 + $0x78] sm:$0xf]
      %v1536 = vld [vmem:[%s1514 + $0x7c] sm:$0xf]
      %v1537 = vld [vmem:[%s1514 + $0x84] sm:$0xf]
      %v1538 = vld [vmem:[%s1514 + $0x88] sm:$0xf]
      %v1539 = vld [vmem:[%s1514 + $0x90] sm:$0xf]
      %v1540 = vld [vmem:[%s1514 + $0x94] sm:$0xf]
      %v1541 = vld [vmem:[%s1514 + $0x9c] sm:$0xf]
      %v1542 = vld [vmem:[%s1514 + $0xa0] sm:$0xf]
      %v1543 = vld [vmem:[%s1514 + $0xa8] sm:$0xf]
      %v1544 = vld [vmem:[%s1514 + $0xac] sm:$0xf]
      %v1545 = vld [vmem:[%s1514 + $0xb4] sm:$0xf]
      %v1546 = vld [vmem:[%s1514 + $0xb8] sm:$0xf]
      %s1547 = scalar_lea.vmem %s260, 12
      %v1548 = vld [vmem:[%s1547] sm:$0xf]
      %v1581 = vunpack.c.l.b16 %v1515
      %v1582 = vunpack.c.l.b16 %v1516
      %v1583 = vunpack.c.l.b16 %v1517
      %v1584 = vunpack.c.l.b16 %v1518
      %v1585 = vunpack.c.l.b16 %v1519
      %v1586 = vunpack.c.l.b16 %v1520
      %v1587 = vunpack.c.l.b16 %v1521
      %v1588 = vunpack.c.l.b16 %v1522
      %v1589 = vunpack.c.l.b16 %v1523
      %v1590 = vunpack.c.l.b16 %v1524
      %v1591 = vunpack.c.l.b16 %v1525
      %v1592 = vunpack.c.l.b16 %v1526
      %v1593 = vunpack.c.l.b16 %v1527
      %v1594 = vunpack.c.l.b16 %v1528
      %v1595 = vunpack.c.l.b16 %v1529
      %v1596 = vunpack.c.l.b16 %v1530
      %v1597 = vunpack.c.l.b16 %v1531
      %v1598 = vunpack.c.l.b16 %v1532
      %v1599 = vunpack.c.l.b16 %v1533
      %v1600 = vunpack.c.l.b16 %v1534
      %v1601 = vunpack.c.l.b16 %v1535
      %v1602 = vunpack.c.l.b16 %v1536
      %v1603 = vunpack.c.l.b16 %v1537
      %v1604 = vunpack.c.l.b16 %v1538
      %v1605 = vunpack.c.l.b16 %v1539
      %v1606 = vunpack.c.l.b16 %v1540
      %v1607 = vunpack.c.l.b16 %v1541
      %v1608 = vunpack.c.l.b16 %v1542
      %v1609 = vunpack.c.l.b16 %v1543
      %v1610 = vunpack.c.l.b16 %v1544
      %v1611 = vunpack.c.l.b16 %v1545
      %v1612 = vunpack.c.l.b16 %v1546
      %v1613 = vpack.c.b16 %v1582, %v1581
      %v1614 = vpack.c.b16 %v1584, %v1583
      %v1615 = vpack.c.b16 %v1586, %v1585
      %v1616 = vpack.c.b16 %v1588, %v1587
      %v1617 = vpack.c.b16 %v1590, %v1589
      %v1618 = vpack.c.b16 %v1592, %v1591
      %v1619 = vpack.c.b16 %v1594, %v1593
      %v1620 = vpack.c.b16 %v1596, %v1595
      %v1621 = vpack.c.b16 %v1598, %v1597
      %v1622 = vpack.c.b16 %v1600, %v1599
      %v1623 = vpack.c.b16 %v1602, %v1601
      %v1624 = vpack.c.b16 %v1604, %v1603
      %v1625 = vpack.c.b16 %v1606, %v1605
      %v1626 = vpack.c.b16 %v1608, %v1607
      %v1627 = vpack.c.b16 %v1610, %v1609
      %v1628 = vpack.c.b16 %v1612, %v1611
      %v1630 = vsel %vm767, %v1613, 0
      %v1633 = vsel %vm767, %v1614, 0
      %v1636 = vsel %vm767, %v1615, 0
      %v1639 = vsel %vm767, %v1616, 0
      %v1642 = vsel %vm767, %v1617, 0
      %v1645 = vsel %vm767, %v1618, 0
      %v1648 = vsel %vm767, %v1619, 0
      %v1651 = vsel %vm767, %v1620, 0
      %v1654 = vsel %vm767, %v1621, 0
      %v1657 = vsel %vm767, %v1622, 0
      %v1660 = vsel %vm767, %v1623, 0
      %v1663 = vsel %vm767, %v1624, 0
      %v1666 = vsel %vm767, %v1625, 0
      %v1669 = vsel %vm767, %v1626, 0
      %v1672 = vsel %vm767, %v1627, 0
      %v1675 = vsel %vm767, %v1628, 0
      %v1678 = vsel %vm816, %v1548, 0
      %1680 = vmatpush.bf16.msra.mxu0 0
      %1681 = vmatpush.bf16.msra.mxu0 0
      %1682 = vmatpush.bf16.msra.mxu0 0
      %1683 = vmatpush.bf16.msra.mxu0 0
      %1684 = vmatpush.bf16.msra.mxu0 0
      %1685 = vmatpush.bf16.msra.mxu0 0
      %1686 = vmatpush.bf16.msra.mxu0 0
      %1687 = vmatpush.bf16.msra.mxu0 %v1678
      %1688 = vmatmul.bf16.gmra.mxu0 %v1630
      %v1689 = vpop.f32.mrf.mxu0
      %v1690 = vadd.f32 0.0, %v1689
      %v1691 = vpop.f32.mrf.mxu0
      %v1692 = vadd.f32 0.0, %v1691
      %1693 = vmatmul.bf16.gmra.mxu0 %v1633
      %v1694 = vpop.f32.mrf.mxu0
      %v1695 = vadd.f32 0.0, %v1694
      %v1696 = vpop.f32.mrf.mxu0
      %v1697 = vadd.f32 0.0, %v1696
      %1698 = vmatmul.bf16.gmra.mxu0 %v1636
      %v1699 = vpop.f32.mrf.mxu0
      %v1700 = vadd.f32 0.0, %v1699
      %v1701 = vpop.f32.mrf.mxu0
      %v1702 = vadd.f32 0.0, %v1701
      %1703 = vmatmul.bf16.gmra.mxu0 %v1639
      %v1704 = vpop.f32.mrf.mxu0
      %v1705 = vadd.f32 0.0, %v1704
      %v1706 = vpop.f32.mrf.mxu0
      %v1707 = vadd.f32 0.0, %v1706
      %1708 = vmatmul.bf16.gmra.mxu0 %v1642
      %v1709 = vpop.f32.mrf.mxu0
      %v1710 = vadd.f32 0.0, %v1709
      %v1711 = vpop.f32.mrf.mxu0
      %v1712 = vadd.f32 0.0, %v1711
      %1713 = vmatmul.bf16.gmra.mxu0 %v1645
      %v1714 = vpop.f32.mrf.mxu0
      %v1715 = vadd.f32 0.0, %v1714
      %v1716 = vpop.f32.mrf.mxu0
      %v1717 = vadd.f32 0.0, %v1716
      %1718 = vmatmul.bf16.gmra.mxu0 %v1648
      %v1719 = vpop.f32.mrf.mxu0
      %v1720 = vadd.f32 0.0, %v1719
      %v1721 = vpop.f32.mrf.mxu0
      %v1722 = vadd.f32 0.0, %v1721
      %1723 = vmatmul.bf16.gmra.mxu0 %v1651
      %v1724 = vpop.f32.mrf.mxu0
      %v1725 = vadd.f32 0.0, %v1724
      %v1726 = vpop.f32.mrf.mxu0
      %v1727 = vadd.f32 0.0, %v1726
      %1728 = vmatmul.bf16.gmra.mxu0 %v1654
      %v1729 = vpop.f32.mrf.mxu0
      %v1730 = vadd.f32 0.0, %v1729
      %v1731 = vpop.f32.mrf.mxu0
      %v1732 = vadd.f32 0.0, %v1731
      %1733 = vmatmul.bf16.gmra.mxu0 %v1657
      %v1734 = vpop.f32.mrf.mxu0
      %v1735 = vadd.f32 0.0, %v1734
      %v1736 = vpop.f32.mrf.mxu0
      %v1737 = vadd.f32 0.0, %v1736
      %1738 = vmatmul.bf16.gmra.mxu0 %v1660
      %v1739 = vpop.f32.mrf.mxu0
      %v1740 = vadd.f32 0.0, %v1739
      %v1741 = vpop.f32.mrf.mxu0
      %v1742 = vadd.f32 0.0, %v1741
      %1743 = vmatmul.bf16.gmra.mxu0 %v1663
      %v1744 = vpop.f32.mrf.mxu0
      %v1745 = vadd.f32 0.0, %v1744
      %v1746 = vpop.f32.mrf.mxu0
      %v1747 = vadd.f32 0.0, %v1746
      %1748 = vmatmul.bf16.gmra.mxu0 %v1666
      %v1749 = vpop.f32.mrf.mxu0
      %v1750 = vadd.f32 0.0, %v1749
      %v1751 = vpop.f32.mrf.mxu0
      %v1752 = vadd.f32 0.0, %v1751
      %1753 = vmatmul.bf16.gmra.mxu0 %v1669
      %v1754 = vpop.f32.mrf.mxu0
      %v1755 = vadd.f32 0.0, %v1754
      %v1756 = vpop.f32.mrf.mxu0
      %v1757 = vadd.f32 0.0, %v1756
      %1758 = vmatmul.bf16.gmra.mxu0 %v1672
      %v1759 = vpop.f32.mrf.mxu0
      %v1760 = vadd.f32 0.0, %v1759
      %v1761 = vpop.f32.mrf.mxu0
      %v1762 = vadd.f32 0.0, %v1761
      %1763 = vmatmul.bf16.gmra.mxu0 %v1675
      %v1764 = vpop.f32.mrf.mxu0
      %v1765 = vadd.f32 0.0, %v1764
      %v1766 = vpop.f32.mrf.mxu0
      %v1767 = vadd.f32 0.0, %v1766
      %1768 = vdwg.mxu0
      %v1769 = vadd.f32 %v1482, %v1690
      %v1770 = vadd.f32 %v1483, %v1692
      %v1771 = vadd.f32 %v1484, %v1695
      %v1772 = vadd.f32 %v1485, %v1697
      %v1773 = vadd.f32 %v1486, %v1700
      %v1774 = vadd.f32 %v1487, %v1702
      %v1775 = vadd.f32 %v1488, %v1705
      %v1776 = vadd.f32 %v1489, %v1707
      %v1777 = vadd.f32 %v1490, %v1710
      %v1778 = vadd.f32 %v1491, %v1712
      %v1779 = vadd.f32 %v1492, %v1715
      %v1780 = vadd.f32 %v1493, %v1717
      %v1781 = vadd.f32 %v1494, %v1720
      %v1782 = vadd.f32 %v1495, %v1722
      %v1783 = vadd.f32 %v1496, %v1725
      %v1784 = vadd.f32 %v1497, %v1727
      %v1785 = vadd.f32 %v1498, %v1730
      %v1786 = vadd.f32 %v1499, %v1732
      %v1787 = vadd.f32 %v1500, %v1735
      %v1788 = vadd.f32 %v1501, %v1737
      %v1789 = vadd.f32 %v1502, %v1740
      %v1790 = vadd.f32 %v1503, %v1742
      %v1791 = vadd.f32 %v1504, %v1745
      %v1792 = vadd.f32 %v1505, %v1747
      %v1793 = vadd.f32 %v1506, %v1750
      %v1794 = vadd.f32 %v1507, %v1752
      %v1795 = vadd.f32 %v1508, %v1755
      %v1796 = vadd.f32 %v1509, %v1757
      %v1797 = vadd.f32 %v1510, %v1760
      %v1798 = vadd.f32 %v1511, %v1762
      %v1799 = vadd.f32 %v1512, %v1765
      %v1800 = vadd.f32 %v1513, %v1767
      %v1801 = vld [vmem:[%s1514] sm:$0xf]
      %v1802 = vld [vmem:[%s1514 + $0x4] sm:$0xf]
      %v1803 = vld [vmem:[%s1514 + $0x8] sm:$0x1]
      %v1804 = vld [vmem:[%s1514 + $0xc] sm:$0xf]
      %v1805 = vld [vmem:[%s1514 + $0x10] sm:$0xf]
      %v1806 = vld [vmem:[%s1514 + $0x14] sm:$0x1]
      %v1807 = vld [vmem:[%s1514 + $0x18] sm:$0xf]
      %v1808 = vld [vmem:[%s1514 + $0x1c] sm:$0xf]
      %v1809 = vld [vmem:[%s1514 + $0x20] sm:$0x1]
      %v1810 = vld [vmem:[%s1514 + $0x24] sm:$0xf]
      %v1811 = vld [vmem:[%s1514 + $0x28] sm:$0xf]
      %v1812 = vld [vmem:[%s1514 + $0x2c] sm:$0x1]
      %v1813 = vld [vmem:[%s1514 + $0x30] sm:$0xf]
      %v1814 = vld [vmem:[%s1514 + $0x34] sm:$0xf]
      %v1815 = vld [vmem:[%s1514 + $0x38] sm:$0x1]
      %v1816 = vld [vmem:[%s1514 + $0x3c] sm:$0xf]
      %v1817 = vld [vmem:[%s1514 + $0x40] sm:$0xf]
      %v1818 = vld [vmem:[%s1514 + $0x44] sm:$0x1]
      %v1819 = vld [vmem:[%s1514 + $0x48] sm:$0xf]
      %v1820 = vld [vmem:[%s1514 + $0x4c] sm:$0xf]
      %v1821 = vld [vmem:[%s1514 + $0x50] sm:$0x1]
      %v1822 = vld [vmem:[%s1514 + $0x54] sm:$0xf]
      %v1823 = vld [vmem:[%s1514 + $0x58] sm:$0xf]
      %v1824 = vld [vmem:[%s1514 + $0x5c] sm:$0x1]
      %v1825 = vld [vmem:[%s1514 + $0x60] sm:$0xf]
      %v1826 = vld [vmem:[%s1514 + $0x64] sm:$0xf]
      %v1827 = vld [vmem:[%s1514 + $0x68] sm:$0x1]
      %v1828 = vld [vmem:[%s1514 + $0x6c] sm:$0xf]
      %v1829 = vld [vmem:[%s1514 + $0x70] sm:$0xf]
      %v1830 = vld [vmem:[%s1514 + $0x74] sm:$0x1]
      %v1831 = vld [vmem:[%s1514 + $0x78] sm:$0xf]
      %v1832 = vld [vmem:[%s1514 + $0x7c] sm:$0xf]
      %v1833 = vld [vmem:[%s1514 + $0x80] sm:$0x1]
      %v1834 = vld [vmem:[%s1514 + $0x84] sm:$0xf]
      %v1835 = vld [vmem:[%s1514 + $0x88] sm:$0xf]
      %v1836 = vld [vmem:[%s1514 + $0x8c] sm:$0x1]
      %v1837 = vld [vmem:[%s1514 + $0x90] sm:$0xf]
      %v1838 = vld [vmem:[%s1514 + $0x94] sm:$0xf]
      %v1839 = vld [vmem:[%s1514 + $0x98] sm:$0x1]
      %v1840 = vld [vmem:[%s1514 + $0x9c] sm:$0xf]
      %v1841 = vld [vmem:[%s1514 + $0xa0] sm:$0xf]
      %v1842 = vld [vmem:[%s1514 + $0xa4] sm:$0x1]
      %v1843 = vld [vmem:[%s1514 + $0xa8] sm:$0xf]
      %v1844 = vld [vmem:[%s1514 + $0xac] sm:$0xf]
      %v1845 = vld [vmem:[%s1514 + $0xb0] sm:$0x1]
      %v1846 = vld [vmem:[%s1514 + $0xb4] sm:$0xf]
      %v1847 = vld [vmem:[%s1514 + $0xb8] sm:$0xf]
      %v1848 = vld [vmem:[%s1514 + $0xbc] sm:$0x1]
      %v1850 = vshrl.u32 %v1801, 16
      %v1852 = vrot.slane %v1850, 4
      %v1853 = vshll.u32 %v1801, 16
      %v1855 = vrot.slane %v1853, 5
      %v1856 = vor.u32 %v1852, %v1855
      %v1857 = vrot.slane %v1856, 4
      %v1859 = vshll.u32 %v1802, 16
      %v1861 = vrot.slane %v1859, 5
      %v1862 = vsel %vm332, %v1857, %v1861
      %v1863 = vshrl.u32 %v1802, 16
      %v1865 = vrot.slane %v1863, 4
      %v1866 = vor.u32 %v1865, %v1861
      %v1867 = vrot.slane %v1866, 4
      %v1869 = vshll.u32 %v1803, 16
      %v1871 = vrot.slane %v1869, 5
      %v1872 = vsel %vm332, %v1867, %v1871
      %v1874 = vshrl.u32 %v1804, 16
      %v1876 = vrot.slane %v1874, 4
      %v1877 = vshll.u32 %v1804, 16
      %v1879 = vrot.slane %v1877, 5
      %v1880 = vor.u32 %v1876, %v1879
      %v1881 = vrot.slane %v1880, 4
      %v1883 = vshll.u32 %v1805, 16
      %v1885 = vrot.slane %v1883, 5
      %v1886 = vsel %vm332, %v1881, %v1885
      %v1887 = vshrl.u32 %v1805, 16
      %v1889 = vrot.slane %v1887, 4
      %v1890 = vor.u32 %v1889, %v1885
      %v1891 = vrot.slane %v1890, 4
      %v1893 = vshll.u32 %v1806, 16
      %v1895 = vrot.slane %v1893, 5
      %v1896 = vsel %vm332, %v1891, %v1895
      %v1898 = vshrl.u32 %v1807, 16
      %v1900 = vrot.slane %v1898, 4
      %v1901 = vshll.u32 %v1807, 16
      %v1903 = vrot.slane %v1901, 5
      %v1904 = vor.u32 %v1900, %v1903
      %v1905 = vrot.slane %v1904, 4
      %v1907 = vshll.u32 %v1808, 16
      %v1909 = vrot.slane %v1907, 5
      %v1910 = vsel %vm332, %v1905, %v1909
      %v1911 = vshrl.u32 %v1808, 16
      %v1913 = vrot.slane %v1911, 4
      %v1914 = vor.u32 %v1913, %v1909
      %v1915 = vrot.slane %v1914, 4
      %v1917 = vshll.u32 %v1809, 16
      %v1919 = vrot.slane %v1917, 5
      %v1920 = vsel %vm332, %v1915, %v1919
      %v1922 = vshrl.u32 %v1810, 16
      %v1924 = vrot.slane %v1922, 4
      %v1925 = vshll.u32 %v1810, 16
      %v1927 = vrot.slane %v1925, 5
      %v1928 = vor.u32 %v1924, %v1927
      %v1929 = vrot.slane %v1928, 4
      %v1931 = vshll.u32 %v1811, 16
      %v1933 = vrot.slane %v1931, 5
      %v1934 = vsel %vm332, %v1929, %v1933
      %v1935 = vshrl.u32 %v1811, 16
      %v1937 = vrot.slane %v1935, 4
      %v1938 = vor.u32 %v1937, %v1933
      %v1939 = vrot.slane %v1938, 4
      %v1941 = vshll.u32 %v1812, 16
      %v1943 = vrot.slane %v1941, 5
      %v1944 = vsel %vm332, %v1939, %v1943
      %v1946 = vshrl.u32 %v1813, 16
      %v1948 = vrot.slane %v1946, 4
      %v1949 = vshll.u32 %v1813, 16
      %v1951 = vrot.slane %v1949, 5
      %v1952 = vor.u32 %v1948, %v1951
      %v1953 = vrot.slane %v1952, 4
      %v1955 = vshll.u32 %v1814, 16
      %v1957 = vrot.slane %v1955, 5
      %v1958 = vsel %vm332, %v1953, %v1957
      %v1959 = vshrl.u32 %v1814, 16
      %v1961 = vrot.slane %v1959, 4
      %v1962 = vor.u32 %v1961, %v1957
      %v1963 = vrot.slane %v1962, 4
      %v1965 = vshll.u32 %v1815, 16
      %v1967 = vrot.slane %v1965, 5
      %v1968 = vsel %vm332, %v1963, %v1967
      %v1970 = vshrl.u32 %v1816, 16
      %v1972 = vrot.slane %v1970, 4
      %v1973 = vshll.u32 %v1816, 16
      %v1975 = vrot.slane %v1973, 5
      %v1976 = vor.u32 %v1972, %v1975
      %v1977 = vrot.slane %v1976, 4
      %v1979 = vshll.u32 %v1817, 16
      %v1981 = vrot.slane %v1979, 5
      %v1982 = vsel %vm332, %v1977, %v1981
      %v1983 = vshrl.u32 %v1817, 16
      %v1985 = vrot.slane %v1983, 4
      %v1986 = vor.u32 %v1985, %v1981
      %v1987 = vrot.slane %v1986, 4
      %v1989 = vshll.u32 %v1818, 16
      %v1991 = vrot.slane %v1989, 5
      %v1992 = vsel %vm332, %v1987, %v1991
      %v1994 = vshrl.u32 %v1819, 16
      %v1996 = vrot.slane %v1994, 4
      %v1997 = vshll.u32 %v1819, 16
      %v1999 = vrot.slane %v1997, 5
      %v2000 = vor.u32 %v1996, %v1999
      %v2001 = vrot.slane %v2000, 4
      %v2003 = vshll.u32 %v1820, 16
      %v2005 = vrot.slane %v2003, 5
      %v2006 = vsel %vm332, %v2001, %v2005
      %v2007 = vshrl.u32 %v1820, 16
      %v2009 = vrot.slane %v2007, 4
      %v2010 = vor.u32 %v2009, %v2005
      %v2011 = vrot.slane %v2010, 4
      %v2013 = vshll.u32 %v1821, 16
      %v2015 = vrot.slane %v2013, 5
      %v2016 = vsel %vm332, %v2011, %v2015
      %v2018 = vshrl.u32 %v1822, 16
      %v2020 = vrot.slane %v2018, 4
      %v2021 = vshll.u32 %v1822, 16
      %v2023 = vrot.slane %v2021, 5
      %v2024 = vor.u32 %v2020, %v2023
      %v2025 = vrot.slane %v2024, 4
      %v2027 = vshll.u32 %v1823, 16
      %v2029 = vrot.slane %v2027, 5
      %v2030 = vsel %vm332, %v2025, %v2029
      %v2031 = vshrl.u32 %v1823, 16
      %v2033 = vrot.slane %v2031, 4
      %v2034 = vor.u32 %v2033, %v2029
      %v2035 = vrot.slane %v2034, 4
      %v2037 = vshll.u32 %v1824, 16
      %v2039 = vrot.slane %v2037, 5
      %v2040 = vsel %vm332, %v2035, %v2039
      %v2042 = vshrl.u32 %v1825, 16
      %v2044 = vrot.slane %v2042, 4
      %v2045 = vshll.u32 %v1825, 16
      %v2047 = vrot.slane %v2045, 5
      %v2048 = vor.u32 %v2044, %v2047
      %v2049 = vrot.slane %v2048, 4
      %v2051 = vshll.u32 %v1826, 16
      %v2053 = vrot.slane %v2051, 5
      %v2054 = vsel %vm332, %v2049, %v2053
      %v2055 = vshrl.u32 %v1826, 16
      %v2057 = vrot.slane %v2055, 4
      %v2058 = vor.u32 %v2057, %v2053
      %v2059 = vrot.slane %v2058, 4
      %v2061 = vshll.u32 %v1827, 16
      %v2063 = vrot.slane %v2061, 5
      %v2064 = vsel %vm332, %v2059, %v2063
      %v2066 = vshrl.u32 %v1828, 16
      %v2068 = vrot.slane %v2066, 4
      %v2069 = vshll.u32 %v1828, 16
      %v2071 = vrot.slane %v2069, 5
      %v2072 = vor.u32 %v2068, %v2071
      %v2073 = vrot.slane %v2072, 4
      %v2075 = vshll.u32 %v1829, 16
      %v2077 = vrot.slane %v2075, 5
      %v2078 = vsel %vm332, %v2073, %v2077
      %v2079 = vshrl.u32 %v1829, 16
      %v2081 = vrot.slane %v2079, 4
      %v2082 = vor.u32 %v2081, %v2077
      %v2083 = vrot.slane %v2082, 4
      %v2085 = vshll.u32 %v1830, 16
      %v2087 = vrot.slane %v2085, 5
      %v2088 = vsel %vm332, %v2083, %v2087
      %v2090 = vshrl.u32 %v1831, 16
      %v2092 = vrot.slane %v2090, 4
      %v2093 = vshll.u32 %v1831, 16
      %v2095 = vrot.slane %v2093, 5
      %v2096 = vor.u32 %v2092, %v2095
      %v2097 = vrot.slane %v2096, 4
      %v2099 = vshll.u32 %v1832, 16
      %v2101 = vrot.slane %v2099, 5
      %v2102 = vsel %vm332, %v2097, %v2101
      %v2103 = vshrl.u32 %v1832, 16
      %v2105 = vrot.slane %v2103, 4
      %v2106 = vor.u32 %v2105, %v2101
      %v2107 = vrot.slane %v2106, 4
      %v2109 = vshll.u32 %v1833, 16
      %v2111 = vrot.slane %v2109, 5
      %v2112 = vsel %vm332, %v2107, %v2111
      %v2114 = vshrl.u32 %v1834, 16
      %v2116 = vrot.slane %v2114, 4
      %v2117 = vshll.u32 %v1834, 16
      %v2119 = vrot.slane %v2117, 5
      %v2120 = vor.u32 %v2116, %v2119
      %v2121 = vrot.slane %v2120, 4
      %v2123 = vshll.u32 %v1835, 16
      %v2125 = vrot.slane %v2123, 5
      %v2126 = vsel %vm332, %v2121, %v2125
      %v2127 = vshrl.u32 %v1835, 16
      %v2129 = vrot.slane %v2127, 4
      %v2130 = vor.u32 %v2129, %v2125
      %v2131 = vrot.slane %v2130, 4
      %v2133 = vshll.u32 %v1836, 16
      %v2135 = vrot.slane %v2133, 5
      %v2136 = vsel %vm332, %v2131, %v2135
      %v2138 = vshrl.u32 %v1837, 16
      %v2140 = vrot.slane %v2138, 4
      %v2141 = vshll.u32 %v1837, 16
      %v2143 = vrot.slane %v2141, 5
      %v2144 = vor.u32 %v2140, %v2143
      %v2145 = vrot.slane %v2144, 4
      %v2147 = vshll.u32 %v1838, 16
      %v2149 = vrot.slane %v2147, 5
      %v2150 = vsel %vm332, %v2145, %v2149
      %v2151 = vshrl.u32 %v1838, 16
      %v2153 = vrot.slane %v2151, 4
      %v2154 = vor.u32 %v2153, %v2149
      %v2155 = vrot.slane %v2154, 4
      %v2157 = vshll.u32 %v1839, 16
      %v2159 = vrot.slane %v2157, 5
      %v2160 = vsel %vm332, %v2155, %v2159
      %v2162 = vshrl.u32 %v1840, 16
      %v2164 = vrot.slane %v2162, 4
      %v2165 = vshll.u32 %v1840, 16
      %v2167 = vrot.slane %v2165, 5
      %v2168 = vor.u32 %v2164, %v2167
      %v2169 = vrot.slane %v2168, 4
      %v2171 = vshll.u32 %v1841, 16
      %v2173 = vrot.slane %v2171, 5
      %v2174 = vsel %vm332, %v2169, %v2173
      %v2175 = vshrl.u32 %v1841, 16
      %v2177 = vrot.slane %v2175, 4
      %v2178 = vor.u32 %v2177, %v2173
      %v2179 = vrot.slane %v2178, 4
      %v2181 = vshll.u32 %v1842, 16
      %v2183 = vrot.slane %v2181, 5
      %v2184 = vsel %vm332, %v2179, %v2183
      %v2186 = vshrl.u32 %v1843, 16
      %v2188 = vrot.slane %v2186, 4
      %v2189 = vshll.u32 %v1843, 16
      %v2191 = vrot.slane %v2189, 5
      %v2192 = vor.u32 %v2188, %v2191
      %v2193 = vrot.slane %v2192, 4
      %v2195 = vshll.u32 %v1844, 16
      %v2197 = vrot.slane %v2195, 5
      %v2198 = vsel %vm332, %v2193, %v2197
      %v2199 = vshrl.u32 %v1844, 16
      %v2201 = vrot.slane %v2199, 4
      %v2202 = vor.u32 %v2201, %v2197
      %v2203 = vrot.slane %v2202, 4
      %v2205 = vshll.u32 %v1845, 16
      %v2207 = vrot.slane %v2205, 5
      %v2208 = vsel %vm332, %v2203, %v2207
      %v2210 = vshrl.u32 %v1846, 16
      %v2212 = vrot.slane %v2210, 4
      %v2213 = vshll.u32 %v1846, 16
      %v2215 = vrot.slane %v2213, 5
      %v2216 = vor.u32 %v2212, %v2215
      %v2217 = vrot.slane %v2216, 4
      %v2219 = vshll.u32 %v1847, 16
      %v2221 = vrot.slane %v2219, 5
      %v2222 = vsel %vm332, %v2217, %v2221
      %v2223 = vshrl.u32 %v1847, 16
      %v2225 = vrot.slane %v2223, 4
      %v2226 = vor.u32 %v2225, %v2221
      %v2227 = vrot.slane %v2226, 4
      %v2229 = vshll.u32 %v1848, 16
      %v2231 = vrot.slane %v2229, 5
      %v2232 = vsel %vm332, %v2227, %v2231
      %s2233 = scalar_lea.vmem %s260, 16
      %v2234 = vld [vmem:[%s2233] sm:$0xf]
      %v2235 = vunpack.c.l.b16 %v1862
      %v2236 = vunpack.c.l.b16 %v1872
      %v2237 = vunpack.c.l.b16 %v1886
      %v2238 = vunpack.c.l.b16 %v1896
      %v2239 = vunpack.c.l.b16 %v1910
      %v2240 = vunpack.c.l.b16 %v1920
      %v2241 = vunpack.c.l.b16 %v1934
      %v2242 = vunpack.c.l.b16 %v1944
      %v2243 = vunpack.c.l.b16 %v1958
      %v2244 = vunpack.c.l.b16 %v1968
      %v2245 = vunpack.c.l.b16 %v1982
      %v2246 = vunpack.c.l.b16 %v1992
      %v2247 = vunpack.c.l.b16 %v2006
      %v2248 = vunpack.c.l.b16 %v2016
      %v2249 = vunpack.c.l.b16 %v2030
      %v2250 = vunpack.c.l.b16 %v2040
      %v2251 = vunpack.c.l.b16 %v2054
      %v2252 = vunpack.c.l.b16 %v2064
      %v2253 = vunpack.c.l.b16 %v2078
      %v2254 = vunpack.c.l.b16 %v2088
      %v2255 = vunpack.c.l.b16 %v2102
      %v2256 = vunpack.c.l.b16 %v2112
      %v2257 = vunpack.c.l.b16 %v2126
      %v2258 = vunpack.c.l.b16 %v2136
      %v2259 = vunpack.c.l.b16 %v2150
      %v2260 = vunpack.c.l.b16 %v2160
      %v2261 = vunpack.c.l.b16 %v2174
      %v2262 = vunpack.c.l.b16 %v2184
      %v2263 = vunpack.c.l.b16 %v2198
      %v2264 = vunpack.c.l.b16 %v2208
      %v2265 = vunpack.c.l.b16 %v2222
      %v2266 = vunpack.c.l.b16 %v2232
      %v2267 = vpack.c.b16 %v2236, %v2235
      %v2268 = vpack.c.b16 %v2238, %v2237
      %v2269 = vpack.c.b16 %v2240, %v2239
      %v2270 = vpack.c.b16 %v2242, %v2241
      %v2271 = vpack.c.b16 %v2244, %v2243
      %v2272 = vpack.c.b16 %v2246, %v2245
      %v2273 = vpack.c.b16 %v2248, %v2247
      %v2274 = vpack.c.b16 %v2250, %v2249
      %v2275 = vpack.c.b16 %v2252, %v2251
      %v2276 = vpack.c.b16 %v2254, %v2253
      %v2277 = vpack.c.b16 %v2256, %v2255
      %v2278 = vpack.c.b16 %v2258, %v2257
      %v2279 = vpack.c.b16 %v2260, %v2259
      %v2280 = vpack.c.b16 %v2262, %v2261
      %v2281 = vpack.c.b16 %v2264, %v2263
      %v2282 = vpack.c.b16 %v2266, %v2265
      %v2284 = vsel %vm767, %v2267, 0
      %v2287 = vsel %vm767, %v2268, 0
      %v2290 = vsel %vm767, %v2269, 0
      %v2293 = vsel %vm767, %v2270, 0
      %v2296 = vsel %vm767, %v2271, 0
      %v2299 = vsel %vm767, %v2272, 0
      %v2302 = vsel %vm767, %v2273, 0
      %v2305 = vsel %vm767, %v2274, 0
      %v2308 = vsel %vm767, %v2275, 0
      %v2311 = vsel %vm767, %v2276, 0
      %v2314 = vsel %vm767, %v2277, 0
      %v2317 = vsel %vm767, %v2278, 0
      %v2320 = vsel %vm767, %v2279, 0
      %v2323 = vsel %vm767, %v2280, 0
      %v2326 = vsel %vm767, %v2281, 0
      %v2329 = vsel %vm767, %v2282, 0
      %v2332 = vsel %vm816, %v2234, 0
      %2334 = vmatpush.bf16.msra.mxu0 0
      %2335 = vmatpush.bf16.msra.mxu0 0
      %2336 = vmatpush.bf16.msra.mxu0 0
      %2337 = vmatpush.bf16.msra.mxu0 0
      %2338 = vmatpush.bf16.msra.mxu0 0
      %2339 = vmatpush.bf16.msra.mxu0 0
      %2340 = vmatpush.bf16.msra.mxu0 0
      %2341 = vmatpush.bf16.msra.mxu0 %v2332
      %2342 = vmatmul.bf16.gmra.mxu0 %v2284
      %v2343 = vpop.f32.mrf.mxu0
      %v2344 = vadd.f32 0.0, %v2343
      %v2345 = vpop.f32.mrf.mxu0
      %v2346 = vadd.f32 0.0, %v2345
      %2347 = vmatmul.bf16.gmra.mxu0 %v2287
      %v2348 = vpop.f32.mrf.mxu0
      %v2349 = vadd.f32 0.0, %v2348
      %v2350 = vpop.f32.mrf.mxu0
      %v2351 = vadd.f32 0.0, %v2350
      %2352 = vmatmul.bf16.gmra.mxu0 %v2290
      %v2353 = vpop.f32.mrf.mxu0
      %v2354 = vadd.f32 0.0, %v2353
      %v2355 = vpop.f32.mrf.mxu0
      %v2356 = vadd.f32 0.0, %v2355
      %2357 = vmatmul.bf16.gmra.mxu0 %v2293
      %v2358 = vpop.f32.mrf.mxu0
      %v2359 = vadd.f32 0.0, %v2358
      %v2360 = vpop.f32.mrf.mxu0
      %v2361 = vadd.f32 0.0, %v2360
      %2362 = vmatmul.bf16.gmra.mxu0 %v2296
      %v2363 = vpop.f32.mrf.mxu0
      %v2364 = vadd.f32 0.0, %v2363
      %v2365 = vpop.f32.mrf.mxu0
      %v2366 = vadd.f32 0.0, %v2365
      %2367 = vmatmul.bf16.gmra.mxu0 %v2299
      %v2368 = vpop.f32.mrf.mxu0
      %v2369 = vadd.f32 0.0, %v2368
      %v2370 = vpop.f32.mrf.mxu0
      %v2371 = vadd.f32 0.0, %v2370
      %2372 = vmatmul.bf16.gmra.mxu0 %v2302
      %v2373 = vpop.f32.mrf.mxu0
      %v2374 = vadd.f32 0.0, %v2373
      %v2375 = vpop.f32.mrf.mxu0
      %v2376 = vadd.f32 0.0, %v2375
      %2377 = vmatmul.bf16.gmra.mxu0 %v2305
      %v2378 = vpop.f32.mrf.mxu0
      %v2379 = vadd.f32 0.0, %v2378
      %v2380 = vpop.f32.mrf.mxu0
      %v2381 = vadd.f32 0.0, %v2380
      %2382 = vmatmul.bf16.gmra.mxu0 %v2308
      %v2383 = vpop.f32.mrf.mxu0
      %v2384 = vadd.f32 0.0, %v2383
      %v2385 = vpop.f32.mrf.mxu0
      %v2386 = vadd.f32 0.0, %v2385
      %2387 = vmatmul.bf16.gmra.mxu0 %v2311
      %v2388 = vpop.f32.mrf.mxu0
      %v2389 = vadd.f32 0.0, %v2388
      %v2390 = vpop.f32.mrf.mxu0
      %v2391 = vadd.f32 0.0, %v2390
      %2392 = vmatmul.bf16.gmra.mxu0 %v2314
      %v2393 = vpop.f32.mrf.mxu0
      %v2394 = vadd.f32 0.0, %v2393
      %v2395 = vpop.f32.mrf.mxu0
      %v2396 = vadd.f32 0.0, %v2395
      %2397 = vmatmul.bf16.gmra.mxu0 %v2317
      %v2398 = vpop.f32.mrf.mxu0
      %v2399 = vadd.f32 0.0, %v2398
      %v2400 = vpop.f32.mrf.mxu0
      %v2401 = vadd.f32 0.0, %v2400
      %2402 = vmatmul.bf16.gmra.mxu0 %v2320
      %v2403 = vpop.f32.mrf.mxu0
      %v2404 = vadd.f32 0.0, %v2403
      %v2405 = vpop.f32.mrf.mxu0
      %v2406 = vadd.f32 0.0, %v2405
      %2407 = vmatmul.bf16.gmra.mxu0 %v2323
      %v2408 = vpop.f32.mrf.mxu0
      %v2409 = vadd.f32 0.0, %v2408
      %v2410 = vpop.f32.mrf.mxu0
      %v2411 = vadd.f32 0.0, %v2410
      %2412 = vmatmul.bf16.gmra.mxu0 %v2326
      %v2413 = vpop.f32.mrf.mxu0
      %v2414 = vadd.f32 0.0, %v2413
      %v2415 = vpop.f32.mrf.mxu0
      %v2416 = vadd.f32 0.0, %v2415
      %2417 = vmatmul.bf16.gmra.mxu0 %v2329
      %v2418 = vpop.f32.mrf.mxu0
      %v2419 = vadd.f32 0.0, %v2418
      %v2420 = vpop.f32.mrf.mxu0
      %v2421 = vadd.f32 0.0, %v2420
      %2422 = vdwg.mxu0
      %v2423 = vadd.f32 %v1769, %v2344
      %v2424 = vadd.f32 %v1770, %v2346
      %v2425 = vadd.f32 %v1771, %v2349
      %v2426 = vadd.f32 %v1772, %v2351
      %v2427 = vadd.f32 %v1773, %v2354
      %v2428 = vadd.f32 %v1774, %v2356
      %v2429 = vadd.f32 %v1775, %v2359
      %v2430 = vadd.f32 %v1776, %v2361
      %v2431 = vadd.f32 %v1777, %v2364
      %v2432 = vadd.f32 %v1778, %v2366
      %v2433 = vadd.f32 %v1779, %v2369
      %v2434 = vadd.f32 %v1780, %v2371
      %v2435 = vadd.f32 %v1781, %v2374
      %v2436 = vadd.f32 %v1782, %v2376
      %v2437 = vadd.f32 %v1783, %v2379
      %v2438 = vadd.f32 %v1784, %v2381
      %v2439 = vadd.f32 %v1785, %v2384
      %v2440 = vadd.f32 %v1786, %v2386
      %v2441 = vadd.f32 %v1787, %v2389
      %v2442 = vadd.f32 %v1788, %v2391
      %v2443 = vadd.f32 %v1789, %v2394
      %v2444 = vadd.f32 %v1790, %v2396
      %v2445 = vadd.f32 %v1791, %v2399
      %v2446 = vadd.f32 %v1792, %v2401
      %v2447 = vadd.f32 %v1793, %v2404
      %v2448 = vadd.f32 %v1794, %v2406
      %v2449 = vadd.f32 %v1795, %v2409
      %v2450 = vadd.f32 %v1796, %v2411
      %v2451 = vadd.f32 %v1797, %v2414
      %v2452 = vadd.f32 %v1798, %v2416
      %v2453 = vadd.f32 %v1799, %v2419
      %v2454 = vadd.f32 %v1800, %v2421
      %v2455 = vld [vmem:[%s1514] sm:$0xe]
      %v2456 = vld [vmem:[%s1514 + $0xc] sm:$0xe]
      %v2457 = vld [vmem:[%s1514 + $0x18] sm:$0xe]
      %v2458 = vld [vmem:[%s1514 + $0x24] sm:$0xe]
      %v2459 = vld [vmem:[%s1514 + $0x30] sm:$0xe]
      %v2460 = vld [vmem:[%s1514 + $0x3c] sm:$0xe]
      %v2461 = vld [vmem:[%s1514 + $0x48] sm:$0xe]
      %v2462 = vld [vmem:[%s1514 + $0x54] sm:$0xe]
      %v2463 = vld [vmem:[%s1514 + $0x60] sm:$0xe]
      %v2464 = vld [vmem:[%s1514 + $0x6c] sm:$0xe]
      %v2465 = vld [vmem:[%s1514 + $0x78] sm:$0xe]
      %v2466 = vld [vmem:[%s1514 + $0x84] sm:$0xe]
      %v2467 = vld [vmem:[%s1514 + $0x90] sm:$0xe]
      %v2468 = vld [vmem:[%s1514 + $0x9c] sm:$0xe]
      %v2469 = vld [vmem:[%s1514 + $0xa8] sm:$0xe]
      %v2470 = vld [vmem:[%s1514 + $0xb4] sm:$0xe]
      %v2519 = vrot.slane %v2455, 5
      %v2520 = vrot.slane %v2519, 4
      %v2521 = vrot.slane %v1802, 5
      %v2522 = vsel %vm1179, %v2520, %v2521
      %v2523 = vrot.slane %v2521, 4
      %v2524 = vrot.slane %v1803, 5
      %v2525 = vsel %vm1179, %v2523, %v2524
      %v2526 = vrot.slane %v2456, 5
      %v2527 = vrot.slane %v2526, 4
      %v2528 = vrot.slane %v1805, 5
      %v2529 = vsel %vm1179, %v2527, %v2528
      %v2530 = vrot.slane %v2528, 4
      %v2531 = vrot.slane %v1806, 5
      %v2532 = vsel %vm1179, %v2530, %v2531
      %v2533 = vrot.slane %v2457, 5
      %v2534 = vrot.slane %v2533, 4
      %v2535 = vrot.slane %v1808, 5
      %v2536 = vsel %vm1179, %v2534, %v2535
      %v2537 = vrot.slane %v2535, 4
      %v2538 = vrot.slane %v1809, 5
      %v2539 = vsel %vm1179, %v2537, %v2538
      %v2540 = vrot.slane %v2458, 5
      %v2541 = vrot.slane %v2540, 4
      %v2542 = vrot.slane %v1811, 5
      %v2543 = vsel %vm1179, %v2541, %v2542
      %v2544 = vrot.slane %v2542, 4
      %v2545 = vrot.slane %v1812, 5
      %v2546 = vsel %vm1179, %v2544, %v2545
      %v2547 = vrot.slane %v2459, 5
      %v2548 = vrot.slane %v2547, 4
      %v2549 = vrot.slane %v1814, 5
      %v2550 = vsel %vm1179, %v2548, %v2549
      %v2551 = vrot.slane %v2549, 4
      %v2552 = vrot.slane %v1815, 5
      %v2553 = vsel %vm1179, %v2551, %v2552
      %v2554 = vrot.slane %v2460, 5
      %v2555 = vrot.slane %v2554, 4
      %v2556 = vrot.slane %v1817, 5
      %v2557 = vsel %vm1179, %v2555, %v2556
      %v2558 = vrot.slane %v2556, 4
      %v2559 = vrot.slane %v1818, 5
      %v2560 = vsel %vm1179, %v2558, %v2559
      %v2561 = vrot.slane %v2461, 5
      %v2562 = vrot.slane %v2561, 4
      %v2563 = vrot.slane %v1820, 5
      %v2564 = vsel %vm1179, %v2562, %v2563
      %v2565 = vrot.slane %v2563, 4
      %v2566 = vrot.slane %v1821, 5
      %v2567 = vsel %vm1179, %v2565, %v2566
      %v2568 = vrot.slane %v2462, 5
      %v2569 = vrot.slane %v2568, 4
      %v2570 = vrot.slane %v1823, 5
      %v2571 = vsel %vm1179, %v2569, %v2570
      %v2572 = vrot.slane %v2570, 4
      %v2573 = vrot.slane %v1824, 5
      %v2574 = vsel %vm1179, %v2572, %v2573
      %v2575 = vrot.slane %v2463, 5
      %v2576 = vrot.slane %v2575, 4
      %v2577 = vrot.slane %v1826, 5
      %v2578 = vsel %vm1179, %v2576, %v2577
      %v2579 = vrot.slane %v2577, 4
      %v2580 = vrot.slane %v1827, 5
      %v2581 = vsel %vm1179, %v2579, %v2580
      %v2582 = vrot.slane %v2464, 5
      %v2583 = vrot.slane %v2582, 4
      %v2584 = vrot.slane %v1829, 5
      %v2585 = vsel %vm1179, %v2583, %v2584
      %v2586 = vrot.slane %v2584, 4
      %v2587 = vrot.slane %v1830, 5
      %v2588 = vsel %vm1179, %v2586, %v2587
      %v2589 = vrot.slane %v2465, 5
      %v2590 = vrot.slane %v2589, 4
      %v2591 = vrot.slane %v1832, 5
      %v2592 = vsel %vm1179, %v2590, %v2591
      %v2593 = vrot.slane %v2591, 4
      %v2594 = vrot.slane %v1833, 5
      %v2595 = vsel %vm1179, %v2593, %v2594
      %v2596 = vrot.slane %v2466, 5
      %v2597 = vrot.slane %v2596, 4
      %v2598 = vrot.slane %v1835, 5
      %v2599 = vsel %vm1179, %v2597, %v2598
      %v2600 = vrot.slane %v2598, 4
      %v2601 = vrot.slane %v1836, 5
      %v2602 = vsel %vm1179, %v2600, %v2601
      %v2603 = vrot.slane %v2467, 5
      %v2604 = vrot.slane %v2603, 4
      %v2605 = vrot.slane %v1838, 5
      %v2606 = vsel %vm1179, %v2604, %v2605
      %v2607 = vrot.slane %v2605, 4
      %v2608 = vrot.slane %v1839, 5
      %v2609 = vsel %vm1179, %v2607, %v2608
      %v2610 = vrot.slane %v2468, 5
      %v2611 = vrot.slane %v2610, 4
      %v2612 = vrot.slane %v1841, 5
      %v2613 = vsel %vm1179, %v2611, %v2612
      %v2614 = vrot.slane %v2612, 4
      %v2615 = vrot.slane %v1842, 5
      %v2616 = vsel %vm1179, %v2614, %v2615
      %v2617 = vrot.slane %v2469, 5
      %v2618 = vrot.slane %v2617, 4
      %v2619 = vrot.slane %v1844, 5
      %v2620 = vsel %vm1179, %v2618, %v2619
      %v2621 = vrot.slane %v2619, 4
      %v2622 = vrot.slane %v1845, 5
      %v2623 = vsel %vm1179, %v2621, %v2622
      %v2624 = vrot.slane %v2470, 5
      %v2625 = vrot.slane %v2624, 4
      %v2626 = vrot.slane %v1847, 5
      %v2627 = vsel %vm1179, %v2625, %v2626
      %v2628 = vrot.slane %v2626, 4
      %v2629 = vrot.slane %v1848, 5
      %v2630 = vsel %vm1179, %v2628, %v2629
      %s2631 = scalar_lea.vmem %s260, 20
      %v2632 = vld [vmem:[%s2631] sm:$0xf]
      %v2633 = vunpack.c.l.b16 %v2522
      %v2634 = vunpack.c.l.b16 %v2525
      %v2635 = vunpack.c.l.b16 %v2529
      %v2636 = vunpack.c.l.b16 %v2532
      %v2637 = vunpack.c.l.b16 %v2536
      %v2638 = vunpack.c.l.b16 %v2539
      %v2639 = vunpack.c.l.b16 %v2543
      %v2640 = vunpack.c.l.b16 %v2546
      %v2641 = vunpack.c.l.b16 %v2550
      %v2642 = vunpack.c.l.b16 %v2553
      %v2643 = vunpack.c.l.b16 %v2557
      %v2644 = vunpack.c.l.b16 %v2560
      %v2645 = vunpack.c.l.b16 %v2564
      %v2646 = vunpack.c.l.b16 %v2567
      %v2647 = vunpack.c.l.b16 %v2571
      %v2648 = vunpack.c.l.b16 %v2574
      %v2649 = vunpack.c.l.b16 %v2578
      %v2650 = vunpack.c.l.b16 %v2581
      %v2651 = vunpack.c.l.b16 %v2585
      %v2652 = vunpack.c.l.b16 %v2588
      %v2653 = vunpack.c.l.b16 %v2592
      %v2654 = vunpack.c.l.b16 %v2595
      %v2655 = vunpack.c.l.b16 %v2599
      %v2656 = vunpack.c.l.b16 %v2602
      %v2657 = vunpack.c.l.b16 %v2606
      %v2658 = vunpack.c.l.b16 %v2609
      %v2659 = vunpack.c.l.b16 %v2613
      %v2660 = vunpack.c.l.b16 %v2616
      %v2661 = vunpack.c.l.b16 %v2620
      %v2662 = vunpack.c.l.b16 %v2623
      %v2663 = vunpack.c.l.b16 %v2627
      %v2664 = vunpack.c.l.b16 %v2630
      %v2665 = vpack.c.b16 %v2634, %v2633
      %v2666 = vpack.c.b16 %v2636, %v2635
      %v2667 = vpack.c.b16 %v2638, %v2637
      %v2668 = vpack.c.b16 %v2640, %v2639
      %v2669 = vpack.c.b16 %v2642, %v2641
      %v2670 = vpack.c.b16 %v2644, %v2643
      %v2671 = vpack.c.b16 %v2646, %v2645
      %v2672 = vpack.c.b16 %v2648, %v2647
      %v2673 = vpack.c.b16 %v2650, %v2649
      %v2674 = vpack.c.b16 %v2652, %v2651
      %v2675 = vpack.c.b16 %v2654, %v2653
      %v2676 = vpack.c.b16 %v2656, %v2655
      %v2677 = vpack.c.b16 %v2658, %v2657
      %v2678 = vpack.c.b16 %v2660, %v2659
      %v2679 = vpack.c.b16 %v2662, %v2661
      %v2680 = vpack.c.b16 %v2664, %v2663
      %v2682 = vsel %vm767, %v2665, 0
      %v2685 = vsel %vm767, %v2666, 0
      %v2688 = vsel %vm767, %v2667, 0
      %v2691 = vsel %vm767, %v2668, 0
      %v2694 = vsel %vm767, %v2669, 0
      %v2697 = vsel %vm767, %v2670, 0
      %v2700 = vsel %vm767, %v2671, 0
      %v2703 = vsel %vm767, %v2672, 0
      %v2706 = vsel %vm767, %v2673, 0
      %v2709 = vsel %vm767, %v2674, 0
      %v2712 = vsel %vm767, %v2675, 0
      %v2715 = vsel %vm767, %v2676, 0
      %v2718 = vsel %vm767, %v2677, 0
      %v2721 = vsel %vm767, %v2678, 0
      %v2724 = vsel %vm767, %v2679, 0
      %v2727 = vsel %vm767, %v2680, 0
      %v2730 = vsel %vm816, %v2632, 0
      %2732 = vmatpush.bf16.msra.mxu0 0
      %2733 = vmatpush.bf16.msra.mxu0 0
      %2734 = vmatpush.bf16.msra.mxu0 0
      %2735 = vmatpush.bf16.msra.mxu0 0
      %2736 = vmatpush.bf16.msra.mxu0 0
      %2737 = vmatpush.bf16.msra.mxu0 0
      %2738 = vmatpush.bf16.msra.mxu0 0
      %2739 = vmatpush.bf16.msra.mxu0 %v2730
      %2740 = vmatmul.bf16.gmra.mxu0 %v2682
      %v2741 = vpop.f32.mrf.mxu0
      %v2742 = vadd.f32 0.0, %v2741
      %v2743 = vpop.f32.mrf.mxu0
      %v2744 = vadd.f32 0.0, %v2743
      %2745 = vmatmul.bf16.gmra.mxu0 %v2685
      %v2746 = vpop.f32.mrf.mxu0
      %v2747 = vadd.f32 0.0, %v2746
      %v2748 = vpop.f32.mrf.mxu0
      %v2749 = vadd.f32 0.0, %v2748
      %2750 = vmatmul.bf16.gmra.mxu0 %v2688
      %v2751 = vpop.f32.mrf.mxu0
      %v2752 = vadd.f32 0.0, %v2751
      %v2753 = vpop.f32.mrf.mxu0
      %v2754 = vadd.f32 0.0, %v2753
      %2755 = vmatmul.bf16.gmra.mxu0 %v2691
      %v2756 = vpop.f32.mrf.mxu0
      %v2757 = vadd.f32 0.0, %v2756
      %v2758 = vpop.f32.mrf.mxu0
      %v2759 = vadd.f32 0.0, %v2758
      %2760 = vmatmul.bf16.gmra.mxu0 %v2694
      %v2761 = vpop.f32.mrf.mxu0
      %v2762 = vadd.f32 0.0, %v2761
      %v2763 = vpop.f32.mrf.mxu0
      %v2764 = vadd.f32 0.0, %v2763
      %2765 = vmatmul.bf16.gmra.mxu0 %v2697
      %v2766 = vpop.f32.mrf.mxu0
      %v2767 = vadd.f32 0.0, %v2766
      %v2768 = vpop.f32.mrf.mxu0
      %v2769 = vadd.f32 0.0, %v2768
      %2770 = vmatmul.bf16.gmra.mxu0 %v2700
      %v2771 = vpop.f32.mrf.mxu0
      %v2772 = vadd.f32 0.0, %v2771
      %v2773 = vpop.f32.mrf.mxu0
      %v2774 = vadd.f32 0.0, %v2773
      %2775 = vmatmul.bf16.gmra.mxu0 %v2703
      %v2776 = vpop.f32.mrf.mxu0
      %v2777 = vadd.f32 0.0, %v2776
      %v2778 = vpop.f32.mrf.mxu0
      %v2779 = vadd.f32 0.0, %v2778
      %2780 = vmatmul.bf16.gmra.mxu0 %v2706
      %v2781 = vpop.f32.mrf.mxu0
      %v2782 = vadd.f32 0.0, %v2781
      %v2783 = vpop.f32.mrf.mxu0
      %v2784 = vadd.f32 0.0, %v2783
      %2785 = vmatmul.bf16.gmra.mxu0 %v2709
      %v2786 = vpop.f32.mrf.mxu0
      %v2787 = vadd.f32 0.0, %v2786
      %v2788 = vpop.f32.mrf.mxu0
      %v2789 = vadd.f32 0.0, %v2788
      %2790 = vmatmul.bf16.gmra.mxu0 %v2712
      %v2791 = vpop.f32.mrf.mxu0
      %v2792 = vadd.f32 0.0, %v2791
      %v2793 = vpop.f32.mrf.mxu0
      %v2794 = vadd.f32 0.0, %v2793
      %2795 = vmatmul.bf16.gmra.mxu0 %v2715
      %v2796 = vpop.f32.mrf.mxu0
      %v2797 = vadd.f32 0.0, %v2796
      %v2798 = vpop.f32.mrf.mxu0
      %v2799 = vadd.f32 0.0, %v2798
      %2800 = vmatmul.bf16.gmra.mxu0 %v2718
      %v2801 = vpop.f32.mrf.mxu0
      %v2802 = vadd.f32 0.0, %v2801
      %v2803 = vpop.f32.mrf.mxu0
      %v2804 = vadd.f32 0.0, %v2803
      %2805 = vmatmul.bf16.gmra.mxu0 %v2721
      %v2806 = vpop.f32.mrf.mxu0
      %v2807 = vadd.f32 0.0, %v2806
      %v2808 = vpop.f32.mrf.mxu0
      %v2809 = vadd.f32 0.0, %v2808
      %2810 = vmatmul.bf16.gmra.mxu0 %v2724
      %v2811 = vpop.f32.mrf.mxu0
      %v2812 = vadd.f32 0.0, %v2811
      %v2813 = vpop.f32.mrf.mxu0
      %v2814 = vadd.f32 0.0, %v2813
      %2815 = vmatmul.bf16.gmra.mxu0 %v2727
      %v2816 = vpop.f32.mrf.mxu0
      %v2817 = vadd.f32 0.0, %v2816
      %v2818 = vpop.f32.mrf.mxu0
      %v2819 = vadd.f32 0.0, %v2818
      %2820 = vdwg.mxu0
      %v2821 = vadd.f32 %v2423, %v2742
      %v2822 = vadd.f32 %v2424, %v2744
      %v2823 = vadd.f32 %v2425, %v2747
      %v2824 = vadd.f32 %v2426, %v2749
      %v2825 = vadd.f32 %v2427, %v2752
      %v2826 = vadd.f32 %v2428, %v2754
      %v2827 = vadd.f32 %v2429, %v2757
      %v2828 = vadd.f32 %v2430, %v2759
      %v2829 = vadd.f32 %v2431, %v2762
      %v2830 = vadd.f32 %v2432, %v2764
      %v2831 = vadd.f32 %v2433, %v2767
      %v2832 = vadd.f32 %v2434, %v2769
      %v2833 = vadd.f32 %v2435, %v2772
      %v2834 = vadd.f32 %v2436, %v2774
      %v2835 = vadd.f32 %v2437, %v2777
      %v2836 = vadd.f32 %v2438, %v2779
      %v2837 = vadd.f32 %v2439, %v2782
      %v2838 = vadd.f32 %v2440, %v2784
      %v2839 = vadd.f32 %v2441, %v2787
      %v2840 = vadd.f32 %v2442, %v2789
      %v2841 = vadd.f32 %v2443, %v2792
      %v2842 = vadd.f32 %v2444, %v2794
      %v2843 = vadd.f32 %v2445, %v2797
      %v2844 = vadd.f32 %v2446, %v2799
      %v2845 = vadd.f32 %v2447, %v2802
      %v2846 = vadd.f32 %v2448, %v2804
      %v2847 = vadd.f32 %v2449, %v2807
      %v2848 = vadd.f32 %v2450, %v2809
      %v2849 = vadd.f32 %v2451, %v2812
      %v2850 = vadd.f32 %v2452, %v2814
      %v2851 = vadd.f32 %v2453, %v2817
      %v2852 = vadd.f32 %v2454, %v2819
      %s2853 = scalar_lea.vmem %s256, 24
      %v2854 = vld [vmem:[%s2853] sm:$0xf]
      %v2855 = vld [vmem:[%s2853 + $0x4] sm:$0xf]
      %v2856 = vld [vmem:[%s2853 + $0xc] sm:$0xf]
      %v2857 = vld [vmem:[%s2853 + $0x10] sm:$0xf]
      %v2858 = vld [vmem:[%s2853 + $0x18] sm:$0xf]
      %v2859 = vld [vmem:[%s2853 + $0x1c] sm:$0xf]
      %v2860 = vld [vmem:[%s2853 + $0x24] sm:$0xf]
      %v2861 = vld [vmem:[%s2853 + $0x28] sm:$0xf]
      %v2862 = vld [vmem:[%s2853 + $0x30] sm:$0xf]
      %v2863 = vld [vmem:[%s2853 + $0x34] sm:$0xf]
      %v2864 = vld [vmem:[%s2853 + $0x3c] sm:$0xf]
      %v2865 = vld [vmem:[%s2853 + $0x40] sm:$0xf]
      %v2866 = vld [vmem:[%s2853 + $0x48] sm:$0xf]
      %v2867 = vld [vmem:[%s2853 + $0x4c] sm:$0xf]
      %v2868 = vld [vmem:[%s2853 + $0x54] sm:$0xf]
      %v2869 = vld [vmem:[%s2853 + $0x58] sm:$0xf]
      %v2870 = vld [vmem:[%s2853 + $0x60] sm:$0xf]
      %v2871 = vld [vmem:[%s2853 + $0x64] sm:$0xf]
      %v2872 = vld [vmem:[%s2853 + $0x6c] sm:$0xf]
      %v2873 = vld [vmem:[%s2853 + $0x70] sm:$0xf]
      %v2874 = vld [vmem:[%s2853 + $0x78] sm:$0xf]
      %v2875 = vld [vmem:[%s2853 + $0x7c] sm:$0xf]
      %v2876 = vld [vmem:[%s2853 + $0x84] sm:$0xf]
      %v2877 = vld [vmem:[%s2853 + $0x88] sm:$0xf]
      %v2878 = vld [vmem:[%s2853 + $0x90] sm:$0xf]
      %v2879 = vld [vmem:[%s2853 + $0x94] sm:$0xf]
      %v2880 = vld [vmem:[%s2853 + $0x9c] sm:$0xf]
      %v2881 = vld [vmem:[%s2853 + $0xa0] sm:$0xf]
      %v2882 = vld [vmem:[%s2853 + $0xa8] sm:$0xf]
      %v2883 = vld [vmem:[%s2853 + $0xac] sm:$0xf]
      %v2884 = vld [vmem:[%s2853 + $0xb4] sm:$0xf]
      %v2885 = vld [vmem:[%s2853 + $0xb8] sm:$0xf]
      %s2886 = scalar_lea.vmem %s260, 24
      %v2887 = vld [vmem:[%s2886] sm:$0xf]
      %v2920 = vunpack.c.l.b16 %v2854
      %v2921 = vunpack.c.l.b16 %v2855
      %v2922 = vunpack.c.l.b16 %v2856
      %v2923 = vunpack.c.l.b16 %v2857
      %v2924 = vunpack.c.l.b16 %v2858
      %v2925 = vunpack.c.l.b16 %v2859
      %v2926 = vunpack.c.l.b16 %v2860
      %v2927 = vunpack.c.l.b16 %v2861
      %v2928 = vunpack.c.l.b16 %v2862
      %v2929 = vunpack.c.l.b16 %v2863
      %v2930 = vunpack.c.l.b16 %v2864
      %v2931 = vunpack.c.l.b16 %v2865
      %v2932 = vunpack.c.l.b16 %v2866
      %v2933 = vunpack.c.l.b16 %v2867
      %v2934 = vunpack.c.l.b16 %v2868
      %v2935 = vunpack.c.l.b16 %v2869
      %v2936 = vunpack.c.l.b16 %v2870
      %v2937 = vunpack.c.l.b16 %v2871
      %v2938 = vunpack.c.l.b16 %v2872
      %v2939 = vunpack.c.l.b16 %v2873
      %v2940 = vunpack.c.l.b16 %v2874
      %v2941 = vunpack.c.l.b16 %v2875
      %v2942 = vunpack.c.l.b16 %v2876
      %v2943 = vunpack.c.l.b16 %v2877
      %v2944 = vunpack.c.l.b16 %v2878
      %v2945 = vunpack.c.l.b16 %v2879
      %v2946 = vunpack.c.l.b16 %v2880
      %v2947 = vunpack.c.l.b16 %v2881
      %v2948 = vunpack.c.l.b16 %v2882
      %v2949 = vunpack.c.l.b16 %v2883
      %v2950 = vunpack.c.l.b16 %v2884
      %v2951 = vunpack.c.l.b16 %v2885
      %v2952 = vpack.c.b16 %v2921, %v2920
      %v2953 = vpack.c.b16 %v2923, %v2922
      %v2954 = vpack.c.b16 %v2925, %v2924
      %v2955 = vpack.c.b16 %v2927, %v2926
      %v2956 = vpack.c.b16 %v2929, %v2928
      %v2957 = vpack.c.b16 %v2931, %v2930
      %v2958 = vpack.c.b16 %v2933, %v2932
      %v2959 = vpack.c.b16 %v2935, %v2934
      %v2960 = vpack.c.b16 %v2937, %v2936
      %v2961 = vpack.c.b16 %v2939, %v2938
      %v2962 = vpack.c.b16 %v2941, %v2940
      %v2963 = vpack.c.b16 %v2943, %v2942
      %v2964 = vpack.c.b16 %v2945, %v2944
      %v2965 = vpack.c.b16 %v2947, %v2946
      %v2966 = vpack.c.b16 %v2949, %v2948
      %v2967 = vpack.c.b16 %v2951, %v2950
      %v2969 = vsel %vm767, %v2952, 0
      %v2972 = vsel %vm767, %v2953, 0
      %v2975 = vsel %vm767, %v2954, 0
      %v2978 = vsel %vm767, %v2955, 0
      %v2981 = vsel %vm767, %v2956, 0
      %v2984 = vsel %vm767, %v2957, 0
      %v2987 = vsel %vm767, %v2958, 0
      %v2990 = vsel %vm767, %v2959, 0
      %v2993 = vsel %vm767, %v2960, 0
      %v2996 = vsel %vm767, %v2961, 0
      %v2999 = vsel %vm767, %v2962, 0
      %v3002 = vsel %vm767, %v2963, 0
      %v3005 = vsel %vm767, %v2964, 0
      %v3008 = vsel %vm767, %v2965, 0
      %v3011 = vsel %vm767, %v2966, 0
      %v3014 = vsel %vm767, %v2967, 0
      %v3017 = vsel %vm816, %v2887, 0
      %3019 = vmatpush.bf16.msra.mxu0 0
      %3020 = vmatpush.bf16.msra.mxu0 0
      %3021 = vmatpush.bf16.msra.mxu0 0
      %3022 = vmatpush.bf16.msra.mxu0 0
      %3023 = vmatpush.bf16.msra.mxu0 0
      %3024 = vmatpush.bf16.msra.mxu0 0
      %3025 = vmatpush.bf16.msra.mxu0 0
      %3026 = vmatpush.bf16.msra.mxu0 %v3017
      %3027 = vmatmul.bf16.gmra.mxu0 %v2969
      %v3028 = vpop.f32.mrf.mxu0
      %v3029 = vadd.f32 0.0, %v3028
      %v3030 = vpop.f32.mrf.mxu0
      %v3031 = vadd.f32 0.0, %v3030
      %3032 = vmatmul.bf16.gmra.mxu0 %v2972
      %v3033 = vpop.f32.mrf.mxu0
      %v3034 = vadd.f32 0.0, %v3033
      %v3035 = vpop.f32.mrf.mxu0
      %v3036 = vadd.f32 0.0, %v3035
      %3037 = vmatmul.bf16.gmra.mxu0 %v2975
      %v3038 = vpop.f32.mrf.mxu0
      %v3039 = vadd.f32 0.0, %v3038
      %v3040 = vpop.f32.mrf.mxu0
      %v3041 = vadd.f32 0.0, %v3040
      %3042 = vmatmul.bf16.gmra.mxu0 %v2978
      %v3043 = vpop.f32.mrf.mxu0
      %v3044 = vadd.f32 0.0, %v3043
      %v3045 = vpop.f32.mrf.mxu0
      %v3046 = vadd.f32 0.0, %v3045
      %3047 = vmatmul.bf16.gmra.mxu0 %v2981
      %v3048 = vpop.f32.mrf.mxu0
      %v3049 = vadd.f32 0.0, %v3048
      %v3050 = vpop.f32.mrf.mxu0
      %v3051 = vadd.f32 0.0, %v3050
      %3052 = vmatmul.bf16.gmra.mxu0 %v2984
      %v3053 = vpop.f32.mrf.mxu0
      %v3054 = vadd.f32 0.0, %v3053
      %v3055 = vpop.f32.mrf.mxu0
      %v3056 = vadd.f32 0.0, %v3055
      %3057 = vmatmul.bf16.gmra.mxu0 %v2987
      %v3058 = vpop.f32.mrf.mxu0
      %v3059 = vadd.f32 0.0, %v3058
      %v3060 = vpop.f32.mrf.mxu0
      %v3061 = vadd.f32 0.0, %v3060
      %3062 = vmatmul.bf16.gmra.mxu0 %v2990
      %v3063 = vpop.f32.mrf.mxu0
      %v3064 = vadd.f32 0.0, %v3063
      %v3065 = vpop.f32.mrf.mxu0
      %v3066 = vadd.f32 0.0, %v3065
      %3067 = vmatmul.bf16.gmra.mxu0 %v2993
      %v3068 = vpop.f32.mrf.mxu0
      %v3069 = vadd.f32 0.0, %v3068
      %v3070 = vpop.f32.mrf.mxu0
      %v3071 = vadd.f32 0.0, %v3070
      %3072 = vmatmul.bf16.gmra.mxu0 %v2996
      %v3073 = vpop.f32.mrf.mxu0
      %v3074 = vadd.f32 0.0, %v3073
      %v3075 = vpop.f32.mrf.mxu0
      %v3076 = vadd.f32 0.0, %v3075
      %3077 = vmatmul.bf16.gmra.mxu0 %v2999
      %v3078 = vpop.f32.mrf.mxu0
      %v3079 = vadd.f32 0.0, %v3078
      %v3080 = vpop.f32.mrf.mxu0
      %v3081 = vadd.f32 0.0, %v3080
      %3082 = vmatmul.bf16.gmra.mxu0 %v3002
      %v3083 = vpop.f32.mrf.mxu0
      %v3084 = vadd.f32 0.0, %v3083
      %v3085 = vpop.f32.mrf.mxu0
      %v3086 = vadd.f32 0.0, %v3085
      %3087 = vmatmul.bf16.gmra.mxu0 %v3005
      %v3088 = vpop.f32.mrf.mxu0
      %v3089 = vadd.f32 0.0, %v3088
      %v3090 = vpop.f32.mrf.mxu0
      %v3091 = vadd.f32 0.0, %v3090
      %3092 = vmatmul.bf16.gmra.mxu0 %v3008
      %v3093 = vpop.f32.mrf.mxu0
      %v3094 = vadd.f32 0.0, %v3093
      %v3095 = vpop.f32.mrf.mxu0
      %v3096 = vadd.f32 0.0, %v3095
      %3097 = vmatmul.bf16.gmra.mxu0 %v3011
      %v3098 = vpop.f32.mrf.mxu0
      %v3099 = vadd.f32 0.0, %v3098
      %v3100 = vpop.f32.mrf.mxu0
      %v3101 = vadd.f32 0.0, %v3100
      %3102 = vmatmul.bf16.gmra.mxu0 %v3014
      %v3103 = vpop.f32.mrf.mxu0
      %v3104 = vadd.f32 0.0, %v3103
      %v3105 = vpop.f32.mrf.mxu0
      %v3106 = vadd.f32 0.0, %v3105
      %3107 = vdwg.mxu0
      %v3108 = vadd.f32 %v2821, %v3029
      %v3109 = vadd.f32 %v2822, %v3031
      %v3110 = vadd.f32 %v2823, %v3034
      %v3111 = vadd.f32 %v2824, %v3036
      %v3112 = vadd.f32 %v2825, %v3039
      %v3113 = vadd.f32 %v2826, %v3041
      %v3114 = vadd.f32 %v2827, %v3044
      %v3115 = vadd.f32 %v2828, %v3046
      %v3116 = vadd.f32 %v2829, %v3049
      %v3117 = vadd.f32 %v2830, %v3051
      %v3118 = vadd.f32 %v2831, %v3054
      %v3119 = vadd.f32 %v2832, %v3056
      %v3120 = vadd.f32 %v2833, %v3059
      %v3121 = vadd.f32 %v2834, %v3061
      %v3122 = vadd.f32 %v2835, %v3064
      %v3123 = vadd.f32 %v2836, %v3066
      %v3124 = vadd.f32 %v2837, %v3069
      %v3125 = vadd.f32 %v2838, %v3071
      %v3126 = vadd.f32 %v2839, %v3074
      %v3127 = vadd.f32 %v2840, %v3076
      %v3128 = vadd.f32 %v2841, %v3079
      %v3129 = vadd.f32 %v2842, %v3081
      %v3130 = vadd.f32 %v2843, %v3084
      %v3131 = vadd.f32 %v2844, %v3086
      %v3132 = vadd.f32 %v2845, %v3089
      %v3133 = vadd.f32 %v2846, %v3091
      %v3134 = vadd.f32 %v2847, %v3094
      %v3135 = vadd.f32 %v2848, %v3096
      %v3136 = vadd.f32 %v2849, %v3099
      %v3137 = vadd.f32 %v2850, %v3101
      %v3138 = vadd.f32 %v2851, %v3104
      %v3139 = vadd.f32 %v2852, %v3106
      %v3140 = vld [vmem:[%s2853] sm:$0xf]
      %v3141 = vld [vmem:[%s2853 + $0x4] sm:$0xf]
      %v3142 = vld [vmem:[%s2853 + $0x8] sm:$0x1]
      %v3143 = vld [vmem:[%s2853 + $0xc] sm:$0xf]
      %v3144 = vld [vmem:[%s2853 + $0x10] sm:$0xf]
      %v3145 = vld [vmem:[%s2853 + $0x14] sm:$0x1]
      %v3146 = vld [vmem:[%s2853 + $0x18] sm:$0xf]
      %v3147 = vld [vmem:[%s2853 + $0x1c] sm:$0xf]
      %v3148 = vld [vmem:[%s2853 + $0x20] sm:$0x1]
      %v3149 = vld [vmem:[%s2853 + $0x24] sm:$0xf]
      %v3150 = vld [vmem:[%s2853 + $0x28] sm:$0xf]
      %v3151 = vld [vmem:[%s2853 + $0x2c] sm:$0x1]
      %v3152 = vld [vmem:[%s2853 + $0x30] sm:$0xf]
      %v3153 = vld [vmem:[%s2853 + $0x34] sm:$0xf]
      %v3154 = vld [vmem:[%s2853 + $0x38] sm:$0x1]
      %v3155 = vld [vmem:[%s2853 + $0x3c] sm:$0xf]
      %v3156 = vld [vmem:[%s2853 + $0x40] sm:$0xf]
      %v3157 = vld [vmem:[%s2853 + $0x44] sm:$0x1]
      %v3158 = vld [vmem:[%s2853 + $0x48] sm:$0xf]
      %v3159 = vld [vmem:[%s2853 + $0x4c] sm:$0xf]
      %v3160 = vld [vmem:[%s2853 + $0x50] sm:$0x1]
      %v3161 = vld [vmem:[%s2853 + $0x54] sm:$0xf]
      %v3162 = vld [vmem:[%s2853 + $0x58] sm:$0xf]
      %v3163 = vld [vmem:[%s2853 + $0x5c] sm:$0x1]
      %v3164 = vld [vmem:[%s2853 + $0x60] sm:$0xf]
      %v3165 = vld [vmem:[%s2853 + $0x64] sm:$0xf]
      %v3166 = vld [vmem:[%s2853 + $0x68] sm:$0x1]
      %v3167 = vld [vmem:[%s2853 + $0x6c] sm:$0xf]
      %v3168 = vld [vmem:[%s2853 + $0x70] sm:$0xf]
      %v3169 = vld [vmem:[%s2853 + $0x74] sm:$0x1]
      %v3170 = vld [vmem:[%s2853 + $0x78] sm:$0xf]
      %v3171 = vld [vmem:[%s2853 + $0x7c] sm:$0xf]
      %v3172 = vld [vmem:[%s2853 + $0x80] sm:$0x1]
      %v3173 = vld [vmem:[%s2853 + $0x84] sm:$0xf]
      %v3174 = vld [vmem:[%s2853 + $0x88] sm:$0xf]
      %v3175 = vld [vmem:[%s2853 + $0x8c] sm:$0x1]
      %v3176 = vld [vmem:[%s2853 + $0x90] sm:$0xf]
      %v3177 = vld [vmem:[%s2853 + $0x94] sm:$0xf]
      %v3178 = vld [vmem:[%s2853 + $0x98] sm:$0x1]
      %v3179 = vld [vmem:[%s2853 + $0x9c] sm:$0xf]
      %v3180 = vld [vmem:[%s2853 + $0xa0] sm:$0xf]
      %v3181 = vld [vmem:[%s2853 + $0xa4] sm:$0x1]
      %v3182 = vld [vmem:[%s2853 + $0xa8] sm:$0xf]
      %v3183 = vld [vmem:[%s2853 + $0xac] sm:$0xf]
      %v3184 = vld [vmem:[%s2853 + $0xb0] sm:$0x1]
      %v3185 = vld [vmem:[%s2853 + $0xb4] sm:$0xf]
      %v3186 = vld [vmem:[%s2853 + $0xb8] sm:$0xf]
      %v3187 = vld [vmem:[%s2853 + $0xbc] sm:$0x1]
      %v3189 = vshrl.u32 %v3140, 16
      %v3191 = vrot.slane %v3189, 4
      %v3192 = vshll.u32 %v3140, 16
      %v3194 = vrot.slane %v3192, 5
      %v3195 = vor.u32 %v3191, %v3194
      %v3196 = vrot.slane %v3195, 4
      %v3198 = vshll.u32 %v3141, 16
      %v3200 = vrot.slane %v3198, 5
      %v3201 = vsel %vm332, %v3196, %v3200
      %v3202 = vshrl.u32 %v3141, 16
      %v3204 = vrot.slane %v3202, 4
      %v3205 = vor.u32 %v3204, %v3200
      %v3206 = vrot.slane %v3205, 4
      %v3208 = vshll.u32 %v3142, 16
      %v3210 = vrot.slane %v3208, 5
      %v3211 = vsel %vm332, %v3206, %v3210
      %v3213 = vshrl.u32 %v3143, 16
      %v3215 = vrot.slane %v3213, 4
      %v3216 = vshll.u32 %v3143, 16
      %v3218 = vrot.slane %v3216, 5
      %v3219 = vor.u32 %v3215, %v3218
      %v3220 = vrot.slane %v3219, 4
      %v3222 = vshll.u32 %v3144, 16
      %v3224 = vrot.slane %v3222, 5
      %v3225 = vsel %vm332, %v3220, %v3224
      %v3226 = vshrl.u32 %v3144, 16
      %v3228 = vrot.slane %v3226, 4
      %v3229 = vor.u32 %v3228, %v3224
      %v3230 = vrot.slane %v3229, 4
      %v3232 = vshll.u32 %v3145, 16
      %v3234 = vrot.slane %v3232, 5
      %v3235 = vsel %vm332, %v3230, %v3234
      %v3237 = vshrl.u32 %v3146, 16
      %v3239 = vrot.slane %v3237, 4
      %v3240 = vshll.u32 %v3146, 16
      %v3242 = vrot.slane %v3240, 5
      %v3243 = vor.u32 %v3239, %v3242
      %v3244 = vrot.slane %v3243, 4
      %v3246 = vshll.u32 %v3147, 16
      %v3248 = vrot.slane %v3246, 5
      %v3249 = vsel %vm332, %v3244, %v3248
      %v3250 = vshrl.u32 %v3147, 16
      %v3252 = vrot.slane %v3250, 4
      %v3253 = vor.u32 %v3252, %v3248
      %v3254 = vrot.slane %v3253, 4
      %v3256 = vshll.u32 %v3148, 16
      %v3258 = vrot.slane %v3256, 5
      %v3259 = vsel %vm332, %v3254, %v3258
      %v3261 = vshrl.u32 %v3149, 16
      %v3263 = vrot.slane %v3261, 4
      %v3264 = vshll.u32 %v3149, 16
      %v3266 = vrot.slane %v3264, 5
      %v3267 = vor.u32 %v3263, %v3266
      %v3268 = vrot.slane %v3267, 4
      %v3270 = vshll.u32 %v3150, 16
      %v3272 = vrot.slane %v3270, 5
      %v3273 = vsel %vm332, %v3268, %v3272
      %v3274 = vshrl.u32 %v3150, 16
      %v3276 = vrot.slane %v3274, 4
      %v3277 = vor.u32 %v3276, %v3272
      %v3278 = vrot.slane %v3277, 4
      %v3280 = vshll.u32 %v3151, 16
      %v3282 = vrot.slane %v3280, 5
      %v3283 = vsel %vm332, %v3278, %v3282
      %v3285 = vshrl.u32 %v3152, 16
      %v3287 = vrot.slane %v3285, 4
      %v3288 = vshll.u32 %v3152, 16
      %v3290 = vrot.slane %v3288, 5
      %v3291 = vor.u32 %v3287, %v3290
      %v3292 = vrot.slane %v3291, 4
      %v3294 = vshll.u32 %v3153, 16
      %v3296 = vrot.slane %v3294, 5
      %v3297 = vsel %vm332, %v3292, %v3296
      %v3298 = vshrl.u32 %v3153, 16
      %v3300 = vrot.slane %v3298, 4
      %v3301 = vor.u32 %v3300, %v3296
      %v3302 = vrot.slane %v3301, 4
      %v3304 = vshll.u32 %v3154, 16
      %v3306 = vrot.slane %v3304, 5
      %v3307 = vsel %vm332, %v3302, %v3306
      %v3309 = vshrl.u32 %v3155, 16
      %v3311 = vrot.slane %v3309, 4
      %v3312 = vshll.u32 %v3155, 16
      %v3314 = vrot.slane %v3312, 5
      %v3315 = vor.u32 %v3311, %v3314
      %v3316 = vrot.slane %v3315, 4
      %v3318 = vshll.u32 %v3156, 16
      %v3320 = vrot.slane %v3318, 5
      %v3321 = vsel %vm332, %v3316, %v3320
      %v3322 = vshrl.u32 %v3156, 16
      %v3324 = vrot.slane %v3322, 4
      %v3325 = vor.u32 %v3324, %v3320
      %v3326 = vrot.slane %v3325, 4
      %v3328 = vshll.u32 %v3157, 16
      %v3330 = vrot.slane %v3328, 5
      %v3331 = vsel %vm332, %v3326, %v3330
      %v3333 = vshrl.u32 %v3158, 16
      %v3335 = vrot.slane %v3333, 4
      %v3336 = vshll.u32 %v3158, 16
      %v3338 = vrot.slane %v3336, 5
      %v3339 = vor.u32 %v3335, %v3338
      %v3340 = vrot.slane %v3339, 4
      %v3342 = vshll.u32 %v3159, 16
      %v3344 = vrot.slane %v3342, 5
      %v3345 = vsel %vm332, %v3340, %v3344
      %v3346 = vshrl.u32 %v3159, 16
      %v3348 = vrot.slane %v3346, 4
      %v3349 = vor.u32 %v3348, %v3344
      %v3350 = vrot.slane %v3349, 4
      %v3352 = vshll.u32 %v3160, 16
      %v3354 = vrot.slane %v3352, 5
      %v3355 = vsel %vm332, %v3350, %v3354
      %v3357 = vshrl.u32 %v3161, 16
      %v3359 = vrot.slane %v3357, 4
      %v3360 = vshll.u32 %v3161, 16
      %v3362 = vrot.slane %v3360, 5
      %v3363 = vor.u32 %v3359, %v3362
      %v3364 = vrot.slane %v3363, 4
      %v3366 = vshll.u32 %v3162, 16
      %v3368 = vrot.slane %v3366, 5
      %v3369 = vsel %vm332, %v3364, %v3368
      %v3370 = vshrl.u32 %v3162, 16
      %v3372 = vrot.slane %v3370, 4
      %v3373 = vor.u32 %v3372, %v3368
      %v3374 = vrot.slane %v3373, 4
      %v3376 = vshll.u32 %v3163, 16
      %v3378 = vrot.slane %v3376, 5
      %v3379 = vsel %vm332, %v3374, %v3378
      %v3381 = vshrl.u32 %v3164, 16
      %v3383 = vrot.slane %v3381, 4
      %v3384 = vshll.u32 %v3164, 16
      %v3386 = vrot.slane %v3384, 5
      %v3387 = vor.u32 %v3383, %v3386
      %v3388 = vrot.slane %v3387, 4
      %v3390 = vshll.u32 %v3165, 16
      %v3392 = vrot.slane %v3390, 5
      %v3393 = vsel %vm332, %v3388, %v3392
      %v3394 = vshrl.u32 %v3165, 16
      %v3396 = vrot.slane %v3394, 4
      %v3397 = vor.u32 %v3396, %v3392
      %v3398 = vrot.slane %v3397, 4
      %v3400 = vshll.u32 %v3166, 16
      %v3402 = vrot.slane %v3400, 5
      %v3403 = vsel %vm332, %v3398, %v3402
      %v3405 = vshrl.u32 %v3167, 16
      %v3407 = vrot.slane %v3405, 4
      %v3408 = vshll.u32 %v3167, 16
      %v3410 = vrot.slane %v3408, 5
      %v3411 = vor.u32 %v3407, %v3410
      %v3412 = vrot.slane %v3411, 4
      %v3414 = vshll.u32 %v3168, 16
      %v3416 = vrot.slane %v3414, 5
      %v3417 = vsel %vm332, %v3412, %v3416
      %v3418 = vshrl.u32 %v3168, 16
      %v3420 = vrot.slane %v3418, 4
      %v3421 = vor.u32 %v3420, %v3416
      %v3422 = vrot.slane %v3421, 4
      %v3424 = vshll.u32 %v3169, 16
      %v3426 = vrot.slane %v3424, 5
      %v3427 = vsel %vm332, %v3422, %v3426
      %v3429 = vshrl.u32 %v3170, 16
      %v3431 = vrot.slane %v3429, 4
      %v3432 = vshll.u32 %v3170, 16
      %v3434 = vrot.slane %v3432, 5
      %v3435 = vor.u32 %v3431, %v3434
      %v3436 = vrot.slane %v3435, 4
      %v3438 = vshll.u32 %v3171, 16
      %v3440 = vrot.slane %v3438, 5
      %v3441 = vsel %vm332, %v3436, %v3440
      %v3442 = vshrl.u32 %v3171, 16
      %v3444 = vrot.slane %v3442, 4
      %v3445 = vor.u32 %v3444, %v3440
      %v3446 = vrot.slane %v3445, 4
      %v3448 = vshll.u32 %v3172, 16
      %v3450 = vrot.slane %v3448, 5
      %v3451 = vsel %vm332, %v3446, %v3450
      %v3453 = vshrl.u32 %v3173, 16
      %v3455 = vrot.slane %v3453, 4
      %v3456 = vshll.u32 %v3173, 16
      %v3458 = vrot.slane %v3456, 5
      %v3459 = vor.u32 %v3455, %v3458
      %v3460 = vrot.slane %v3459, 4
      %v3462 = vshll.u32 %v3174, 16
      %v3464 = vrot.slane %v3462, 5
      %v3465 = vsel %vm332, %v3460, %v3464
      %v3466 = vshrl.u32 %v3174, 16
      %v3468 = vrot.slane %v3466, 4
      %v3469 = vor.u32 %v3468, %v3464
      %v3470 = vrot.slane %v3469, 4
      %v3472 = vshll.u32 %v3175, 16
      %v3474 = vrot.slane %v3472, 5
      %v3475 = vsel %vm332, %v3470, %v3474
      %v3477 = vshrl.u32 %v3176, 16
      %v3479 = vrot.slane %v3477, 4
      %v3480 = vshll.u32 %v3176, 16
      %v3482 = vrot.slane %v3480, 5
      %v3483 = vor.u32 %v3479, %v3482
      %v3484 = vrot.slane %v3483, 4
      %v3486 = vshll.u32 %v3177, 16
      %v3488 = vrot.slane %v3486, 5
      %v3489 = vsel %vm332, %v3484, %v3488
      %v3490 = vshrl.u32 %v3177, 16
      %v3492 = vrot.slane %v3490, 4
      %v3493 = vor.u32 %v3492, %v3488
      %v3494 = vrot.slane %v3493, 4
      %v3496 = vshll.u32 %v3178, 16
      %v3498 = vrot.slane %v3496, 5
      %v3499 = vsel %vm332, %v3494, %v3498
      %v3501 = vshrl.u32 %v3179, 16
      %v3503 = vrot.slane %v3501, 4
      %v3504 = vshll.u32 %v3179, 16
      %v3506 = vrot.slane %v3504, 5
      %v3507 = vor.u32 %v3503, %v3506
      %v3508 = vrot.slane %v3507, 4
      %v3510 = vshll.u32 %v3180, 16
      %v3512 = vrot.slane %v3510, 5
      %v3513 = vsel %vm332, %v3508, %v3512
      %v3514 = vshrl.u32 %v3180, 16
      %v3516 = vrot.slane %v3514, 4
      %v3517 = vor.u32 %v3516, %v3512
      %v3518 = vrot.slane %v3517, 4
      %v3520 = vshll.u32 %v3181, 16
      %v3522 = vrot.slane %v3520, 5
      %v3523 = vsel %vm332, %v3518, %v3522
      %v3525 = vshrl.u32 %v3182, 16
      %v3527 = vrot.slane %v3525, 4
      %v3528 = vshll.u32 %v3182, 16
      %v3530 = vrot.slane %v3528, 5
      %v3531 = vor.u32 %v3527, %v3530
      %v3532 = vrot.slane %v3531, 4
      %v3534 = vshll.u32 %v3183, 16
      %v3536 = vrot.slane %v3534, 5
      %v3537 = vsel %vm332, %v3532, %v3536
      %v3538 = vshrl.u32 %v3183, 16
      %v3540 = vrot.slane %v3538, 4
      %v3541 = vor.u32 %v3540, %v3536
      %v3542 = vrot.slane %v3541, 4
      %v3544 = vshll.u32 %v3184, 16
      %v3546 = vrot.slane %v3544, 5
      %v3547 = vsel %vm332, %v3542, %v3546
      %v3549 = vshrl.u32 %v3185, 16
      %v3551 = vrot.slane %v3549, 4
      %v3552 = vshll.u32 %v3185, 16
      %v3554 = vrot.slane %v3552, 5
      %v3555 = vor.u32 %v3551, %v3554
      %v3556 = vrot.slane %v3555, 4
      %v3558 = vshll.u32 %v3186, 16
      %v3560 = vrot.slane %v3558, 5
      %v3561 = vsel %vm332, %v3556, %v3560
      %v3562 = vshrl.u32 %v3186, 16
      %v3564 = vrot.slane %v3562, 4
      %v3565 = vor.u32 %v3564, %v3560
      %v3566 = vrot.slane %v3565, 4
      %v3568 = vshll.u32 %v3187, 16
      %v3570 = vrot.slane %v3568, 5
      %v3571 = vsel %vm332, %v3566, %v3570
      %s3572 = scalar_lea.vmem %s260, 28
      %v3573 = vld [vmem:[%s3572] sm:$0xf]
      %v3574 = vunpack.c.l.b16 %v3201
      %v3575 = vunpack.c.l.b16 %v3211
      %v3576 = vunpack.c.l.b16 %v3225
      %v3577 = vunpack.c.l.b16 %v3235
      %v3578 = vunpack.c.l.b16 %v3249
      %v3579 = vunpack.c.l.b16 %v3259
      %v3580 = vunpack.c.l.b16 %v3273
      %v3581 = vunpack.c.l.b16 %v3283
      %v3582 = vunpack.c.l.b16 %v3297
      %v3583 = vunpack.c.l.b16 %v3307
      %v3584 = vunpack.c.l.b16 %v3321
      %v3585 = vunpack.c.l.b16 %v3331
      %v3586 = vunpack.c.l.b16 %v3345
      %v3587 = vunpack.c.l.b16 %v3355
      %v3588 = vunpack.c.l.b16 %v3369
      %v3589 = vunpack.c.l.b16 %v3379
      %v3590 = vunpack.c.l.b16 %v3393
      %v3591 = vunpack.c.l.b16 %v3403
      %v3592 = vunpack.c.l.b16 %v3417
      %v3593 = vunpack.c.l.b16 %v3427
      %v3594 = vunpack.c.l.b16 %v3441
      %v3595 = vunpack.c.l.b16 %v3451
      %v3596 = vunpack.c.l.b16 %v3465
      %v3597 = vunpack.c.l.b16 %v3475
      %v3598 = vunpack.c.l.b16 %v3489
      %v3599 = vunpack.c.l.b16 %v3499
      %v3600 = vunpack.c.l.b16 %v3513
      %v3601 = vunpack.c.l.b16 %v3523
      %v3602 = vunpack.c.l.b16 %v3537
      %v3603 = vunpack.c.l.b16 %v3547
      %v3604 = vunpack.c.l.b16 %v3561
      %v3605 = vunpack.c.l.b16 %v3571
      %v3606 = vpack.c.b16 %v3575, %v3574
      %v3607 = vpack.c.b16 %v3577, %v3576
      %v3608 = vpack.c.b16 %v3579, %v3578
      %v3609 = vpack.c.b16 %v3581, %v3580
      %v3610 = vpack.c.b16 %v3583, %v3582
      %v3611 = vpack.c.b16 %v3585, %v3584
      %v3612 = vpack.c.b16 %v3587, %v3586
      %v3613 = vpack.c.b16 %v3589, %v3588
      %v3614 = vpack.c.b16 %v3591, %v3590
      %v3615 = vpack.c.b16 %v3593, %v3592
      %v3616 = vpack.c.b16 %v3595, %v3594
      %v3617 = vpack.c.b16 %v3597, %v3596
      %v3618 = vpack.c.b16 %v3599, %v3598
      %v3619 = vpack.c.b16 %v3601, %v3600
      %v3620 = vpack.c.b16 %v3603, %v3602
      %v3621 = vpack.c.b16 %v3605, %v3604
      %v3623 = vsel %vm767, %v3606, 0
      %v3626 = vsel %vm767, %v3607, 0
      %v3629 = vsel %vm767, %v3608, 0
      %v3632 = vsel %vm767, %v3609, 0
      %v3635 = vsel %vm767, %v3610, 0
      %v3638 = vsel %vm767, %v3611, 0
      %v3641 = vsel %vm767, %v3612, 0
      %v3644 = vsel %vm767, %v3613, 0
      %v3647 = vsel %vm767, %v3614, 0
      %v3650 = vsel %vm767, %v3615, 0
      %v3653 = vsel %vm767, %v3616, 0
      %v3656 = vsel %vm767, %v3617, 0
      %v3659 = vsel %vm767, %v3618, 0
      %v3662 = vsel %vm767, %v3619, 0
      %v3665 = vsel %vm767, %v3620, 0
      %v3668 = vsel %vm767, %v3621, 0
      %v3671 = vsel %vm816, %v3573, 0
      %3673 = vmatpush.bf16.msra.mxu0 0
      %3674 = vmatpush.bf16.msra.mxu0 0
      %3675 = vmatpush.bf16.msra.mxu0 0
      %3676 = vmatpush.bf16.msra.mxu0 0
      %3677 = vmatpush.bf16.msra.mxu0 0
      %3678 = vmatpush.bf16.msra.mxu0 0
      %3679 = vmatpush.bf16.msra.mxu0 0
      %3680 = vmatpush.bf16.msra.mxu0 %v3671
      %3681 = vmatmul.bf16.gmra.mxu0 %v3623
      %v3682 = vpop.f32.mrf.mxu0
      %v3683 = vadd.f32 0.0, %v3682
      %v3684 = vpop.f32.mrf.mxu0
      %v3685 = vadd.f32 0.0, %v3684
      %3686 = vmatmul.bf16.gmra.mxu0 %v3626
      %v3687 = vpop.f32.mrf.mxu0
      %v3688 = vadd.f32 0.0, %v3687
      %v3689 = vpop.f32.mrf.mxu0
      %v3690 = vadd.f32 0.0, %v3689
      %3691 = vmatmul.bf16.gmra.mxu0 %v3629
      %v3692 = vpop.f32.mrf.mxu0
      %v3693 = vadd.f32 0.0, %v3692
      %v3694 = vpop.f32.mrf.mxu0
      %v3695 = vadd.f32 0.0, %v3694
      %3696 = vmatmul.bf16.gmra.mxu0 %v3632
      %v3697 = vpop.f32.mrf.mxu0
      %v3698 = vadd.f32 0.0, %v3697
      %v3699 = vpop.f32.mrf.mxu0
      %v3700 = vadd.f32 0.0, %v3699
      %3701 = vmatmul.bf16.gmra.mxu0 %v3635
      %v3702 = vpop.f32.mrf.mxu0
      %v3703 = vadd.f32 0.0, %v3702
      %v3704 = vpop.f32.mrf.mxu0
      %v3705 = vadd.f32 0.0, %v3704
      %3706 = vmatmul.bf16.gmra.mxu0 %v3638
      %v3707 = vpop.f32.mrf.mxu0
      %v3708 = vadd.f32 0.0, %v3707
      %v3709 = vpop.f32.mrf.mxu0
      %v3710 = vadd.f32 0.0, %v3709
      %3711 = vmatmul.bf16.gmra.mxu0 %v3641
      %v3712 = vpop.f32.mrf.mxu0
      %v3713 = vadd.f32 0.0, %v3712
      %v3714 = vpop.f32.mrf.mxu0
      %v3715 = vadd.f32 0.0, %v3714
      %3716 = vmatmul.bf16.gmra.mxu0 %v3644
      %v3717 = vpop.f32.mrf.mxu0
      %v3718 = vadd.f32 0.0, %v3717
      %v3719 = vpop.f32.mrf.mxu0
      %v3720 = vadd.f32 0.0, %v3719
      %3721 = vmatmul.bf16.gmra.mxu0 %v3647
      %v3722 = vpop.f32.mrf.mxu0
      %v3723 = vadd.f32 0.0, %v3722
      %v3724 = vpop.f32.mrf.mxu0
      %v3725 = vadd.f32 0.0, %v3724
      %3726 = vmatmul.bf16.gmra.mxu0 %v3650
      %v3727 = vpop.f32.mrf.mxu0
      %v3728 = vadd.f32 0.0, %v3727
      %v3729 = vpop.f32.mrf.mxu0
      %v3730 = vadd.f32 0.0, %v3729
      %3731 = vmatmul.bf16.gmra.mxu0 %v3653
      %v3732 = vpop.f32.mrf.mxu0
      %v3733 = vadd.f32 0.0, %v3732
      %v3734 = vpop.f32.mrf.mxu0
      %v3735 = vadd.f32 0.0, %v3734
      %3736 = vmatmul.bf16.gmra.mxu0 %v3656
      %v3737 = vpop.f32.mrf.mxu0
      %v3738 = vadd.f32 0.0, %v3737
      %v3739 = vpop.f32.mrf.mxu0
      %v3740 = vadd.f32 0.0, %v3739
      %3741 = vmatmul.bf16.gmra.mxu0 %v3659
      %v3742 = vpop.f32.mrf.mxu0
      %v3743 = vadd.f32 0.0, %v3742
      %v3744 = vpop.f32.mrf.mxu0
      %v3745 = vadd.f32 0.0, %v3744
      %3746 = vmatmul.bf16.gmra.mxu0 %v3662
      %v3747 = vpop.f32.mrf.mxu0
      %v3748 = vadd.f32 0.0, %v3747
      %v3749 = vpop.f32.mrf.mxu0
      %v3750 = vadd.f32 0.0, %v3749
      %3751 = vmatmul.bf16.gmra.mxu0 %v3665
      %v3752 = vpop.f32.mrf.mxu0
      %v3753 = vadd.f32 0.0, %v3752
      %v3754 = vpop.f32.mrf.mxu0
      %v3755 = vadd.f32 0.0, %v3754
      %3756 = vmatmul.bf16.gmra.mxu0 %v3668
      %v3757 = vpop.f32.mrf.mxu0
      %v3758 = vadd.f32 0.0, %v3757
      %v3759 = vpop.f32.mrf.mxu0
      %v3760 = vadd.f32 0.0, %v3759
      %3761 = vdwg.mxu0
      %v3762 = vadd.f32 %v3108, %v3683
      %v3763 = vadd.f32 %v3109, %v3685
      %v3764 = vadd.f32 %v3110, %v3688
      %v3765 = vadd.f32 %v3111, %v3690
      %v3766 = vadd.f32 %v3112, %v3693
      %v3767 = vadd.f32 %v3113, %v3695
      %v3768 = vadd.f32 %v3114, %v3698
      %v3769 = vadd.f32 %v3115, %v3700
      %v3770 = vadd.f32 %v3116, %v3703
      %v3771 = vadd.f32 %v3117, %v3705
      %v3772 = vadd.f32 %v3118, %v3708
      %v3773 = vadd.f32 %v3119, %v3710
      %v3774 = vadd.f32 %v3120, %v3713
      %v3775 = vadd.f32 %v3121, %v3715
      %v3776 = vadd.f32 %v3122, %v3718
      %v3777 = vadd.f32 %v3123, %v3720
      %v3778 = vadd.f32 %v3124, %v3723
      %v3779 = vadd.f32 %v3125, %v3725
      %v3780 = vadd.f32 %v3126, %v3728
      %v3781 = vadd.f32 %v3127, %v3730
      %v3782 = vadd.f32 %v3128, %v3733
      %v3783 = vadd.f32 %v3129, %v3735
      %v3784 = vadd.f32 %v3130, %v3738
      %v3785 = vadd.f32 %v3131, %v3740
      %v3786 = vadd.f32 %v3132, %v3743
      %v3787 = vadd.f32 %v3133, %v3745
      %v3788 = vadd.f32 %v3134, %v3748
      %v3789 = vadd.f32 %v3135, %v3750
      %v3790 = vadd.f32 %v3136, %v3753
      %v3791 = vadd.f32 %v3137, %v3755
      %v3792 = vadd.f32 %v3138, %v3758
      %v3793 = vadd.f32 %v3139, %v3760
      %v3794 = vld [vmem:[%s2853] sm:$0xe]
      %v3795 = vld [vmem:[%s2853 + $0xc] sm:$0xe]
      %v3796 = vld [vmem:[%s2853 + $0x18] sm:$0xe]
      %v3797 = vld [vmem:[%s2853 + $0x24] sm:$0xe]
      %v3798 = vld [vmem:[%s2853 + $0x30] sm:$0xe]
      %v3799 = vld [vmem:[%s2853 + $0x3c] sm:$0xe]
      %v3800 = vld [vmem:[%s2853 + $0x48] sm:$0xe]
      %v3801 = vld [vmem:[%s2853 + $0x54] sm:$0xe]
      %v3802 = vld [vmem:[%s2853 + $0x60] sm:$0xe]
      %v3803 = vld [vmem:[%s2853 + $0x6c] sm:$0xe]
      %v3804 = vld [vmem:[%s2853 + $0x78] sm:$0xe]
      %v3805 = vld [vmem:[%s2853 + $0x84] sm:$0xe]
      %v3806 = vld [vmem:[%s2853 + $0x90] sm:$0xe]
      %v3807 = vld [vmem:[%s2853 + $0x9c] sm:$0xe]
      %v3808 = vld [vmem:[%s2853 + $0xa8] sm:$0xe]
      %v3809 = vld [vmem:[%s2853 + $0xb4] sm:$0xe]
      %v3858 = vrot.slane %v3794, 5
      %v3859 = vrot.slane %v3858, 4
      %v3860 = vrot.slane %v3141, 5
      %v3861 = vsel %vm1179, %v3859, %v3860
      %v3862 = vrot.slane %v3860, 4
      %v3863 = vrot.slane %v3142, 5
      %v3864 = vsel %vm1179, %v3862, %v3863
      %v3865 = vrot.slane %v3795, 5
      %v3866 = vrot.slane %v3865, 4
      %v3867 = vrot.slane %v3144, 5
      %v3868 = vsel %vm1179, %v3866, %v3867
      %v3869 = vrot.slane %v3867, 4
      %v3870 = vrot.slane %v3145, 5
      %v3871 = vsel %vm1179, %v3869, %v3870
      %v3872 = vrot.slane %v3796, 5
      %v3873 = vrot.slane %v3872, 4
      %v3874 = vrot.slane %v3147, 5
      %v3875 = vsel %vm1179, %v3873, %v3874
      %v3876 = vrot.slane %v3874, 4
      %v3877 = vrot.slane %v3148, 5
      %v3878 = vsel %vm1179, %v3876, %v3877
      %v3879 = vrot.slane %v3797, 5
      %v3880 = vrot.slane %v3879, 4
      %v3881 = vrot.slane %v3150, 5
      %v3882 = vsel %vm1179, %v3880, %v3881
      %v3883 = vrot.slane %v3881, 4
      %v3884 = vrot.slane %v3151, 5
      %v3885 = vsel %vm1179, %v3883, %v3884
      %v3886 = vrot.slane %v3798, 5
      %v3887 = vrot.slane %v3886, 4
      %v3888 = vrot.slane %v3153, 5
      %v3889 = vsel %vm1179, %v3887, %v3888
      %v3890 = vrot.slane %v3888, 4
      %v3891 = vrot.slane %v3154, 5
      %v3892 = vsel %vm1179, %v3890, %v3891
      %v3893 = vrot.slane %v3799, 5
      %v3894 = vrot.slane %v3893, 4
      %v3895 = vrot.slane %v3156, 5
      %v3896 = vsel %vm1179, %v3894, %v3895
      %v3897 = vrot.slane %v3895, 4
      %v3898 = vrot.slane %v3157, 5
      %v3899 = vsel %vm1179, %v3897, %v3898
      %v3900 = vrot.slane %v3800, 5
      %v3901 = vrot.slane %v3900, 4
      %v3902 = vrot.slane %v3159, 5
      %v3903 = vsel %vm1179, %v3901, %v3902
      %v3904 = vrot.slane %v3902, 4
      %v3905 = vrot.slane %v3160, 5
      %v3906 = vsel %vm1179, %v3904, %v3905
      %v3907 = vrot.slane %v3801, 5
      %v3908 = vrot.slane %v3907, 4
      %v3909 = vrot.slane %v3162, 5
      %v3910 = vsel %vm1179, %v3908, %v3909
      %v3911 = vrot.slane %v3909, 4
      %v3912 = vrot.slane %v3163, 5
      %v3913 = vsel %vm1179, %v3911, %v3912
      %v3914 = vrot.slane %v3802, 5
      %v3915 = vrot.slane %v3914, 4
      %v3916 = vrot.slane %v3165, 5
      %v3917 = vsel %vm1179, %v3915, %v3916
      %v3918 = vrot.slane %v3916, 4
      %v3919 = vrot.slane %v3166, 5
      %v3920 = vsel %vm1179, %v3918, %v3919
      %v3921 = vrot.slane %v3803, 5
      %v3922 = vrot.slane %v3921, 4
      %v3923 = vrot.slane %v3168, 5
      %v3924 = vsel %vm1179, %v3922, %v3923
      %v3925 = vrot.slane %v3923, 4
      %v3926 = vrot.slane %v3169, 5
      %v3927 = vsel %vm1179, %v3925, %v3926
      %v3928 = vrot.slane %v3804, 5
      %v3929 = vrot.slane %v3928, 4
      %v3930 = vrot.slane %v3171, 5
      %v3931 = vsel %vm1179, %v3929, %v3930
      %v3932 = vrot.slane %v3930, 4
      %v3933 = vrot.slane %v3172, 5
      %v3934 = vsel %vm1179, %v3932, %v3933
      %v3935 = vrot.slane %v3805, 5
      %v3936 = vrot.slane %v3935, 4
      %v3937 = vrot.slane %v3174, 5
      %v3938 = vsel %vm1179, %v3936, %v3937
      %v3939 = vrot.slane %v3937, 4
      %v3940 = vrot.slane %v3175, 5
      %v3941 = vsel %vm1179, %v3939, %v3940
      %v3942 = vrot.slane %v3806, 5
      %v3943 = vrot.slane %v3942, 4
      %v3944 = vrot.slane %v3177, 5
      %v3945 = vsel %vm1179, %v3943, %v3944
      %v3946 = vrot.slane %v3944, 4
      %v3947 = vrot.slane %v3178, 5
      %v3948 = vsel %vm1179, %v3946, %v3947
      %v3949 = vrot.slane %v3807, 5
      %v3950 = vrot.slane %v3949, 4
      %v3951 = vrot.slane %v3180, 5
      %v3952 = vsel %vm1179, %v3950, %v3951
      %v3953 = vrot.slane %v3951, 4
      %v3954 = vrot.slane %v3181, 5
      %v3955 = vsel %vm1179, %v3953, %v3954
      %v3956 = vrot.slane %v3808, 5
      %v3957 = vrot.slane %v3956, 4
      %v3958 = vrot.slane %v3183, 5
      %v3959 = vsel %vm1179, %v3957, %v3958
      %v3960 = vrot.slane %v3958, 4
      %v3961 = vrot.slane %v3184, 5
      %v3962 = vsel %vm1179, %v3960, %v3961
      %v3963 = vrot.slane %v3809, 5
      %v3964 = vrot.slane %v3963, 4
      %v3965 = vrot.slane %v3186, 5
      %v3966 = vsel %vm1179, %v3964, %v3965
      %v3967 = vrot.slane %v3965, 4
      %v3968 = vrot.slane %v3187, 5
      %v3969 = vsel %vm1179, %v3967, %v3968
      %s3970 = scalar_lea.vmem %s260, 32
      %v3971 = vld [vmem:[%s3970] sm:$0xf]
      %v3972 = vunpack.c.l.b16 %v3861
      %v3973 = vunpack.c.l.b16 %v3864
      %v3974 = vunpack.c.l.b16 %v3868
      %v3975 = vunpack.c.l.b16 %v3871
      %v3976 = vunpack.c.l.b16 %v3875
      %v3977 = vunpack.c.l.b16 %v3878
      %v3978 = vunpack.c.l.b16 %v3882
      %v3979 = vunpack.c.l.b16 %v3885
      %v3980 = vunpack.c.l.b16 %v3889
      %v3981 = vunpack.c.l.b16 %v3892
      %v3982 = vunpack.c.l.b16 %v3896
      %v3983 = vunpack.c.l.b16 %v3899
      %v3984 = vunpack.c.l.b16 %v3903
      %v3985 = vunpack.c.l.b16 %v3906
      %v3986 = vunpack.c.l.b16 %v3910
      %v3987 = vunpack.c.l.b16 %v3913
      %v3988 = vunpack.c.l.b16 %v3917
      %v3989 = vunpack.c.l.b16 %v3920
      %v3990 = vunpack.c.l.b16 %v3924
      %v3991 = vunpack.c.l.b16 %v3927
      %v3992 = vunpack.c.l.b16 %v3931
      %v3993 = vunpack.c.l.b16 %v3934
      %v3994 = vunpack.c.l.b16 %v3938
      %v3995 = vunpack.c.l.b16 %v3941
      %v3996 = vunpack.c.l.b16 %v3945
      %v3997 = vunpack.c.l.b16 %v3948
      %v3998 = vunpack.c.l.b16 %v3952
      %v3999 = vunpack.c.l.b16 %v3955
      %v4000 = vunpack.c.l.b16 %v3959
      %v4001 = vunpack.c.l.b16 %v3962
      %v4002 = vunpack.c.l.b16 %v3966
      %v4003 = vunpack.c.l.b16 %v3969
      %v4004 = vpack.c.b16 %v3973, %v3972
      %v4005 = vpack.c.b16 %v3975, %v3974
      %v4006 = vpack.c.b16 %v3977, %v3976
      %v4007 = vpack.c.b16 %v3979, %v3978
      %v4008 = vpack.c.b16 %v3981, %v3980
      %v4009 = vpack.c.b16 %v3983, %v3982
      %v4010 = vpack.c.b16 %v3985, %v3984
      %v4011 = vpack.c.b16 %v3987, %v3986
      %v4012 = vpack.c.b16 %v3989, %v3988
      %v4013 = vpack.c.b16 %v3991, %v3990
      %v4014 = vpack.c.b16 %v3993, %v3992
      %v4015 = vpack.c.b16 %v3995, %v3994
      %v4016 = vpack.c.b16 %v3997, %v3996
      %v4017 = vpack.c.b16 %v3999, %v3998
      %v4018 = vpack.c.b16 %v4001, %v4000
      %v4019 = vpack.c.b16 %v4003, %v4002
      %v4021 = vsel %vm767, %v4004, 0
      %v4024 = vsel %vm767, %v4005, 0
      %v4027 = vsel %vm767, %v4006, 0
      %v4030 = vsel %vm767, %v4007, 0
      %v4033 = vsel %vm767, %v4008, 0
      %v4036 = vsel %vm767, %v4009, 0
      %v4039 = vsel %vm767, %v4010, 0
      %v4042 = vsel %vm767, %v4011, 0
      %v4045 = vsel %vm767, %v4012, 0
      %v4048 = vsel %vm767, %v4013, 0
      %v4051 = vsel %vm767, %v4014, 0
      %v4054 = vsel %vm767, %v4015, 0
      %v4057 = vsel %vm767, %v4016, 0
      %v4060 = vsel %vm767, %v4017, 0
      %v4063 = vsel %vm767, %v4018, 0
      %v4066 = vsel %vm767, %v4019, 0
      %v4069 = vsel %vm816, %v3971, 0
      %4071 = vmatpush.bf16.msra.mxu0 0
      %4072 = vmatpush.bf16.msra.mxu0 0
      %4073 = vmatpush.bf16.msra.mxu0 0
      %4074 = vmatpush.bf16.msra.mxu0 0
      %4075 = vmatpush.bf16.msra.mxu0 0
      %4076 = vmatpush.bf16.msra.mxu0 0
      %4077 = vmatpush.bf16.msra.mxu0 0
      %4078 = vmatpush.bf16.msra.mxu0 %v4069
      %4079 = vmatmul.bf16.gmra.mxu0 %v4021
      %v4080 = vpop.f32.mrf.mxu0
      %v4081 = vadd.f32 0.0, %v4080
      %v4082 = vpop.f32.mrf.mxu0
      %v4083 = vadd.f32 0.0, %v4082
      %4084 = vmatmul.bf16.gmra.mxu0 %v4024
      %v4085 = vpop.f32.mrf.mxu0
      %v4086 = vadd.f32 0.0, %v4085
      %v4087 = vpop.f32.mrf.mxu0
      %v4088 = vadd.f32 0.0, %v4087
      %4089 = vmatmul.bf16.gmra.mxu0 %v4027
      %v4090 = vpop.f32.mrf.mxu0
      %v4091 = vadd.f32 0.0, %v4090
      %v4092 = vpop.f32.mrf.mxu0
      %v4093 = vadd.f32 0.0, %v4092
      %4094 = vmatmul.bf16.gmra.mxu0 %v4030
      %v4095 = vpop.f32.mrf.mxu0
      %v4096 = vadd.f32 0.0, %v4095
      %v4097 = vpop.f32.mrf.mxu0
      %v4098 = vadd.f32 0.0, %v4097
      %4099 = vmatmul.bf16.gmra.mxu0 %v4033
      %v4100 = vpop.f32.mrf.mxu0
      %v4101 = vadd.f32 0.0, %v4100
      %v4102 = vpop.f32.mrf.mxu0
      %v4103 = vadd.f32 0.0, %v4102
      %4104 = vmatmul.bf16.gmra.mxu0 %v4036
      %v4105 = vpop.f32.mrf.mxu0
      %v4106 = vadd.f32 0.0, %v4105
      %v4107 = vpop.f32.mrf.mxu0
      %v4108 = vadd.f32 0.0, %v4107
      %4109 = vmatmul.bf16.gmra.mxu0 %v4039
      %v4110 = vpop.f32.mrf.mxu0
      %v4111 = vadd.f32 0.0, %v4110
      %v4112 = vpop.f32.mrf.mxu0
      %v4113 = vadd.f32 0.0, %v4112
      %4114 = vmatmul.bf16.gmra.mxu0 %v4042
      %v4115 = vpop.f32.mrf.mxu0
      %v4116 = vadd.f32 0.0, %v4115
      %v4117 = vpop.f32.mrf.mxu0
      %v4118 = vadd.f32 0.0, %v4117
      %4119 = vmatmul.bf16.gmra.mxu0 %v4045
      %v4120 = vpop.f32.mrf.mxu0
      %v4121 = vadd.f32 0.0, %v4120
      %v4122 = vpop.f32.mrf.mxu0
      %v4123 = vadd.f32 0.0, %v4122
      %4124 = vmatmul.bf16.gmra.mxu0 %v4048
      %v4125 = vpop.f32.mrf.mxu0
      %v4126 = vadd.f32 0.0, %v4125
      %v4127 = vpop.f32.mrf.mxu0
      %v4128 = vadd.f32 0.0, %v4127
      %4129 = vmatmul.bf16.gmra.mxu0 %v4051
      %v4130 = vpop.f32.mrf.mxu0
      %v4131 = vadd.f32 0.0, %v4130
      %v4132 = vpop.f32.mrf.mxu0
      %v4133 = vadd.f32 0.0, %v4132
      %4134 = vmatmul.bf16.gmra.mxu0 %v4054
      %v4135 = vpop.f32.mrf.mxu0
      %v4136 = vadd.f32 0.0, %v4135
      %v4137 = vpop.f32.mrf.mxu0
      %v4138 = vadd.f32 0.0, %v4137
      %4139 = vmatmul.bf16.gmra.mxu0 %v4057
      %v4140 = vpop.f32.mrf.mxu0
      %v4141 = vadd.f32 0.0, %v4140
      %v4142 = vpop.f32.mrf.mxu0
      %v4143 = vadd.f32 0.0, %v4142
      %4144 = vmatmul.bf16.gmra.mxu0 %v4060
      %v4145 = vpop.f32.mrf.mxu0
      %v4146 = vadd.f32 0.0, %v4145
      %v4147 = vpop.f32.mrf.mxu0
      %v4148 = vadd.f32 0.0, %v4147
      %4149 = vmatmul.bf16.gmra.mxu0 %v4063
      %v4150 = vpop.f32.mrf.mxu0
      %v4151 = vadd.f32 0.0, %v4150
      %v4152 = vpop.f32.mrf.mxu0
      %v4153 = vadd.f32 0.0, %v4152
      %4154 = vmatmul.bf16.gmra.mxu0 %v4066
      %v4155 = vpop.f32.mrf.mxu0
      %v4156 = vadd.f32 0.0, %v4155
      %v4157 = vpop.f32.mrf.mxu0
      %v4158 = vadd.f32 0.0, %v4157
      %4159 = vdwg.mxu0
      %v4160 = vadd.f32 %v3762, %v4081
      %v4161 = vadd.f32 %v3763, %v4083
      %v4162 = vadd.f32 %v3764, %v4086
      %v4163 = vadd.f32 %v3765, %v4088
      %v4164 = vadd.f32 %v3766, %v4091
      %v4165 = vadd.f32 %v3767, %v4093
      %v4166 = vadd.f32 %v3768, %v4096
      %v4167 = vadd.f32 %v3769, %v4098
      %v4168 = vadd.f32 %v3770, %v4101
      %v4169 = vadd.f32 %v3771, %v4103
      %v4170 = vadd.f32 %v3772, %v4106
      %v4171 = vadd.f32 %v3773, %v4108
      %v4172 = vadd.f32 %v3774, %v4111
      %v4173 = vadd.f32 %v3775, %v4113
      %v4174 = vadd.f32 %v3776, %v4116
      %v4175 = vadd.f32 %v3777, %v4118
      %v4176 = vadd.f32 %v3778, %v4121
      %v4177 = vadd.f32 %v3779, %v4123
      %v4178 = vadd.f32 %v3780, %v4126
      %v4179 = vadd.f32 %v3781, %v4128
      %v4180 = vadd.f32 %v3782, %v4131
      %v4181 = vadd.f32 %v3783, %v4133
      %v4182 = vadd.f32 %v3784, %v4136
      %v4183 = vadd.f32 %v3785, %v4138
      %v4184 = vadd.f32 %v3786, %v4141
      %v4185 = vadd.f32 %v3787, %v4143
      %v4186 = vadd.f32 %v3788, %v4146
      %v4187 = vadd.f32 %v3789, %v4148
      %v4188 = vadd.f32 %v3790, %v4151
      %v4189 = vadd.f32 %v3791, %v4153
      %v4190 = vadd.f32 %v3792, %v4156
      %v4191 = vadd.f32 %v3793, %v4158
      %v4192 = vld [vmem:[%s263] sm:$0x1]
      %v4194 = vperm.slane %v4192, 0
      %v4196 = vadd.f32 %v4160, %v4194
      %v4197 = vadd.f32 %v4161, %v4194
      %v4198 = vadd.f32 %v4162, %v4194
      %v4199 = vadd.f32 %v4163, %v4194
      %v4200 = vadd.f32 %v4164, %v4194
      %v4201 = vadd.f32 %v4165, %v4194
      %v4202 = vadd.f32 %v4166, %v4194
      %v4203 = vadd.f32 %v4167, %v4194
      %v4204 = vadd.f32 %v4168, %v4194
      %v4205 = vadd.f32 %v4169, %v4194
      %v4206 = vadd.f32 %v4170, %v4194
      %v4207 = vadd.f32 %v4171, %v4194
      %v4208 = vadd.f32 %v4172, %v4194
      %v4209 = vadd.f32 %v4173, %v4194
      %v4210 = vadd.f32 %v4174, %v4194
      %v4211 = vadd.f32 %v4175, %v4194
      %v4212 = vadd.f32 %v4176, %v4194
      %v4213 = vadd.f32 %v4177, %v4194
      %v4214 = vadd.f32 %v4178, %v4194
      %v4215 = vadd.f32 %v4179, %v4194
      %v4216 = vadd.f32 %v4180, %v4194
      %v4217 = vadd.f32 %v4181, %v4194
      %v4218 = vadd.f32 %v4182, %v4194
      %v4219 = vadd.f32 %v4183, %v4194
      %v4220 = vadd.f32 %v4184, %v4194
      %v4221 = vadd.f32 %v4185, %v4194
      %v4222 = vadd.f32 %v4186, %v4194
      %v4223 = vadd.f32 %v4187, %v4194
      %v4224 = vadd.f32 %v4188, %v4194
      %v4225 = vadd.f32 %v4189, %v4194
      %v4226 = vadd.f32 %v4190, %v4194
      %v4227 = vadd.f32 %v4191, %v4194
      %v4228 = vld [vmem:[%s271] sm:$0xf]
      %v4229 = vld [vmem:[%s271 + $0x4] sm:$0xf]
      %v4230 = vld [vmem:[%s271 + $0x8] sm:$0xf]
      %v4231 = vld [vmem:[%s271 + $0xc] sm:$0xf]
      %v4232 = vld [vmem:[%s271 + $0x10] sm:$0xf]
      %v4233 = vld [vmem:[%s271 + $0x14] sm:$0xf]
      %v4234 = vld [vmem:[%s271 + $0x18] sm:$0xf]
      %v4235 = vld [vmem:[%s271 + $0x1c] sm:$0xf]
      %v4236 = vld [vmem:[%s271 + $0x20] sm:$0xf]
      %v4237 = vld [vmem:[%s271 + $0x24] sm:$0xf]
      %v4238 = vld [vmem:[%s271 + $0x28] sm:$0xf]
      %v4239 = vld [vmem:[%s271 + $0x2c] sm:$0xf]
      %v4240 = vld [vmem:[%s271 + $0x30] sm:$0xf]
      %v4241 = vld [vmem:[%s271 + $0x34] sm:$0xf]
      %v4242 = vld [vmem:[%s271 + $0x38] sm:$0xf]
      %v4243 = vld [vmem:[%s271 + $0x3c] sm:$0xf]
      %v4244 = vld [vmem:[%s271 + $0x40] sm:$0xf]
      %v4245 = vld [vmem:[%s271 + $0x44] sm:$0xf]
      %v4246 = vld [vmem:[%s271 + $0x48] sm:$0xf]
      %v4247 = vld [vmem:[%s271 + $0x4c] sm:$0xf]
      %v4248 = vld [vmem:[%s271 + $0x50] sm:$0xf]
      %v4249 = vld [vmem:[%s271 + $0x54] sm:$0xf]
      %v4250 = vld [vmem:[%s271 + $0x58] sm:$0xf]
      %v4251 = vld [vmem:[%s271 + $0x5c] sm:$0xf]
      %v4252 = vld [vmem:[%s271 + $0x60] sm:$0xf]
      %v4253 = vld [vmem:[%s271 + $0x64] sm:$0xf]
      %v4254 = vld [vmem:[%s271 + $0x68] sm:$0xf]
      %v4255 = vld [vmem:[%s271 + $0x6c] sm:$0xf]
      %v4256 = vld [vmem:[%s271 + $0x70] sm:$0xf]
      %v4257 = vld [vmem:[%s271 + $0x74] sm:$0xf]
      %v4258 = vld [vmem:[%s271 + $0x78] sm:$0xf]
      %v4259 = vld [vmem:[%s271 + $0x7c] sm:$0xf]
      %v4260 = vunpack.c.l.bf16 %v4228
      %v4261 = vunpack.c.l.bf16 %v4229
      %v4262 = vunpack.c.l.bf16 %v4230
      %v4263 = vunpack.c.l.bf16 %v4231
      %v4264 = vunpack.c.l.bf16 %v4232
      %v4265 = vunpack.c.l.bf16 %v4233
      %v4266 = vunpack.c.l.bf16 %v4234
      %v4267 = vunpack.c.l.bf16 %v4235
      %v4268 = vunpack.c.l.bf16 %v4236
      %v4269 = vunpack.c.l.bf16 %v4237
      %v4270 = vunpack.c.l.bf16 %v4238
      %v4271 = vunpack.c.l.bf16 %v4239
      %v4272 = vunpack.c.l.bf16 %v4240
      %v4273 = vunpack.c.l.bf16 %v4241
      %v4274 = vunpack.c.l.bf16 %v4242
      %v4275 = vunpack.c.l.bf16 %v4243
      %v4276 = vunpack.c.l.bf16 %v4244
      %v4277 = vunpack.c.l.bf16 %v4245
      %v4278 = vunpack.c.l.bf16 %v4246
      %v4279 = vunpack.c.l.bf16 %v4247
      %v4280 = vunpack.c.l.bf16 %v4248
      %v4281 = vunpack.c.l.bf16 %v4249
      %v4282 = vunpack.c.l.bf16 %v4250
      %v4283 = vunpack.c.l.bf16 %v4251
      %v4284 = vunpack.c.l.bf16 %v4252
      %v4285 = vunpack.c.l.bf16 %v4253
      %v4286 = vunpack.c.l.bf16 %v4254
      %v4287 = vunpack.c.l.bf16 %v4255
      %v4288 = vunpack.c.l.bf16 %v4256
      %v4289 = vunpack.c.l.bf16 %v4257
      %v4290 = vunpack.c.l.bf16 %v4258
      %v4291 = vunpack.c.l.bf16 %v4259
      %v4292 = vadd.f32 %v4196, %v4260
      %v4293 = vadd.f32 %v4197, %v4261
      %v4294 = vadd.f32 %v4198, %v4262
      %v4295 = vadd.f32 %v4199, %v4263
      %v4296 = vadd.f32 %v4200, %v4264
      %v4297 = vadd.f32 %v4201, %v4265
      %v4298 = vadd.f32 %v4202, %v4266
      %v4299 = vadd.f32 %v4203, %v4267
      %v4300 = vadd.f32 %v4204, %v4268
      %v4301 = vadd.f32 %v4205, %v4269
      %v4302 = vadd.f32 %v4206, %v4270
      %v4303 = vadd.f32 %v4207, %v4271
      %v4304 = vadd.f32 %v4208, %v4272
      %v4305 = vadd.f32 %v4209, %v4273
      %v4306 = vadd.f32 %v4210, %v4274
      %v4307 = vadd.f32 %v4211, %v4275
      %v4308 = vadd.f32 %v4212, %v4276
      %v4309 = vadd.f32 %v4213, %v4277
      %v4310 = vadd.f32 %v4214, %v4278
      %v4311 = vadd.f32 %v4215, %v4279
      %v4312 = vadd.f32 %v4216, %v4280
      %v4313 = vadd.f32 %v4217, %v4281
      %v4314 = vadd.f32 %v4218, %v4282
      %v4315 = vadd.f32 %v4219, %v4283
      %v4316 = vadd.f32 %v4220, %v4284
      %v4317 = vadd.f32 %v4221, %v4285
      %v4318 = vadd.f32 %v4222, %v4286
      %v4319 = vadd.f32 %v4223, %v4287
      %v4320 = vadd.f32 %v4224, %v4288
      %v4321 = vadd.f32 %v4225, %v4289
      %v4322 = vadd.f32 %v4226, %v4290
      %v4323 = vadd.f32 %v4227, %v4291
      %v4324 = vmax.f32 %v4292, 0.0
      %v4325 = vmax.f32 %v4293, 0.0
      %v4326 = vmax.f32 %v4294, 0.0
      %v4327 = vmax.f32 %v4295, 0.0
      %v4328 = vmax.f32 %v4296, 0.0
      %v4329 = vmax.f32 %v4297, 0.0
      %v4330 = vmax.f32 %v4298, 0.0
      %v4331 = vmax.f32 %v4299, 0.0
      %v4332 = vmax.f32 %v4300, 0.0
      %v4333 = vmax.f32 %v4301, 0.0
      %v4334 = vmax.f32 %v4302, 0.0
      %v4335 = vmax.f32 %v4303, 0.0
      %v4336 = vmax.f32 %v4304, 0.0
      %v4337 = vmax.f32 %v4305, 0.0
      %v4338 = vmax.f32 %v4306, 0.0
      %v4339 = vmax.f32 %v4307, 0.0
      %v4340 = vmax.f32 %v4308, 0.0
      %v4341 = vmax.f32 %v4309, 0.0
      %v4342 = vmax.f32 %v4310, 0.0
      %v4343 = vmax.f32 %v4311, 0.0
      %v4344 = vmax.f32 %v4312, 0.0
      %v4345 = vmax.f32 %v4313, 0.0
      %v4346 = vmax.f32 %v4314, 0.0
      %v4347 = vmax.f32 %v4315, 0.0
      %v4348 = vmax.f32 %v4316, 0.0
      %v4349 = vmax.f32 %v4317, 0.0
      %v4350 = vmax.f32 %v4318, 0.0
      %v4351 = vmax.f32 %v4319, 0.0
      %v4352 = vmax.f32 %v4320, 0.0
      %v4353 = vmax.f32 %v4321, 0.0
      %v4354 = vmax.f32 %v4322, 0.0
      %v4355 = vmax.f32 %v4323, 0.0
      %v4356 = vpack.c.bf16 %v4324, %v4324
      %v4357 = vpack.c.bf16 %v4325, %v4325
      %v4358 = vpack.c.bf16 %v4326, %v4326
      %v4359 = vpack.c.bf16 %v4327, %v4327
      %v4360 = vpack.c.bf16 %v4328, %v4328
      %v4361 = vpack.c.bf16 %v4329, %v4329
      %v4362 = vpack.c.bf16 %v4330, %v4330
      %v4363 = vpack.c.bf16 %v4331, %v4331
      %v4364 = vpack.c.bf16 %v4332, %v4332
      %v4365 = vpack.c.bf16 %v4333, %v4333
      %v4366 = vpack.c.bf16 %v4334, %v4334
      %v4367 = vpack.c.bf16 %v4335, %v4335
      %v4368 = vpack.c.bf16 %v4336, %v4336
      %v4369 = vpack.c.bf16 %v4337, %v4337
      %v4370 = vpack.c.bf16 %v4338, %v4338
      %v4371 = vpack.c.bf16 %v4339, %v4339
      %v4372 = vpack.c.bf16 %v4340, %v4340
      %v4373 = vpack.c.bf16 %v4341, %v4341
      %v4374 = vpack.c.bf16 %v4342, %v4342
      %v4375 = vpack.c.bf16 %v4343, %v4343
      %v4376 = vpack.c.bf16 %v4344, %v4344
      %v4377 = vpack.c.bf16 %v4345, %v4345
      %v4378 = vpack.c.bf16 %v4346, %v4346
      %v4379 = vpack.c.bf16 %v4347, %v4347
      %v4380 = vpack.c.bf16 %v4348, %v4348
      %v4381 = vpack.c.bf16 %v4349, %v4349
      %v4382 = vpack.c.bf16 %v4350, %v4350
      %v4383 = vpack.c.bf16 %v4351, %v4351
      %v4384 = vpack.c.bf16 %v4352, %v4352
      %v4385 = vpack.c.bf16 %v4353, %v4353
      %v4386 = vpack.c.bf16 %v4354, %v4354
      %v4387 = vpack.c.bf16 %v4355, %v4355
      %4388 = vst [vmem:[%s279] sm:$0xf] %v4356
      %4389 = vst [vmem:[%s279 + $0x4] sm:$0xf] %v4357
      %4390 = vst [vmem:[%s279 + $0x8] sm:$0xf] %v4358
      %4391 = vst [vmem:[%s279 + $0xc] sm:$0xf] %v4359
      %4392 = vst [vmem:[%s279 + $0x10] sm:$0xf] %v4360
      %4393 = vst [vmem:[%s279 + $0x14] sm:$0xf] %v4361
      %4394 = vst [vmem:[%s279 + $0x18] sm:$0xf] %v4362
      %4395 = vst [vmem:[%s279 + $0x1c] sm:$0xf] %v4363
      %4396 = vst [vmem:[%s279 + $0x20] sm:$0xf] %v4364
      %4397 = vst [vmem:[%s279 + $0x24] sm:$0xf] %v4365
      %4398 = vst [vmem:[%s279 + $0x28] sm:$0xf] %v4366
      %4399 = vst [vmem:[%s279 + $0x2c] sm:$0xf] %v4367
      %4400 = vst [vmem:[%s279 + $0x30] sm:$0xf] %v4368
      %4401 = vst [vmem:[%s279 + $0x34] sm:$0xf] %v4369
      %4402 = vst [vmem:[%s279 + $0x38] sm:$0xf] %v4370
      %4403 = vst [vmem:[%s279 + $0x3c] sm:$0xf] %v4371
      %4404 = vst [vmem:[%s279 + $0x40] sm:$0xf] %v4372
      %4405 = vst [vmem:[%s279 + $0x44] sm:$0xf] %v4373
      %4406 = vst [vmem:[%s279 + $0x48] sm:$0xf] %v4374
      %4407 = vst [vmem:[%s279 + $0x4c] sm:$0xf] %v4375
      %4408 = vst [vmem:[%s279 + $0x50] sm:$0xf] %v4376
      %4409 = vst [vmem:[%s279 + $0x54] sm:$0xf] %v4377
      %4410 = vst [vmem:[%s279 + $0x58] sm:$0xf] %v4378
      %4411 = vst [vmem:[%s279 + $0x5c] sm:$0xf] %v4379
      %4412 = vst [vmem:[%s279 + $0x60] sm:$0xf] %v4380
      %4413 = vst [vmem:[%s279 + $0x64] sm:$0xf] %v4381
      %4414 = vst [vmem:[%s279 + $0x68] sm:$0xf] %v4382
      %4415 = vst [vmem:[%s279 + $0x6c] sm:$0xf] %v4383
      %4416 = vst [vmem:[%s279 + $0x70] sm:$0xf] %v4384
      %4417 = vst [vmem:[%s279 + $0x74] sm:$0xf] %v4385
      %4418 = vst [vmem:[%s279 + $0x78] sm:$0xf] %v4386
      %4419 = vst [vmem:[%s279 + $0x7c] sm:$0xf] %v4387
      %p4420 = scmp.lt.s32.totalorder %s19, 1
      %s4421 = scalar_select %p4420, %s19, 1
      %p4422 = scmp.lt.s32.totalorder %s20, 0
      %s4423 = scalar_select %p4422, %s20, 0
      %s4424 = smul.addr %s4421, 32
      %s4425 = sadd.s32 %s4423, %s4424
      %s4426 = smul.addr %s4425, 4
      %s4427 = scalar_lea.vmem %s4, %s4426
      // Predicated region
      $region37: #{basic_block_forward.3} parent=35 // pred_check
        %p4428 = pneg %p153
      $region38: #{basic_block_forward.3} parent=35 // pred_check_branch
        %4430 = sbr.rel (%p4428) target = $region40
      $region39: #{basic_block_forward.3} parent=35 // pred_region
        _
      $region40: #{basic_block_forward.3} parent=35 // pred_fallthru
        _
    $region36: #{basic_block_forward.3} parent=5 // pred_fallthru
      _
    %p4431 = scmp.le.s32.totalorder 2, %s10
    // Predicated region
    $region41: #{basic_block_forward.3} parent=5 // pred_check
      %p4432 = pneg %p4431
    $region42: #{basic_block_forward.3} parent=5 // pred_check_branch
      %4434 = sbr.rel (%p4432) target = $region44
    $region43: #{basic_block_forward.3} parent=5 // pred_region
      %s4435 = ssub.s32 %s10, 2
      // Predicated region
      $region45: #{basic_block_forward.3} parent=43 // pred_check
        %p4436 = pneg %p159
      $region46: #{basic_block_forward.3} parent=43 // pred_check_branch
        %4438 = sbr.rel (%p4436) target = $region48
      $region47: #{basic_block_forward.3} parent=43 // pred_region
        %p4439 = scmp.lt.s32.totalorder %s21, 1
        %s4440 = scalar_select %p4439, %s21, 1
        %p4441 = scmp.lt.s32.totalorder %s22, 0
        %s4442 = scalar_select %p4441, %s22, 0
        %s4443 = smul.addr %s4440, 32
        %s4444 = sadd.s32 %s4442, %s4443
        %s4445 = smul.addr %s4444, 4
        %s4446 = scalar_lea.vmem %s4, %s4445
      $region48: #{basic_block_forward.3} parent=43 // pred_fallthru
        _
    $region44: #{basic_block_forward.3} parent=5 // pred_fallthru
      _
  $region6: #{basic_block_forward.3} parent=0 // loop_footer
    %s14 = sadd.s32 1, %s10
  $region7: #{basic_block_forward.3} parent=0 // loop_footer_branch
    %9 = sbr.rel target = $region3
  $region8: #{basic_block_forward.3} parent=0 // loop_exit
    _

</llo_original>
